<compile_context>
chip_gen: v7x
topology: tpu7x:2x2x1
jax: 0.10.0
libtpu: 0.0.40
codegen_flags: <defaults>
</compile_context>

<pallas_src>
import functools

import jax
import jax.numpy as jnp
from jax import lax
from jax.experimental import pallas as pl
from jax.experimental.pallas import tpu as pltpu

# ---------------- config (small synthetic BERT) ----------------
B, S = 2, 16          # batch, sequence length
H = 64                # hidden size
N_HEADS = 2
D_HEAD = H // N_HEADS
INTER = 128           # FFN intermediate size
N_LAYERS = 2
VOCAB = 100
N_TYPES = 2
MAX_POS = 32
NUM_LABELS = 8        # CRF label count (e.g. BIO over several entity types)
LN_EPS = 1e-12


def _layernorm(h, g, b, eps=LN_EPS):
    mu = jnp.mean(h, axis=-1, keepdims=True)
    var = jnp.mean(jnp.square(h - mu), axis=-1, keepdims=True)
    return (h - mu) * lax.rsqrt(var + eps) * g + b


# ---------------- single fused kernel: emb-LN -> encoder layers -> emissions -> CRF ----------------
def _fused_kernel(mask_ref,                      # SMEM scalar-prefetch: [B, S] int32 (0/1)
                  emb_ref, bias_ref,             # [1,S,H], [1,1,S]
                  eg_ref, eb_ref,                # embedding LN gamma/beta [1,H]
                  wq_ref, wk_ref, wv_ref,        # [L, NH, H, Dh]
                  bq_ref, bk_ref, bv_ref,        # [L, NH, 1, Dh]
                  wo_ref, bo_ref,                # [L, NH, Dh, H], [L, 1, H]
                  ln1g_ref, ln1b_ref,            # [L, 1, H]
                  wi_ref, bi_ref,                # [L, H, INTER], [L, 1, INTER]
                  wo2_ref, bo2_ref,              # [L, INTER, H], [L, 1, H]
                  ln2g_ref, ln2b_ref,            # [L, 1, H]
                  emw_ref, embias_ref,           # emission head [H, NL], [1, NL]
                  start_ref, end_ref, transt_ref,  # [1,NL], [1,NL], [NL,NL] (= trans.T)
                  tags_ref):                     # out: [1, 1, S] int32
    b = pl.program_id(0)
    ss = S
    nl = NUM_LABELS
    scale = 1.0 / (D_HEAD ** 0.5)

    # ---- embedding LayerNorm (no fake residual) ----
    x = _layernorm(emb_ref[0], eg_ref[...], eb_ref[...])          # [S, H]
    bias = bias_ref[0]                                            # [1, S] additive key mask

    # ---- encoder layers (static unrolled; weights statically indexed per layer/head) ----
    for l in range(N_LAYERS):
        heads = []
        for hd in range(N_HEADS):
            q = jnp.dot(x, wq_ref[l, hd], preferred_element_type=jnp.float32) + bq_ref[l, hd]
            k = jnp.dot(x, wk_ref[l, hd], preferred_element_type=jnp.float32) + bk_ref[l, hd]
            v = jnp.dot(x, wv_ref[l, hd], preferred_element_type=jnp.float32) + bv_ref[l, hd]
            s = lax.dot_general(q, k, (((1,), (1,)), ((), ())),
                                preferred_element_type=jnp.float32) * scale + bias
            p = jax.nn.softmax(s, axis=-1)
            ctx = jnp.dot(p, v, preferred_element_type=jnp.float32)
            heads.append(jnp.dot(ctx, wo_ref[l, hd], preferred_element_type=jnp.float32))
        attn = functools.reduce(lambda a, c: a + c, heads) + bo_ref[l]

        h1 = _layernorm(attn + x, ln1g_ref[l], ln1b_ref[l])
        inter = jnp.dot(h1, wi_ref[l], preferred_element_type=jnp.float32) + bi_ref[l]
        # TODO(synk): HF BERT default is exact (erf) GELU; tanh approximation used here.
        inter = jax.nn.gelu(inter, approximate=True)
        ffn = jnp.dot(inter, wo2_ref[l], preferred_element_type=jnp.float32) + bo2_ref[l]
        x = _layernorm(ffn + h1, ln2g_ref[l], ln2b_ref[l])

    # ---- emission head (hoisted out of the DP loop; emissions never touch HBM) ----
    em = jnp.dot(x, emw_ref[...], preferred_element_type=jnp.float32) + embias_ref[...]  # [S, NL]

    # ---- Viterbi forward DP (fully unrolled, backpointers kept in registers) ----
    trans_t = transt_ref[...]                                     # [NL, NL]; trans_t[j, i] = trans[i, j]
    lbl_iota = lax.broadcasted_iota(jnp.int32, (1, nl), 1)        # hoisted
    idx3 = lax.broadcasted_iota(jnp.int32, (1, nl, nl), 2)        # hoisted

    score = start_ref[...] + em[0:1, :]                           # [1, NL]
    bps = [None]                                                  # backpointers for t = 1..S-1
    for t in range(1, ss):
        cand = score[:, None, :] + trans_t[None, :, :]            # [1, NL_next, NL_prev]
        best = jnp.max(cand, axis=-1)                             # [1, NL]
        bp = jnp.min(jnp.where(cand >= best[:, :, None], idx3, nl),
                     axis=-1).astype(jnp.int32)                   # first-max tie-break
        bps.append(bp)
        mf = (mask_ref[b, t] > 0).astype(jnp.float32)             # scalar 0/1
        score = score + mf * (best + em[t:t + 1, :] - score)      # masked steps keep old score

    final = score + end_ref[...]                                  # [1, NL]
    fmax = jnp.max(final, axis=-1, keepdims=True)
    tag = jnp.min(jnp.where(final >= fmax, lbl_iota, nl),
                  axis=-1, keepdims=True).astype(jnp.int32)       # [1, 1] last valid tag

    # ---- backtrack (unrolled, integer gather), tags accumulated into one lane-dense row ----
    pos_iota = lax.broadcasted_iota(jnp.int32, (1, ss), 1)

    def put(row, t, tg):
        val = mask_ref[b, t] * tg                                 # padded positions -> 0
        return jnp.where(pos_iota == t, val, row)

    tags_row = put(jnp.zeros((1, ss), jnp.int32), ss - 1, tag)
    for t in range(ss - 2, -1, -1):
        bp_t1 = bps[t + 1]                                        # [1, NL] int32
        prev = jnp.sum(jnp.where(lbl_iota == tag, bp_t1, 0),
                       axis=-1, keepdims=True)                    # bp[t+1][tag], int32
        mi = mask_ref[b, t + 1]                                   # scalar 0/1
        tag = tag + mi * (prev - tag)                             # only advance through valid steps
        tags_row = put(tags_row, t, tag)

    tags_ref[0] = tags_row                                        # single lane-dense store


# ---------------- forward wrapper (embedding gathers + one pallas_call) ----------------
def bert_crf_forward(packed, input_ids, token_type_ids, attention_mask):
    bb, ss = input_ids.shape
    pos_ids = jnp.arange(ss)
    # Embedding table gathers stay in XLA (no clean dense-Pallas equivalent at this size).
    emb = (packed["word_emb"][input_ids]
           + packed["pos_emb"][pos_ids][None, :, :]
           + packed["type_emb"][token_type_ids])                  # [B, S, H]
    bias = ((1.0 - attention_mask.astype(jnp.float32)) * -10000.0)[:, None, :]   # [B,1,S]

    def full(shape):
        n = len(shape)
        return pl.BlockSpec(shape, lambda b, m: (0,) * n)

    grid_spec = pltpu.PrefetchScalarGridSpec(
        num_scalar_prefetch=1,                                    # attention_mask -> SMEM
        grid=(bb,),
        in_specs=[
            pl.BlockSpec((1, ss, H), lambda b, m: (b, 0, 0)),     # embeddings
            pl.BlockSpec((1, 1, ss), lambda b, m: (b, 0, 0)),     # attention bias
            full((1, H)), full((1, H)),                           # emb LN gamma/beta
            full((N_LAYERS, N_HEADS, H, D_HEAD)),                 # wq
            full((N_LAYERS, N_HEADS, H, D_HEAD)),                 # wk
            full((N_LAYERS, N_HEADS, H, D_HEAD)),                 # wv
            full((N_LAYERS, N_HEADS, 1, D_HEAD)),                 # bq
            full((N_LAYERS, N_HEADS, 1, D_HEAD)),                 # bk
            full((N_LAYERS, N_HEADS, 1, D_HEAD)),                 # bv
            full((N_LAYERS, N_HEADS, D_HEAD, H)),                 # wo
            full((N_LAYERS, 1, H)),                               # bo
            full((N_LAYERS, 1, H)), full((N_LAYERS, 1, H)),       # ln1 gamma/beta
            full((N_LAYERS, H, INTER)), full((N_LAYERS, 1, INTER)),  # wi, bi
            full((N_LAYERS, INTER, H)), full((N_LAYERS, 1, H)),   # wo2, bo2
            full((N_LAYERS, 1, H)), full((N_LAYERS, 1, H)),       # ln2 gamma/beta
            full((H, NUM_LABELS)), full((1, NUM_LABELS)),         # emission W, b
            full((1, NUM_LABELS)), full((1, NUM_LABELS)),         # crf start, end
            full((NUM_LABELS, NUM_LABELS)),                       # trans.T
        ],
        out_specs=pl.BlockSpec((1, 1, ss), lambda b, m: (b, 0, 0)),
    )

    tags = pl.pallas_call(
        _fused_kernel,
        grid_spec=grid_spec,
        out_shape=jax.ShapeDtypeStruct((bb, 1, ss), jnp.int32),
        compiler_params=pltpu.CompilerParams(dimension_semantics=("parallel",)),
    )(attention_mask.astype(jnp.int32),
      emb, bias,
      packed["emb_ln_g"], packed["emb_ln_b"],
      packed["wq"], packed["wk"], packed["wv"],
      packed["bq"], packed["bk"], packed["bv"],
      packed["wo"], packed["bo"], packed["ln1_g"], packed["ln1_b"],
      packed["wi"], packed["bi"], packed["wo2"], packed["bo2"],
      packed["ln2_g"], packed["ln2_b"],
      packed["ffn_w"], packed["ffn_b"],
      packed["crf_start"], packed["crf_end"], packed["crf_trans_t"])
    return tags[:, 0, :]                                          # [B, S]


# ---------------- deterministic parameter init + one-time packing ----------------
def init_params(key):
    def normal(k, shape, scale=0.02):
        return scale * jax.random.normal(k, shape, dtype=jnp.float32)

    keys = jax.random.split(key, 7 + N_LAYERS)
    params = {
        "word_emb": normal(keys[0], (VOCAB, H)),
        "pos_emb": normal(keys[1], (MAX_POS, H)),
        "type_emb": normal(keys[2], (N_TYPES, H)),
        "emb_ln_g": jnp.ones((H,), jnp.float32),
        "emb_ln_b": jnp.zeros((H,), jnp.float32),
        "ffn_w": normal(keys[3], (H, NUM_LABELS)),
        "ffn_b": jnp.zeros((NUM_LABELS,), jnp.float32),
        "crf_start": 0.1 * jax.random.normal(keys[4], (NUM_LABELS,), dtype=jnp.float32),
        "crf_end": 0.1 * jax.random.normal(keys[5], (NUM_LABELS,), dtype=jnp.float32),
        "crf_trans": 0.1 * jax.random.normal(keys[6], (NUM_LABELS, NUM_LABELS), dtype=jnp.float32),
        "layers": [],
    }
    for i in range(N_LAYERS):
        lk = jax.random.split(keys[7 + i], 6)
        params["layers"].append({
            "wq": normal(lk[0], (H, H)), "bq": jnp.zeros((H,), jnp.float32),
            "wk": normal(lk[1], (H, H)), "bk": jnp.zeros((H,), jnp.float32),
            "wv": normal(lk[2], (H, H)), "bv": jnp.zeros((H,), jnp.float32),
            "wo": normal(lk[3], (H, H)), "bo": jnp.zeros((H,), jnp.float32),
            "ln1_g": jnp.ones((H,), jnp.float32), "ln1_b": jnp.zeros((H,), jnp.float32),
            "wi": normal(lk[4], (H, INTER)), "bi": jnp.zeros((INTER,), jnp.float32),
            "wo2": normal(lk[5], (INTER, H)), "bo2": jnp.zeros((H,), jnp.float32),
            "ln2_g": jnp.ones((H,), jnp.float32), "ln2_b": jnp.zeros((H,), jnp.float32),
        })
    return params


def pack_params(p):
    """One-time repack: stack per-layer weights and pre-split heads (no per-forward concats)."""
    def stack(name):
        return jnp.stack([lyr[name] for lyr in p["layers"]])

    return {
        "word_emb": p["word_emb"], "pos_emb": p["pos_emb"], "type_emb": p["type_emb"],
        "emb_ln_g": p["emb_ln_g"].reshape(1, H),
        "emb_ln_b": p["emb_ln_b"].reshape(1, H),
        # per-head input-projection columns: w[:, h*Dh:(h+1)*Dh]  ->  [L, NH, H, Dh]
        "wq": stack("wq").reshape(N_LAYERS, H, N_HEADS, D_HEAD).transpose(0, 2, 1, 3),
        "wk": stack("wk").reshape(N_LAYERS, H, N_HEADS, D_HEAD).transpose(0, 2, 1, 3),
        "wv": stack("wv").reshape(N_LAYERS, H, N_HEADS, D_HEAD).transpose(0, 2, 1, 3),
        "bq": stack("bq").reshape(N_LAYERS, N_HEADS, 1, D_HEAD),
        "bk": stack("bk").reshape(N_LAYERS, N_HEADS, 1, D_HEAD),
        "bv": stack("bv").reshape(N_LAYERS, N_HEADS, 1, D_HEAD),
        # per-head output-projection rows: wo[h*Dh:(h+1)*Dh, :]  ->  [L, NH, Dh, H]
        "wo": stack("wo").reshape(N_LAYERS, N_HEADS, D_HEAD, H),
        "bo": stack("bo").reshape(N_LAYERS, 1, H),
        "ln1_g": stack("ln1_g").reshape(N_LAYERS, 1, H),
        "ln1_b": stack("ln1_b").reshape(N_LAYERS, 1, H),
        "wi": stack("wi"),
        "bi": stack("bi").reshape(N_LAYERS, 1, INTER),
        "wo2": stack("wo2"),
        "bo2": stack("bo2").reshape(N_LAYERS, 1, H),
        "ln2_g": stack("ln2_g").reshape(N_LAYERS, 1, H),
        "ln2_b": stack("ln2_b").reshape(N_LAYERS, 1, H),
        "ffn_w": p["ffn_w"],
        "ffn_b": p["ffn_b"].reshape(1, NUM_LABELS),
        "crf_start": p["crf_start"].reshape(1, NUM_LABELS),
        "crf_end": p["crf_end"].reshape(1, NUM_LABELS),
        "crf_trans_t": p["crf_trans"].T,
    }


if __name__ == "__main__":
    key = jax.random.PRNGKey(0)
    kp, kid = jax.random.split(key)
    params = init_params(kp)
    packed = pack_params(params)

    input_ids = jax.random.randint(kid, (B, S), 0, VOCAB, dtype=jnp.int32)
    token_type_ids = jnp.zeros((B, S), jnp.int32)
    attention_mask = jnp.stack([
        jnp.ones((S,), jnp.int32),
        jnp.concatenate([jnp.ones((10,), jnp.int32), jnp.zeros((S - 10,), jnp.int32)]),
    ], axis=0)                                                    # second sequence is padded

    tags = jax.jit(bert_crf_forward)(packed, input_ids, token_type_ids, attention_mask)
    jax.block_until_ready(tags)
    assert tags.shape == (B, S)
    print("KERNEL_OK")
</pallas_src>

<mosaic_0001>
module attributes {stable_mosaic.version = 11 : i64} {
  func.func @_fused_kernel(%arg0: i32, %arg1: memref<2x16xi32, #tpu.memory_space<smem>>, %arg2: memref<1x16x64xf32, #tpu.memory_space<vmem>>, %arg3: memref<1x1x16xf32, #tpu.memory_space<vmem>>, %arg4: memref<1x64xf32, #tpu.memory_space<vmem>>, %arg5: memref<1x64xf32, #tpu.memory_space<vmem>>, %arg6: memref<2x2x64x32xf32, #tpu.memory_space<vmem>>, %arg7: memref<2x2x64x32xf32, #tpu.memory_space<vmem>>, %arg8: memref<2x2x64x32xf32, #tpu.memory_space<vmem>>, %arg9: memref<2x2x1x32xf32, #tpu.memory_space<vmem>>, %arg10: memref<2x2x1x32xf32, #tpu.memory_space<vmem>>, %arg11: memref<2x2x1x32xf32, #tpu.memory_space<vmem>>, %arg12: memref<2x2x32x64xf32, #tpu.memory_space<vmem>>, %arg13: memref<2x1x64xf32, #tpu.memory_space<vmem>>, %arg14: memref<2x1x64xf32, #tpu.memory_space<vmem>>, %arg15: memref<2x1x64xf32, #tpu.memory_space<vmem>>, %arg16: memref<2x64x128xf32, #tpu.memory_space<vmem>>, %arg17: memref<2x1x128xf32, #tpu.memory_space<vmem>>, %arg18: memref<2x128x64xf32, #tpu.memory_space<vmem>>, %arg19: memref<2x1x64xf32, #tpu.memory_space<vmem>>, %arg20: memref<2x1x64xf32, #tpu.memory_space<vmem>>, %arg21: memref<2x1x64xf32, #tpu.memory_space<vmem>>, %arg22: memref<64x8xf32, #tpu.memory_space<vmem>>, %arg23: memref<1x8xf32, #tpu.memory_space<vmem>>, %arg24: memref<1x8xf32, #tpu.memory_space<vmem>>, %arg25: memref<1x8xf32, #tpu.memory_space<vmem>>, %arg26: memref<8x8xf32, #tpu.memory_space<vmem>>, %arg27: memref<1x1x16xi32, #tpu.memory_space<vmem>>) attributes {dimension_semantics = [#tpu.dimension_semantics<parallel>], iteration_bounds = array<i64: 2>, scalar_prefetch = 1 : i64, scratch_operands = 0 : i64, tpu.core_type = #tpu.core_type<tc>, window_params = [{transform_indices = @transform_0, window_bounds = array<i64: 1, 16, 64>}, {transform_indices = @transform_1, window_bounds = array<i64: 1, 1, 16>}, {pipeline_mode = #tpu.pipeline_mode<synchronous>, transform_indices = @transform_2, window_bounds = array<i64: 1, 64>}, {pipeline_mode = #tpu.pipeline_mode<synchronous>, transform_indices = @transform_3, window_bounds = array<i64: 1, 64>}, {pipeline_mode = #tpu.pipeline_mode<synchronous>, transform_indices = @transform_4, window_bounds = array<i64: 2, 2, 64, 32>}, {pipeline_mode = #tpu.pipeline_mode<synchronous>, transform_indices = @transform_5, window_bounds = array<i64: 2, 2, 64, 32>}, {pipeline_mode = #tpu.pipeline_mode<synchronous>, transform_indices = @transform_6, window_bounds = array<i64: 2, 2, 64, 32>}, {pipeline_mode = #tpu.pipeline_mode<synchronous>, transform_indices = @transform_7, window_bounds = array<i64: 2, 2, 1, 32>}, {pipeline_mode = #tpu.pipeline_mode<synchronous>, transform_indices = @transform_8, window_bounds = array<i64: 2, 2, 1, 32>}, {pipeline_mode = #tpu.pipeline_mode<synchronous>, transform_indices = @transform_9, window_bounds = array<i64: 2, 2, 1, 32>}, {pipeline_mode = #tpu.pipeline_mode<synchronous>, transform_indices = @transform_10, window_bounds = array<i64: 2, 2, 32, 64>}, {pipeline_mode = #tpu.pipeline_mode<synchronous>, transform_indices = @transform_11, window_bounds = array<i64: 2, 1, 64>}, {pipeline_mode = #tpu.pipeline_mode<synchronous>, transform_indices = @transform_12, window_bounds = array<i64: 2, 1, 64>}, {pipeline_mode = #tpu.pipeline_mode<synchronous>, transform_indices = @transform_13, window_bounds = array<i64: 2, 1, 64>}, {pipeline_mode = #tpu.pipeline_mode<synchronous>, transform_indices = @transform_14, window_bounds = array<i64: 2, 64, 128>}, {pipeline_mode = #tpu.pipeline_mode<synchronous>, transform_indices = @transform_15, window_bounds = array<i64: 2, 1, 128>}, {pipeline_mode = #tpu.pipeline_mode<synchronous>, transform_indices = @transform_16, window_bounds = array<i64: 2, 128, 64>}, {pipeline_mode = #tpu.pipeline_mode<synchronous>, transform_indices = @transform_17, window_bounds = array<i64: 2, 1, 64>}, {pipeline_mode = #tpu.pipeline_mode<synchronous>, transform_indices = @transform_18, window_bounds = array<i64: 2, 1, 64>}, {pipeline_mode = #tpu.pipeline_mode<synchronous>, transform_indices = @transform_19, window_bounds = array<i64: 2, 1, 64>}, {pipeline_mode = #tpu.pipeline_mode<synchronous>, transform_indices = @transform_20, window_bounds = array<i64: 64, 8>}, {pipeline_mode = #tpu.pipeline_mode<synchronous>, transform_indices = @transform_21, window_bounds = array<i64: 1, 8>}, {pipeline_mode = #tpu.pipeline_mode<synchronous>, transform_indices = @transform_22, window_bounds = array<i64: 1, 8>}, {pipeline_mode = #tpu.pipeline_mode<synchronous>, transform_indices = @transform_23, window_bounds = array<i64: 1, 8>}, {pipeline_mode = #tpu.pipeline_mode<synchronous>, transform_indices = @transform_24, window_bounds = array<i64: 8, 8>}, {transform_indices = @transform_25, window_bounds = array<i64: 1, 1, 16>}]} {
    %c0 = arith.constant 0 : index
    %c0_0 = arith.constant 0 : index
    %c0_1 = arith.constant 0 : index
    %0 = vector.load %arg2[%c0, %c0_0, %c0_1] : memref<1x16x64xf32, #tpu.memory_space<vmem>>, vector<1x16x64xf32>
    %1 = vector.shape_cast %0 : vector<1x16x64xf32> to vector<16x64xf32>
    %c0_2 = arith.constant 0 : index
    %c0_3 = arith.constant 0 : index
    %2 = vector.load %arg4[%c0_2, %c0_3] : memref<1x64xf32, #tpu.memory_space<vmem>>, vector<1x64xf32>
    %c0_4 = arith.constant 0 : index
    %c0_5 = arith.constant 0 : index
    %3 = vector.load %arg5[%c0_4, %c0_5] : memref<1x64xf32, #tpu.memory_space<vmem>>, vector<1x64xf32>
    %cst = arith.constant dense<0.000000e+00> : vector<16xf32>
    %4 = vector.multi_reduction <add>, %1, %cst [1] : vector<16x64xf32> to vector<16xf32>
    %5 = vector.shape_cast %4 : vector<16xf32> to vector<16x1xf32>
    %cst_6 = arith.constant 6.400000e+01 : f32
    %6 = vector.broadcast %cst_6 : f32 to vector<16x1xf32>
    %7 = arith.divf %5, %6 : vector<16x1xf32>
    %8 = vector.broadcast %7 : vector<16x1xf32> to vector<16x64xf32>
    %9 = arith.subf %1, %8 : vector<16x64xf32>
    %10 = arith.mulf %9, %9 : vector<16x64xf32>
    %cst_7 = arith.constant dense<0.000000e+00> : vector<16xf32>
    %11 = vector.multi_reduction <add>, %10, %cst_7 [1] : vector<16x64xf32> to vector<16xf32>
    %12 = vector.shape_cast %11 : vector<16xf32> to vector<16x1xf32>
    %cst_8 = arith.constant 6.400000e+01 : f32
    %13 = vector.broadcast %cst_8 : f32 to vector<16x1xf32>
    %14 = arith.divf %12, %13 : vector<16x1xf32>
    %15 = vector.broadcast %7 : vector<16x1xf32> to vector<16x64xf32>
    %16 = arith.subf %1, %15 : vector<16x64xf32>
    %cst_9 = arith.constant 9.99999996E-13 : f32
    %17 = vector.broadcast %cst_9 : f32 to vector<16x1xf32>
    %18 = arith.addf %14, %17 : vector<16x1xf32>
    %19 = math.rsqrt %18 : vector<16x1xf32>
    %20 = vector.broadcast %19 : vector<16x1xf32> to vector<16x64xf32>
    %21 = arith.mulf %16, %20 : vector<16x64xf32>
    %22 = vector.broadcast %2 : vector<1x64xf32> to vector<16x64xf32>
    %23 = arith.mulf %21, %22 : vector<16x64xf32>
    %24 = vector.broadcast %3 : vector<1x64xf32> to vector<16x64xf32>
    %25 = arith.addf %23, %24 : vector<16x64xf32>
    %c0_10 = arith.constant 0 : index
    %c0_11 = arith.constant 0 : index
    %c0_12 = arith.constant 0 : index
    %26 = vector.load %arg3[%c0_10, %c0_11, %c0_12] : memref<1x1x16xf32, #tpu.memory_space<vmem>>, vector<1x1x16xf32>
    %27 = vector.shape_cast %26 : vector<1x1x16xf32> to vector<1x16xf32>
    %c0_13 = arith.constant 0 : index
    %c0_14 = arith.constant 0 : index
    %c0_15 = arith.constant 0 : index
    %c0_16 = arith.constant 0 : index
    %28 = vector.load %arg6[%c0_13, %c0_14, %c0_15, %c0_16] : memref<2x2x64x32xf32, #tpu.memory_space<vmem>>, vector<1x1x64x32xf32>
    %29 = vector.shape_cast %28 : vector<1x1x64x32xf32> to vector<64x32xf32>
    %cst_17 = arith.constant dense<0.000000e+00> : vector<16x32xf32>
    %30 = tpu.matmul %25, %29, %cst_17 {dimension_numbers = #tpu.dot_dimension_numbers<[1], [0], [0], [1], [0, 0, 1, 1], [], []>} : vector<16x64xf32>, vector<64x32xf32>, vector<16x32xf32> -> vector<16x32xf32>
    %c0_18 = arith.constant 0 : index
    %c0_19 = arith.constant 0 : index
    %c0_20 = arith.constant 0 : index
    %c0_21 = arith.constant 0 : index
    %31 = vector.load %arg9[%c0_18, %c0_19, %c0_20, %c0_21] : memref<2x2x1x32xf32, #tpu.memory_space<vmem>>, vector<1x1x1x32xf32>
    %32 = vector.shape_cast %31 : vector<1x1x1x32xf32> to vector<1x32xf32>
    %33 = vector.broadcast %32 : vector<1x32xf32> to vector<16x32xf32>
    %34 = arith.addf %30, %33 : vector<16x32xf32>
    %c0_22 = arith.constant 0 : index
    %c0_23 = arith.constant 0 : index
    %c0_24 = arith.constant 0 : index
    %c0_25 = arith.constant 0 : index
    %35 = vector.load %arg7[%c0_22, %c0_23, %c0_24, %c0_25] : memref<2x2x64x32xf32, #tpu.memory_space<vmem>>, vector<1x1x64x32xf32>
    %36 = vector.shape_cast %35 : vector<1x1x64x32xf32> to vector<64x32xf32>
    %cst_26 = arith.constant dense<0.000000e+00> : vector<16x32xf32>
    %37 = tpu.matmul %25, %36, %cst_26 {dimension_numbers = #tpu.dot_dimension_numbers<[1], [0], [0], [1], [0, 0, 1, 1], [], []>} : vector<16x64xf32>, vector<64x32xf32>, vector<16x32xf32> -> vector<16x32xf32>
    %c0_27 = arith.constant 0 : index
    %c0_28 = arith.constant 0 : index
    %c0_29 = arith.constant 0 : index
    %c0_30 = arith.constant 0 : index
    %38 = vector.load %arg10[%c0_27, %c0_28, %c0_29, %c0_30] : memref<2x2x1x32xf32, #tpu.memory_space<vmem>>, vector<1x1x1x32xf32>
    %39 = vector.shape_cast %38 : vector<1x1x1x32xf32> to vector<1x32xf32>
    %40 = vector.broadcast %39 : vector<1x32xf32> to vector<16x32xf32>
    %41 = arith.addf %37, %40 : vector<16x32xf32>
    %c0_31 = arith.constant 0 : index
    %c0_32 = arith.constant 0 : index
    %c0_33 = arith.constant 0 : index
    %c0_34 = arith.constant 0 : index
    %42 = vector.load %arg8[%c0_31, %c0_32, %c0_33, %c0_34] : memref<2x2x64x32xf32, #tpu.memory_space<vmem>>, vector<1x1x64x32xf32>
    %43 = vector.shape_cast %42 : vector<1x1x64x32xf32> to vector<64x32xf32>
    %cst_35 = arith.constant dense<0.000000e+00> : vector<16x32xf32>
    %44 = tpu.matmul %25, %43, %cst_35 {dimension_numbers = #tpu.dot_dimension_numbers<[1], [0], [0], [1], [0, 0, 1, 1], [], []>} : vector<16x64xf32>, vector<64x32xf32>, vector<16x32xf32> -> vector<16x32xf32>
    %c0_36 = arith.constant 0 : index
    %c0_37 = arith.constant 0 : index
    %c0_38 = arith.constant 0 : index
    %c0_39 = arith.constant 0 : index
    %45 = vector.load %arg11[%c0_36, %c0_37, %c0_38, %c0_39] : memref<2x2x1x32xf32, #tpu.memory_space<vmem>>, vector<1x1x1x32xf32>
    %46 = vector.shape_cast %45 : vector<1x1x1x32xf32> to vector<1x32xf32>
    %47 = vector.broadcast %46 : vector<1x32xf32> to vector<16x32xf32>
    %48 = arith.addf %44, %47 : vector<16x32xf32>
    %cst_40 = arith.constant dense<0.000000e+00> : vector<16x16xf32>
    %49 = tpu.matmul %34, %41, %cst_40 {dimension_numbers = #tpu.dot_dimension_numbers<[1], [1], [0], [0], [0, 0, 1, 0], [], []>} : vector<16x32xf32>, vector<16x32xf32>, vector<16x16xf32> -> vector<16x16xf32>
    %cst_41 = arith.constant 0.176776692 : f32
    %50 = vector.broadcast %cst_41 : f32 to vector<16x16xf32>
    %51 = arith.mulf %49, %50 : vector<16x16xf32>
    %52 = vector.broadcast %27 : vector<1x16xf32> to vector<16x16xf32>
    %53 = arith.addf %51, %52 : vector<16x16xf32>
    %cst_42 = arith.constant dense<0xFF800000> : vector<16xf32>
    %54 = vector.multi_reduction <maximumf>, %53, %cst_42 [1] : vector<16x16xf32> to vector<16xf32>
    %cst_43 = arith.constant 0xFF800000 : f32
    %55 = vector.broadcast %cst_43 : f32 to vector<16xf32>
    %56 = arith.maximumf %55, %54 : vector<16xf32>
    %57 = vector.shape_cast %56 : vector<16xf32> to vector<16x1xf32>
    %58 = vector.broadcast %57 : vector<16x1xf32> to vector<16x16xf32>
    %59 = arith.subf %53, %58 : vector<16x16xf32>
    %60 = math.exp %59 : vector<16x16xf32>
    %cst_44 = arith.constant dense<0.000000e+00> : vector<16xf32>
    %61 = vector.multi_reduction <add>, %60, %cst_44 [1] : vector<16x16xf32> to vector<16xf32>
    %62 = vector.shape_cast %61 : vector<16xf32> to vector<16x1xf32>
    %63 = vector.broadcast %62 : vector<16x1xf32> to vector<16x16xf32>
    %64 = arith.divf %60, %63 : vector<16x16xf32>
    %cst_45 = arith.constant dense<0.000000e+00> : vector<16x32xf32>
    %65 = tpu.matmul %64, %48, %cst_45 {dimension_numbers = #tpu.dot_dimension_numbers<[1], [0], [0], [1], [0, 0, 1, 1], [], []>} : vector<16x16xf32>, vector<16x32xf32>, vector<16x32xf32> -> vector<16x32xf32>
    %c0_46 = arith.constant 0 : index
    %c0_47 = arith.constant 0 : index
    %c0_48 = arith.constant 0 : index
    %c0_49 = arith.constant 0 : index
    %66 = vector.load %arg12[%c0_46, %c0_47, %c0_48, %c0_49] : memref<2x2x32x64xf32, #tpu.memory_space<vmem>>, vector<1x1x32x64xf32>
    %67 = vector.shape_cast %66 : vector<1x1x32x64xf32> to vector<32x64xf32>
    %cst_50 = arith.constant dense<0.000000e+00> : vector<16x64xf32>
    %68 = tpu.matmul %65, %67, %cst_50 {dimension_numbers = #tpu.dot_dimension_numbers<[1], [0], [0], [1], [0, 0, 1, 1], [], []>} : vector<16x32xf32>, vector<32x64xf32>, vector<16x64xf32> -> vector<16x64xf32>
    %c0_51 = arith.constant 0 : index
    %c1 = arith.constant 1 : index
    %c0_52 = arith.constant 0 : index
    %c0_53 = arith.constant 0 : index
    %69 = vector.load %arg6[%c0_51, %c1, %c0_52, %c0_53] : memref<2x2x64x32xf32, #tpu.memory_space<vmem>>, vector<1x1x64x32xf32>
    %70 = vector.shape_cast %69 : vector<1x1x64x32xf32> to vector<64x32xf32>
    %cst_54 = arith.constant dense<0.000000e+00> : vector<16x32xf32>
    %71 = tpu.matmul %25, %70, %cst_54 {dimension_numbers = #tpu.dot_dimension_numbers<[1], [0], [0], [1], [0, 0, 1, 1], [], []>} : vector<16x64xf32>, vector<64x32xf32>, vector<16x32xf32> -> vector<16x32xf32>
    %c0_55 = arith.constant 0 : index
    %c1_56 = arith.constant 1 : index
    %c0_57 = arith.constant 0 : index
    %c0_58 = arith.constant 0 : index
    %72 = vector.load %arg9[%c0_55, %c1_56, %c0_57, %c0_58] : memref<2x2x1x32xf32, #tpu.memory_space<vmem>>, vector<1x1x1x32xf32>
    %73 = vector.shape_cast %72 : vector<1x1x1x32xf32> to vector<1x32xf32>
    %74 = vector.broadcast %73 : vector<1x32xf32> to vector<16x32xf32>
    %75 = arith.addf %71, %74 : vector<16x32xf32>
    %c0_59 = arith.constant 0 : index
    %c1_60 = arith.constant 1 : index
    %c0_61 = arith.constant 0 : index
    %c0_62 = arith.constant 0 : index
    %76 = vector.load %arg7[%c0_59, %c1_60, %c0_61, %c0_62] : memref<2x2x64x32xf32, #tpu.memory_space<vmem>>, vector<1x1x64x32xf32>
    %77 = vector.shape_cast %76 : vector<1x1x64x32xf32> to vector<64x32xf32>
    %cst_63 = arith.constant dense<0.000000e+00> : vector<16x32xf32>
    %78 = tpu.matmul %25, %77, %cst_63 {dimension_numbers = #tpu.dot_dimension_numbers<[1], [0], [0], [1], [0, 0, 1, 1], [], []>} : vector<16x64xf32>, vector<64x32xf32>, vector<16x32xf32> -> vector<16x32xf32>
    %c0_64 = arith.constant 0 : index
    %c1_65 = arith.constant 1 : index
    %c0_66 = arith.constant 0 : index
    %c0_67 = arith.constant 0 : index
    %79 = vector.load %arg10[%c0_64, %c1_65, %c0_66, %c0_67] : memref<2x2x1x32xf32, #tpu.memory_space<vmem>>, vector<1x1x1x32xf32>
    %80 = vector.shape_cast %79 : vector<1x1x1x32xf32> to vector<1x32xf32>
    %81 = vector.broadcast %80 : vector<1x32xf32> to vector<16x32xf32>
    %82 = arith.addf %78, %81 : vector<16x32xf32>
    %c0_68 = arith.constant 0 : index
    %c1_69 = arith.constant 1 : index
    %c0_70 = arith.constant 0 : index
    %c0_71 = arith.constant 0 : index
    %83 = vector.load %arg8[%c0_68, %c1_69, %c0_70, %c0_71] : memref<2x2x64x32xf32, #tpu.memory_space<vmem>>, vector<1x1x64x32xf32>
    %84 = vector.shape_cast %83 : vector<1x1x64x32xf32> to vector<64x32xf32>
    %cst_72 = arith.constant dense<0.000000e+00> : vector<16x32xf32>
    %85 = tpu.matmul %25, %84, %cst_72 {dimension_numbers = #tpu.dot_dimension_numbers<[1], [0], [0], [1], [0, 0, 1, 1], [], []>} : vector<16x64xf32>, vector<64x32xf32>, vector<16x32xf32> -> vector<16x32xf32>
    %c0_73 = arith.constant 0 : index
    %c1_74 = arith.constant 1 : index
    %c0_75 = arith.constant 0 : index
    %c0_76 = arith.constant 0 : index
    %86 = vector.load %arg11[%c0_73, %c1_74, %c0_75, %c0_76] : memref<2x2x1x32xf32, #tpu.memory_space<vmem>>, vector<1x1x1x32xf32>
    %87 = vector.shape_cast %86 : vector<1x1x1x32xf32> to vector<1x32xf32>
    %88 = vector.broadcast %87 : vector<1x32xf32> to vector<16x32xf32>
    %89 = arith.addf %85, %88 : vector<16x32xf32>
    %cst_77 = arith.constant dense<0.000000e+00> : vector<16x16xf32>
    %90 = tpu.matmul %75, %82, %cst_77 {dimension_numbers = #tpu.dot_dimension_numbers<[1], [1], [0], [0], [0, 0, 1, 0], [], []>} : vector<16x32xf32>, vector<16x32xf32>, vector<16x16xf32> -> vector<16x16xf32>
    %cst_78 = arith.constant 0.176776692 : f32
    %91 = vector.broadcast %cst_78 : f32 to vector<16x16xf32>
    %92 = arith.mulf %90, %91 : vector<16x16xf32>
    %93 = vector.broadcast %27 : vector<1x16xf32> to vector<16x16xf32>
    %94 = arith.addf %92, %93 : vector<16x16xf32>
    %cst_79 = arith.constant dense<0xFF800000> : vector<16xf32>
    %95 = vector.multi_reduction <maximumf>, %94, %cst_79 [1] : vector<16x16xf32> to vector<16xf32>
    %cst_80 = arith.constant 0xFF800000 : f32
    %96 = vector.broadcast %cst_80 : f32 to vector<16xf32>
    %97 = arith.maximumf %96, %95 : vector<16xf32>
    %98 = vector.shape_cast %97 : vector<16xf32> to vector<16x1xf32>
    %99 = vector.broadcast %98 : vector<16x1xf32> to vector<16x16xf32>
    %100 = arith.subf %94, %99 : vector<16x16xf32>
    %101 = math.exp %100 : vector<16x16xf32>
    %cst_81 = arith.constant dense<0.000000e+00> : vector<16xf32>
    %102 = vector.multi_reduction <add>, %101, %cst_81 [1] : vector<16x16xf32> to vector<16xf32>
    %103 = vector.shape_cast %102 : vector<16xf32> to vector<16x1xf32>
    %104 = vector.broadcast %103 : vector<16x1xf32> to vector<16x16xf32>
    %105 = arith.divf %101, %104 : vector<16x16xf32>
    %cst_82 = arith.constant dense<0.000000e+00> : vector<16x32xf32>
    %106 = tpu.matmul %105, %89, %cst_82 {dimension_numbers = #tpu.dot_dimension_numbers<[1], [0], [0], [1], [0, 0, 1, 1], [], []>} : vector<16x16xf32>, vector<16x32xf32>, vector<16x32xf32> -> vector<16x32xf32>
    %c0_83 = arith.constant 0 : index
    %c1_84 = arith.constant 1 : index
    %c0_85 = arith.constant 0 : index
    %c0_86 = arith.constant 0 : index
    %107 = vector.load %arg12[%c0_83, %c1_84, %c0_85, %c0_86] : memref<2x2x32x64xf32, #tpu.memory_space<vmem>>, vector<1x1x32x64xf32>
    %108 = vector.shape_cast %107 : vector<1x1x32x64xf32> to vector<32x64xf32>
    %cst_87 = arith.constant dense<0.000000e+00> : vector<16x64xf32>
    %109 = tpu.matmul %106, %108, %cst_87 {dimension_numbers = #tpu.dot_dimension_numbers<[1], [0], [0], [1], [0, 0, 1, 1], [], []>} : vector<16x32xf32>, vector<32x64xf32>, vector<16x64xf32> -> vector<16x64xf32>
    %110 = arith.addf %68, %109 : vector<16x64xf32>
    %c0_88 = arith.constant 0 : index
    %c0_89 = arith.constant 0 : index
    %c0_90 = arith.constant 0 : index
    %111 = vector.load %arg13[%c0_88, %c0_89, %c0_90] : memref<2x1x64xf32, #tpu.memory_space<vmem>>, vector<1x1x64xf32>
    %112 = vector.shape_cast %111 : vector<1x1x64xf32> to vector<1x64xf32>
    %113 = vector.broadcast %112 : vector<1x64xf32> to vector<16x64xf32>
    %114 = arith.addf %110, %113 : vector<16x64xf32>
    %115 = arith.addf %114, %25 : vector<16x64xf32>
    %c0_91 = arith.constant 0 : index
    %c0_92 = arith.constant 0 : index
    %c0_93 = arith.constant 0 : index
    %116 = vector.load %arg14[%c0_91, %c0_92, %c0_93] : memref<2x1x64xf32, #tpu.memory_space<vmem>>, vector<1x1x64xf32>
    %117 = vector.shape_cast %116 : vector<1x1x64xf32> to vector<1x64xf32>
    %c0_94 = arith.constant 0 : index
    %c0_95 = arith.constant 0 : index
    %c0_96 = arith.constant 0 : index
    %118 = vector.load %arg15[%c0_94, %c0_95, %c0_96] : memref<2x1x64xf32, #tpu.memory_space<vmem>>, vector<1x1x64xf32>
    %119 = vector.shape_cast %118 : vector<1x1x64xf32> to vector<1x64xf32>
    %cst_97 = arith.constant dense<0.000000e+00> : vector<16xf32>
    %120 = vector.multi_reduction <add>, %115, %cst_97 [1] : vector<16x64xf32> to vector<16xf32>
    %121 = vector.shape_cast %120 : vector<16xf32> to vector<16x1xf32>
    %cst_98 = arith.constant 6.400000e+01 : f32
    %122 = vector.broadcast %cst_98 : f32 to vector<16x1xf32>
    %123 = arith.divf %121, %122 : vector<16x1xf32>
    %124 = vector.broadcast %123 : vector<16x1xf32> to vector<16x64xf32>
    %125 = arith.subf %115, %124 : vector<16x64xf32>
    %126 = arith.mulf %125, %125 : vector<16x64xf32>
    %cst_99 = arith.constant dense<0.000000e+00> : vector<16xf32>
    %127 = vector.multi_reduction <add>, %126, %cst_99 [1] : vector<16x64xf32> to vector<16xf32>
    %128 = vector.shape_cast %127 : vector<16xf32> to vector<16x1xf32>
    %cst_100 = arith.constant 6.400000e+01 : f32
    %129 = vector.broadcast %cst_100 : f32 to vector<16x1xf32>
    %130 = arith.divf %128, %129 : vector<16x1xf32>
    %131 = vector.broadcast %123 : vector<16x1xf32> to vector<16x64xf32>
    %132 = arith.subf %115, %131 : vector<16x64xf32>
    %cst_101 = arith.constant 9.99999996E-13 : f32
    %133 = vector.broadcast %cst_101 : f32 to vector<16x1xf32>
    %134 = arith.addf %130, %133 : vector<16x1xf32>
    %135 = math.rsqrt %134 : vector<16x1xf32>
    %136 = vector.broadcast %135 : vector<16x1xf32> to vector<16x64xf32>
    %137 = arith.mulf %132, %136 : vector<16x64xf32>
    %138 = vector.broadcast %117 : vector<1x64xf32> to vector<16x64xf32>
    %139 = arith.mulf %137, %138 : vector<16x64xf32>
    %140 = vector.broadcast %119 : vector<1x64xf32> to vector<16x64xf32>
    %141 = arith.addf %139, %140 : vector<16x64xf32>
    %c0_102 = arith.constant 0 : index
    %c0_103 = arith.constant 0 : index
    %c0_104 = arith.constant 0 : index
    %142 = vector.load %arg16[%c0_102, %c0_103, %c0_104] : memref<2x64x128xf32, #tpu.memory_space<vmem>>, vector<1x64x128xf32>
    %143 = vector.shape_cast %142 : vector<1x64x128xf32> to vector<64x128xf32>
    %cst_105 = arith.constant dense<0.000000e+00> : vector<16x128xf32>
    %144 = tpu.matmul %141, %143, %cst_105 {dimension_numbers = #tpu.dot_dimension_numbers<[1], [0], [0], [1], [0, 0, 1, 1], [], []>} : vector<16x64xf32>, vector<64x128xf32>, vector<16x128xf32> -> vector<16x128xf32>
    %c0_106 = arith.constant 0 : index
    %c0_107 = arith.constant 0 : index
    %c0_108 = arith.constant 0 : index
    %145 = vector.load %arg17[%c0_106, %c0_107, %c0_108] : memref<2x1x128xf32, #tpu.memory_space<vmem>>, vector<1x1x128xf32>
    %146 = vector.shape_cast %145 : vector<1x1x128xf32> to vector<1x128xf32>
    %147 = vector.broadcast %146 : vector<1x128xf32> to vector<16x128xf32>
    %148 = arith.addf %144, %147 : vector<16x128xf32>
    %149 = arith.mulf %148, %148 : vector<16x128xf32>
    %150 = arith.mulf %148, %149 : vector<16x128xf32>
    %cst_109 = arith.constant 4.471500e-02 : f32
    %151 = vector.broadcast %cst_109 : f32 to vector<16x128xf32>
    %152 = arith.mulf %151, %150 : vector<16x128xf32>
    %153 = arith.addf %148, %152 : vector<16x128xf32>
    %cst_110 = arith.constant 0.797884583 : f32
    %154 = vector.broadcast %cst_110 : f32 to vector<16x128xf32>
    %155 = arith.mulf %154, %153 : vector<16x128xf32>
    %156 = math.tanh %155 : vector<16x128xf32>
    %cst_111 = arith.constant 1.000000e+00 : f32
    %157 = vector.broadcast %cst_111 : f32 to vector<16x128xf32>
    %158 = arith.addf %157, %156 : vector<16x128xf32>
    %cst_112 = arith.constant 5.000000e-01 : f32
    %159 = vector.broadcast %cst_112 : f32 to vector<16x128xf32>
    %160 = arith.mulf %159, %158 : vector<16x128xf32>
    %161 = arith.mulf %148, %160 : vector<16x128xf32>
    %c0_113 = arith.constant 0 : index
    %c0_114 = arith.constant 0 : index
    %c0_115 = arith.constant 0 : index
    %162 = vector.load %arg18[%c0_113, %c0_114, %c0_115] : memref<2x128x64xf32, #tpu.memory_space<vmem>>, vector<1x128x64xf32>
    %163 = vector.shape_cast %162 : vector<1x128x64xf32> to vector<128x64xf32>
    %cst_116 = arith.constant dense<0.000000e+00> : vector<16x64xf32>
    %164 = tpu.matmul %161, %163, %cst_116 {dimension_numbers = #tpu.dot_dimension_numbers<[1], [0], [0], [1], [0, 0, 1, 1], [], []>} : vector<16x128xf32>, vector<128x64xf32>, vector<16x64xf32> -> vector<16x64xf32>
    %c0_117 = arith.constant 0 : index
    %c0_118 = arith.constant 0 : index
    %c0_119 = arith.constant 0 : index
    %165 = vector.load %arg19[%c0_117, %c0_118, %c0_119] : memref<2x1x64xf32, #tpu.memory_space<vmem>>, vector<1x1x64xf32>
    %166 = vector.shape_cast %165 : vector<1x1x64xf32> to vector<1x64xf32>
    %167 = vector.broadcast %166 : vector<1x64xf32> to vector<16x64xf32>
    %168 = arith.addf %164, %167 : vector<16x64xf32>
    %169 = arith.addf %168, %141 : vector<16x64xf32>
    %c0_120 = arith.constant 0 : index
    %c0_121 = arith.constant 0 : index
    %c0_122 = arith.constant 0 : index
    %170 = vector.load %arg20[%c0_120, %c0_121, %c0_122] : memref<2x1x64xf32, #tpu.memory_space<vmem>>, vector<1x1x64xf32>
    %171 = vector.shape_cast %170 : vector<1x1x64xf32> to vector<1x64xf32>
    %c0_123 = arith.constant 0 : index
    %c0_124 = arith.constant 0 : index
    %c0_125 = arith.constant 0 : index
    %172 = vector.load %arg21[%c0_123, %c0_124, %c0_125] : memref<2x1x64xf32, #tpu.memory_space<vmem>>, vector<1x1x64xf32>
    %173 = vector.shape_cast %172 : vector<1x1x64xf32> to vector<1x64xf32>
    %cst_126 = arith.constant dense<0.000000e+00> : vector<16xf32>
    %174 = vector.multi_reduction <add>, %169, %cst_126 [1] : vector<16x64xf32> to vector<16xf32>
    %175 = vector.shape_cast %174 : vector<16xf32> to vector<16x1xf32>
    %cst_127 = arith.constant 6.400000e+01 : f32
    %176 = vector.broadcast %cst_127 : f32 to vector<16x1xf32>
    %177 = arith.divf %175, %176 : vector<16x1xf32>
    %178 = vector.broadcast %177 : vector<16x1xf32> to vector<16x64xf32>
    %179 = arith.subf %169, %178 : vector<16x64xf32>
    %180 = arith.mulf %179, %179 : vector<16x64xf32>
    %cst_128 = arith.constant dense<0.000000e+00> : vector<16xf32>
    %181 = vector.multi_reduction <add>, %180, %cst_128 [1] : vector<16x64xf32> to vector<16xf32>
    %182 = vector.shape_cast %181 : vector<16xf32> to vector<16x1xf32>
    %cst_129 = arith.constant 6.400000e+01 : f32
    %183 = vector.broadcast %cst_129 : f32 to vector<16x1xf32>
    %184 = arith.divf %182, %183 : vector<16x1xf32>
    %185 = vector.broadcast %177 : vector<16x1xf32> to vector<16x64xf32>
    %186 = arith.subf %169, %185 : vector<16x64xf32>
    %cst_130 = arith.constant 9.99999996E-13 : f32
    %187 = vector.broadcast %cst_130 : f32 to vector<16x1xf32>
    %188 = arith.addf %184, %187 : vector<16x1xf32>
    %189 = math.rsqrt %188 : vector<16x1xf32>
    %190 = vector.broadcast %189 : vector<16x1xf32> to vector<16x64xf32>
    %191 = arith.mulf %186, %190 : vector<16x64xf32>
    %192 = vector.broadcast %171 : vector<1x64xf32> to vector<16x64xf32>
    %193 = arith.mulf %191, %192 : vector<16x64xf32>
    %194 = vector.broadcast %173 : vector<1x64xf32> to vector<16x64xf32>
    %195 = arith.addf %193, %194 : vector<16x64xf32>
    %c1_131 = arith.constant 1 : index
    %c0_132 = arith.constant 0 : index
    %c0_133 = arith.constant 0 : index
    %c0_134 = arith.constant 0 : index
    %196 = vector.load %arg6[%c1_131, %c0_132, %c0_133, %c0_134] : memref<2x2x64x32xf32, #tpu.memory_space<vmem>>, vector<1x1x64x32xf32>
    %197 = vector.shape_cast %196 : vector<1x1x64x32xf32> to vector<64x32xf32>
    %cst_135 = arith.constant dense<0.000000e+00> : vector<16x32xf32>
    %198 = tpu.matmul %195, %197, %cst_135 {dimension_numbers = #tpu.dot_dimension_numbers<[1], [0], [0], [1], [0, 0, 1, 1], [], []>} : vector<16x64xf32>, vector<64x32xf32>, vector<16x32xf32> -> vector<16x32xf32>
    %c1_136 = arith.constant 1 : index
    %c0_137 = arith.constant 0 : index
    %c0_138 = arith.constant 0 : index
    %c0_139 = arith.constant 0 : index
    %199 = vector.load %arg9[%c1_136, %c0_137, %c0_138, %c0_139] : memref<2x2x1x32xf32, #tpu.memory_space<vmem>>, vector<1x1x1x32xf32>
    %200 = vector.shape_cast %199 : vector<1x1x1x32xf32> to vector<1x32xf32>
    %201 = vector.broadcast %200 : vector<1x32xf32> to vector<16x32xf32>
    %202 = arith.addf %198, %201 : vector<16x32xf32>
    %c1_140 = arith.constant 1 : index
    %c0_141 = arith.constant 0 : index
    %c0_142 = arith.constant 0 : index
    %c0_143 = arith.constant 0 : index
    %203 = vector.load %arg7[%c1_140, %c0_141, %c0_142, %c0_143] : memref<2x2x64x32xf32, #tpu.memory_space<vmem>>, vector<1x1x64x32xf32>
    %204 = vector.shape_cast %203 : vector<1x1x64x32xf32> to vector<64x32xf32>
    %cst_144 = arith.constant dense<0.000000e+00> : vector<16x32xf32>
    %205 = tpu.matmul %195, %204, %cst_144 {dimension_numbers = #tpu.dot_dimension_numbers<[1], [0], [0], [1], [0, 0, 1, 1], [], []>} : vector<16x64xf32>, vector<64x32xf32>, vector<16x32xf32> -> vector<16x32xf32>
    %c1_145 = arith.constant 1 : index
    %c0_146 = arith.constant 0 : index
    %c0_147 = arith.constant 0 : index
    %c0_148 = arith.constant 0 : index
    %206 = vector.load %arg10[%c1_145, %c0_146, %c0_147, %c0_148] : memref<2x2x1x32xf32, #tpu.memory_space<vmem>>, vector<1x1x1x32xf32>
    %207 = vector.shape_cast %206 : vector<1x1x1x32xf32> to vector<1x32xf32>
    %208 = vector.broadcast %207 : vector<1x32xf32> to vector<16x32xf32>
    %209 = arith.addf %205, %208 : vector<16x32xf32>
    %c1_149 = arith.constant 1 : index
    %c0_150 = arith.constant 0 : index
    %c0_151 = arith.constant 0 : index
    %c0_152 = arith.constant 0 : index
    %210 = vector.load %arg8[%c1_149, %c0_150, %c0_151, %c0_152] : memref<2x2x64x32xf32, #tpu.memory_space<vmem>>, vector<1x1x64x32xf32>
    %211 = vector.shape_cast %210 : vector<1x1x64x32xf32> to vector<64x32xf32>
    %cst_153 = arith.constant dense<0.000000e+00> : vector<16x32xf32>
    %212 = tpu.matmul %195, %211, %cst_153 {dimension_numbers = #tpu.dot_dimension_numbers<[1], [0], [0], [1], [0, 0, 1, 1], [], []>} : vector<16x64xf32>, vector<64x32xf32>, vector<16x32xf32> -> vector<16x32xf32>
    %c1_154 = arith.constant 1 : index
    %c0_155 = arith.constant 0 : index
    %c0_156 = arith.constant 0 : index
    %c0_157 = arith.constant 0 : index
    %213 = vector.load %arg11[%c1_154, %c0_155, %c0_156, %c0_157] : memref<2x2x1x32xf32, #tpu.memory_space<vmem>>, vector<1x1x1x32xf32>
    %214 = vector.shape_cast %213 : vector<1x1x1x32xf32> to vector<1x32xf32>
    %215 = vector.broadcast %214 : vector<1x32xf32> to vector<16x32xf32>
    %216 = arith.addf %212, %215 : vector<16x32xf32>
    %cst_158 = arith.constant dense<0.000000e+00> : vector<16x16xf32>
    %217 = tpu.matmul %202, %209, %cst_158 {dimension_numbers = #tpu.dot_dimension_numbers<[1], [1], [0], [0], [0, 0, 1, 0], [], []>} : vector<16x32xf32>, vector<16x32xf32>, vector<16x16xf32> -> vector<16x16xf32>
    %cst_159 = arith.constant 0.176776692 : f32
    %218 = vector.broadcast %cst_159 : f32 to vector<16x16xf32>
    %219 = arith.mulf %217, %218 : vector<16x16xf32>
    %220 = vector.broadcast %27 : vector<1x16xf32> to vector<16x16xf32>
    %221 = arith.addf %219, %220 : vector<16x16xf32>
    %cst_160 = arith.constant dense<0xFF800000> : vector<16xf32>
    %222 = vector.multi_reduction <maximumf>, %221, %cst_160 [1] : vector<16x16xf32> to vector<16xf32>
    %cst_161 = arith.constant 0xFF800000 : f32
    %223 = vector.broadcast %cst_161 : f32 to vector<16xf32>
    %224 = arith.maximumf %223, %222 : vector<16xf32>
    %225 = vector.shape_cast %224 : vector<16xf32> to vector<16x1xf32>
    %226 = vector.broadcast %225 : vector<16x1xf32> to vector<16x16xf32>
    %227 = arith.subf %221, %226 : vector<16x16xf32>
    %228 = math.exp %227 : vector<16x16xf32>
    %cst_162 = arith.constant dense<0.000000e+00> : vector<16xf32>
    %229 = vector.multi_reduction <add>, %228, %cst_162 [1] : vector<16x16xf32> to vector<16xf32>
    %230 = vector.shape_cast %229 : vector<16xf32> to vector<16x1xf32>
    %231 = vector.broadcast %230 : vector<16x1xf32> to vector<16x16xf32>
    %232 = arith.divf %228, %231 : vector<16x16xf32>
    %cst_163 = arith.constant dense<0.000000e+00> : vector<16x32xf32>
    %233 = tpu.matmul %232, %216, %cst_163 {dimension_numbers = #tpu.dot_dimension_numbers<[1], [0], [0], [1], [0, 0, 1, 1], [], []>} : vector<16x16xf32>, vector<16x32xf32>, vector<16x32xf32> -> vector<16x32xf32>
    %c1_164 = arith.constant 1 : index
    %c0_165 = arith.constant 0 : index
    %c0_166 = arith.constant 0 : index
    %c0_167 = arith.constant 0 : index
    %234 = vector.load %arg12[%c1_164, %c0_165, %c0_166, %c0_167] : memref<2x2x32x64xf32, #tpu.memory_space<vmem>>, vector<1x1x32x64xf32>
    %235 = vector.shape_cast %234 : vector<1x1x32x64xf32> to vector<32x64xf32>
    %cst_168 = arith.constant dense<0.000000e+00> : vector<16x64xf32>
    %236 = tpu.matmul %233, %235, %cst_168 {dimension_numbers = #tpu.dot_dimension_numbers<[1], [0], [0], [1], [0, 0, 1, 1], [], []>} : vector<16x32xf32>, vector<32x64xf32>, vector<16x64xf32> -> vector<16x64xf32>
    %c1_169 = arith.constant 1 : index
    %c1_170 = arith.constant 1 : index
    %c0_171 = arith.constant 0 : index
    %c0_172 = arith.constant 0 : index
    %237 = vector.load %arg6[%c1_169, %c1_170, %c0_171, %c0_172] : memref<2x2x64x32xf32, #tpu.memory_space<vmem>>, vector<1x1x64x32xf32>
    %238 = vector.shape_cast %237 : vector<1x1x64x32xf32> to vector<64x32xf32>
    %cst_173 = arith.constant dense<0.000000e+00> : vector<16x32xf32>
    %239 = tpu.matmul %195, %238, %cst_173 {dimension_numbers = #tpu.dot_dimension_numbers<[1], [0], [0], [1], [0, 0, 1, 1], [], []>} : vector<16x64xf32>, vector<64x32xf32>, vector<16x32xf32> -> vector<16x32xf32>
    %c1_174 = arith.constant 1 : index
    %c1_175 = arith.constant 1 : index
    %c0_176 = arith.constant 0 : index
    %c0_177 = arith.constant 0 : index
    %240 = vector.load %arg9[%c1_174, %c1_175, %c0_176, %c0_177] : memref<2x2x1x32xf32, #tpu.memory_space<vmem>>, vector<1x1x1x32xf32>
    %241 = vector.shape_cast %240 : vector<1x1x1x32xf32> to vector<1x32xf32>
    %242 = vector.broadcast %241 : vector<1x32xf32> to vector<16x32xf32>
    %243 = arith.addf %239, %242 : vector<16x32xf32>
    %c1_178 = arith.constant 1 : index
    %c1_179 = arith.constant 1 : index
    %c0_180 = arith.constant 0 : index
    %c0_181 = arith.constant 0 : index
    %244 = vector.load %arg7[%c1_178, %c1_179, %c0_180, %c0_181] : memref<2x2x64x32xf32, #tpu.memory_space<vmem>>, vector<1x1x64x32xf32>
    %245 = vector.shape_cast %244 : vector<1x1x64x32xf32> to vector<64x32xf32>
    %cst_182 = arith.constant dense<0.000000e+00> : vector<16x32xf32>
    %246 = tpu.matmul %195, %245, %cst_182 {dimension_numbers = #tpu.dot_dimension_numbers<[1], [0], [0], [1], [0, 0, 1, 1], [], []>} : vector<16x64xf32>, vector<64x32xf32>, vector<16x32xf32> -> vector<16x32xf32>
    %c1_183 = arith.constant 1 : index
    %c1_184 = arith.constant 1 : index
    %c0_185 = arith.constant 0 : index
    %c0_186 = arith.constant 0 : index
    %247 = vector.load %arg10[%c1_183, %c1_184, %c0_185, %c0_186] : memref<2x2x1x32xf32, #tpu.memory_space<vmem>>, vector<1x1x1x32xf32>
    %248 = vector.shape_cast %247 : vector<1x1x1x32xf32> to vector<1x32xf32>
    %249 = vector.broadcast %248 : vector<1x32xf32> to vector<16x32xf32>
    %250 = arith.addf %246, %249 : vector<16x32xf32>
    %c1_187 = arith.constant 1 : index
    %c1_188 = arith.constant 1 : index
    %c0_189 = arith.constant 0 : index
    %c0_190 = arith.constant 0 : index
    %251 = vector.load %arg8[%c1_187, %c1_188, %c0_189, %c0_190] : memref<2x2x64x32xf32, #tpu.memory_space<vmem>>, vector<1x1x64x32xf32>
    %252 = vector.shape_cast %251 : vector<1x1x64x32xf32> to vector<64x32xf32>
    %cst_191 = arith.constant dense<0.000000e+00> : vector<16x32xf32>
    %253 = tpu.matmul %195, %252, %cst_191 {dimension_numbers = #tpu.dot_dimension_numbers<[1], [0], [0], [1], [0, 0, 1, 1], [], []>} : vector<16x64xf32>, vector<64x32xf32>, vector<16x32xf32> -> vector<16x32xf32>
    %c1_192 = arith.constant 1 : index
    %c1_193 = arith.constant 1 : index
    %c0_194 = arith.constant 0 : index
    %c0_195 = arith.constant 0 : index
    %254 = vector.load %arg11[%c1_192, %c1_193, %c0_194, %c0_195] : memref<2x2x1x32xf32, #tpu.memory_space<vmem>>, vector<1x1x1x32xf32>
    %255 = vector.shape_cast %254 : vector<1x1x1x32xf32> to vector<1x32xf32>
    %256 = vector.broadcast %255 : vector<1x32xf32> to vector<16x32xf32>
    %257 = arith.addf %253, %256 : vector<16x32xf32>
    %cst_196 = arith.constant dense<0.000000e+00> : vector<16x16xf32>
    %258 = tpu.matmul %243, %250, %cst_196 {dimension_numbers = #tpu.dot_dimension_numbers<[1], [1], [0], [0], [0, 0, 1, 0], [], []>} : vector<16x32xf32>, vector<16x32xf32>, vector<16x16xf32> -> vector<16x16xf32>
    %cst_197 = arith.constant 0.176776692 : f32
    %259 = vector.broadcast %cst_197 : f32 to vector<16x16xf32>
    %260 = arith.mulf %258, %259 : vector<16x16xf32>
    %261 = vector.broadcast %27 : vector<1x16xf32> to vector<16x16xf32>
    %262 = arith.addf %260, %261 : vector<16x16xf32>
    %cst_198 = arith.constant dense<0xFF800000> : vector<16xf32>
    %263 = vector.multi_reduction <maximumf>, %262, %cst_198 [1] : vector<16x16xf32> to vector<16xf32>
    %cst_199 = arith.constant 0xFF800000 : f32
    %264 = vector.broadcast %cst_199 : f32 to vector<16xf32>
    %265 = arith.maximumf %264, %263 : vector<16xf32>
    %266 = vector.shape_cast %265 : vector<16xf32> to vector<16x1xf32>
    %267 = vector.broadcast %266 : vector<16x1xf32> to vector<16x16xf32>
    %268 = arith.subf %262, %267 : vector<16x16xf32>
    %269 = math.exp %268 : vector<16x16xf32>
    %cst_200 = arith.constant dense<0.000000e+00> : vector<16xf32>
    %270 = vector.multi_reduction <add>, %269, %cst_200 [1] : vector<16x16xf32> to vector<16xf32>
    %271 = vector.shape_cast %270 : vector<16xf32> to vector<16x1xf32>
    %272 = vector.broadcast %271 : vector<16x1xf32> to vector<16x16xf32>
    %273 = arith.divf %269, %272 : vector<16x16xf32>
    %cst_201 = arith.constant dense<0.000000e+00> : vector<16x32xf32>
    %274 = tpu.matmul %273, %257, %cst_201 {dimension_numbers = #tpu.dot_dimension_numbers<[1], [0], [0], [1], [0, 0, 1, 1], [], []>} : vector<16x16xf32>, vector<16x32xf32>, vector<16x32xf32> -> vector<16x32xf32>
    %c1_202 = arith.constant 1 : index
    %c1_203 = arith.constant 1 : index
    %c0_204 = arith.constant 0 : index
    %c0_205 = arith.constant 0 : index
    %275 = vector.load %arg12[%c1_202, %c1_203, %c0_204, %c0_205] : memref<2x2x32x64xf32, #tpu.memory_space<vmem>>, vector<1x1x32x64xf32>
    %276 = vector.shape_cast %275 : vector<1x1x32x64xf32> to vector<32x64xf32>
    %cst_206 = arith.constant dense<0.000000e+00> : vector<16x64xf32>
    %277 = tpu.matmul %274, %276, %cst_206 {dimension_numbers = #tpu.dot_dimension_numbers<[1], [0], [0], [1], [0, 0, 1, 1], [], []>} : vector<16x32xf32>, vector<32x64xf32>, vector<16x64xf32> -> vector<16x64xf32>
    %278 = arith.addf %236, %277 : vector<16x64xf32>
    %c1_207 = arith.constant 1 : index
    %c0_208 = arith.constant 0 : index
    %c0_209 = arith.constant 0 : index
    %279 = vector.load %arg13[%c1_207, %c0_208, %c0_209] : memref<2x1x64xf32, #tpu.memory_space<vmem>>, vector<1x1x64xf32>
    %280 = vector.shape_cast %279 : vector<1x1x64xf32> to vector<1x64xf32>
    %281 = vector.broadcast %280 : vector<1x64xf32> to vector<16x64xf32>
    %282 = arith.addf %278, %281 : vector<16x64xf32>
    %283 = arith.addf %282, %195 : vector<16x64xf32>
    %c1_210 = arith.constant 1 : index
    %c0_211 = arith.constant 0 : index
    %c0_212 = arith.constant 0 : index
    %284 = vector.load %arg14[%c1_210, %c0_211, %c0_212] : memref<2x1x64xf32, #tpu.memory_space<vmem>>, vector<1x1x64xf32>
    %285 = vector.shape_cast %284 : vector<1x1x64xf32> to vector<1x64xf32>
    %c1_213 = arith.constant 1 : index
    %c0_214 = arith.constant 0 : index
    %c0_215 = arith.constant 0 : index
    %286 = vector.load %arg15[%c1_213, %c0_214, %c0_215] : memref<2x1x64xf32, #tpu.memory_space<vmem>>, vector<1x1x64xf32>
    %287 = vector.shape_cast %286 : vector<1x1x64xf32> to vector<1x64xf32>
    %cst_216 = arith.constant dense<0.000000e+00> : vector<16xf32>
    %288 = vector.multi_reduction <add>, %283, %cst_216 [1] : vector<16x64xf32> to vector<16xf32>
    %289 = vector.shape_cast %288 : vector<16xf32> to vector<16x1xf32>
    %cst_217 = arith.constant 6.400000e+01 : f32
    %290 = vector.broadcast %cst_217 : f32 to vector<16x1xf32>
    %291 = arith.divf %289, %290 : vector<16x1xf32>
    %292 = vector.broadcast %291 : vector<16x1xf32> to vector<16x64xf32>
    %293 = arith.subf %283, %292 : vector<16x64xf32>
    %294 = arith.mulf %293, %293 : vector<16x64xf32>
    %cst_218 = arith.constant dense<0.000000e+00> : vector<16xf32>
    %295 = vector.multi_reduction <add>, %294, %cst_218 [1] : vector<16x64xf32> to vector<16xf32>
    %296 = vector.shape_cast %295 : vector<16xf32> to vector<16x1xf32>
    %cst_219 = arith.constant 6.400000e+01 : f32
    %297 = vector.broadcast %cst_219 : f32 to vector<16x1xf32>
    %298 = arith.divf %296, %297 : vector<16x1xf32>
    %299 = vector.broadcast %291 : vector<16x1xf32> to vector<16x64xf32>
    %300 = arith.subf %283, %299 : vector<16x64xf32>
    %cst_220 = arith.constant 9.99999996E-13 : f32
    %301 = vector.broadcast %cst_220 : f32 to vector<16x1xf32>
    %302 = arith.addf %298, %301 : vector<16x1xf32>
    %303 = math.rsqrt %302 : vector<16x1xf32>
    %304 = vector.broadcast %303 : vector<16x1xf32> to vector<16x64xf32>
    %305 = arith.mulf %300, %304 : vector<16x64xf32>
    %306 = vector.broadcast %285 : vector<1x64xf32> to vector<16x64xf32>
    %307 = arith.mulf %305, %306 : vector<16x64xf32>
    %308 = vector.broadcast %287 : vector<1x64xf32> to vector<16x64xf32>
    %309 = arith.addf %307, %308 : vector<16x64xf32>
    %c1_221 = arith.constant 1 : index
    %c0_222 = arith.constant 0 : index
    %c0_223 = arith.constant 0 : index
    %310 = vector.load %arg16[%c1_221, %c0_222, %c0_223] : memref<2x64x128xf32, #tpu.memory_space<vmem>>, vector<1x64x128xf32>
    %311 = vector.shape_cast %310 : vector<1x64x128xf32> to vector<64x128xf32>
    %cst_224 = arith.constant dense<0.000000e+00> : vector<16x128xf32>
    %312 = tpu.matmul %309, %311, %cst_224 {dimension_numbers = #tpu.dot_dimension_numbers<[1], [0], [0], [1], [0, 0, 1, 1], [], []>} : vector<16x64xf32>, vector<64x128xf32>, vector<16x128xf32> -> vector<16x128xf32>
    %c1_225 = arith.constant 1 : index
    %c0_226 = arith.constant 0 : index
    %c0_227 = arith.constant 0 : index
    %313 = vector.load %arg17[%c1_225, %c0_226, %c0_227] : memref<2x1x128xf32, #tpu.memory_space<vmem>>, vector<1x1x128xf32>
    %314 = vector.shape_cast %313 : vector<1x1x128xf32> to vector<1x128xf32>
    %315 = vector.broadcast %314 : vector<1x128xf32> to vector<16x128xf32>
    %316 = arith.addf %312, %315 : vector<16x128xf32>
    %317 = arith.mulf %316, %316 : vector<16x128xf32>
    %318 = arith.mulf %316, %317 : vector<16x128xf32>
    %cst_228 = arith.constant 4.471500e-02 : f32
    %319 = vector.broadcast %cst_228 : f32 to vector<16x128xf32>
    %320 = arith.mulf %319, %318 : vector<16x128xf32>
    %321 = arith.addf %316, %320 : vector<16x128xf32>
    %cst_229 = arith.constant 0.797884583 : f32
    %322 = vector.broadcast %cst_229 : f32 to vector<16x128xf32>
    %323 = arith.mulf %322, %321 : vector<16x128xf32>
    %324 = math.tanh %323 : vector<16x128xf32>
    %cst_230 = arith.constant 1.000000e+00 : f32
    %325 = vector.broadcast %cst_230 : f32 to vector<16x128xf32>
    %326 = arith.addf %325, %324 : vector<16x128xf32>
    %cst_231 = arith.constant 5.000000e-01 : f32
    %327 = vector.broadcast %cst_231 : f32 to vector<16x128xf32>
    %328 = arith.mulf %327, %326 : vector<16x128xf32>
    %329 = arith.mulf %316, %328 : vector<16x128xf32>
    %c1_232 = arith.constant 1 : index
    %c0_233 = arith.constant 0 : index
    %c0_234 = arith.constant 0 : index
    %330 = vector.load %arg18[%c1_232, %c0_233, %c0_234] : memref<2x128x64xf32, #tpu.memory_space<vmem>>, vector<1x128x64xf32>
    %331 = vector.shape_cast %330 : vector<1x128x64xf32> to vector<128x64xf32>
    %cst_235 = arith.constant dense<0.000000e+00> : vector<16x64xf32>
    %332 = tpu.matmul %329, %331, %cst_235 {dimension_numbers = #tpu.dot_dimension_numbers<[1], [0], [0], [1], [0, 0, 1, 1], [], []>} : vector<16x128xf32>, vector<128x64xf32>, vector<16x64xf32> -> vector<16x64xf32>
    %c1_236 = arith.constant 1 : index
    %c0_237 = arith.constant 0 : index
    %c0_238 = arith.constant 0 : index
    %333 = vector.load %arg19[%c1_236, %c0_237, %c0_238] : memref<2x1x64xf32, #tpu.memory_space<vmem>>, vector<1x1x64xf32>
    %334 = vector.shape_cast %333 : vector<1x1x64xf32> to vector<1x64xf32>
    %335 = vector.broadcast %334 : vector<1x64xf32> to vector<16x64xf32>
    %336 = arith.addf %332, %335 : vector<16x64xf32>
    %337 = arith.addf %336, %309 : vector<16x64xf32>
    %c1_239 = arith.constant 1 : index
    %c0_240 = arith.constant 0 : index
    %c0_241 = arith.constant 0 : index
    %338 = vector.load %arg20[%c1_239, %c0_240, %c0_241] : memref<2x1x64xf32, #tpu.memory_space<vmem>>, vector<1x1x64xf32>
    %339 = vector.shape_cast %338 : vector<1x1x64xf32> to vector<1x64xf32>
    %c1_242 = arith.constant 1 : index
    %c0_243 = arith.constant 0 : index
    %c0_244 = arith.constant 0 : index
    %340 = vector.load %arg21[%c1_242, %c0_243, %c0_244] : memref<2x1x64xf32, #tpu.memory_space<vmem>>, vector<1x1x64xf32>
    %341 = vector.shape_cast %340 : vector<1x1x64xf32> to vector<1x64xf32>
    %cst_245 = arith.constant dense<0.000000e+00> : vector<16xf32>
    %342 = vector.multi_reduction <add>, %337, %cst_245 [1] : vector<16x64xf32> to vector<16xf32>
    %343 = vector.shape_cast %342 : vector<16xf32> to vector<16x1xf32>
    %cst_246 = arith.constant 6.400000e+01 : f32
    %344 = vector.broadcast %cst_246 : f32 to vector<16x1xf32>
    %345 = arith.divf %343, %344 : vector<16x1xf32>
    %346 = vector.broadcast %345 : vector<16x1xf32> to vector<16x64xf32>
    %347 = arith.subf %337, %346 : vector<16x64xf32>
    %348 = arith.mulf %347, %347 : vector<16x64xf32>
    %cst_247 = arith.constant dense<0.000000e+00> : vector<16xf32>
    %349 = vector.multi_reduction <add>, %348, %cst_247 [1] : vector<16x64xf32> to vector<16xf32>
    %350 = vector.shape_cast %349 : vector<16xf32> to vector<16x1xf32>
    %cst_248 = arith.constant 6.400000e+01 : f32
    %351 = vector.broadcast %cst_248 : f32 to vector<16x1xf32>
    %352 = arith.divf %350, %351 : vector<16x1xf32>
    %353 = vector.broadcast %345 : vector<16x1xf32> to vector<16x64xf32>
    %354 = arith.subf %337, %353 : vector<16x64xf32>
    %cst_249 = arith.constant 9.99999996E-13 : f32
    %355 = vector.broadcast %cst_249 : f32 to vector<16x1xf32>
    %356 = arith.addf %352, %355 : vector<16x1xf32>
    %357 = math.rsqrt %356 : vector<16x1xf32>
    %358 = vector.broadcast %357 : vector<16x1xf32> to vector<16x64xf32>
    %359 = arith.mulf %354, %358 : vector<16x64xf32>
    %360 = vector.broadcast %339 : vector<1x64xf32> to vector<16x64xf32>
    %361 = arith.mulf %359, %360 : vector<16x64xf32>
    %362 = vector.broadcast %341 : vector<1x64xf32> to vector<16x64xf32>
    %363 = arith.addf %361, %362 : vector<16x64xf32>
    %c0_250 = arith.constant 0 : index
    %c0_251 = arith.constant 0 : index
    %364 = vector.load %arg22[%c0_250, %c0_251] : memref<64x8xf32, #tpu.memory_space<vmem>>, vector<64x8xf32>
    %cst_252 = arith.constant dense<0.000000e+00> : vector<16x8xf32>
    %365 = tpu.matmul %363, %364, %cst_252 {dimension_numbers = #tpu.dot_dimension_numbers<[1], [0], [0], [1], [0, 0, 1, 1], [], []>} : vector<16x64xf32>, vector<64x8xf32>, vector<16x8xf32> -> vector<16x8xf32>
    %c0_253 = arith.constant 0 : index
    %c0_254 = arith.constant 0 : index
    %366 = vector.load %arg23[%c0_253, %c0_254] : memref<1x8xf32, #tpu.memory_space<vmem>>, vector<1x8xf32>
    %367 = vector.broadcast %366 : vector<1x8xf32> to vector<16x8xf32>
    %368 = arith.addf %365, %367 : vector<16x8xf32>
    %c0_255 = arith.constant 0 : index
    %c0_256 = arith.constant 0 : index
    %369 = vector.load %arg26[%c0_255, %c0_256] : memref<8x8xf32, #tpu.memory_space<vmem>>, vector<8x8xf32>
    %370 = tpu.iota {dimensions = array<i32: 1>} : vector<1x8xi32>
    %371 = tpu.iota {dimensions = array<i32: 2>} : vector<1x8x8xi32>
    %c0_257 = arith.constant 0 : index
    %c0_258 = arith.constant 0 : index
    %372 = vector.load %arg24[%c0_257, %c0_258] : memref<1x8xf32, #tpu.memory_space<vmem>>, vector<1x8xf32>
    %373 = vector.extract_strided_slice %368 {offsets = [0, 0], sizes = [1, 8], strides = [1, 1]} : vector<16x8xf32> to vector<1x8xf32>
    %374 = arith.addf %372, %373 : vector<1x8xf32>
    %375 = vector.shape_cast %374 : vector<1x8xf32> to vector<1x1x8xf32>
    %376 = vector.shape_cast %369 : vector<8x8xf32> to vector<1x8x8xf32>
    %377 = vector.broadcast %375 : vector<1x1x8xf32> to vector<1x8x8xf32>
    %378 = arith.addf %377, %376 : vector<1x8x8xf32>
    %cst_259 = arith.constant dense<0xFF800000> : vector<1x8xf32>
    %379 = vector.multi_reduction <maximumf>, %378, %cst_259 [2] : vector<1x8x8xf32> to vector<1x8xf32>
    %380 = vector.shape_cast %379 : vector<1x8xf32> to vector<1x8x1xf32>
    %381 = vector.broadcast %380 : vector<1x8x1xf32> to vector<1x8x8xf32>
    %382 = arith.cmpf oge, %378, %381 : vector<1x8x8xf32>
    %c8_i32 = arith.constant 8 : i32
    %383 = vector.broadcast %c8_i32 : i32 to vector<1x8x8xi32>
    %384 = arith.select %382, %371, %383 : vector<1x8x8xi1>, vector<1x8x8xi32>
    %cst_260 = arith.constant dense<2147483647> : vector<1x8xi32>
    %385 = vector.multi_reduction <minsi>, %384, %cst_260 [2] : vector<1x8x8xi32> to vector<1x8xi32>
    %386 = arith.index_cast %arg0 : i32 to index
    %c1_261 = arith.constant 1 : index
    %387 = memref.load %arg1[%386, %c1_261] : memref<2x16xi32, #tpu.memory_space<smem>>
    %c0_i32 = arith.constant 0 : i32
    %388 = arith.cmpi sgt, %387, %c0_i32 : i32
    %389 = arith.extui %388 : i1 to i32
    %390 = arith.sitofp %389 : i32 to f32
    %391 = vector.extract_strided_slice %368 {offsets = [1, 0], sizes = [1, 8], strides = [1, 1]} : vector<16x8xf32> to vector<1x8xf32>
    %392 = arith.addf %379, %391 : vector<1x8xf32>
    %393 = arith.subf %392, %374 : vector<1x8xf32>
    %394 = vector.broadcast %390 : f32 to vector<1x8xf32>
    %395 = arith.mulf %394, %393 : vector<1x8xf32>
    %396 = arith.addf %374, %395 : vector<1x8xf32>
    %397 = vector.shape_cast %396 : vector<1x8xf32> to vector<1x1x8xf32>
    %398 = vector.shape_cast %369 : vector<8x8xf32> to vector<1x8x8xf32>
    %399 = vector.broadcast %397 : vector<1x1x8xf32> to vector<1x8x8xf32>
    %400 = arith.addf %399, %398 : vector<1x8x8xf32>
    %cst_262 = arith.constant dense<0xFF800000> : vector<1x8xf32>
    %401 = vector.multi_reduction <maximumf>, %400, %cst_262 [2] : vector<1x8x8xf32> to vector<1x8xf32>
    %402 = vector.shape_cast %401 : vector<1x8xf32> to vector<1x8x1xf32>
    %403 = vector.broadcast %402 : vector<1x8x1xf32> to vector<1x8x8xf32>
    %404 = arith.cmpf oge, %400, %403 : vector<1x8x8xf32>
    %c8_i32_263 = arith.constant 8 : i32
    %405 = vector.broadcast %c8_i32_263 : i32 to vector<1x8x8xi32>
    %406 = arith.select %404, %371, %405 : vector<1x8x8xi1>, vector<1x8x8xi32>
    %cst_264 = arith.constant dense<2147483647> : vector<1x8xi32>
    %407 = vector.multi_reduction <minsi>, %406, %cst_264 [2] : vector<1x8x8xi32> to vector<1x8xi32>
    %408 = arith.index_cast %arg0 : i32 to index
    %c2 = arith.constant 2 : index
    %409 = memref.load %arg1[%408, %c2] : memref<2x16xi32, #tpu.memory_space<smem>>
    %c0_i32_265 = arith.constant 0 : i32
    %410 = arith.cmpi sgt, %409, %c0_i32_265 : i32
    %411 = arith.extui %410 : i1 to i32
    %412 = arith.sitofp %411 : i32 to f32
    %413 = vector.extract_strided_slice %368 {offsets = [2, 0], sizes = [1, 8], strides = [1, 1]} : vector<16x8xf32> to vector<1x8xf32>
    %414 = arith.addf %401, %413 : vector<1x8xf32>
    %415 = arith.subf %414, %396 : vector<1x8xf32>
    %416 = vector.broadcast %412 : f32 to vector<1x8xf32>
    %417 = arith.mulf %416, %415 : vector<1x8xf32>
    %418 = arith.addf %396, %417 : vector<1x8xf32>
    %419 = vector.shape_cast %418 : vector<1x8xf32> to vector<1x1x8xf32>
    %420 = vector.shape_cast %369 : vector<8x8xf32> to vector<1x8x8xf32>
    %421 = vector.broadcast %419 : vector<1x1x8xf32> to vector<1x8x8xf32>
    %422 = arith.addf %421, %420 : vector<1x8x8xf32>
    %cst_266 = arith.constant dense<0xFF800000> : vector<1x8xf32>
    %423 = vector.multi_reduction <maximumf>, %422, %cst_266 [2] : vector<1x8x8xf32> to vector<1x8xf32>
    %424 = vector.shape_cast %423 : vector<1x8xf32> to vector<1x8x1xf32>
    %425 = vector.broadcast %424 : vector<1x8x1xf32> to vector<1x8x8xf32>
    %426 = arith.cmpf oge, %422, %425 : vector<1x8x8xf32>
    %c8_i32_267 = arith.constant 8 : i32
    %427 = vector.broadcast %c8_i32_267 : i32 to vector<1x8x8xi32>
    %428 = arith.select %426, %371, %427 : vector<1x8x8xi1>, vector<1x8x8xi32>
    %cst_268 = arith.constant dense<2147483647> : vector<1x8xi32>
    %429 = vector.multi_reduction <minsi>, %428, %cst_268 [2] : vector<1x8x8xi32> to vector<1x8xi32>
    %430 = arith.index_cast %arg0 : i32 to index
    %c3 = arith.constant 3 : index
    %431 = memref.load %arg1[%430, %c3] : memref<2x16xi32, #tpu.memory_space<smem>>
    %c0_i32_269 = arith.constant 0 : i32
    %432 = arith.cmpi sgt, %431, %c0_i32_269 : i32
    %433 = arith.extui %432 : i1 to i32
    %434 = arith.sitofp %433 : i32 to f32
    %435 = vector.extract_strided_slice %368 {offsets = [3, 0], sizes = [1, 8], strides = [1, 1]} : vector<16x8xf32> to vector<1x8xf32>
    %436 = arith.addf %423, %435 : vector<1x8xf32>
    %437 = arith.subf %436, %418 : vector<1x8xf32>
    %438 = vector.broadcast %434 : f32 to vector<1x8xf32>
    %439 = arith.mulf %438, %437 : vector<1x8xf32>
    %440 = arith.addf %418, %439 : vector<1x8xf32>
    %441 = vector.shape_cast %440 : vector<1x8xf32> to vector<1x1x8xf32>
    %442 = vector.shape_cast %369 : vector<8x8xf32> to vector<1x8x8xf32>
    %443 = vector.broadcast %441 : vector<1x1x8xf32> to vector<1x8x8xf32>
    %444 = arith.addf %443, %442 : vector<1x8x8xf32>
    %cst_270 = arith.constant dense<0xFF800000> : vector<1x8xf32>
    %445 = vector.multi_reduction <maximumf>, %444, %cst_270 [2] : vector<1x8x8xf32> to vector<1x8xf32>
    %446 = vector.shape_cast %445 : vector<1x8xf32> to vector<1x8x1xf32>
    %447 = vector.broadcast %446 : vector<1x8x1xf32> to vector<1x8x8xf32>
    %448 = arith.cmpf oge, %444, %447 : vector<1x8x8xf32>
    %c8_i32_271 = arith.constant 8 : i32
    %449 = vector.broadcast %c8_i32_271 : i32 to vector<1x8x8xi32>
    %450 = arith.select %448, %371, %449 : vector<1x8x8xi1>, vector<1x8x8xi32>
    %cst_272 = arith.constant dense<2147483647> : vector<1x8xi32>
    %451 = vector.multi_reduction <minsi>, %450, %cst_272 [2] : vector<1x8x8xi32> to vector<1x8xi32>
    %452 = arith.index_cast %arg0 : i32 to index
    %c4 = arith.constant 4 : index
    %453 = memref.load %arg1[%452, %c4] : memref<2x16xi32, #tpu.memory_space<smem>>
    %c0_i32_273 = arith.constant 0 : i32
    %454 = arith.cmpi sgt, %453, %c0_i32_273 : i32
    %455 = arith.extui %454 : i1 to i32
    %456 = arith.sitofp %455 : i32 to f32
    %457 = vector.extract_strided_slice %368 {offsets = [4, 0], sizes = [1, 8], strides = [1, 1]} : vector<16x8xf32> to vector<1x8xf32>
    %458 = arith.addf %445, %457 : vector<1x8xf32>
    %459 = arith.subf %458, %440 : vector<1x8xf32>
    %460 = vector.broadcast %456 : f32 to vector<1x8xf32>
    %461 = arith.mulf %460, %459 : vector<1x8xf32>
    %462 = arith.addf %440, %461 : vector<1x8xf32>
    %463 = vector.shape_cast %462 : vector<1x8xf32> to vector<1x1x8xf32>
    %464 = vector.shape_cast %369 : vector<8x8xf32> to vector<1x8x8xf32>
    %465 = vector.broadcast %463 : vector<1x1x8xf32> to vector<1x8x8xf32>
    %466 = arith.addf %465, %464 : vector<1x8x8xf32>
    %cst_274 = arith.constant dense<0xFF800000> : vector<1x8xf32>
    %467 = vector.multi_reduction <maximumf>, %466, %cst_274 [2] : vector<1x8x8xf32> to vector<1x8xf32>
    %468 = vector.shape_cast %467 : vector<1x8xf32> to vector<1x8x1xf32>
    %469 = vector.broadcast %468 : vector<1x8x1xf32> to vector<1x8x8xf32>
    %470 = arith.cmpf oge, %466, %469 : vector<1x8x8xf32>
    %c8_i32_275 = arith.constant 8 : i32
    %471 = vector.broadcast %c8_i32_275 : i32 to vector<1x8x8xi32>
    %472 = arith.select %470, %371, %471 : vector<1x8x8xi1>, vector<1x8x8xi32>
    %cst_276 = arith.constant dense<2147483647> : vector<1x8xi32>
    %473 = vector.multi_reduction <minsi>, %472, %cst_276 [2] : vector<1x8x8xi32> to vector<1x8xi32>
    %474 = arith.index_cast %arg0 : i32 to index
    %c5 = arith.constant 5 : index
    %475 = memref.load %arg1[%474, %c5] : memref<2x16xi32, #tpu.memory_space<smem>>
    %c0_i32_277 = arith.constant 0 : i32
    %476 = arith.cmpi sgt, %475, %c0_i32_277 : i32
    %477 = arith.extui %476 : i1 to i32
    %478 = arith.sitofp %477 : i32 to f32
    %479 = vector.extract_strided_slice %368 {offsets = [5, 0], sizes = [1, 8], strides = [1, 1]} : vector<16x8xf32> to vector<1x8xf32>
    %480 = arith.addf %467, %479 : vector<1x8xf32>
    %481 = arith.subf %480, %462 : vector<1x8xf32>
    %482 = vector.broadcast %478 : f32 to vector<1x8xf32>
    %483 = arith.mulf %482, %481 : vector<1x8xf32>
    %484 = arith.addf %462, %483 : vector<1x8xf32>
    %485 = vector.shape_cast %484 : vector<1x8xf32> to vector<1x1x8xf32>
    %486 = vector.shape_cast %369 : vector<8x8xf32> to vector<1x8x8xf32>
    %487 = vector.broadcast %485 : vector<1x1x8xf32> to vector<1x8x8xf32>
    %488 = arith.addf %487, %486 : vector<1x8x8xf32>
    %cst_278 = arith.constant dense<0xFF800000> : vector<1x8xf32>
    %489 = vector.multi_reduction <maximumf>, %488, %cst_278 [2] : vector<1x8x8xf32> to vector<1x8xf32>
    %490 = vector.shape_cast %489 : vector<1x8xf32> to vector<1x8x1xf32>
    %491 = vector.broadcast %490 : vector<1x8x1xf32> to vector<1x8x8xf32>
    %492 = arith.cmpf oge, %488, %491 : vector<1x8x8xf32>
    %c8_i32_279 = arith.constant 8 : i32
    %493 = vector.broadcast %c8_i32_279 : i32 to vector<1x8x8xi32>
    %494 = arith.select %492, %371, %493 : vector<1x8x8xi1>, vector<1x8x8xi32>
    %cst_280 = arith.constant dense<2147483647> : vector<1x8xi32>
    %495 = vector.multi_reduction <minsi>, %494, %cst_280 [2] : vector<1x8x8xi32> to vector<1x8xi32>
    %496 = arith.index_cast %arg0 : i32 to index
    %c6 = arith.constant 6 : index
    %497 = memref.load %arg1[%496, %c6] : memref<2x16xi32, #tpu.memory_space<smem>>
    %c0_i32_281 = arith.constant 0 : i32
    %498 = arith.cmpi sgt, %497, %c0_i32_281 : i32
    %499 = arith.extui %498 : i1 to i32
    %500 = arith.sitofp %499 : i32 to f32
    %501 = vector.extract_strided_slice %368 {offsets = [6, 0], sizes = [1, 8], strides = [1, 1]} : vector<16x8xf32> to vector<1x8xf32>
    %502 = arith.addf %489, %501 : vector<1x8xf32>
    %503 = arith.subf %502, %484 : vector<1x8xf32>
    %504 = vector.broadcast %500 : f32 to vector<1x8xf32>
    %505 = arith.mulf %504, %503 : vector<1x8xf32>
    %506 = arith.addf %484, %505 : vector<1x8xf32>
    %507 = vector.shape_cast %506 : vector<1x8xf32> to vector<1x1x8xf32>
    %508 = vector.shape_cast %369 : vector<8x8xf32> to vector<1x8x8xf32>
    %509 = vector.broadcast %507 : vector<1x1x8xf32> to vector<1x8x8xf32>
    %510 = arith.addf %509, %508 : vector<1x8x8xf32>
    %cst_282 = arith.constant dense<0xFF800000> : vector<1x8xf32>
    %511 = vector.multi_reduction <maximumf>, %510, %cst_282 [2] : vector<1x8x8xf32> to vector<1x8xf32>
    %512 = vector.shape_cast %511 : vector<1x8xf32> to vector<1x8x1xf32>
    %513 = vector.broadcast %512 : vector<1x8x1xf32> to vector<1x8x8xf32>
    %514 = arith.cmpf oge, %510, %513 : vector<1x8x8xf32>
    %c8_i32_283 = arith.constant 8 : i32
    %515 = vector.broadcast %c8_i32_283 : i32 to vector<1x8x8xi32>
    %516 = arith.select %514, %371, %515 : vector<1x8x8xi1>, vector<1x8x8xi32>
    %cst_284 = arith.constant dense<2147483647> : vector<1x8xi32>
    %517 = vector.multi_reduction <minsi>, %516, %cst_284 [2] : vector<1x8x8xi32> to vector<1x8xi32>
    %518 = arith.index_cast %arg0 : i32 to index
    %c7 = arith.constant 7 : index
    %519 = memref.load %arg1[%518, %c7] : memref<2x16xi32, #tpu.memory_space<smem>>
    %c0_i32_285 = arith.constant 0 : i32
    %520 = arith.cmpi sgt, %519, %c0_i32_285 : i32
    %521 = arith.extui %520 : i1 to i32
    %522 = arith.sitofp %521 : i32 to f32
    %523 = vector.extract_strided_slice %368 {offsets = [7, 0], sizes = [1, 8], strides = [1, 1]} : vector<16x8xf32> to vector<1x8xf32>
    %524 = arith.addf %511, %523 : vector<1x8xf32>
    %525 = arith.subf %524, %506 : vector<1x8xf32>
    %526 = vector.broadcast %522 : f32 to vector<1x8xf32>
    %527 = arith.mulf %526, %525 : vector<1x8xf32>
    %528 = arith.addf %506, %527 : vector<1x8xf32>
    %529 = vector.shape_cast %528 : vector<1x8xf32> to vector<1x1x8xf32>
    %530 = vector.shape_cast %369 : vector<8x8xf32> to vector<1x8x8xf32>
    %531 = vector.broadcast %529 : vector<1x1x8xf32> to vector<1x8x8xf32>
    %532 = arith.addf %531, %530 : vector<1x8x8xf32>
    %cst_286 = arith.constant dense<0xFF800000> : vector<1x8xf32>
    %533 = vector.multi_reduction <maximumf>, %532, %cst_286 [2] : vector<1x8x8xf32> to vector<1x8xf32>
    %534 = vector.shape_cast %533 : vector<1x8xf32> to vector<1x8x1xf32>
    %535 = vector.broadcast %534 : vector<1x8x1xf32> to vector<1x8x8xf32>
    %536 = arith.cmpf oge, %532, %535 : vector<1x8x8xf32>
    %c8_i32_287 = arith.constant 8 : i32
    %537 = vector.broadcast %c8_i32_287 : i32 to vector<1x8x8xi32>
    %538 = arith.select %536, %371, %537 : vector<1x8x8xi1>, vector<1x8x8xi32>
    %cst_288 = arith.constant dense<2147483647> : vector<1x8xi32>
    %539 = vector.multi_reduction <minsi>, %538, %cst_288 [2] : vector<1x8x8xi32> to vector<1x8xi32>
    %540 = arith.index_cast %arg0 : i32 to index
    %c8 = arith.constant 8 : index
    %541 = memref.load %arg1[%540, %c8] : memref<2x16xi32, #tpu.memory_space<smem>>
    %c0_i32_289 = arith.constant 0 : i32
    %542 = arith.cmpi sgt, %541, %c0_i32_289 : i32
    %543 = arith.extui %542 : i1 to i32
    %544 = arith.sitofp %543 : i32 to f32
    %545 = vector.extract_strided_slice %368 {offsets = [8, 0], sizes = [1, 8], strides = [1, 1]} : vector<16x8xf32> to vector<1x8xf32>
    %546 = arith.addf %533, %545 : vector<1x8xf32>
    %547 = arith.subf %546, %528 : vector<1x8xf32>
    %548 = vector.broadcast %544 : f32 to vector<1x8xf32>
    %549 = arith.mulf %548, %547 : vector<1x8xf32>
    %550 = arith.addf %528, %549 : vector<1x8xf32>
    %551 = vector.shape_cast %550 : vector<1x8xf32> to vector<1x1x8xf32>
    %552 = vector.shape_cast %369 : vector<8x8xf32> to vector<1x8x8xf32>
    %553 = vector.broadcast %551 : vector<1x1x8xf32> to vector<1x8x8xf32>
    %554 = arith.addf %553, %552 : vector<1x8x8xf32>
    %cst_290 = arith.constant dense<0xFF800000> : vector<1x8xf32>
    %555 = vector.multi_reduction <maximumf>, %554, %cst_290 [2] : vector<1x8x8xf32> to vector<1x8xf32>
    %556 = vector.shape_cast %555 : vector<1x8xf32> to vector<1x8x1xf32>
    %557 = vector.broadcast %556 : vector<1x8x1xf32> to vector<1x8x8xf32>
    %558 = arith.cmpf oge, %554, %557 : vector<1x8x8xf32>
    %c8_i32_291 = arith.constant 8 : i32
    %559 = vector.broadcast %c8_i32_291 : i32 to vector<1x8x8xi32>
    %560 = arith.select %558, %371, %559 : vector<1x8x8xi1>, vector<1x8x8xi32>
    %cst_292 = arith.constant dense<2147483647> : vector<1x8xi32>
    %561 = vector.multi_reduction <minsi>, %560, %cst_292 [2] : vector<1x8x8xi32> to vector<1x8xi32>
    %562 = arith.index_cast %arg0 : i32 to index
    %c9 = arith.constant 9 : index
    %563 = memref.load %arg1[%562, %c9] : memref<2x16xi32, #tpu.memory_space<smem>>
    %c0_i32_293 = arith.constant 0 : i32
    %564 = arith.cmpi sgt, %563, %c0_i32_293 : i32
    %565 = arith.extui %564 : i1 to i32
    %566 = arith.sitofp %565 : i32 to f32
    %567 = vector.extract_strided_slice %368 {offsets = [9, 0], sizes = [1, 8], strides = [1, 1]} : vector<16x8xf32> to vector<1x8xf32>
    %568 = arith.addf %555, %567 : vector<1x8xf32>
    %569 = arith.subf %568, %550 : vector<1x8xf32>
    %570 = vector.broadcast %566 : f32 to vector<1x8xf32>
    %571 = arith.mulf %570, %569 : vector<1x8xf32>
    %572 = arith.addf %550, %571 : vector<1x8xf32>
    %573 = vector.shape_cast %572 : vector<1x8xf32> to vector<1x1x8xf32>
    %574 = vector.shape_cast %369 : vector<8x8xf32> to vector<1x8x8xf32>
    %575 = vector.broadcast %573 : vector<1x1x8xf32> to vector<1x8x8xf32>
    %576 = arith.addf %575, %574 : vector<1x8x8xf32>
    %cst_294 = arith.constant dense<0xFF800000> : vector<1x8xf32>
    %577 = vector.multi_reduction <maximumf>, %576, %cst_294 [2] : vector<1x8x8xf32> to vector<1x8xf32>
    %578 = vector.shape_cast %577 : vector<1x8xf32> to vector<1x8x1xf32>
    %579 = vector.broadcast %578 : vector<1x8x1xf32> to vector<1x8x8xf32>
    %580 = arith.cmpf oge, %576, %579 : vector<1x8x8xf32>
    %c8_i32_295 = arith.constant 8 : i32
    %581 = vector.broadcast %c8_i32_295 : i32 to vector<1x8x8xi32>
    %582 = arith.select %580, %371, %581 : vector<1x8x8xi1>, vector<1x8x8xi32>
    %cst_296 = arith.constant dense<2147483647> : vector<1x8xi32>
    %583 = vector.multi_reduction <minsi>, %582, %cst_296 [2] : vector<1x8x8xi32> to vector<1x8xi32>
    %584 = arith.index_cast %arg0 : i32 to index
    %c10 = arith.constant 10 : index
    %585 = memref.load %arg1[%584, %c10] : memref<2x16xi32, #tpu.memory_space<smem>>
    %c0_i32_297 = arith.constant 0 : i32
    %586 = arith.cmpi sgt, %585, %c0_i32_297 : i32
    %587 = arith.extui %586 : i1 to i32
    %588 = arith.sitofp %587 : i32 to f32
    %589 = vector.extract_strided_slice %368 {offsets = [10, 0], sizes = [1, 8], strides = [1, 1]} : vector<16x8xf32> to vector<1x8xf32>
    %590 = arith.addf %577, %589 : vector<1x8xf32>
    %591 = arith.subf %590, %572 : vector<1x8xf32>
    %592 = vector.broadcast %588 : f32 to vector<1x8xf32>
    %593 = arith.mulf %592, %591 : vector<1x8xf32>
    %594 = arith.addf %572, %593 : vector<1x8xf32>
    %595 = vector.shape_cast %594 : vector<1x8xf32> to vector<1x1x8xf32>
    %596 = vector.shape_cast %369 : vector<8x8xf32> to vector<1x8x8xf32>
    %597 = vector.broadcast %595 : vector<1x1x8xf32> to vector<1x8x8xf32>
    %598 = arith.addf %597, %596 : vector<1x8x8xf32>
    %cst_298 = arith.constant dense<0xFF800000> : vector<1x8xf32>
    %599 = vector.multi_reduction <maximumf>, %598, %cst_298 [2] : vector<1x8x8xf32> to vector<1x8xf32>
    %600 = vector.shape_cast %599 : vector<1x8xf32> to vector<1x8x1xf32>
    %601 = vector.broadcast %600 : vector<1x8x1xf32> to vector<1x8x8xf32>
    %602 = arith.cmpf oge, %598, %601 : vector<1x8x8xf32>
    %c8_i32_299 = arith.constant 8 : i32
    %603 = vector.broadcast %c8_i32_299 : i32 to vector<1x8x8xi32>
    %604 = arith.select %602, %371, %603 : vector<1x8x8xi1>, vector<1x8x8xi32>
    %cst_300 = arith.constant dense<2147483647> : vector<1x8xi32>
    %605 = vector.multi_reduction <minsi>, %604, %cst_300 [2] : vector<1x8x8xi32> to vector<1x8xi32>
    %606 = arith.index_cast %arg0 : i32 to index
    %c11 = arith.constant 11 : index
    %607 = memref.load %arg1[%606, %c11] : memref<2x16xi32, #tpu.memory_space<smem>>
    %c0_i32_301 = arith.constant 0 : i32
    %608 = arith.cmpi sgt, %607, %c0_i32_301 : i32
    %609 = arith.extui %608 : i1 to i32
    %610 = arith.sitofp %609 : i32 to f32
    %611 = vector.extract_strided_slice %368 {offsets = [11, 0], sizes = [1, 8], strides = [1, 1]} : vector<16x8xf32> to vector<1x8xf32>
    %612 = arith.addf %599, %611 : vector<1x8xf32>
    %613 = arith.subf %612, %594 : vector<1x8xf32>
    %614 = vector.broadcast %610 : f32 to vector<1x8xf32>
    %615 = arith.mulf %614, %613 : vector<1x8xf32>
    %616 = arith.addf %594, %615 : vector<1x8xf32>
    %617 = vector.shape_cast %616 : vector<1x8xf32> to vector<1x1x8xf32>
    %618 = vector.shape_cast %369 : vector<8x8xf32> to vector<1x8x8xf32>
    %619 = vector.broadcast %617 : vector<1x1x8xf32> to vector<1x8x8xf32>
    %620 = arith.addf %619, %618 : vector<1x8x8xf32>
    %cst_302 = arith.constant dense<0xFF800000> : vector<1x8xf32>
    %621 = vector.multi_reduction <maximumf>, %620, %cst_302 [2] : vector<1x8x8xf32> to vector<1x8xf32>
    %622 = vector.shape_cast %621 : vector<1x8xf32> to vector<1x8x1xf32>
    %623 = vector.broadcast %622 : vector<1x8x1xf32> to vector<1x8x8xf32>
    %624 = arith.cmpf oge, %620, %623 : vector<1x8x8xf32>
    %c8_i32_303 = arith.constant 8 : i32
    %625 = vector.broadcast %c8_i32_303 : i32 to vector<1x8x8xi32>
    %626 = arith.select %624, %371, %625 : vector<1x8x8xi1>, vector<1x8x8xi32>
    %cst_304 = arith.constant dense<2147483647> : vector<1x8xi32>
    %627 = vector.multi_reduction <minsi>, %626, %cst_304 [2] : vector<1x8x8xi32> to vector<1x8xi32>
    %628 = arith.index_cast %arg0 : i32 to index
    %c12 = arith.constant 12 : index
    %629 = memref.load %arg1[%628, %c12] : memref<2x16xi32, #tpu.memory_space<smem>>
    %c0_i32_305 = arith.constant 0 : i32
    %630 = arith.cmpi sgt, %629, %c0_i32_305 : i32
    %631 = arith.extui %630 : i1 to i32
    %632 = arith.sitofp %631 : i32 to f32
    %633 = vector.extract_strided_slice %368 {offsets = [12, 0], sizes = [1, 8], strides = [1, 1]} : vector<16x8xf32> to vector<1x8xf32>
    %634 = arith.addf %621, %633 : vector<1x8xf32>
    %635 = arith.subf %634, %616 : vector<1x8xf32>
    %636 = vector.broadcast %632 : f32 to vector<1x8xf32>
    %637 = arith.mulf %636, %635 : vector<1x8xf32>
    %638 = arith.addf %616, %637 : vector<1x8xf32>
    %639 = vector.shape_cast %638 : vector<1x8xf32> to vector<1x1x8xf32>
    %640 = vector.shape_cast %369 : vector<8x8xf32> to vector<1x8x8xf32>
    %641 = vector.broadcast %639 : vector<1x1x8xf32> to vector<1x8x8xf32>
    %642 = arith.addf %641, %640 : vector<1x8x8xf32>
    %cst_306 = arith.constant dense<0xFF800000> : vector<1x8xf32>
    %643 = vector.multi_reduction <maximumf>, %642, %cst_306 [2] : vector<1x8x8xf32> to vector<1x8xf32>
    %644 = vector.shape_cast %643 : vector<1x8xf32> to vector<1x8x1xf32>
    %645 = vector.broadcast %644 : vector<1x8x1xf32> to vector<1x8x8xf32>
    %646 = arith.cmpf oge, %642, %645 : vector<1x8x8xf32>
    %c8_i32_307 = arith.constant 8 : i32
    %647 = vector.broadcast %c8_i32_307 : i32 to vector<1x8x8xi32>
    %648 = arith.select %646, %371, %647 : vector<1x8x8xi1>, vector<1x8x8xi32>
    %cst_308 = arith.constant dense<2147483647> : vector<1x8xi32>
    %649 = vector.multi_reduction <minsi>, %648, %cst_308 [2] : vector<1x8x8xi32> to vector<1x8xi32>
    %650 = arith.index_cast %arg0 : i32 to index
    %c13 = arith.constant 13 : index
    %651 = memref.load %arg1[%650, %c13] : memref<2x16xi32, #tpu.memory_space<smem>>
    %c0_i32_309 = arith.constant 0 : i32
    %652 = arith.cmpi sgt, %651, %c0_i32_309 : i32
    %653 = arith.extui %652 : i1 to i32
    %654 = arith.sitofp %653 : i32 to f32
    %655 = vector.extract_strided_slice %368 {offsets = [13, 0], sizes = [1, 8], strides = [1, 1]} : vector<16x8xf32> to vector<1x8xf32>
    %656 = arith.addf %643, %655 : vector<1x8xf32>
    %657 = arith.subf %656, %638 : vector<1x8xf32>
    %658 = vector.broadcast %654 : f32 to vector<1x8xf32>
    %659 = arith.mulf %658, %657 : vector<1x8xf32>
    %660 = arith.addf %638, %659 : vector<1x8xf32>
    %661 = vector.shape_cast %660 : vector<1x8xf32> to vector<1x1x8xf32>
    %662 = vector.shape_cast %369 : vector<8x8xf32> to vector<1x8x8xf32>
    %663 = vector.broadcast %661 : vector<1x1x8xf32> to vector<1x8x8xf32>
    %664 = arith.addf %663, %662 : vector<1x8x8xf32>
    %cst_310 = arith.constant dense<0xFF800000> : vector<1x8xf32>
    %665 = vector.multi_reduction <maximumf>, %664, %cst_310 [2] : vector<1x8x8xf32> to vector<1x8xf32>
    %666 = vector.shape_cast %665 : vector<1x8xf32> to vector<1x8x1xf32>
    %667 = vector.broadcast %666 : vector<1x8x1xf32> to vector<1x8x8xf32>
    %668 = arith.cmpf oge, %664, %667 : vector<1x8x8xf32>
    %c8_i32_311 = arith.constant 8 : i32
    %669 = vector.broadcast %c8_i32_311 : i32 to vector<1x8x8xi32>
    %670 = arith.select %668, %371, %669 : vector<1x8x8xi1>, vector<1x8x8xi32>
    %cst_312 = arith.constant dense<2147483647> : vector<1x8xi32>
    %671 = vector.multi_reduction <minsi>, %670, %cst_312 [2] : vector<1x8x8xi32> to vector<1x8xi32>
    %672 = arith.index_cast %arg0 : i32 to index
    %c14 = arith.constant 14 : index
    %673 = memref.load %arg1[%672, %c14] : memref<2x16xi32, #tpu.memory_space<smem>>
    %c0_i32_313 = arith.constant 0 : i32
    %674 = arith.cmpi sgt, %673, %c0_i32_313 : i32
    %675 = arith.extui %674 : i1 to i32
    %676 = arith.sitofp %675 : i32 to f32
    %677 = vector.extract_strided_slice %368 {offsets = [14, 0], sizes = [1, 8], strides = [1, 1]} : vector<16x8xf32> to vector<1x8xf32>
    %678 = arith.addf %665, %677 : vector<1x8xf32>
    %679 = arith.subf %678, %660 : vector<1x8xf32>
    %680 = vector.broadcast %676 : f32 to vector<1x8xf32>
    %681 = arith.mulf %680, %679 : vector<1x8xf32>
    %682 = arith.addf %660, %681 : vector<1x8xf32>
    %683 = vector.shape_cast %682 : vector<1x8xf32> to vector<1x1x8xf32>
    %684 = vector.shape_cast %369 : vector<8x8xf32> to vector<1x8x8xf32>
    %685 = vector.broadcast %683 : vector<1x1x8xf32> to vector<1x8x8xf32>
    %686 = arith.addf %685, %684 : vector<1x8x8xf32>
    %cst_314 = arith.constant dense<0xFF800000> : vector<1x8xf32>
    %687 = vector.multi_reduction <maximumf>, %686, %cst_314 [2] : vector<1x8x8xf32> to vector<1x8xf32>
    %688 = vector.shape_cast %687 : vector<1x8xf32> to vector<1x8x1xf32>
    %689 = vector.broadcast %688 : vector<1x8x1xf32> to vector<1x8x8xf32>
    %690 = arith.cmpf oge, %686, %689 : vector<1x8x8xf32>
    %c8_i32_315 = arith.constant 8 : i32
    %691 = vector.broadcast %c8_i32_315 : i32 to vector<1x8x8xi32>
    %692 = arith.select %690, %371, %691 : vector<1x8x8xi1>, vector<1x8x8xi32>
    %cst_316 = arith.constant dense<2147483647> : vector<1x8xi32>
    %693 = vector.multi_reduction <minsi>, %692, %cst_316 [2] : vector<1x8x8xi32> to vector<1x8xi32>
    %694 = arith.index_cast %arg0 : i32 to index
    %c15 = arith.constant 15 : index
    %695 = memref.load %arg1[%694, %c15] : memref<2x16xi32, #tpu.memory_space<smem>>
    %c0_i32_317 = arith.constant 0 : i32
    %696 = arith.cmpi sgt, %695, %c0_i32_317 : i32
    %697 = arith.extui %696 : i1 to i32
    %698 = arith.sitofp %697 : i32 to f32
    %699 = vector.extract_strided_slice %368 {offsets = [15, 0], sizes = [1, 8], strides = [1, 1]} : vector<16x8xf32> to vector<1x8xf32>
    %700 = arith.addf %687, %699 : vector<1x8xf32>
    %701 = arith.subf %700, %682 : vector<1x8xf32>
    %702 = vector.broadcast %698 : f32 to vector<1x8xf32>
    %703 = arith.mulf %702, %701 : vector<1x8xf32>
    %704 = arith.addf %682, %703 : vector<1x8xf32>
    %c0_318 = arith.constant 0 : index
    %c0_319 = arith.constant 0 : index
    %705 = vector.load %arg25[%c0_318, %c0_319] : memref<1x8xf32, #tpu.memory_space<vmem>>, vector<1x8xf32>
    %706 = arith.addf %704, %705 : vector<1x8xf32>
    %cst_320 = arith.constant dense<0xFF800000> : vector<1xf32>
    %707 = vector.multi_reduction <maximumf>, %706, %cst_320 [1] : vector<1x8xf32> to vector<1xf32>
    %708 = vector.shape_cast %707 : vector<1xf32> to vector<1x1xf32>
    %709 = vector.broadcast %708 : vector<1x1xf32> to vector<1x8xf32>
    %710 = arith.cmpf oge, %706, %709 : vector<1x8xf32>
    %c8_i32_321 = arith.constant 8 : i32
    %711 = vector.broadcast %c8_i32_321 : i32 to vector<1x8xi32>
    %712 = arith.select %710, %370, %711 : vector<1x8xi1>, vector<1x8xi32>
    %cst_322 = arith.constant dense<2147483647> : vector<1xi32>
    %713 = vector.multi_reduction <minsi>, %712, %cst_322 [1] : vector<1x8xi32> to vector<1xi32>
    %714 = vector.shape_cast %713 : vector<1xi32> to vector<1x1xi32>
    %715 = tpu.iota {dimensions = array<i32: 1>} : vector<1x16xi32>
    %c0_i32_323 = arith.constant 0 : i32
    %716 = vector.broadcast %c0_i32_323 : i32 to vector<1x16xi32>
    %717 = arith.index_cast %arg0 : i32 to index
    %c15_324 = arith.constant 15 : index
    %718 = memref.load %arg1[%717, %c15_324] : memref<2x16xi32, #tpu.memory_space<smem>>
    %719 = vector.broadcast %718 : i32 to vector<1x1xi32>
    %720 = arith.muli %719, %714 : vector<1x1xi32>
    %c15_i32 = arith.constant 15 : i32
    %721 = vector.broadcast %c15_i32 : i32 to vector<1x16xi32>
    %722 = arith.cmpi eq, %715, %721 : vector<1x16xi32>
    %723 = vector.shape_cast %720 : vector<1x1xi32> to vector<1x1xi32>
    %724 = vector.broadcast %723 : vector<1x1xi32> to vector<1x16xi32>
    %725 = arith.select %722, %724, %716 : vector<1x16xi1>, vector<1x16xi32>
    %726 = vector.broadcast %714 : vector<1x1xi32> to vector<1x8xi32>
    %727 = arith.cmpi eq, %370, %726 : vector<1x8xi32>
    %c0_i32_325 = arith.constant 0 : i32
    %728 = vector.broadcast %c0_i32_325 : i32 to vector<1x8xi32>
    %729 = arith.select %727, %693, %728 : vector<1x8xi1>, vector<1x8xi32>
    %cst_326 = arith.constant dense<0> : vector<1xi32>
    %730 = vector.multi_reduction <add>, %729, %cst_326 [1] : vector<1x8xi32> to vector<1xi32>
    %731 = vector.shape_cast %730 : vector<1xi32> to vector<1x1xi32>
    %732 = arith.index_cast %arg0 : i32 to index
    %c15_327 = arith.constant 15 : index
    %733 = memref.load %arg1[%732, %c15_327] : memref<2x16xi32, #tpu.memory_space<smem>>
    %734 = arith.subi %731, %714 : vector<1x1xi32>
    %735 = vector.broadcast %733 : i32 to vector<1x1xi32>
    %736 = arith.muli %735, %734 : vector<1x1xi32>
    %737 = arith.addi %714, %736 : vector<1x1xi32>
    %738 = arith.index_cast %arg0 : i32 to index
    %c14_328 = arith.constant 14 : index
    %739 = memref.load %arg1[%738, %c14_328] : memref<2x16xi32, #tpu.memory_space<smem>>
    %740 = vector.broadcast %739 : i32 to vector<1x1xi32>
    %741 = arith.muli %740, %737 : vector<1x1xi32>
    %c14_i32 = arith.constant 14 : i32
    %742 = vector.broadcast %c14_i32 : i32 to vector<1x16xi32>
    %743 = arith.cmpi eq, %715, %742 : vector<1x16xi32>
    %744 = vector.shape_cast %741 : vector<1x1xi32> to vector<1x1xi32>
    %745 = vector.broadcast %744 : vector<1x1xi32> to vector<1x16xi32>
    %746 = arith.select %743, %745, %725 : vector<1x16xi1>, vector<1x16xi32>
    %747 = vector.broadcast %737 : vector<1x1xi32> to vector<1x8xi32>
    %748 = arith.cmpi eq, %370, %747 : vector<1x8xi32>
    %c0_i32_329 = arith.constant 0 : i32
    %749 = vector.broadcast %c0_i32_329 : i32 to vector<1x8xi32>
    %750 = arith.select %748, %671, %749 : vector<1x8xi1>, vector<1x8xi32>
    %cst_330 = arith.constant dense<0> : vector<1xi32>
    %751 = vector.multi_reduction <add>, %750, %cst_330 [1] : vector<1x8xi32> to vector<1xi32>
    %752 = vector.shape_cast %751 : vector<1xi32> to vector<1x1xi32>
    %753 = arith.index_cast %arg0 : i32 to index
    %c14_331 = arith.constant 14 : index
    %754 = memref.load %arg1[%753, %c14_331] : memref<2x16xi32, #tpu.memory_space<smem>>
    %755 = arith.subi %752, %737 : vector<1x1xi32>
    %756 = vector.broadcast %754 : i32 to vector<1x1xi32>
    %757 = arith.muli %756, %755 : vector<1x1xi32>
    %758 = arith.addi %737, %757 : vector<1x1xi32>
    %759 = arith.index_cast %arg0 : i32 to index
    %c13_332 = arith.constant 13 : index
    %760 = memref.load %arg1[%759, %c13_332] : memref<2x16xi32, #tpu.memory_space<smem>>
    %761 = vector.broadcast %760 : i32 to vector<1x1xi32>
    %762 = arith.muli %761, %758 : vector<1x1xi32>
    %c13_i32 = arith.constant 13 : i32
    %763 = vector.broadcast %c13_i32 : i32 to vector<1x16xi32>
    %764 = arith.cmpi eq, %715, %763 : vector<1x16xi32>
    %765 = vector.shape_cast %762 : vector<1x1xi32> to vector<1x1xi32>
    %766 = vector.broadcast %765 : vector<1x1xi32> to vector<1x16xi32>
    %767 = arith.select %764, %766, %746 : vector<1x16xi1>, vector<1x16xi32>
    %768 = vector.broadcast %758 : vector<1x1xi32> to vector<1x8xi32>
    %769 = arith.cmpi eq, %370, %768 : vector<1x8xi32>
    %c0_i32_333 = arith.constant 0 : i32
    %770 = vector.broadcast %c0_i32_333 : i32 to vector<1x8xi32>
    %771 = arith.select %769, %649, %770 : vector<1x8xi1>, vector<1x8xi32>
    %cst_334 = arith.constant dense<0> : vector<1xi32>
    %772 = vector.multi_reduction <add>, %771, %cst_334 [1] : vector<1x8xi32> to vector<1xi32>
    %773 = vector.shape_cast %772 : vector<1xi32> to vector<1x1xi32>
    %774 = arith.index_cast %arg0 : i32 to index
    %c13_335 = arith.constant 13 : index
    %775 = memref.load %arg1[%774, %c13_335] : memref<2x16xi32, #tpu.memory_space<smem>>
    %776 = arith.subi %773, %758 : vector<1x1xi32>
    %777 = vector.broadcast %775 : i32 to vector<1x1xi32>
    %778 = arith.muli %777, %776 : vector<1x1xi32>
    %779 = arith.addi %758, %778 : vector<1x1xi32>
    %780 = arith.index_cast %arg0 : i32 to index
    %c12_336 = arith.constant 12 : index
    %781 = memref.load %arg1[%780, %c12_336] : memref<2x16xi32, #tpu.memory_space<smem>>
    %782 = vector.broadcast %781 : i32 to vector<1x1xi32>
    %783 = arith.muli %782, %779 : vector<1x1xi32>
    %c12_i32 = arith.constant 12 : i32
    %784 = vector.broadcast %c12_i32 : i32 to vector<1x16xi32>
    %785 = arith.cmpi eq, %715, %784 : vector<1x16xi32>
    %786 = vector.shape_cast %783 : vector<1x1xi32> to vector<1x1xi32>
    %787 = vector.broadcast %786 : vector<1x1xi32> to vector<1x16xi32>
    %788 = arith.select %785, %787, %767 : vector<1x16xi1>, vector<1x16xi32>
    %789 = vector.broadcast %779 : vector<1x1xi32> to vector<1x8xi32>
    %790 = arith.cmpi eq, %370, %789 : vector<1x8xi32>
    %c0_i32_337 = arith.constant 0 : i32
    %791 = vector.broadcast %c0_i32_337 : i32 to vector<1x8xi32>
    %792 = arith.select %790, %627, %791 : vector<1x8xi1>, vector<1x8xi32>
    %cst_338 = arith.constant dense<0> : vector<1xi32>
    %793 = vector.multi_reduction <add>, %792, %cst_338 [1] : vector<1x8xi32> to vector<1xi32>
    %794 = vector.shape_cast %793 : vector<1xi32> to vector<1x1xi32>
    %795 = arith.index_cast %arg0 : i32 to index
    %c12_339 = arith.constant 12 : index
    %796 = memref.load %arg1[%795, %c12_339] : memref<2x16xi32, #tpu.memory_space<smem>>
    %797 = arith.subi %794, %779 : vector<1x1xi32>
    %798 = vector.broadcast %796 : i32 to vector<1x1xi32>
    %799 = arith.muli %798, %797 : vector<1x1xi32>
    %800 = arith.addi %779, %799 : vector<1x1xi32>
    %801 = arith.index_cast %arg0 : i32 to index
    %c11_340 = arith.constant 11 : index
    %802 = memref.load %arg1[%801, %c11_340] : memref<2x16xi32, #tpu.memory_space<smem>>
    %803 = vector.broadcast %802 : i32 to vector<1x1xi32>
    %804 = arith.muli %803, %800 : vector<1x1xi32>
    %c11_i32 = arith.constant 11 : i32
    %805 = vector.broadcast %c11_i32 : i32 to vector<1x16xi32>
    %806 = arith.cmpi eq, %715, %805 : vector<1x16xi32>
    %807 = vector.shape_cast %804 : vector<1x1xi32> to vector<1x1xi32>
    %808 = vector.broadcast %807 : vector<1x1xi32> to vector<1x16xi32>
    %809 = arith.select %806, %808, %788 : vector<1x16xi1>, vector<1x16xi32>
    %810 = vector.broadcast %800 : vector<1x1xi32> to vector<1x8xi32>
    %811 = arith.cmpi eq, %370, %810 : vector<1x8xi32>
    %c0_i32_341 = arith.constant 0 : i32
    %812 = vector.broadcast %c0_i32_341 : i32 to vector<1x8xi32>
    %813 = arith.select %811, %605, %812 : vector<1x8xi1>, vector<1x8xi32>
    %cst_342 = arith.constant dense<0> : vector<1xi32>
    %814 = vector.multi_reduction <add>, %813, %cst_342 [1] : vector<1x8xi32> to vector<1xi32>
    %815 = vector.shape_cast %814 : vector<1xi32> to vector<1x1xi32>
    %816 = arith.index_cast %arg0 : i32 to index
    %c11_343 = arith.constant 11 : index
    %817 = memref.load %arg1[%816, %c11_343] : memref<2x16xi32, #tpu.memory_space<smem>>
    %818 = arith.subi %815, %800 : vector<1x1xi32>
    %819 = vector.broadcast %817 : i32 to vector<1x1xi32>
    %820 = arith.muli %819, %818 : vector<1x1xi32>
    %821 = arith.addi %800, %820 : vector<1x1xi32>
    %822 = arith.index_cast %arg0 : i32 to index
    %c10_344 = arith.constant 10 : index
    %823 = memref.load %arg1[%822, %c10_344] : memref<2x16xi32, #tpu.memory_space<smem>>
    %824 = vector.broadcast %823 : i32 to vector<1x1xi32>
    %825 = arith.muli %824, %821 : vector<1x1xi32>
    %c10_i32 = arith.constant 10 : i32
    %826 = vector.broadcast %c10_i32 : i32 to vector<1x16xi32>
    %827 = arith.cmpi eq, %715, %826 : vector<1x16xi32>
    %828 = vector.shape_cast %825 : vector<1x1xi32> to vector<1x1xi32>
    %829 = vector.broadcast %828 : vector<1x1xi32> to vector<1x16xi32>
    %830 = arith.select %827, %829, %809 : vector<1x16xi1>, vector<1x16xi32>
    %831 = vector.broadcast %821 : vector<1x1xi32> to vector<1x8xi32>
    %832 = arith.cmpi eq, %370, %831 : vector<1x8xi32>
    %c0_i32_345 = arith.constant 0 : i32
    %833 = vector.broadcast %c0_i32_345 : i32 to vector<1x8xi32>
    %834 = arith.select %832, %583, %833 : vector<1x8xi1>, vector<1x8xi32>
    %cst_346 = arith.constant dense<0> : vector<1xi32>
    %835 = vector.multi_reduction <add>, %834, %cst_346 [1] : vector<1x8xi32> to vector<1xi32>
    %836 = vector.shape_cast %835 : vector<1xi32> to vector<1x1xi32>
    %837 = arith.index_cast %arg0 : i32 to index
    %c10_347 = arith.constant 10 : index
    %838 = memref.load %arg1[%837, %c10_347] : memref<2x16xi32, #tpu.memory_space<smem>>
    %839 = arith.subi %836, %821 : vector<1x1xi32>
    %840 = vector.broadcast %838 : i32 to vector<1x1xi32>
    %841 = arith.muli %840, %839 : vector<1x1xi32>
    %842 = arith.addi %821, %841 : vector<1x1xi32>
    %843 = arith.index_cast %arg0 : i32 to index
    %c9_348 = arith.constant 9 : index
    %844 = memref.load %arg1[%843, %c9_348] : memref<2x16xi32, #tpu.memory_space<smem>>
    %845 = vector.broadcast %844 : i32 to vector<1x1xi32>
    %846 = arith.muli %845, %842 : vector<1x1xi32>
    %c9_i32 = arith.constant 9 : i32
    %847 = vector.broadcast %c9_i32 : i32 to vector<1x16xi32>
    %848 = arith.cmpi eq, %715, %847 : vector<1x16xi32>
    %849 = vector.shape_cast %846 : vector<1x1xi32> to vector<1x1xi32>
    %850 = vector.broadcast %849 : vector<1x1xi32> to vector<1x16xi32>
    %851 = arith.select %848, %850, %830 : vector<1x16xi1>, vector<1x16xi32>
    %852 = vector.broadcast %842 : vector<1x1xi32> to vector<1x8xi32>
    %853 = arith.cmpi eq, %370, %852 : vector<1x8xi32>
    %c0_i32_349 = arith.constant 0 : i32
    %854 = vector.broadcast %c0_i32_349 : i32 to vector<1x8xi32>
    %855 = arith.select %853, %561, %854 : vector<1x8xi1>, vector<1x8xi32>
    %cst_350 = arith.constant dense<0> : vector<1xi32>
    %856 = vector.multi_reduction <add>, %855, %cst_350 [1] : vector<1x8xi32> to vector<1xi32>
    %857 = vector.shape_cast %856 : vector<1xi32> to vector<1x1xi32>
    %858 = arith.index_cast %arg0 : i32 to index
    %c9_351 = arith.constant 9 : index
    %859 = memref.load %arg1[%858, %c9_351] : memref<2x16xi32, #tpu.memory_space<smem>>
    %860 = arith.subi %857, %842 : vector<1x1xi32>
    %861 = vector.broadcast %859 : i32 to vector<1x1xi32>
    %862 = arith.muli %861, %860 : vector<1x1xi32>
    %863 = arith.addi %842, %862 : vector<1x1xi32>
    %864 = arith.index_cast %arg0 : i32 to index
    %c8_352 = arith.constant 8 : index
    %865 = memref.load %arg1[%864, %c8_352] : memref<2x16xi32, #tpu.memory_space<smem>>
    %866 = vector.broadcast %865 : i32 to vector<1x1xi32>
    %867 = arith.muli %866, %863 : vector<1x1xi32>
    %c8_i32_353 = arith.constant 8 : i32
    %868 = vector.broadcast %c8_i32_353 : i32 to vector<1x16xi32>
    %869 = arith.cmpi eq, %715, %868 : vector<1x16xi32>
    %870 = vector.shape_cast %867 : vector<1x1xi32> to vector<1x1xi32>
    %871 = vector.broadcast %870 : vector<1x1xi32> to vector<1x16xi32>
    %872 = arith.select %869, %871, %851 : vector<1x16xi1>, vector<1x16xi32>
    %873 = vector.broadcast %863 : vector<1x1xi32> to vector<1x8xi32>
    %874 = arith.cmpi eq, %370, %873 : vector<1x8xi32>
    %c0_i32_354 = arith.constant 0 : i32
    %875 = vector.broadcast %c0_i32_354 : i32 to vector<1x8xi32>
    %876 = arith.select %874, %539, %875 : vector<1x8xi1>, vector<1x8xi32>
    %cst_355 = arith.constant dense<0> : vector<1xi32>
    %877 = vector.multi_reduction <add>, %876, %cst_355 [1] : vector<1x8xi32> to vector<1xi32>
    %878 = vector.shape_cast %877 : vector<1xi32> to vector<1x1xi32>
    %879 = arith.index_cast %arg0 : i32 to index
    %c8_356 = arith.constant 8 : index
    %880 = memref.load %arg1[%879, %c8_356] : memref<2x16xi32, #tpu.memory_space<smem>>
    %881 = arith.subi %878, %863 : vector<1x1xi32>
    %882 = vector.broadcast %880 : i32 to vector<1x1xi32>
    %883 = arith.muli %882, %881 : vector<1x1xi32>
    %884 = arith.addi %863, %883 : vector<1x1xi32>
    %885 = arith.index_cast %arg0 : i32 to index
    %c7_357 = arith.constant 7 : index
    %886 = memref.load %arg1[%885, %c7_357] : memref<2x16xi32, #tpu.memory_space<smem>>
    %887 = vector.broadcast %886 : i32 to vector<1x1xi32>
    %888 = arith.muli %887, %884 : vector<1x1xi32>
    %c7_i32 = arith.constant 7 : i32
    %889 = vector.broadcast %c7_i32 : i32 to vector<1x16xi32>
    %890 = arith.cmpi eq, %715, %889 : vector<1x16xi32>
    %891 = vector.shape_cast %888 : vector<1x1xi32> to vector<1x1xi32>
    %892 = vector.broadcast %891 : vector<1x1xi32> to vector<1x16xi32>
    %893 = arith.select %890, %892, %872 : vector<1x16xi1>, vector<1x16xi32>
    %894 = vector.broadcast %884 : vector<1x1xi32> to vector<1x8xi32>
    %895 = arith.cmpi eq, %370, %894 : vector<1x8xi32>
    %c0_i32_358 = arith.constant 0 : i32
    %896 = vector.broadcast %c0_i32_358 : i32 to vector<1x8xi32>
    %897 = arith.select %895, %517, %896 : vector<1x8xi1>, vector<1x8xi32>
    %cst_359 = arith.constant dense<0> : vector<1xi32>
    %898 = vector.multi_reduction <add>, %897, %cst_359 [1] : vector<1x8xi32> to vector<1xi32>
    %899 = vector.shape_cast %898 : vector<1xi32> to vector<1x1xi32>
    %900 = arith.index_cast %arg0 : i32 to index
    %c7_360 = arith.constant 7 : index
    %901 = memref.load %arg1[%900, %c7_360] : memref<2x16xi32, #tpu.memory_space<smem>>
    %902 = arith.subi %899, %884 : vector<1x1xi32>
    %903 = vector.broadcast %901 : i32 to vector<1x1xi32>
    %904 = arith.muli %903, %902 : vector<1x1xi32>
    %905 = arith.addi %884, %904 : vector<1x1xi32>
    %906 = arith.index_cast %arg0 : i32 to index
    %c6_361 = arith.constant 6 : index
    %907 = memref.load %arg1[%906, %c6_361] : memref<2x16xi32, #tpu.memory_space<smem>>
    %908 = vector.broadcast %907 : i32 to vector<1x1xi32>
    %909 = arith.muli %908, %905 : vector<1x1xi32>
    %c6_i32 = arith.constant 6 : i32
    %910 = vector.broadcast %c6_i32 : i32 to vector<1x16xi32>
    %911 = arith.cmpi eq, %715, %910 : vector<1x16xi32>
    %912 = vector.shape_cast %909 : vector<1x1xi32> to vector<1x1xi32>
    %913 = vector.broadcast %912 : vector<1x1xi32> to vector<1x16xi32>
    %914 = arith.select %911, %913, %893 : vector<1x16xi1>, vector<1x16xi32>
    %915 = vector.broadcast %905 : vector<1x1xi32> to vector<1x8xi32>
    %916 = arith.cmpi eq, %370, %915 : vector<1x8xi32>
    %c0_i32_362 = arith.constant 0 : i32
    %917 = vector.broadcast %c0_i32_362 : i32 to vector<1x8xi32>
    %918 = arith.select %916, %495, %917 : vector<1x8xi1>, vector<1x8xi32>
    %cst_363 = arith.constant dense<0> : vector<1xi32>
    %919 = vector.multi_reduction <add>, %918, %cst_363 [1] : vector<1x8xi32> to vector<1xi32>
    %920 = vector.shape_cast %919 : vector<1xi32> to vector<1x1xi32>
    %921 = arith.index_cast %arg0 : i32 to index
    %c6_364 = arith.constant 6 : index
    %922 = memref.load %arg1[%921, %c6_364] : memref<2x16xi32, #tpu.memory_space<smem>>
    %923 = arith.subi %920, %905 : vector<1x1xi32>
    %924 = vector.broadcast %922 : i32 to vector<1x1xi32>
    %925 = arith.muli %924, %923 : vector<1x1xi32>
    %926 = arith.addi %905, %925 : vector<1x1xi32>
    %927 = arith.index_cast %arg0 : i32 to index
    %c5_365 = arith.constant 5 : index
    %928 = memref.load %arg1[%927, %c5_365] : memref<2x16xi32, #tpu.memory_space<smem>>
    %929 = vector.broadcast %928 : i32 to vector<1x1xi32>
    %930 = arith.muli %929, %926 : vector<1x1xi32>
    %c5_i32 = arith.constant 5 : i32
    %931 = vector.broadcast %c5_i32 : i32 to vector<1x16xi32>
    %932 = arith.cmpi eq, %715, %931 : vector<1x16xi32>
    %933 = vector.shape_cast %930 : vector<1x1xi32> to vector<1x1xi32>
    %934 = vector.broadcast %933 : vector<1x1xi32> to vector<1x16xi32>
    %935 = arith.select %932, %934, %914 : vector<1x16xi1>, vector<1x16xi32>
    %936 = vector.broadcast %926 : vector<1x1xi32> to vector<1x8xi32>
    %937 = arith.cmpi eq, %370, %936 : vector<1x8xi32>
    %c0_i32_366 = arith.constant 0 : i32
    %938 = vector.broadcast %c0_i32_366 : i32 to vector<1x8xi32>
    %939 = arith.select %937, %473, %938 : vector<1x8xi1>, vector<1x8xi32>
    %cst_367 = arith.constant dense<0> : vector<1xi32>
    %940 = vector.multi_reduction <add>, %939, %cst_367 [1] : vector<1x8xi32> to vector<1xi32>
    %941 = vector.shape_cast %940 : vector<1xi32> to vector<1x1xi32>
    %942 = arith.index_cast %arg0 : i32 to index
    %c5_368 = arith.constant 5 : index
    %943 = memref.load %arg1[%942, %c5_368] : memref<2x16xi32, #tpu.memory_space<smem>>
    %944 = arith.subi %941, %926 : vector<1x1xi32>
    %945 = vector.broadcast %943 : i32 to vector<1x1xi32>
    %946 = arith.muli %945, %944 : vector<1x1xi32>
    %947 = arith.addi %926, %946 : vector<1x1xi32>
    %948 = arith.index_cast %arg0 : i32 to index
    %c4_369 = arith.constant 4 : index
    %949 = memref.load %arg1[%948, %c4_369] : memref<2x16xi32, #tpu.memory_space<smem>>
    %950 = vector.broadcast %949 : i32 to vector<1x1xi32>
    %951 = arith.muli %950, %947 : vector<1x1xi32>
    %c4_i32 = arith.constant 4 : i32
    %952 = vector.broadcast %c4_i32 : i32 to vector<1x16xi32>
    %953 = arith.cmpi eq, %715, %952 : vector<1x16xi32>
    %954 = vector.shape_cast %951 : vector<1x1xi32> to vector<1x1xi32>
    %955 = vector.broadcast %954 : vector<1x1xi32> to vector<1x16xi32>
    %956 = arith.select %953, %955, %935 : vector<1x16xi1>, vector<1x16xi32>
    %957 = vector.broadcast %947 : vector<1x1xi32> to vector<1x8xi32>
    %958 = arith.cmpi eq, %370, %957 : vector<1x8xi32>
    %c0_i32_370 = arith.constant 0 : i32
    %959 = vector.broadcast %c0_i32_370 : i32 to vector<1x8xi32>
    %960 = arith.select %958, %451, %959 : vector<1x8xi1>, vector<1x8xi32>
    %cst_371 = arith.constant dense<0> : vector<1xi32>
    %961 = vector.multi_reduction <add>, %960, %cst_371 [1] : vector<1x8xi32> to vector<1xi32>
    %962 = vector.shape_cast %961 : vector<1xi32> to vector<1x1xi32>
    %963 = arith.index_cast %arg0 : i32 to index
    %c4_372 = arith.constant 4 : index
    %964 = memref.load %arg1[%963, %c4_372] : memref<2x16xi32, #tpu.memory_space<smem>>
    %965 = arith.subi %962, %947 : vector<1x1xi32>
    %966 = vector.broadcast %964 : i32 to vector<1x1xi32>
    %967 = arith.muli %966, %965 : vector<1x1xi32>
    %968 = arith.addi %947, %967 : vector<1x1xi32>
    %969 = arith.index_cast %arg0 : i32 to index
    %c3_373 = arith.constant 3 : index
    %970 = memref.load %arg1[%969, %c3_373] : memref<2x16xi32, #tpu.memory_space<smem>>
    %971 = vector.broadcast %970 : i32 to vector<1x1xi32>
    %972 = arith.muli %971, %968 : vector<1x1xi32>
    %c3_i32 = arith.constant 3 : i32
    %973 = vector.broadcast %c3_i32 : i32 to vector<1x16xi32>
    %974 = arith.cmpi eq, %715, %973 : vector<1x16xi32>
    %975 = vector.shape_cast %972 : vector<1x1xi32> to vector<1x1xi32>
    %976 = vector.broadcast %975 : vector<1x1xi32> to vector<1x16xi32>
    %977 = arith.select %974, %976, %956 : vector<1x16xi1>, vector<1x16xi32>
    %978 = vector.broadcast %968 : vector<1x1xi32> to vector<1x8xi32>
    %979 = arith.cmpi eq, %370, %978 : vector<1x8xi32>
    %c0_i32_374 = arith.constant 0 : i32
    %980 = vector.broadcast %c0_i32_374 : i32 to vector<1x8xi32>
    %981 = arith.select %979, %429, %980 : vector<1x8xi1>, vector<1x8xi32>
    %cst_375 = arith.constant dense<0> : vector<1xi32>
    %982 = vector.multi_reduction <add>, %981, %cst_375 [1] : vector<1x8xi32> to vector<1xi32>
    %983 = vector.shape_cast %982 : vector<1xi32> to vector<1x1xi32>
    %984 = arith.index_cast %arg0 : i32 to index
    %c3_376 = arith.constant 3 : index
    %985 = memref.load %arg1[%984, %c3_376] : memref<2x16xi32, #tpu.memory_space<smem>>
    %986 = arith.subi %983, %968 : vector<1x1xi32>
    %987 = vector.broadcast %985 : i32 to vector<1x1xi32>
    %988 = arith.muli %987, %986 : vector<1x1xi32>
    %989 = arith.addi %968, %988 : vector<1x1xi32>
    %990 = arith.index_cast %arg0 : i32 to index
    %c2_377 = arith.constant 2 : index
    %991 = memref.load %arg1[%990, %c2_377] : memref<2x16xi32, #tpu.memory_space<smem>>
    %992 = vector.broadcast %991 : i32 to vector<1x1xi32>
    %993 = arith.muli %992, %989 : vector<1x1xi32>
    %c2_i32 = arith.constant 2 : i32
    %994 = vector.broadcast %c2_i32 : i32 to vector<1x16xi32>
    %995 = arith.cmpi eq, %715, %994 : vector<1x16xi32>
    %996 = vector.shape_cast %993 : vector<1x1xi32> to vector<1x1xi32>
    %997 = vector.broadcast %996 : vector<1x1xi32> to vector<1x16xi32>
    %998 = arith.select %995, %997, %977 : vector<1x16xi1>, vector<1x16xi32>
    %999 = vector.broadcast %989 : vector<1x1xi32> to vector<1x8xi32>
    %1000 = arith.cmpi eq, %370, %999 : vector<1x8xi32>
    %c0_i32_378 = arith.constant 0 : i32
    %1001 = vector.broadcast %c0_i32_378 : i32 to vector<1x8xi32>
    %1002 = arith.select %1000, %407, %1001 : vector<1x8xi1>, vector<1x8xi32>
    %cst_379 = arith.constant dense<0> : vector<1xi32>
    %1003 = vector.multi_reduction <add>, %1002, %cst_379 [1] : vector<1x8xi32> to vector<1xi32>
    %1004 = vector.shape_cast %1003 : vector<1xi32> to vector<1x1xi32>
    %1005 = arith.index_cast %arg0 : i32 to index
    %c2_380 = arith.constant 2 : index
    %1006 = memref.load %arg1[%1005, %c2_380] : memref<2x16xi32, #tpu.memory_space<smem>>
    %1007 = arith.subi %1004, %989 : vector<1x1xi32>
    %1008 = vector.broadcast %1006 : i32 to vector<1x1xi32>
    %1009 = arith.muli %1008, %1007 : vector<1x1xi32>
    %1010 = arith.addi %989, %1009 : vector<1x1xi32>
    %1011 = arith.index_cast %arg0 : i32 to index
    %c1_381 = arith.constant 1 : index
    %1012 = memref.load %arg1[%1011, %c1_381] : memref<2x16xi32, #tpu.memory_space<smem>>
    %1013 = vector.broadcast %1012 : i32 to vector<1x1xi32>
    %1014 = arith.muli %1013, %1010 : vector<1x1xi32>
    %c1_i32 = arith.constant 1 : i32
    %1015 = vector.broadcast %c1_i32 : i32 to vector<1x16xi32>
    %1016 = arith.cmpi eq, %715, %1015 : vector<1x16xi32>
    %1017 = vector.shape_cast %1014 : vector<1x1xi32> to vector<1x1xi32>
    %1018 = vector.broadcast %1017 : vector<1x1xi32> to vector<1x16xi32>
    %1019 = arith.select %1016, %1018, %998 : vector<1x16xi1>, vector<1x16xi32>
    %1020 = vector.broadcast %1010 : vector<1x1xi32> to vector<1x8xi32>
    %1021 = arith.cmpi eq, %370, %1020 : vector<1x8xi32>
    %c0_i32_382 = arith.constant 0 : i32
    %1022 = vector.broadcast %c0_i32_382 : i32 to vector<1x8xi32>
    %1023 = arith.select %1021, %385, %1022 : vector<1x8xi1>, vector<1x8xi32>
    %cst_383 = arith.constant dense<0> : vector<1xi32>
    %1024 = vector.multi_reduction <add>, %1023, %cst_383 [1] : vector<1x8xi32> to vector<1xi32>
    %1025 = vector.shape_cast %1024 : vector<1xi32> to vector<1x1xi32>
    %1026 = arith.index_cast %arg0 : i32 to index
    %c1_384 = arith.constant 1 : index
    %1027 = memref.load %arg1[%1026, %c1_384] : memref<2x16xi32, #tpu.memory_space<smem>>
    %1028 = arith.subi %1025, %1010 : vector<1x1xi32>
    %1029 = vector.broadcast %1027 : i32 to vector<1x1xi32>
    %1030 = arith.muli %1029, %1028 : vector<1x1xi32>
    %1031 = arith.addi %1010, %1030 : vector<1x1xi32>
    %1032 = arith.index_cast %arg0 : i32 to index
    %c0_385 = arith.constant 0 : index
    %1033 = memref.load %arg1[%1032, %c0_385] : memref<2x16xi32, #tpu.memory_space<smem>>
    %1034 = vector.broadcast %1033 : i32 to vector<1x1xi32>
    %1035 = arith.muli %1034, %1031 : vector<1x1xi32>
    %c0_i32_386 = arith.constant 0 : i32
    %1036 = vector.broadcast %c0_i32_386 : i32 to vector<1x16xi32>
    %1037 = arith.cmpi eq, %715, %1036 : vector<1x16xi32>
    %1038 = vector.shape_cast %1035 : vector<1x1xi32> to vector<1x1xi32>
    %1039 = vector.broadcast %1038 : vector<1x1xi32> to vector<1x16xi32>
    %1040 = arith.select %1037, %1039, %1019 : vector<1x16xi1>, vector<1x16xi32>
    %c0_387 = arith.constant 0 : index
    %c0_388 = arith.constant 0 : index
    %c0_389 = arith.constant 0 : index
    %1041 = vector.load %arg27[%c0_387, %c0_388, %c0_389] : memref<1x1x16xi32, #tpu.memory_space<vmem>>, vector<1x1x16xi32>
    %1042 = vector.shape_cast %1041 : vector<1x1x16xi32> to vector<1x16xi32>
    %1043 = vector.shape_cast %1040 : vector<1x16xi32> to vector<1x1x16xi32>
    tpu.vector_store %arg27[%c0_387, %c0_388, %c0_389], %1043 {strides = array<i32>} : memref<1x1x16xi32, #tpu.memory_space<vmem>>, vector<1x1x16xi32>,
    return
  }
  func.func @transform_0(%arg0: i32, %arg1: memref<2x16xi32, #tpu.memory_space<smem>>) -> (i32, i32, i32) {
    %c0_i32 = arith.constant 0 : i32
    %c0_i32_0 = arith.constant 0 : i32
    %c0_i32_1 = arith.constant 0 : i32
    return %arg0, %c0_i32, %c0_i32_0 : i32, i32, i32
  }
  func.func @transform_1(%arg0: i32, %arg1: memref<2x16xi32, #tpu.memory_space<smem>>) -> (i32, i32, i32) {
    %c0_i32 = arith.constant 0 : i32
    %c0_i32_0 = arith.constant 0 : i32
    %c0_i32_1 = arith.constant 0 : i32
    return %arg0, %c0_i32, %c0_i32_0 : i32, i32, i32
  }
  func.func @transform_2(%arg0: i32, %arg1: memref<2x16xi32, #tpu.memory_space<smem>>) -> (i32, i32) {
    %c0_i32 = arith.constant 0 : i32
    %c0_i32_0 = arith.constant 0 : i32
    %c0_i32_1 = arith.constant 0 : i32
    return %c0_i32, %c0_i32_0 : i32, i32
  }
  func.func @transform_3(%arg0: i32, %arg1: memref<2x16xi32, #tpu.memory_space<smem>>) -> (i32, i32) {
    %c0_i32 = arith.constant 0 : i32
    %c0_i32_0 = arith.constant 0 : i32
    %c0_i32_1 = arith.constant 0 : i32
    return %c0_i32, %c0_i32_0 : i32, i32
  }
  func.func @transform_4(%arg0: i32, %arg1: memref<2x16xi32, #tpu.memory_space<smem>>) -> (i32, i32, i32, i32) {
    %c0_i32 = arith.constant 0 : i32
    %c0_i32_0 = arith.constant 0 : i32
    %c0_i32_1 = arith.constant 0 : i32
    %c0_i32_2 = arith.constant 0 : i32
    %c0_i32_3 = arith.constant 0 : i32
    return %c0_i32, %c0_i32_0, %c0_i32_1, %c0_i32_2 : i32, i32, i32, i32
  }
  func.func @transform_5(%arg0: i32, %arg1: memref<2x16xi32, #tpu.memory_space<smem>>) -> (i32, i32, i32, i32) {
    %c0_i32 = arith.constant 0 : i32
    %c0_i32_0 = arith.constant 0 : i32
    %c0_i32_1 = arith.constant 0 : i32
    %c0_i32_2 = arith.constant 0 : i32
    %c0_i32_3 = arith.constant 0 : i32
    return %c0_i32, %c0_i32_0, %c0_i32_1, %c0_i32_2 : i32, i32, i32, i32
  }
  func.func @transform_6(%arg0: i32, %arg1: memref<2x16xi32, #tpu.memory_space<smem>>) -> (i32, i32, i32, i32) {
    %c0_i32 = arith.constant 0 : i32
    %c0_i32_0 = arith.constant 0 : i32
    %c0_i32_1 = arith.constant 0 : i32
    %c0_i32_2 = arith.constant 0 : i32
    %c0_i32_3 = arith.constant 0 : i32
    return %c0_i32, %c0_i32_0, %c0_i32_1, %c0_i32_2 : i32, i32, i32, i32
  }
  func.func @transform_7(%arg0: i32, %arg1: memref<2x16xi32, #tpu.memory_space<smem>>) -> (i32, i32, i32, i32) {
    %c0_i32 = arith.constant 0 : i32
    %c0_i32_0 = arith.constant 0 : i32
    %c0_i32_1 = arith.constant 0 : i32
    %c0_i32_2 = arith.constant 0 : i32
    %c0_i32_3 = arith.constant 0 : i32
    return %c0_i32, %c0_i32_0, %c0_i32_1, %c0_i32_2 : i32, i32, i32, i32
  }
  func.func @transform_8(%arg0: i32, %arg1: memref<2x16xi32, #tpu.memory_space<smem>>) -> (i32, i32, i32, i32) {
    %c0_i32 = arith.constant 0 : i32
    %c0_i32_0 = arith.constant 0 : i32
    %c0_i32_1 = arith.constant 0 : i32
    %c0_i32_2 = arith.constant 0 : i32
    %c0_i32_3 = arith.constant 0 : i32
    return %c0_i32, %c0_i32_0, %c0_i32_1, %c0_i32_2 : i32, i32, i32, i32
  }
  func.func @transform_9(%arg0: i32, %arg1: memref<2x16xi32, #tpu.memory_space<smem>>) -> (i32, i32, i32, i32) {
    %c0_i32 = arith.constant 0 : i32
    %c0_i32_0 = arith.constant 0 : i32
    %c0_i32_1 = arith.constant 0 : i32
    %c0_i32_2 = arith.constant 0 : i32
    %c0_i32_3 = arith.constant 0 : i32
    return %c0_i32, %c0_i32_0, %c0_i32_1, %c0_i32_2 : i32, i32, i32, i32
  }
  func.func @transform_10(%arg0: i32, %arg1: memref<2x16xi32, #tpu.memory_space<smem>>) -> (i32, i32, i32, i32) {
    %c0_i32 = arith.constant 0 : i32
    %c0_i32_0 = arith.constant 0 : i32
    %c0_i32_1 = arith.constant 0 : i32
    %c0_i32_2 = arith.constant 0 : i32
    %c0_i32_3 = arith.constant 0 : i32
    return %c0_i32, %c0_i32_0, %c0_i32_1, %c0_i32_2 : i32, i32, i32, i32
  }
  func.func @transform_11(%arg0: i32, %arg1: memref<2x16xi32, #tpu.memory_space<smem>>) -> (i32, i32, i32) {
    %c0_i32 = arith.constant 0 : i32
    %c0_i32_0 = arith.constant 0 : i32
    %c0_i32_1 = arith.constant 0 : i32
    %c0_i32_2 = arith.constant 0 : i32
    return %c0_i32, %c0_i32_0, %c0_i32_1 : i32, i32, i32
  }
  func.func @transform_12(%arg0: i32, %arg1: memref<2x16xi32, #tpu.memory_space<smem>>) -> (i32, i32, i32) {
    %c0_i32 = arith.constant 0 : i32
    %c0_i32_0 = arith.constant 0 : i32
    %c0_i32_1 = arith.constant 0 : i32
    %c0_i32_2 = arith.constant 0 : i32
    return %c0_i32, %c0_i32_0, %c0_i32_1 : i32, i32, i32
  }
  func.func @transform_13(%arg0: i32, %arg1: memref<2x16xi32, #tpu.memory_space<smem>>) -> (i32, i32, i32) {
    %c0_i32 = arith.constant 0 : i32
    %c0_i32_0 = arith.constant 0 : i32
    %c0_i32_1 = arith.constant 0 : i32
    %c0_i32_2 = arith.constant 0 : i32
    return %c0_i32, %c0_i32_0, %c0_i32_1 : i32, i32, i32
  }
  func.func @transform_14(%arg0: i32, %arg1: memref<2x16xi32, #tpu.memory_space<smem>>) -> (i32, i32, i32) {
    %c0_i32 = arith.constant 0 : i32
    %c0_i32_0 = arith.constant 0 : i32
    %c0_i32_1 = arith.constant 0 : i32
    %c0_i32_2 = arith.constant 0 : i32
    return %c0_i32, %c0_i32_0, %c0_i32_1 : i32, i32, i32
  }
  func.func @transform_15(%arg0: i32, %arg1: memref<2x16xi32, #tpu.memory_space<smem>>) -> (i32, i32, i32) {
    %c0_i32 = arith.constant 0 : i32
    %c0_i32_0 = arith.constant 0 : i32
    %c0_i32_1 = arith.constant 0 : i32
    %c0_i32_2 = arith.constant 0 : i32
    return %c0_i32, %c0_i32_0, %c0_i32_1 : i32, i32, i32
  }
  func.func @transform_16(%arg0: i32, %arg1: memref<2x16xi32, #tpu.memory_space<smem>>) -> (i32, i32, i32) {
    %c0_i32 = arith.constant 0 : i32
    %c0_i32_0 = arith.constant 0 : i32
    %c0_i32_1 = arith.constant 0 : i32
    %c0_i32_2 = arith.constant 0 : i32
    return %c0_i32, %c0_i32_0, %c0_i32_1 : i32, i32, i32
  }
  func.func @transform_17(%arg0: i32, %arg1: memref<2x16xi32, #tpu.memory_space<smem>>) -> (i32, i32, i32) {
    %c0_i32 = arith.constant 0 : i32
    %c0_i32_0 = arith.constant 0 : i32
    %c0_i32_1 = arith.constant 0 : i32
    %c0_i32_2 = arith.constant 0 : i32
    return %c0_i32, %c0_i32_0, %c0_i32_1 : i32, i32, i32
  }
  func.func @transform_18(%arg0: i32, %arg1: memref<2x16xi32, #tpu.memory_space<smem>>) -> (i32, i32, i32) {
    %c0_i32 = arith.constant 0 : i32
    %c0_i32_0 = arith.constant 0 : i32
    %c0_i32_1 = arith.constant 0 : i32
    %c0_i32_2 = arith.constant 0 : i32
    return %c0_i32, %c0_i32_0, %c0_i32_1 : i32, i32, i32
  }
  func.func @transform_19(%arg0: i32, %arg1: memref<2x16xi32, #tpu.memory_space<smem>>) -> (i32, i32, i32) {
    %c0_i32 = arith.constant 0 : i32
    %c0_i32_0 = arith.constant 0 : i32
    %c0_i32_1 = arith.constant 0 : i32
    %c0_i32_2 = arith.constant 0 : i32
    return %c0_i32, %c0_i32_0, %c0_i32_1 : i32, i32, i32
  }
  func.func @transform_20(%arg0: i32, %arg1: memref<2x16xi32, #tpu.memory_space<smem>>) -> (i32, i32) {
    %c0_i32 = arith.constant 0 : i32
    %c0_i32_0 = arith.constant 0 : i32
    %c0_i32_1 = arith.constant 0 : i32
    return %c0_i32, %c0_i32_0 : i32, i32
  }
  func.func @transform_21(%arg0: i32, %arg1: memref<2x16xi32, #tpu.memory_space<smem>>) -> (i32, i32) {
    %c0_i32 = arith.constant 0 : i32
    %c0_i32_0 = arith.constant 0 : i32
    %c0_i32_1 = arith.constant 0 : i32
    return %c0_i32, %c0_i32_0 : i32, i32
  }
  func.func @transform_22(%arg0: i32, %arg1: memref<2x16xi32, #tpu.memory_space<smem>>) -> (i32, i32) {
    %c0_i32 = arith.constant 0 : i32
    %c0_i32_0 = arith.constant 0 : i32
    %c0_i32_1 = arith.constant 0 : i32
    return %c0_i32, %c0_i32_0 : i32, i32
  }
  func.func @transform_23(%arg0: i32, %arg1: memref<2x16xi32, #tpu.memory_space<smem>>) -> (i32, i32) {
    %c0_i32 = arith.constant 0 : i32
    %c0_i32_0 = arith.constant 0 : i32
    %c0_i32_1 = arith.constant 0 : i32
    return %c0_i32, %c0_i32_0 : i32, i32
  }
  func.func @transform_24(%arg0: i32, %arg1: memref<2x16xi32, #tpu.memory_space<smem>>) -> (i32, i32) {
    %c0_i32 = arith.constant 0 : i32
    %c0_i32_0 = arith.constant 0 : i32
    %c0_i32_1 = arith.constant 0 : i32
    return %c0_i32, %c0_i32_0 : i32, i32
  }
  func.func @transform_25(%arg0: i32, %arg1: memref<2x16xi32, #tpu.memory_space<smem>>) -> (i32, i32, i32) {
    %c0_i32 = arith.constant 0 : i32
    %c0_i32_0 = arith.constant 0 : i32
    %c0_i32_1 = arith.constant 0 : i32
    return %arg0, %c0_i32, %c0_i32_0 : i32, i32, i32
  }
}

</mosaic_0001>

<llo_original>
// kernel: bert_crf_forward.1
$region0: #{bert_crf_forward.1}
  #allocation0 [shape = 'u32[]', space=smem, size = 0x4, offset = 0x4, fixed_abs, tag = 'smem constant byte address 0x4 - core index']
  #allocation1 [shape = 'u32[144,128]{1,0:T(1,128)}', space=vmem, size = 0x12000, scoped, tag = 'internal scratch']
  #allocation2 [shape = 's32[1]{0}', space=sflag, size = 0x4, scoped, tag = 'scoped memory for bert_crf_forward.1']
  #allocation3 [shape = 'u8[1024]{0}', space=smem, size = 0x400, scoped, tag = 'prefetched SMEM operand 0']
  %s0 = inlined_call_operand.vmem [shape: s32[2,16], index: 0, kind: input, shape index: {}]
  %s1 = inlined_call_operand.vmem [shape: f32[2,16,64], index: 1, kind: input, shape index: {}]
  %s2 = inlined_call_operand.vmem [shape: f32[2,1,16], index: 2, kind: input, shape index: {}]
  %s3 = inlined_call_operand.vmem [shape: f32[1,64], index: 3, kind: input, shape index: {}]
  %s4 = inlined_call_operand.vmem [shape: f32[1,64], index: 4, kind: input, shape index: {}]
  %s5 = inlined_call_operand.vmem [shape: f32[2,2,64,32], index: 5, kind: input, shape index: {}]
  %s6 = inlined_call_operand.vmem [shape: f32[2,2,64,32], index: 6, kind: input, shape index: {}]
  %s7 = inlined_call_operand.vmem [shape: f32[2,2,64,32], index: 7, kind: input, shape index: {}]
  %s8 = inlined_call_operand.vmem [shape: f32[2,2,1,32], index: 8, kind: input, shape index: {}]
  %s9 = inlined_call_operand.vmem [shape: f32[2,2,1,32], index: 9, kind: input, shape index: {}]
  %s10 = inlined_call_operand.vmem [shape: f32[2,2,1,32], index: 10, kind: input, shape index: {}]
  %s11 = inlined_call_operand.vmem [shape: f32[2,2,32,64], index: 11, kind: input, shape index: {}]
  %s12 = inlined_call_operand.vmem [shape: f32[2,1,64], index: 12, kind: input, shape index: {}]
  %s13 = inlined_call_operand.vmem [shape: f32[2,1,64], index: 13, kind: input, shape index: {}]
  %s14 = inlined_call_operand.vmem [shape: f32[2,1,64], index: 14, kind: input, shape index: {}]
  %s15 = inlined_call_operand.vmem [shape: f32[2,64,128], index: 15, kind: input, shape index: {}]
  %s16 = inlined_call_operand.vmem [shape: f32[2,1,128], index: 16, kind: input, shape index: {}]
  %s17 = inlined_call_operand.vmem [shape: f32[2,128,64], index: 17, kind: input, shape index: {}]
  %s18 = inlined_call_operand.vmem [shape: f32[2,1,64], index: 18, kind: input, shape index: {}]
  %s19 = inlined_call_operand.vmem [shape: f32[2,1,64], index: 19, kind: input, shape index: {}]
  %s20 = inlined_call_operand.vmem [shape: f32[2,1,64], index: 20, kind: input, shape index: {}]
  %s21 = inlined_call_operand.vmem [shape: f32[64,8], index: 21, kind: input, shape index: {}]
  %s22 = inlined_call_operand.vmem [shape: f32[1,8], index: 22, kind: input, shape index: {}]
  %s23 = inlined_call_operand.vmem [shape: f32[1,8], index: 23, kind: input, shape index: {}]
  %s24 = inlined_call_operand.vmem [shape: f32[1,8], index: 24, kind: input, shape index: {}]
  %s25 = inlined_call_operand.vmem [shape: f32[8,8], index: 25, kind: input, shape index: {}]
  %s26 = inlined_call_operand.hbm [shape: s32[2,1,16], index: 26, kind: output, shape index: {}]
  %s27 = sld [smem:[#allocation0]]
  $region133: #{bert_crf_forward.1} parent=0
    _
  %s29 = ssub.s32 1, %s27
  %s30 = scalar_select 0, %s29, %s27
  %s31 = sshll.u32 %s0, 4
  %s32 = int_to_ptr.vmem [resolvable:$true] %s31
  %34 = dma.vmem_to_smem %s32, 32, [#allocation3], [#allocation2]
  %35 = dma.done [#allocation2], 32
  %36 = sfence
  $region1: #{bert_crf_forward.1} parent=0
    #allocation4 [shape = 'u8[1024]{0}', space=vmem, size = 0x400, scoped, tag = 'output window, operand 0']
    #allocation5 [shape = 's32[2]{0}', space=sflag, size = 0x8, scoped, tag = 'scoped memory for bert_crf_forward.1']
    %37 = vsyncpa [#allocation5], 0
    %s38 = scalar_lea.sflag [#allocation5], 1
    %39 = vsyncpa %s38, 0
    loop: start=0, step=1, limit=4
    $region2: #{bert_crf_forward.1} parent=1 // loop_pre_header
      _
    $region3: #{bert_crf_forward.1} parent=1 // loop_header
      %s41 = sphi 0, %s45
      %p42 = scmp.ge.s32.totalorder %s41, 4
      %s51 = sphi 0, %s53
      %s54 = sphi 0, %s51
      %s55 = sphi 0, %s54
      %s71 = sphi 0, %s55
      %s77 = sphi 0, %s79
      %s80 = sphi 0, %s77
      %s81 = sphi 0, %s80
      %s97 = sphi 0, %s81
      %s101 = sphi 0, %s101
      %s103 = sphi 0, %s101
      %s104 = sphi 0, %s103
      %s118 = sphi 0, %s104
      %s122 = sphi 0, %s122
      %s124 = sphi 0, %s122
      %s125 = sphi 0, %s124
      %s139 = sphi 0, %s125
      %s143 = sphi 0, %s143
      %s145 = sphi 0, %s143
      %s146 = sphi 0, %s145
      %s160 = sphi 0, %s146
      %s164 = sphi 0, %s164
      %s166 = sphi 0, %s164
      %s167 = sphi 0, %s166
      %s181 = sphi 0, %s167
      %s185 = sphi 0, %s185
      %s187 = sphi 0, %s185
      %s188 = sphi 0, %s187
      %s202 = sphi 0, %s188
      %s206 = sphi 0, %s206
      %s208 = sphi 0, %s206
      %s209 = sphi 0, %s208
      %s223 = sphi 0, %s209
      %s227 = sphi 0, %s227
      %s229 = sphi 0, %s227
      %s230 = sphi 0, %s229
      %s244 = sphi 0, %s230
      %s248 = sphi 0, %s248
      %s250 = sphi 0, %s248
      %s251 = sphi 0, %s250
      %s265 = sphi 0, %s251
      %s269 = sphi 0, %s269
      %s271 = sphi 0, %s269
      %s272 = sphi 0, %s271
      %s286 = sphi 0, %s272
      %s290 = sphi 0, %s290
      %s292 = sphi 0, %s290
      %s293 = sphi 0, %s292
      %s307 = sphi 0, %s293
      %s311 = sphi 0, %s311
      %s313 = sphi 0, %s311
      %s314 = sphi 0, %s313
      %s328 = sphi 0, %s314
      %s332 = sphi 0, %s332
      %s334 = sphi 0, %s332
      %s335 = sphi 0, %s334
      %s349 = sphi 0, %s335
      %s353 = sphi 0, %s353
      %s355 = sphi 0, %s353
      %s356 = sphi 0, %s355
      %s370 = sphi 0, %s356
      %s374 = sphi 0, %s374
      %s376 = sphi 0, %s374
      %s377 = sphi 0, %s376
      %s391 = sphi 0, %s377
      %s395 = sphi 0, %s395
      %s397 = sphi 0, %s395
      %s398 = sphi 0, %s397
      %s412 = sphi 0, %s398
      %s416 = sphi 0, %s416
      %s418 = sphi 0, %s416
      %s419 = sphi 0, %s418
      %s433 = sphi 0, %s419
      %s437 = sphi 0, %s437
      %s439 = sphi 0, %s437
      %s440 = sphi 0, %s439
      %s454 = sphi 0, %s440
      %s458 = sphi 0, %s458
      %s460 = sphi 0, %s458
      %s461 = sphi 0, %s460
      %s475 = sphi 0, %s461
      %s479 = sphi 0, %s479
      %s481 = sphi 0, %s479
      %s482 = sphi 0, %s481
      %s496 = sphi 0, %s482
      %s500 = sphi 0, %s500
      %s502 = sphi 0, %s500
      %s503 = sphi 0, %s502
      %s517 = sphi 0, %s503
      %s521 = sphi 0, %s521
      %s523 = sphi 0, %s521
      %s524 = sphi 0, %s523
      %s538 = sphi 0, %s524
      %s542 = sphi 0, %s542
      %s544 = sphi 0, %s542
      %s545 = sphi 0, %s544
      %s559 = sphi 0, %s545
      %s563 = sphi 0, %s563
      %s565 = sphi 0, %s563
      %s566 = sphi 0, %s565
      %s580 = sphi 0, %s566
      %s586 = sphi 0, %s588
      %s589 = sphi 0, %s586
      %s590 = sphi 0, %s589
      %s606 = sphi 0, %s590
    $region4: #{bert_crf_forward.1} parent=1 // loop_header_branch
      %44 = sbr.rel (%p42) target = $region8
    $region5: #{bert_crf_forward.1} parent=1 // loop_body
      %s46 = ssub.s32 %s41, 1
      %s47 = ssub.s32 %s41, 2
      %s48 = sadd.s32 %s41, 1
      %s49 = ssub.s32 %s41, %s48
      %p50 = scmp.eq.s32.totalorder %s49, 0
      %s52 = sadd.s32 %s51, 1
      %s53 = scalar_select %p50, %s51, %s52
      %p56 = pneg %p50
      %p57 = scmp.eq.s32.totalorder %s41, 1
      %p58 = por %p56, %p57
      %p59 = scmp.ne.s32.totalorder %s51, %s54
      %p60 = scmp.eq.s32.totalorder %s41, 0
      %p61 = por %p59, %p60
      %p62 = scmp.ne.s32.totalorder %s51, %s54
      %p63 = scmp.eq.s32.totalorder %s46, 1
      %p64 = por %p62, %p63
      %p65 = scmp.ne.s32.totalorder %s54, %s55
      %p66 = scmp.eq.s32.totalorder %s46, 0
      %p67 = por %p65, %p66
      %p68 = scmp.ne.s32.totalorder %s54, %s55
      %p69 = scmp.eq.s32.totalorder %s47, 1
      %p70 = por %p68, %p69
      %p72 = scmp.ne.s32.totalorder %s55, %s71
      %p73 = scmp.eq.s32.totalorder %s47, 0
      %p74 = por %p72, %p73
      %s75 = ssub.s32 %s41, %s48
      %p76 = scmp.eq.s32.totalorder %s75, 0
      %s78 = sadd.s32 %s77, 1
      %s79 = scalar_select %p76, %s77, %s78
      %p82 = pneg %p76
      %p83 = scmp.eq.s32.totalorder %s41, 1
      %p84 = por %p82, %p83
      %p85 = scmp.ne.s32.totalorder %s77, %s80
      %p86 = scmp.eq.s32.totalorder %s41, 0
      %p87 = por %p85, %p86
      %p88 = scmp.ne.s32.totalorder %s77, %s80
      %p89 = scmp.eq.s32.totalorder %s46, 1
      %p90 = por %p88, %p89
      %p91 = scmp.ne.s32.totalorder %s80, %s81
      %p92 = scmp.eq.s32.totalorder %s46, 0
      %p93 = por %p91, %p92
      %p94 = scmp.ne.s32.totalorder %s80, %s81
      %p95 = scmp.eq.s32.totalorder %s47, 1
      %p96 = por %p94, %p95
      %p98 = scmp.ne.s32.totalorder %s81, %s97
      %p99 = scmp.eq.s32.totalorder %s47, 0
      %p100 = por %p98, %p99
      %s102 = sadd.s32 %s101, 1
      %p105 = scmp.eq.s32.totalorder %s41, 1
      %p106 = scmp.ne.s32.totalorder %s101, %s103
      %p107 = scmp.eq.s32.totalorder %s41, 0
      %p108 = por %p106, %p107
      %p109 = scmp.ne.s32.totalorder %s101, %s103
      %p110 = scmp.eq.s32.totalorder %s46, 1
      %p111 = por %p109, %p110
      %p112 = scmp.ne.s32.totalorder %s103, %s104
      %p113 = scmp.eq.s32.totalorder %s46, 0
      %p114 = por %p112, %p113
      %p115 = scmp.ne.s32.totalorder %s103, %s104
      %p116 = scmp.eq.s32.totalorder %s47, 1
      %p117 = por %p115, %p116
      %p119 = scmp.ne.s32.totalorder %s104, %s118
      %p120 = scmp.eq.s32.totalorder %s47, 0
      %p121 = por %p119, %p120
      %s123 = sadd.s32 %s122, 1
      %p126 = scmp.eq.s32.totalorder %s41, 1
      %p127 = scmp.ne.s32.totalorder %s122, %s124
      %p128 = scmp.eq.s32.totalorder %s41, 0
      %p129 = por %p127, %p128
      %p130 = scmp.ne.s32.totalorder %s122, %s124
      %p131 = scmp.eq.s32.totalorder %s46, 1
      %p132 = por %p130, %p131
      %p133 = scmp.ne.s32.totalorder %s124, %s125
      %p134 = scmp.eq.s32.totalorder %s46, 0
      %p135 = por %p133, %p134
      %p136 = scmp.ne.s32.totalorder %s124, %s125
      %p137 = scmp.eq.s32.totalorder %s47, 1
      %p138 = por %p136, %p137
      %p140 = scmp.ne.s32.totalorder %s125, %s139
      %p141 = scmp.eq.s32.totalorder %s47, 0
      %p142 = por %p140, %p141
      %s144 = sadd.s32 %s143, 1
      %p147 = scmp.eq.s32.totalorder %s41, 1
      %p148 = scmp.ne.s32.totalorder %s143, %s145
      %p149 = scmp.eq.s32.totalorder %s41, 0
      %p150 = por %p148, %p149
      %p151 = scmp.ne.s32.totalorder %s143, %s145
      %p152 = scmp.eq.s32.totalorder %s46, 1
      %p153 = por %p151, %p152
      %p154 = scmp.ne.s32.totalorder %s145, %s146
      %p155 = scmp.eq.s32.totalorder %s46, 0
      %p156 = por %p154, %p155
      %p157 = scmp.ne.s32.totalorder %s145, %s146
      %p158 = scmp.eq.s32.totalorder %s47, 1
      %p159 = por %p157, %p158
      %p161 = scmp.ne.s32.totalorder %s146, %s160
      %p162 = scmp.eq.s32.totalorder %s47, 0
      %p163 = por %p161, %p162
      %s165 = sadd.s32 %s164, 1
      %p168 = scmp.eq.s32.totalorder %s41, 1
      %p169 = scmp.ne.s32.totalorder %s164, %s166
      %p170 = scmp.eq.s32.totalorder %s41, 0
      %p171 = por %p169, %p170
      %p172 = scmp.ne.s32.totalorder %s164, %s166
      %p173 = scmp.eq.s32.totalorder %s46, 1
      %p174 = por %p172, %p173
      %p175 = scmp.ne.s32.totalorder %s166, %s167
      %p176 = scmp.eq.s32.totalorder %s46, 0
      %p177 = por %p175, %p176
      %p178 = scmp.ne.s32.totalorder %s166, %s167
      %p179 = scmp.eq.s32.totalorder %s47, 1
      %p180 = por %p178, %p179
      %p182 = scmp.ne.s32.totalorder %s167, %s181
      %p183 = scmp.eq.s32.totalorder %s47, 0
      %p184 = por %p182, %p183
      %s186 = sadd.s32 %s185, 1
      %p189 = scmp.eq.s32.totalorder %s41, 1
      %p190 = scmp.ne.s32.totalorder %s185, %s187
      %p191 = scmp.eq.s32.totalorder %s41, 0
      %p192 = por %p190, %p191
      %p193 = scmp.ne.s32.totalorder %s185, %s187
      %p194 = scmp.eq.s32.totalorder %s46, 1
      %p195 = por %p193, %p194
      %p196 = scmp.ne.s32.totalorder %s187, %s188
      %p197 = scmp.eq.s32.totalorder %s46, 0
      %p198 = por %p196, %p197
      %p199 = scmp.ne.s32.totalorder %s187, %s188
      %p200 = scmp.eq.s32.totalorder %s47, 1
      %p201 = por %p199, %p200
      %p203 = scmp.ne.s32.totalorder %s188, %s202
      %p204 = scmp.eq.s32.totalorder %s47, 0
      %p205 = por %p203, %p204
      %s207 = sadd.s32 %s206, 1
      %p210 = scmp.eq.s32.totalorder %s41, 1
      %p211 = scmp.ne.s32.totalorder %s206, %s208
      %p212 = scmp.eq.s32.totalorder %s41, 0
      %p213 = por %p211, %p212
      %p214 = scmp.ne.s32.totalorder %s206, %s208
      %p215 = scmp.eq.s32.totalorder %s46, 1
      %p216 = por %p214, %p215
      %p217 = scmp.ne.s32.totalorder %s208, %s209
      %p218 = scmp.eq.s32.totalorder %s46, 0
      %p219 = por %p217, %p218
      %p220 = scmp.ne.s32.totalorder %s208, %s209
      %p221 = scmp.eq.s32.totalorder %s47, 1
      %p222 = por %p220, %p221
      %p224 = scmp.ne.s32.totalorder %s209, %s223
      %p225 = scmp.eq.s32.totalorder %s47, 0
      %p226 = por %p224, %p225
      %s228 = sadd.s32 %s227, 1
      %p231 = scmp.eq.s32.totalorder %s41, 1
      %p232 = scmp.ne.s32.totalorder %s227, %s229
      %p233 = scmp.eq.s32.totalorder %s41, 0
      %p234 = por %p232, %p233
      %p235 = scmp.ne.s32.totalorder %s227, %s229
      %p236 = scmp.eq.s32.totalorder %s46, 1
      %p237 = por %p235, %p236
      %p238 = scmp.ne.s32.totalorder %s229, %s230
      %p239 = scmp.eq.s32.totalorder %s46, 0
      %p240 = por %p238, %p239
      %p241 = scmp.ne.s32.totalorder %s229, %s230
      %p242 = scmp.eq.s32.totalorder %s47, 1
      %p243 = por %p241, %p242
      %p245 = scmp.ne.s32.totalorder %s230, %s244
      %p246 = scmp.eq.s32.totalorder %s47, 0
      %p247 = por %p245, %p246
      %s249 = sadd.s32 %s248, 1
      %p252 = scmp.eq.s32.totalorder %s41, 1
      %p253 = scmp.ne.s32.totalorder %s248, %s250
      %p254 = scmp.eq.s32.totalorder %s41, 0
      %p255 = por %p253, %p254
      %p256 = scmp.ne.s32.totalorder %s248, %s250
      %p257 = scmp.eq.s32.totalorder %s46, 1
      %p258 = por %p256, %p257
      %p259 = scmp.ne.s32.totalorder %s250, %s251
      %p260 = scmp.eq.s32.totalorder %s46, 0
      %p261 = por %p259, %p260
      %p262 = scmp.ne.s32.totalorder %s250, %s251
      %p263 = scmp.eq.s32.totalorder %s47, 1
      %p264 = por %p262, %p263
      %p266 = scmp.ne.s32.totalorder %s251, %s265
      %p267 = scmp.eq.s32.totalorder %s47, 0
      %p268 = por %p266, %p267
      %s270 = sadd.s32 %s269, 1
      %p273 = scmp.eq.s32.totalorder %s41, 1
      %p274 = scmp.ne.s32.totalorder %s269, %s271
      %p275 = scmp.eq.s32.totalorder %s41, 0
      %p276 = por %p274, %p275
      %p277 = scmp.ne.s32.totalorder %s269, %s271
      %p278 = scmp.eq.s32.totalorder %s46, 1
      %p279 = por %p277, %p278
      %p280 = scmp.ne.s32.totalorder %s271, %s272
      %p281 = scmp.eq.s32.totalorder %s46, 0
      %p282 = por %p280, %p281
      %p283 = scmp.ne.s32.totalorder %s271, %s272
      %p284 = scmp.eq.s32.totalorder %s47, 1
      %p285 = por %p283, %p284
      %p287 = scmp.ne.s32.totalorder %s272, %s286
      %p288 = scmp.eq.s32.totalorder %s47, 0
      %p289 = por %p287, %p288
      %s291 = sadd.s32 %s290, 1
      %p294 = scmp.eq.s32.totalorder %s41, 1
      %p295 = scmp.ne.s32.totalorder %s290, %s292
      %p296 = scmp.eq.s32.totalorder %s41, 0
      %p297 = por %p295, %p296
      %p298 = scmp.ne.s32.totalorder %s290, %s292
      %p299 = scmp.eq.s32.totalorder %s46, 1
      %p300 = por %p298, %p299
      %p301 = scmp.ne.s32.totalorder %s292, %s293
      %p302 = scmp.eq.s32.totalorder %s46, 0
      %p303 = por %p301, %p302
      %p304 = scmp.ne.s32.totalorder %s292, %s293
      %p305 = scmp.eq.s32.totalorder %s47, 1
      %p306 = por %p304, %p305
      %p308 = scmp.ne.s32.totalorder %s293, %s307
      %p309 = scmp.eq.s32.totalorder %s47, 0
      %p310 = por %p308, %p309
      %s312 = sadd.s32 %s311, 1
      %p315 = scmp.eq.s32.totalorder %s41, 1
      %p316 = scmp.ne.s32.totalorder %s311, %s313
      %p317 = scmp.eq.s32.totalorder %s41, 0
      %p318 = por %p316, %p317
      %p319 = scmp.ne.s32.totalorder %s311, %s313
      %p320 = scmp.eq.s32.totalorder %s46, 1
      %p321 = por %p319, %p320
      %p322 = scmp.ne.s32.totalorder %s313, %s314
      %p323 = scmp.eq.s32.totalorder %s46, 0
      %p324 = por %p322, %p323
      %p325 = scmp.ne.s32.totalorder %s313, %s314
      %p326 = scmp.eq.s32.totalorder %s47, 1
      %p327 = por %p325, %p326
      %p329 = scmp.ne.s32.totalorder %s314, %s328
      %p330 = scmp.eq.s32.totalorder %s47, 0
      %p331 = por %p329, %p330
      %s333 = sadd.s32 %s332, 1
      %p336 = scmp.eq.s32.totalorder %s41, 1
      %p337 = scmp.ne.s32.totalorder %s332, %s334
      %p338 = scmp.eq.s32.totalorder %s41, 0
      %p339 = por %p337, %p338
      %p340 = scmp.ne.s32.totalorder %s332, %s334
      %p341 = scmp.eq.s32.totalorder %s46, 1
      %p342 = por %p340, %p341
      %p343 = scmp.ne.s32.totalorder %s334, %s335
      %p344 = scmp.eq.s32.totalorder %s46, 0
      %p345 = por %p343, %p344
      %p346 = scmp.ne.s32.totalorder %s334, %s335
      %p347 = scmp.eq.s32.totalorder %s47, 1
      %p348 = por %p346, %p347
      %p350 = scmp.ne.s32.totalorder %s335, %s349
      %p351 = scmp.eq.s32.totalorder %s47, 0
      %p352 = por %p350, %p351
      %s354 = sadd.s32 %s353, 1
      %p357 = scmp.eq.s32.totalorder %s41, 1
      %p358 = scmp.ne.s32.totalorder %s353, %s355
      %p359 = scmp.eq.s32.totalorder %s41, 0
      %p360 = por %p358, %p359
      %p361 = scmp.ne.s32.totalorder %s353, %s355
      %p362 = scmp.eq.s32.totalorder %s46, 1
      %p363 = por %p361, %p362
      %p364 = scmp.ne.s32.totalorder %s355, %s356
      %p365 = scmp.eq.s32.totalorder %s46, 0
      %p366 = por %p364, %p365
      %p367 = scmp.ne.s32.totalorder %s355, %s356
      %p368 = scmp.eq.s32.totalorder %s47, 1
      %p369 = por %p367, %p368
      %p371 = scmp.ne.s32.totalorder %s356, %s370
      %p372 = scmp.eq.s32.totalorder %s47, 0
      %p373 = por %p371, %p372
      %s375 = sadd.s32 %s374, 1
      %p378 = scmp.eq.s32.totalorder %s41, 1
      %p379 = scmp.ne.s32.totalorder %s374, %s376
      %p380 = scmp.eq.s32.totalorder %s41, 0
      %p381 = por %p379, %p380
      %p382 = scmp.ne.s32.totalorder %s374, %s376
      %p383 = scmp.eq.s32.totalorder %s46, 1
      %p384 = por %p382, %p383
      %p385 = scmp.ne.s32.totalorder %s376, %s377
      %p386 = scmp.eq.s32.totalorder %s46, 0
      %p387 = por %p385, %p386
      %p388 = scmp.ne.s32.totalorder %s376, %s377
      %p389 = scmp.eq.s32.totalorder %s47, 1
      %p390 = por %p388, %p389
      %p392 = scmp.ne.s32.totalorder %s377, %s391
      %p393 = scmp.eq.s32.totalorder %s47, 0
      %p394 = por %p392, %p393
      %s396 = sadd.s32 %s395, 1
      %p399 = scmp.eq.s32.totalorder %s41, 1
      %p400 = scmp.ne.s32.totalorder %s395, %s397
      %p401 = scmp.eq.s32.totalorder %s41, 0
      %p402 = por %p400, %p401
      %p403 = scmp.ne.s32.totalorder %s395, %s397
      %p404 = scmp.eq.s32.totalorder %s46, 1
      %p405 = por %p403, %p404
      %p406 = scmp.ne.s32.totalorder %s397, %s398
      %p407 = scmp.eq.s32.totalorder %s46, 0
      %p408 = por %p406, %p407
      %p409 = scmp.ne.s32.totalorder %s397, %s398
      %p410 = scmp.eq.s32.totalorder %s47, 1
      %p411 = por %p409, %p410
      %p413 = scmp.ne.s32.totalorder %s398, %s412
      %p414 = scmp.eq.s32.totalorder %s47, 0
      %p415 = por %p413, %p414
      %s417 = sadd.s32 %s416, 1
      %p420 = scmp.eq.s32.totalorder %s41, 1
      %p421 = scmp.ne.s32.totalorder %s416, %s418
      %p422 = scmp.eq.s32.totalorder %s41, 0
      %p423 = por %p421, %p422
      %p424 = scmp.ne.s32.totalorder %s416, %s418
      %p425 = scmp.eq.s32.totalorder %s46, 1
      %p426 = por %p424, %p425
      %p427 = scmp.ne.s32.totalorder %s418, %s419
      %p428 = scmp.eq.s32.totalorder %s46, 0
      %p429 = por %p427, %p428
      %p430 = scmp.ne.s32.totalorder %s418, %s419
      %p431 = scmp.eq.s32.totalorder %s47, 1
      %p432 = por %p430, %p431
      %p434 = scmp.ne.s32.totalorder %s419, %s433
      %p435 = scmp.eq.s32.totalorder %s47, 0
      %p436 = por %p434, %p435
      %s438 = sadd.s32 %s437, 1
      %p441 = scmp.eq.s32.totalorder %s41, 1
      %p442 = scmp.ne.s32.totalorder %s437, %s439
      %p443 = scmp.eq.s32.totalorder %s41, 0
      %p444 = por %p442, %p443
      %p445 = scmp.ne.s32.totalorder %s437, %s439
      %p446 = scmp.eq.s32.totalorder %s46, 1
      %p447 = por %p445, %p446
      %p448 = scmp.ne.s32.totalorder %s439, %s440
      %p449 = scmp.eq.s32.totalorder %s46, 0
      %p450 = por %p448, %p449
      %p451 = scmp.ne.s32.totalorder %s439, %s440
      %p452 = scmp.eq.s32.totalorder %s47, 1
      %p453 = por %p451, %p452
      %p455 = scmp.ne.s32.totalorder %s440, %s454
      %p456 = scmp.eq.s32.totalorder %s47, 0
      %p457 = por %p455, %p456
      %s459 = sadd.s32 %s458, 1
      %p462 = scmp.eq.s32.totalorder %s41, 1
      %p463 = scmp.ne.s32.totalorder %s458, %s460
      %p464 = scmp.eq.s32.totalorder %s41, 0
      %p465 = por %p463, %p464
      %p466 = scmp.ne.s32.totalorder %s458, %s460
      %p467 = scmp.eq.s32.totalorder %s46, 1
      %p468 = por %p466, %p467
      %p469 = scmp.ne.s32.totalorder %s460, %s461
      %p470 = scmp.eq.s32.totalorder %s46, 0
      %p471 = por %p469, %p470
      %p472 = scmp.ne.s32.totalorder %s460, %s461
      %p473 = scmp.eq.s32.totalorder %s47, 1
      %p474 = por %p472, %p473
      %p476 = scmp.ne.s32.totalorder %s461, %s475
      %p477 = scmp.eq.s32.totalorder %s47, 0
      %p478 = por %p476, %p477
      %s480 = sadd.s32 %s479, 1
      %p483 = scmp.eq.s32.totalorder %s41, 1
      %p484 = scmp.ne.s32.totalorder %s479, %s481
      %p485 = scmp.eq.s32.totalorder %s41, 0
      %p486 = por %p484, %p485
      %p487 = scmp.ne.s32.totalorder %s479, %s481
      %p488 = scmp.eq.s32.totalorder %s46, 1
      %p489 = por %p487, %p488
      %p490 = scmp.ne.s32.totalorder %s481, %s482
      %p491 = scmp.eq.s32.totalorder %s46, 0
      %p492 = por %p490, %p491
      %p493 = scmp.ne.s32.totalorder %s481, %s482
      %p494 = scmp.eq.s32.totalorder %s47, 1
      %p495 = por %p493, %p494
      %p497 = scmp.ne.s32.totalorder %s482, %s496
      %p498 = scmp.eq.s32.totalorder %s47, 0
      %p499 = por %p497, %p498
      %s501 = sadd.s32 %s500, 1
      %p504 = scmp.eq.s32.totalorder %s41, 1
      %p505 = scmp.ne.s32.totalorder %s500, %s502
      %p506 = scmp.eq.s32.totalorder %s41, 0
      %p507 = por %p505, %p506
      %p508 = scmp.ne.s32.totalorder %s500, %s502
      %p509 = scmp.eq.s32.totalorder %s46, 1
      %p510 = por %p508, %p509
      %p511 = scmp.ne.s32.totalorder %s502, %s503
      %p512 = scmp.eq.s32.totalorder %s46, 0
      %p513 = por %p511, %p512
      %p514 = scmp.ne.s32.totalorder %s502, %s503
      %p515 = scmp.eq.s32.totalorder %s47, 1
      %p516 = por %p514, %p515
      %p518 = scmp.ne.s32.totalorder %s503, %s517
      %p519 = scmp.eq.s32.totalorder %s47, 0
      %p520 = por %p518, %p519
      %s522 = sadd.s32 %s521, 1
      %p525 = scmp.eq.s32.totalorder %s41, 1
      %p526 = scmp.ne.s32.totalorder %s521, %s523
      %p527 = scmp.eq.s32.totalorder %s41, 0
      %p528 = por %p526, %p527
      %p529 = scmp.ne.s32.totalorder %s521, %s523
      %p530 = scmp.eq.s32.totalorder %s46, 1
      %p531 = por %p529, %p530
      %p532 = scmp.ne.s32.totalorder %s523, %s524
      %p533 = scmp.eq.s32.totalorder %s46, 0
      %p534 = por %p532, %p533
      %p535 = scmp.ne.s32.totalorder %s523, %s524
      %p536 = scmp.eq.s32.totalorder %s47, 1
      %p537 = por %p535, %p536
      %p539 = scmp.ne.s32.totalorder %s524, %s538
      %p540 = scmp.eq.s32.totalorder %s47, 0
      %p541 = por %p539, %p540
      %s543 = sadd.s32 %s542, 1
      %p546 = scmp.eq.s32.totalorder %s41, 1
      %p547 = scmp.ne.s32.totalorder %s542, %s544
      %p548 = scmp.eq.s32.totalorder %s41, 0
      %p549 = por %p547, %p548
      %p550 = scmp.ne.s32.totalorder %s542, %s544
      %p551 = scmp.eq.s32.totalorder %s46, 1
      %p552 = por %p550, %p551
      %p553 = scmp.ne.s32.totalorder %s544, %s545
      %p554 = scmp.eq.s32.totalorder %s46, 0
      %p555 = por %p553, %p554
      %p556 = scmp.ne.s32.totalorder %s544, %s545
      %p557 = scmp.eq.s32.totalorder %s47, 1
      %p558 = por %p556, %p557
      %p560 = scmp.ne.s32.totalorder %s545, %s559
      %p561 = scmp.eq.s32.totalorder %s47, 0
      %p562 = por %p560, %p561
      %s564 = sadd.s32 %s563, 1
      %p567 = scmp.eq.s32.totalorder %s41, 1
      %p568 = scmp.ne.s32.totalorder %s563, %s565
      %p569 = scmp.eq.s32.totalorder %s41, 0
      %p570 = por %p568, %p569
      %p571 = scmp.ne.s32.totalorder %s563, %s565
      %p572 = scmp.eq.s32.totalorder %s46, 1
      %p573 = por %p571, %p572
      %p574 = scmp.ne.s32.totalorder %s565, %s566
      %p575 = scmp.eq.s32.totalorder %s46, 0
      %p576 = por %p574, %p575
      %p577 = scmp.ne.s32.totalorder %s565, %s566
      %p578 = scmp.eq.s32.totalorder %s47, 1
      %p579 = por %p577, %p578
      %p581 = scmp.ne.s32.totalorder %s566, %s580
      %p582 = scmp.eq.s32.totalorder %s47, 0
      %p583 = por %p581, %p582
      %s584 = ssub.s32 %s41, %s48
      %p585 = scmp.eq.s32.totalorder %s584, 0
      %s587 = sadd.s32 %s586, 1
      %s588 = scalar_select %p585, %s586, %s587
      %p591 = pneg %p585
      %p592 = scmp.eq.s32.totalorder %s41, 1
      %p593 = por %p591, %p592
      %p594 = scmp.ne.s32.totalorder %s586, %s589
      %p595 = scmp.eq.s32.totalorder %s41, 0
      %p596 = por %p594, %p595
      %p597 = scmp.ne.s32.totalorder %s586, %s589
      %p598 = scmp.eq.s32.totalorder %s46, 1
      %p599 = por %p597, %p598
      %p600 = scmp.ne.s32.totalorder %s589, %s590
      %p601 = scmp.eq.s32.totalorder %s46, 0
      %p602 = por %p600, %p601
      %p603 = scmp.ne.s32.totalorder %s589, %s590
      %p604 = scmp.eq.s32.totalorder %s47, 1
      %p605 = por %p603, %p604
      %p607 = scmp.ne.s32.totalorder %s590, %s606
      %p608 = scmp.eq.s32.totalorder %s47, 0
      %p609 = por %p607, %p608
      %p610 = scmp.le.s32.totalorder 1, %s41
      %p611 = scmp.lt.s32.totalorder %s41, 3
      %p612 = pnand %p610, %p611
      %p613 = pneg %p612
      // Predicated region
      $region9: #{bert_crf_forward.1} parent=5 // pred_check
        _
      $region10: #{bert_crf_forward.1} parent=5 // pred_check_branch
        %615 = sbr.rel (%p612) target = $region12
      $region11: #{bert_crf_forward.1} parent=5 // pred_region
        %s616 = ssub.s32 %s41, 1
        // Predicated region
        $region13: #{bert_crf_forward.1} parent=11 // pred_check
          %p617 = pneg %p114
        $region14: #{bert_crf_forward.1} parent=11 // pred_check_branch
          %619 = sbr.rel (%p617) target = $region16
        $region15: #{bert_crf_forward.1} parent=11 // pred_region
          _
        $region16: #{bert_crf_forward.1} parent=11 // pred_fallthru
          _
        // Predicated region
        $region17: #{bert_crf_forward.1} parent=11 // pred_check
          %p620 = pneg %p135
        $region18: #{bert_crf_forward.1} parent=11 // pred_check_branch
          %622 = sbr.rel (%p620) target = $region20
        $region19: #{bert_crf_forward.1} parent=11 // pred_region
          _
        $region20: #{bert_crf_forward.1} parent=11 // pred_fallthru
          _
        // Predicated region
        $region21: #{bert_crf_forward.1} parent=11 // pred_check
          %p623 = pneg %p156
        $region22: #{bert_crf_forward.1} parent=11 // pred_check_branch
          %625 = sbr.rel (%p623) target = $region24
        $region23: #{bert_crf_forward.1} parent=11 // pred_region
          _
        $region24: #{bert_crf_forward.1} parent=11 // pred_fallthru
          _
        // Predicated region
        $region25: #{bert_crf_forward.1} parent=11 // pred_check
          %p626 = pneg %p177
        $region26: #{bert_crf_forward.1} parent=11 // pred_check_branch
          %628 = sbr.rel (%p626) target = $region28
        $region27: #{bert_crf_forward.1} parent=11 // pred_region
          _
        $region28: #{bert_crf_forward.1} parent=11 // pred_fallthru
          _
        // Predicated region
        $region29: #{bert_crf_forward.1} parent=11 // pred_check
          %p629 = pneg %p198
        $region30: #{bert_crf_forward.1} parent=11 // pred_check_branch
          %631 = sbr.rel (%p629) target = $region32
        $region31: #{bert_crf_forward.1} parent=11 // pred_region
          _
        $region32: #{bert_crf_forward.1} parent=11 // pred_fallthru
          _
        // Predicated region
        $region33: #{bert_crf_forward.1} parent=11 // pred_check
          %p632 = pneg %p219
        $region34: #{bert_crf_forward.1} parent=11 // pred_check_branch
          %634 = sbr.rel (%p632) target = $region36
        $region35: #{bert_crf_forward.1} parent=11 // pred_region
          _
        $region36: #{bert_crf_forward.1} parent=11 // pred_fallthru
          _
        // Predicated region
        $region37: #{bert_crf_forward.1} parent=11 // pred_check
          %p635 = pneg %p240
        $region38: #{bert_crf_forward.1} parent=11 // pred_check_branch
          %637 = sbr.rel (%p635) target = $region40
        $region39: #{bert_crf_forward.1} parent=11 // pred_region
          _
        $region40: #{bert_crf_forward.1} parent=11 // pred_fallthru
          _
        // Predicated region
        $region41: #{bert_crf_forward.1} parent=11 // pred_check
          %p638 = pneg %p261
        $region42: #{bert_crf_forward.1} parent=11 // pred_check_branch
          %640 = sbr.rel (%p638) target = $region44
        $region43: #{bert_crf_forward.1} parent=11 // pred_region
          _
        $region44: #{bert_crf_forward.1} parent=11 // pred_fallthru
          _
        // Predicated region
        $region45: #{bert_crf_forward.1} parent=11 // pred_check
          %p641 = pneg %p282
        $region46: #{bert_crf_forward.1} parent=11 // pred_check_branch
          %643 = sbr.rel (%p641) target = $region48
        $region47: #{bert_crf_forward.1} parent=11 // pred_region
          _
        $region48: #{bert_crf_forward.1} parent=11 // pred_fallthru
          _
        // Predicated region
        $region49: #{bert_crf_forward.1} parent=11 // pred_check
          %p644 = pneg %p303
        $region50: #{bert_crf_forward.1} parent=11 // pred_check_branch
          %646 = sbr.rel (%p644) target = $region52
        $region51: #{bert_crf_forward.1} parent=11 // pred_region
          _
        $region52: #{bert_crf_forward.1} parent=11 // pred_fallthru
          _
        // Predicated region
        $region53: #{bert_crf_forward.1} parent=11 // pred_check
          %p647 = pneg %p324
        $region54: #{bert_crf_forward.1} parent=11 // pred_check_branch
          %649 = sbr.rel (%p647) target = $region56
        $region55: #{bert_crf_forward.1} parent=11 // pred_region
          _
        $region56: #{bert_crf_forward.1} parent=11 // pred_fallthru
          _
        // Predicated region
        $region57: #{bert_crf_forward.1} parent=11 // pred_check
          %p650 = pneg %p345
        $region58: #{bert_crf_forward.1} parent=11 // pred_check_branch
          %652 = sbr.rel (%p650) target = $region60
        $region59: #{bert_crf_forward.1} parent=11 // pred_region
          _
        $region60: #{bert_crf_forward.1} parent=11 // pred_fallthru
          _
        // Predicated region
        $region61: #{bert_crf_forward.1} parent=11 // pred_check
          %p653 = pneg %p366
        $region62: #{bert_crf_forward.1} parent=11 // pred_check_branch
          %655 = sbr.rel (%p653) target = $region64
        $region63: #{bert_crf_forward.1} parent=11 // pred_region
          _
        $region64: #{bert_crf_forward.1} parent=11 // pred_fallthru
          _
        // Predicated region
        $region65: #{bert_crf_forward.1} parent=11 // pred_check
          %p656 = pneg %p387
        $region66: #{bert_crf_forward.1} parent=11 // pred_check_branch
          %658 = sbr.rel (%p656) target = $region68
        $region67: #{bert_crf_forward.1} parent=11 // pred_region
          _
        $region68: #{bert_crf_forward.1} parent=11 // pred_fallthru
          _
        // Predicated region
        $region69: #{bert_crf_forward.1} parent=11 // pred_check
          %p659 = pneg %p408
        $region70: #{bert_crf_forward.1} parent=11 // pred_check_branch
          %661 = sbr.rel (%p659) target = $region72
        $region71: #{bert_crf_forward.1} parent=11 // pred_region
          _
        $region72: #{bert_crf_forward.1} parent=11 // pred_fallthru
          _
        // Predicated region
        $region73: #{bert_crf_forward.1} parent=11 // pred_check
          %p662 = pneg %p429
        $region74: #{bert_crf_forward.1} parent=11 // pred_check_branch
          %664 = sbr.rel (%p662) target = $region76
        $region75: #{bert_crf_forward.1} parent=11 // pred_region
          _
        $region76: #{bert_crf_forward.1} parent=11 // pred_fallthru
          _
        // Predicated region
        $region77: #{bert_crf_forward.1} parent=11 // pred_check
          %p665 = pneg %p450
        $region78: #{bert_crf_forward.1} parent=11 // pred_check_branch
          %667 = sbr.rel (%p665) target = $region80
        $region79: #{bert_crf_forward.1} parent=11 // pred_region
          _
        $region80: #{bert_crf_forward.1} parent=11 // pred_fallthru
          _
        // Predicated region
        $region81: #{bert_crf_forward.1} parent=11 // pred_check
          %p668 = pneg %p471
        $region82: #{bert_crf_forward.1} parent=11 // pred_check_branch
          %670 = sbr.rel (%p668) target = $region84
        $region83: #{bert_crf_forward.1} parent=11 // pred_region
          _
        $region84: #{bert_crf_forward.1} parent=11 // pred_fallthru
          _
        // Predicated region
        $region85: #{bert_crf_forward.1} parent=11 // pred_check
          %p671 = pneg %p492
        $region86: #{bert_crf_forward.1} parent=11 // pred_check_branch
          %673 = sbr.rel (%p671) target = $region88
        $region87: #{bert_crf_forward.1} parent=11 // pred_region
          _
        $region88: #{bert_crf_forward.1} parent=11 // pred_fallthru
          _
        // Predicated region
        $region89: #{bert_crf_forward.1} parent=11 // pred_check
          %p674 = pneg %p513
        $region90: #{bert_crf_forward.1} parent=11 // pred_check_branch
          %676 = sbr.rel (%p674) target = $region92
        $region91: #{bert_crf_forward.1} parent=11 // pred_region
          _
        $region92: #{bert_crf_forward.1} parent=11 // pred_fallthru
          _
        // Predicated region
        $region93: #{bert_crf_forward.1} parent=11 // pred_check
          %p677 = pneg %p534
        $region94: #{bert_crf_forward.1} parent=11 // pred_check_branch
          %679 = sbr.rel (%p677) target = $region96
        $region95: #{bert_crf_forward.1} parent=11 // pred_region
          _
        $region96: #{bert_crf_forward.1} parent=11 // pred_fallthru
          _
        // Predicated region
        $region97: #{bert_crf_forward.1} parent=11 // pred_check
          %p680 = pneg %p555
        $region98: #{bert_crf_forward.1} parent=11 // pred_check_branch
          %682 = sbr.rel (%p680) target = $region100
        $region99: #{bert_crf_forward.1} parent=11 // pred_region
          _
        $region100: #{bert_crf_forward.1} parent=11 // pred_fallthru
          _
        // Predicated region
        $region101: #{bert_crf_forward.1} parent=11 // pred_check
          %p683 = pneg %p576
        $region102: #{bert_crf_forward.1} parent=11 // pred_check_branch
          %685 = sbr.rel (%p683) target = $region104
        $region103: #{bert_crf_forward.1} parent=11 // pred_region
          _
        $region104: #{bert_crf_forward.1} parent=11 // pred_fallthru
          _
      $region12: #{bert_crf_forward.1} parent=5 // pred_fallthru
        _
      %p686 = scmp.lt.s32.totalorder %s41, 2
      // Predicated region
      $region105: #{bert_crf_forward.1} parent=5 // pred_check
        %p687 = pneg %p686
      $region106: #{bert_crf_forward.1} parent=5 // pred_check_branch
        %689 = sbr.rel (%p687) target = $region108
      $region107: #{bert_crf_forward.1} parent=5 // pred_region
        // Predicated region
        $region109: #{bert_crf_forward.1} parent=107 // pred_check
          %p690 = pneg %p61
        $region110: #{bert_crf_forward.1} parent=107 // pred_check_branch
          %692 = sbr.rel (%p690) target = $region112
        $region111: #{bert_crf_forward.1} parent=107 // pred_region
          %p693 = scmp.lt.s32.totalorder %s41, 1
          %s694 = scalar_select %p693, %s41, 1
          %s695 = smul.addr %s694, 2
          %s696 = smul.addr %s695, 8
          %s697 = scalar_lea.vmem %s1, %s696
        $region112: #{bert_crf_forward.1} parent=107 // pred_fallthru
          _
        // Predicated region
        $region113: #{bert_crf_forward.1} parent=107 // pred_check
          %p698 = pneg %p87
        $region114: #{bert_crf_forward.1} parent=107 // pred_check_branch
          %700 = sbr.rel (%p698) target = $region116
        $region115: #{bert_crf_forward.1} parent=107 // pred_region
          %p701 = scmp.lt.s32.totalorder %s41, 1
          %s702 = scalar_select %p701, %s41, 1
          %s703 = scalar_lea.vmem %s2, %s702
        $region116: #{bert_crf_forward.1} parent=107 // pred_fallthru
          _
      $region108: #{bert_crf_forward.1} parent=5 // pred_fallthru
        _
      %p704 = scmp.le.s32.totalorder 1, %s41
      %p705 = scmp.lt.s32.totalorder %s41, 3
      %p706 = pnand %p704, %p705
      %p707 = pneg %p706
      // Predicated region
      $region117: #{bert_crf_forward.1} parent=5 // pred_check
        _
      $region118: #{bert_crf_forward.1} parent=5 // pred_check_branch
        %709 = sbr.rel (%p706) target = $region120
      $region119: #{bert_crf_forward.1} parent=5 // pred_region
        %s710 = ssub.s32 %s41, 1
        %p711 = scmp.lt.s32.totalorder %s46, 1
        %s712 = scalar_select %p711, %s46, 1
        %s713 = smul.addr %s712, 2
        %s714 = smul.addr %s713, 8
        %s715 = scalar_lea.vmem %s1, %s714
        %p716 = pneg %p67
        %p717 = pneg %p64
        %p718 = scmp.lt.s32.totalorder %s46, 1
        %s719 = scalar_select %p718, %s46, 1
        %s720 = scalar_lea.vmem %s2, %s719
        %p721 = pneg %p93
        %p722 = pneg %p90
        %p723 = pneg %p114
        %p724 = pneg %p111
        %p725 = pneg %p135
        %p726 = pneg %p132
        %p727 = pneg %p156
        %p728 = pneg %p153
        %p729 = pneg %p177
        %p730 = pneg %p174
        %p731 = pneg %p198
        %p732 = pneg %p195
        %p733 = pneg %p219
        %p734 = pneg %p216
        %p735 = pneg %p240
        %p736 = pneg %p237
        %p737 = pneg %p261
        %p738 = pneg %p258
        %p739 = pneg %p282
        %p740 = pneg %p279
        %p741 = pneg %p303
        %p742 = pneg %p300
        %p743 = pneg %p324
        %p744 = pneg %p321
        %p745 = pneg %p345
        %p746 = pneg %p342
        %p747 = pneg %p366
        %p748 = pneg %p363
        %p749 = pneg %p387
        %p750 = pneg %p384
        %p751 = pneg %p408
        %p752 = pneg %p405
        %p753 = pneg %p429
        %p754 = pneg %p426
        %p755 = pneg %p450
        %p756 = pneg %p447
        %p757 = pneg %p471
        %p758 = pneg %p468
        %p759 = pneg %p492
        %p760 = pneg %p489
        %p761 = pneg %p513
        %p762 = pneg %p510
        %p763 = pneg %p534
        %p764 = pneg %p531
        %p765 = pneg %p555
        %p766 = pneg %p552
        %p767 = pneg %p576
        %p768 = pneg %p573
        %p769 = pneg %p602
        %p770 = pneg %p599
        %s771 = sand.u32 %s589, 1
        %s772 = scalar_lea.sflag [#allocation5], %s771
        %s773 = sand.u32 %s589, 1
        %s774 = scalar_lea.vmem [#allocation4], %s773
        %p775 = scmp.lt.s32.totalorder %s46, 1
        %s776 = scalar_select %p775, %s46, 1
        %s777 = smul.addr %s776, 2
        %s778 = smul.addr %s777, 8
        %s779 = scalar_lea.vmem %s1, %s778
        %p780 = scmp.lt.s32.totalorder %s46, 1
        %s781 = scalar_select %p780, %s46, 1
        %s782 = scalar_lea.vmem %s2, %s781
        %v783 = vld [vmem:[%s779] sm:$0xff]
        %v784 = vld [vmem:[%s779 + $0x8] sm:$0xff]
        %v785 = vld [vmem:[%s3] sm:$0x1]
        %v786 = vld [vmem:[%s4] sm:$0x1]
        %vm787 = vcmask 523264
        %v788 = vsel %vm787, %v783, 0.0
        %789 = vadd.xlane.f32.xlu0 %v788
        %v790 = vpop.xlane.xlu0 %789
        %v791 = vsel %vm787, %v784, 0.0
        %792 = vadd.xlane.f32.xlu0 %v791
        %v793 = vpop.xlane.xlu0 %792
        %v794 = vrcp.pop 64.0
        %v795 = vmul.f32 %v790, %v794
        %v796 = vmul.f32 %v793, %v794
        %v797 = vsub.f32 %v783, %v795
        %v798 = vsub.f32 %v784, %v796
        %v799 = vmul.f32 %v797, %v797
        %v800 = vmul.f32 %v798, %v798
        %v801 = vsel %vm787, %v799, 0.0
        %802 = vadd.xlane.f32.xlu0 %v801
        %v803 = vpop.xlane.xlu0 %802
        %v804 = vsel %vm787, %v800, 0.0
        %805 = vadd.xlane.f32.xlu0 %v804
        %v806 = vpop.xlane.xlu0 %805
        %v807 = vmul.f32 %v803, %v794
        %v808 = vmul.f32 %v806, %v794
        %v809 = vadd.f32 %v807, 1e-12
        %v810 = vadd.f32 %v808, 1e-12
        %v811 = vrsqrt.pop %v809
        %v812 = vrsqrt.pop %v810
        %v813 = vmul.f32 %v797, %v811
        %v814 = vmul.f32 %v798, %v812
        %v816 = vlaneseq
        %v817 = vshrl.u32 %v816, 7
        %v818 = vsub.s32 0, %v817
        %v819 = vrot.slane %v785, %v818
        %v821 = vmul.f32 %v813, %v819
        %v822 = vmul.f32 %v814, %v819
        %v824 = vlaneseq
        %v825 = vshrl.u32 %v824, 7
        %v826 = vsub.s32 0, %v825
        %v827 = vrot.slane %v786, %v826
        %v829 = vadd.f32 %v821, %v827
        %v830 = vadd.f32 %v822, %v827
        %v831 = vld [vmem:[%s782] sm:$0x1]
        %v832 = vld [vmem:[%s5] sm:$0xff]
        %v833 = vld [vmem:[%s5 + $0x8] sm:$0xff]
        %v834 = vld [vmem:[%s5 + $0x10] sm:$0xff]
        %v835 = vld [vmem:[%s5 + $0x18] sm:$0xff]
        %v836 = vld [vmem:[%s5 + $0x20] sm:$0xff]
        %v837 = vld [vmem:[%s5 + $0x28] sm:$0xff]
        %v838 = vld [vmem:[%s5 + $0x30] sm:$0xff]
        %v839 = vld [vmem:[%s5 + $0x38] sm:$0xff]
        %v840 = vld [vmem:[%s8] sm:$0x1]
        %v842 = vlaneseq
        %v843 = vshrl.u32 %v842, 7
        %v844 = vsub.s32 0, %v843
        %v845 = vrot.slane %v840, %v844
        %v848 = vsel %vm787, %v829, 0
        %v851 = vsel %vm787, %v830, 0
        %853 = vmatprep.subr.mxu0 0.0
        %854 = vmatpush1.msra.mxu0 %v832
        %855 = vmatprep.subr.mxu0 0.0
        %856 = vmatpush1.msra.mxu0 %v833
        %857 = vmatprep.subr.mxu0 0.0
        %858 = vmatpush1.msra.mxu0 %v834
        %859 = vmatprep.subr.mxu0 0.0
        %860 = vmatpush1.msra.mxu0 %v835
        %861 = vmatprep.subr.mxu0 0.0
        %862 = vmatpush1.msra.mxu0 %v836
        %863 = vmatprep.subr.mxu0 0.0
        %864 = vmatpush1.msra.mxu0 %v837
        %865 = vmatprep.subr.mxu0 0.0
        %866 = vmatpush1.msra.mxu0 %v838
        %867 = vmatprep.subr.mxu0 0.0
        %868 = vmatpush1.msra.mxu0 %v839
        %869 = vmatprep.subr.mxu0 0.0
        %870 = vmatpush1.msra.mxu0 0.0
        %871 = vmatprep.subr.mxu0 0.0
        %872 = vmatpush1.msra.mxu0 0.0
        %873 = vmatprep.subr.mxu0 0.0
        %874 = vmatpush1.msra.mxu0 0.0
        %875 = vmatprep.subr.mxu0 0.0
        %876 = vmatpush1.msra.mxu0 0.0
        %877 = vmatprep.subr.mxu0 0.0
        %878 = vmatpush1.msra.mxu0 0.0
        %879 = vmatprep.subr.mxu0 0.0
        %880 = vmatpush1.msra.mxu0 0.0
        %881 = vmatprep.subr.mxu0 0.0
        %882 = vmatpush1.msra.mxu0 0.0
        %883 = vmatprep.subr.mxu0 0.0
        %884 = vmatpush1.msra.mxu0 0.0
        %885 = vmatprep.subr.mxu0 0.0
        %886 = vmatpush1.msra.mxu0 0.0
        %887 = vmatprep.subr.mxu0 0.0
        %888 = vmatpush1.msra.mxu0 0.0
        %889 = vmatprep.subr.mxu0 0.0
        %890 = vmatpush1.msra.mxu0 0.0
        %891 = vmatprep.subr.mxu0 0.0
        %892 = vmatpush1.msra.mxu0 0.0
        %893 = vmatprep.subr.mxu0 0.0
        %894 = vmatpush1.msra.mxu0 0.0
        %895 = vmatprep.subr.mxu0 0.0
        %896 = vmatpush1.msra.mxu0 0.0
        %897 = vmatprep.subr.mxu0 0.0
        %898 = vmatpush1.msra.mxu0 0.0
        %899 = vmatprep.subr.mxu0 0.0
        %900 = vmatpush1.msra.mxu0 0.0
        %901 = vmatprep.subr.mxu0 0.0
        %902 = vmatpush1.msra.mxu0 0.0
        %903 = vmatprep.subr.mxu0 0.0
        %904 = vmatpush1.msra.mxu0 0.0
        %905 = vmatprep.subr.mxu0 0.0
        %906 = vmatpush1.msra.mxu0 0.0
        %907 = vmatprep.subr.mxu0 0.0
        %908 = vmatpush1.msra.mxu0 0.0
        %909 = vmatprep.subr.mxu0 0.0
        %910 = vmatpush1.msra.mxu0 0.0
        %911 = vmatprep.subr.mxu0 0.0
        %912 = vmatpush1.msra.mxu0 0.0
        %913 = vmatprep.subr.mxu0 0.0
        %914 = vmatpush1.msra.mxu0 0.0
        %915 = vmatprep.subr.mxu0 0.0
        %916 = vmatpush1.msra.mxu0 0.0
        %917 = vmatprep.mubr.f32.mxu0 0.0
        %918 = vmatmul.mubr.f32.gmra.mrb[0].mxu0 %v848
        %v919 = vpop.f32.mrb[0].mxu0
        %v920 = vadd.f32 %v845, %v919
        %v921 = vpop.f32.mrb[0].mxu0
        %922 = vmatprep.mubr.f32.mxu0 0.0
        %923 = vmatmul.mubr.f32.gmra.mrb[0].mxu0 %v851
        %v924 = vpop.f32.mrb[0].mxu0
        %v925 = vadd.f32 %v845, %v924
        %v926 = vpop.f32.mrb[0].mxu0
        %927 = vdwg.mxu0
        %v928 = vld [vmem:[%s6] sm:$0xff]
        %v929 = vld [vmem:[%s6 + $0x8] sm:$0xff]
        %v930 = vld [vmem:[%s6 + $0x10] sm:$0xff]
        %v931 = vld [vmem:[%s6 + $0x18] sm:$0xff]
        %v932 = vld [vmem:[%s6 + $0x20] sm:$0xff]
        %v933 = vld [vmem:[%s6 + $0x28] sm:$0xff]
        %v934 = vld [vmem:[%s6 + $0x30] sm:$0xff]
        %v935 = vld [vmem:[%s6 + $0x38] sm:$0xff]
        %v936 = vld [vmem:[%s9] sm:$0x1]
        %v938 = vlaneseq
        %v939 = vshrl.u32 %v938, 7
        %v940 = vsub.s32 0, %v939
        %v941 = vrot.slane %v936, %v940
        %943 = vmatprep.subr.mxu0 0.0
        %944 = vmatpush1.msra.mxu0 %v928
        %945 = vmatprep.subr.mxu0 0.0
        %946 = vmatpush1.msra.mxu0 %v929
        %947 = vmatprep.subr.mxu0 0.0
        %948 = vmatpush1.msra.mxu0 %v930
        %949 = vmatprep.subr.mxu0 0.0
        %950 = vmatpush1.msra.mxu0 %v931
        %951 = vmatprep.subr.mxu0 0.0
        %952 = vmatpush1.msra.mxu0 %v932
        %953 = vmatprep.subr.mxu0 0.0
        %954 = vmatpush1.msra.mxu0 %v933
        %955 = vmatprep.subr.mxu0 0.0
        %956 = vmatpush1.msra.mxu0 %v934
        %957 = vmatprep.subr.mxu0 0.0
        %958 = vmatpush1.msra.mxu0 %v935
        %959 = vmatprep.subr.mxu0 0.0
        %960 = vmatpush1.msra.mxu0 0.0
        %961 = vmatprep.subr.mxu0 0.0
        %962 = vmatpush1.msra.mxu0 0.0
        %963 = vmatprep.subr.mxu0 0.0
        %964 = vmatpush1.msra.mxu0 0.0
        %965 = vmatprep.subr.mxu0 0.0
        %966 = vmatpush1.msra.mxu0 0.0
        %967 = vmatprep.subr.mxu0 0.0
        %968 = vmatpush1.msra.mxu0 0.0
        %969 = vmatprep.subr.mxu0 0.0
        %970 = vmatpush1.msra.mxu0 0.0
        %971 = vmatprep.subr.mxu0 0.0
        %972 = vmatpush1.msra.mxu0 0.0
        %973 = vmatprep.subr.mxu0 0.0
        %974 = vmatpush1.msra.mxu0 0.0
        %975 = vmatprep.subr.mxu0 0.0
        %976 = vmatpush1.msra.mxu0 0.0
        %977 = vmatprep.subr.mxu0 0.0
        %978 = vmatpush1.msra.mxu0 0.0
        %979 = vmatprep.subr.mxu0 0.0
        %980 = vmatpush1.msra.mxu0 0.0
        %981 = vmatprep.subr.mxu0 0.0
        %982 = vmatpush1.msra.mxu0 0.0
        %983 = vmatprep.subr.mxu0 0.0
        %984 = vmatpush1.msra.mxu0 0.0
        %985 = vmatprep.subr.mxu0 0.0
        %986 = vmatpush1.msra.mxu0 0.0
        %987 = vmatprep.subr.mxu0 0.0
        %988 = vmatpush1.msra.mxu0 0.0
        %989 = vmatprep.subr.mxu0 0.0
        %990 = vmatpush1.msra.mxu0 0.0
        %991 = vmatprep.subr.mxu0 0.0
        %992 = vmatpush1.msra.mxu0 0.0
        %993 = vmatprep.subr.mxu0 0.0
        %994 = vmatpush1.msra.mxu0 0.0
        %995 = vmatprep.subr.mxu0 0.0
        %996 = vmatpush1.msra.mxu0 0.0
        %997 = vmatprep.subr.mxu0 0.0
        %998 = vmatpush1.msra.mxu0 0.0
        %999 = vmatprep.subr.mxu0 0.0
        %1000 = vmatpush1.msra.mxu0 0.0
        %1001 = vmatprep.subr.mxu0 0.0
        %1002 = vmatpush1.msra.mxu0 0.0
        %1003 = vmatprep.subr.mxu0 0.0
        %1004 = vmatpush1.msra.mxu0 0.0
        %1005 = vmatprep.subr.mxu0 0.0
        %1006 = vmatpush1.msra.mxu0 0.0
        %1007 = vmatprep.mubr.f32.mxu0 0.0
        %1008 = vmatmul.mubr.f32.gmra.mrb[0].mxu0 %v848
        %v1009 = vpop.f32.mrb[0].mxu0
        %v1010 = vadd.f32 %v941, %v1009
        %v1011 = vpop.f32.mrb[0].mxu0
        %1012 = vmatprep.mubr.f32.mxu0 0.0
        %1013 = vmatmul.mubr.f32.gmra.mrb[0].mxu0 %v851
        %v1014 = vpop.f32.mrb[0].mxu0
        %v1015 = vadd.f32 %v941, %v1014
        %v1016 = vpop.f32.mrb[0].mxu0
        %1017 = vdwg.mxu0
        %v1018 = vld [vmem:[%s7] sm:$0xff]
        %v1019 = vld [vmem:[%s7 + $0x8] sm:$0xff]
        %v1020 = vld [vmem:[%s7 + $0x10] sm:$0xff]
        %v1021 = vld [vmem:[%s7 + $0x18] sm:$0xff]
        %v1022 = vld [vmem:[%s7 + $0x20] sm:$0xff]
        %v1023 = vld [vmem:[%s7 + $0x28] sm:$0xff]
        %v1024 = vld [vmem:[%s7 + $0x30] sm:$0xff]
        %v1025 = vld [vmem:[%s7 + $0x38] sm:$0xff]
        %v1026 = vld [vmem:[%s10] sm:$0x1]
        %v1028 = vlaneseq
        %v1029 = vshrl.u32 %v1028, 7
        %v1030 = vsub.s32 0, %v1029
        %v1031 = vrot.slane %v1026, %v1030
        %1033 = vmatprep.subr.mxu0 0.0
        %1034 = vmatpush1.msra.mxu0 %v1018
        %1035 = vmatprep.subr.mxu0 0.0
        %1036 = vmatpush1.msra.mxu0 %v1019
        %1037 = vmatprep.subr.mxu0 0.0
        %1038 = vmatpush1.msra.mxu0 %v1020
        %1039 = vmatprep.subr.mxu0 0.0
        %1040 = vmatpush1.msra.mxu0 %v1021
        %1041 = vmatprep.subr.mxu0 0.0
        %1042 = vmatpush1.msra.mxu0 %v1022
        %1043 = vmatprep.subr.mxu0 0.0
        %1044 = vmatpush1.msra.mxu0 %v1023
        %1045 = vmatprep.subr.mxu0 0.0
        %1046 = vmatpush1.msra.mxu0 %v1024
        %1047 = vmatprep.subr.mxu0 0.0
        %1048 = vmatpush1.msra.mxu0 %v1025
        %1049 = vmatprep.subr.mxu0 0.0
        %1050 = vmatpush1.msra.mxu0 0.0
        %1051 = vmatprep.subr.mxu0 0.0
        %1052 = vmatpush1.msra.mxu0 0.0
        %1053 = vmatprep.subr.mxu0 0.0
        %1054 = vmatpush1.msra.mxu0 0.0
        %1055 = vmatprep.subr.mxu0 0.0
        %1056 = vmatpush1.msra.mxu0 0.0
        %1057 = vmatprep.subr.mxu0 0.0
        %1058 = vmatpush1.msra.mxu0 0.0
        %1059 = vmatprep.subr.mxu0 0.0
        %1060 = vmatpush1.msra.mxu0 0.0
        %1061 = vmatprep.subr.mxu0 0.0
        %1062 = vmatpush1.msra.mxu0 0.0
        %1063 = vmatprep.subr.mxu0 0.0
        %1064 = vmatpush1.msra.mxu0 0.0
        %1065 = vmatprep.subr.mxu0 0.0
        %1066 = vmatpush1.msra.mxu0 0.0
        %1067 = vmatprep.subr.mxu0 0.0
        %1068 = vmatpush1.msra.mxu0 0.0
        %1069 = vmatprep.subr.mxu0 0.0
        %1070 = vmatpush1.msra.mxu0 0.0
        %1071 = vmatprep.subr.mxu0 0.0
        %1072 = vmatpush1.msra.mxu0 0.0
        %1073 = vmatprep.subr.mxu0 0.0
        %1074 = vmatpush1.msra.mxu0 0.0
        %1075 = vmatprep.subr.mxu0 0.0
        %1076 = vmatpush1.msra.mxu0 0.0
        %1077 = vmatprep.subr.mxu0 0.0
        %1078 = vmatpush1.msra.mxu0 0.0
        %1079 = vmatprep.subr.mxu0 0.0
        %1080 = vmatpush1.msra.mxu0 0.0
        %1081 = vmatprep.subr.mxu0 0.0
        %1082 = vmatpush1.msra.mxu0 0.0
        %1083 = vmatprep.subr.mxu0 0.0
        %1084 = vmatpush1.msra.mxu0 0.0
        %1085 = vmatprep.subr.mxu0 0.0
        %1086 = vmatpush1.msra.mxu0 0.0
        %1087 = vmatprep.subr.mxu0 0.0
        %1088 = vmatpush1.msra.mxu0 0.0
        %1089 = vmatprep.subr.mxu0 0.0
        %1090 = vmatpush1.msra.mxu0 0.0
        %1091 = vmatprep.subr.mxu0 0.0
        %1092 = vmatpush1.msra.mxu0 0.0
        %1093 = vmatprep.subr.mxu0 0.0
        %1094 = vmatpush1.msra.mxu0 0.0
        %1095 = vmatprep.subr.mxu0 0.0
        %1096 = vmatpush1.msra.mxu0 0.0
        %1097 = vmatprep.mubr.f32.mxu0 0.0
        %1098 = vmatmul.mubr.f32.gmra.mrb[0].mxu0 %v848
        %v1099 = vpop.f32.mrb[0].mxu0
        %v1100 = vadd.f32 %v1031, %v1099
        %v1101 = vpop.f32.mrb[0].mxu0
        %1102 = vmatprep.mubr.f32.mxu0 0.0
        %1103 = vmatmul.mubr.f32.gmra.mrb[0].mxu0 %v851
        %v1104 = vpop.f32.mrb[0].mxu0
        %v1105 = vadd.f32 %v1031, %v1104
        %v1106 = vpop.f32.mrb[0].mxu0
        %1107 = vdwg.mxu0
        %vm1108 = vcmask 261120
        %v1110 = vsel %vm1108, %v920, 0
        %v1113 = vsel %vm1108, %v925, 0
        %v1116 = vsel %vm1108, %v1010, 0
        %v1119 = vsel %vm1108, %v1015, 0
        %1121 = vmatprep.subr.mxu0 0.0
        %1122 = vmatpush1.xpose.msra.mxu0 %v1116
        %1123 = vmatprep.subr.mxu0 0.0
        %1124 = vmatpush1.xpose.msra.mxu0 %v1119
        %1125 = vmatprep.subr.mxu0 0.0
        %1126 = vmatpush1.xpose.msra.mxu0 0.0
        %1127 = vmatprep.subr.mxu0 0.0
        %1128 = vmatpush1.xpose.msra.mxu0 0.0
        %1129 = vmatprep.subr.mxu0 0.0
        %1130 = vmatpush1.xpose.msra.mxu0 0.0
        %1131 = vmatprep.subr.mxu0 0.0
        %1132 = vmatpush1.xpose.msra.mxu0 0.0
        %1133 = vmatprep.subr.mxu0 0.0
        %1134 = vmatpush1.xpose.msra.mxu0 0.0
        %1135 = vmatprep.subr.mxu0 0.0
        %1136 = vmatpush1.xpose.msra.mxu0 0.0
        %1137 = vmatprep.subr.mxu0 0.0
        %1138 = vmatpush1.xpose.msra.mxu0 0.0
        %1139 = vmatprep.subr.mxu0 0.0
        %1140 = vmatpush1.xpose.msra.mxu0 0.0
        %1141 = vmatprep.subr.mxu0 0.0
        %1142 = vmatpush1.xpose.msra.mxu0 0.0
        %1143 = vmatprep.subr.mxu0 0.0
        %1144 = vmatpush1.xpose.msra.mxu0 0.0
        %1145 = vmatprep.subr.mxu0 0.0
        %1146 = vmatpush1.xpose.msra.mxu0 0.0
        %1147 = vmatprep.subr.mxu0 0.0
        %1148 = vmatpush1.xpose.msra.mxu0 0.0
        %1149 = vmatprep.subr.mxu0 0.0
        %1150 = vmatpush1.xpose.msra.mxu0 0.0
        %1151 = vmatprep.subr.mxu0 0.0
        %1152 = vmatpush1.xpose.msra.mxu0 0.0
        %1153 = vmatprep.subr.mxu0 0.0
        %1154 = vmatpush1.xpose.msra.mxu0 0.0
        %1155 = vmatprep.subr.mxu0 0.0
        %1156 = vmatpush1.xpose.msra.mxu0 0.0
        %1157 = vmatprep.subr.mxu0 0.0
        %1158 = vmatpush1.xpose.msra.mxu0 0.0
        %1159 = vmatprep.subr.mxu0 0.0
        %1160 = vmatpush1.xpose.msra.mxu0 0.0
        %1161 = vmatprep.subr.mxu0 0.0
        %1162 = vmatpush1.xpose.msra.mxu0 0.0
        %1163 = vmatprep.subr.mxu0 0.0
        %1164 = vmatpush1.xpose.msra.mxu0 0.0
        %1165 = vmatprep.subr.mxu0 0.0
        %1166 = vmatpush1.xpose.msra.mxu0 0.0
        %1167 = vmatprep.subr.mxu0 0.0
        %1168 = vmatpush1.xpose.msra.mxu0 0.0
        %1169 = vmatprep.subr.mxu0 0.0
        %1170 = vmatpush1.xpose.msra.mxu0 0.0
        %1171 = vmatprep.subr.mxu0 0.0
        %1172 = vmatpush1.xpose.msra.mxu0 0.0
        %1173 = vmatprep.subr.mxu0 0.0
        %1174 = vmatpush1.xpose.msra.mxu0 0.0
        %1175 = vmatprep.subr.mxu0 0.0
        %1176 = vmatpush1.xpose.msra.mxu0 0.0
        %1177 = vmatprep.subr.mxu0 0.0
        %1178 = vmatpush1.xpose.msra.mxu0 0.0
        %1179 = vmatprep.subr.mxu0 0.0
        %1180 = vmatpush1.xpose.msra.mxu0 0.0
        %1181 = vmatprep.subr.mxu0 0.0
        %1182 = vmatpush1.xpose.msra.mxu0 0.0
        %1183 = vmatprep.subr.mxu0 0.0
        %1184 = vmatpush1.xpose.msra.mxu0 0.0
        %1185 = vmatprep.mubr.f32.mxu0 0.0
        %1186 = vmatmul.mubr.f32.gmra.mrb[0].mxu0 %v1110
        %v1187 = vpop.f32.mrb[0].mxu0
        %v1188 = vadd.f32 0.0, %v1187
        %v1189 = vpop.f32.mrb[0].mxu0
        %1190 = vmatprep.mubr.f32.mxu0 0.0
        %1191 = vmatmul.mubr.f32.gmra.mrb[0].mxu0 %v1113
        %v1192 = vpop.f32.mrb[0].mxu0
        %v1193 = vadd.f32 0.0, %v1192
        %v1194 = vpop.f32.mrb[0].mxu0
        %1195 = vdwg.mxu0
        %v1196 = vmul.f32 %v1188, 0.17677669
        %v1197 = vmul.f32 %v1193, 0.17677669
        %v1199 = vlaneseq
        %v1200 = vshrl.u32 %v1199, 7
        %v1201 = vsub.s32 0, %v1200
        %v1202 = vrot.slane %v831, %v1201
        %v1204 = vadd.f32 %v1196, %v1202
        %v1205 = vadd.f32 %v1197, %v1202
        %vm1206 = vcmask 130048
        %v1207 = vsel %vm1206, %v1204, -inf
        %1208 = vmax.xlane.f32.xlu0 %v1207
        %v1209 = vpop.xlane.xlu0 %1208
        %v1210 = vsel %vm1206, %v1205, -inf
        %1211 = vmax.xlane.f32.xlu0 %v1210
        %v1212 = vpop.xlane.xlu0 %1211
        %v1213 = vsub.f32 %v1204, %v1209
        %v1214 = vsub.f32 %v1205, %v1212
        %v1215 = vmul.f32 %v1213, 1.442695
        %v1216 = vpow.pop %v1215
        %v1217 = vmul.f32 %v1214, 1.442695
        %v1218 = vpow.pop %v1217
        %v1219 = vsel %vm1206, %v1216, 0.0
        %1220 = vadd.xlane.f32.xlu0 %v1219
        %v1221 = vpop.xlane.xlu0 %1220
        %v1222 = vsel %vm1206, %v1218, 0.0
        %1223 = vadd.xlane.f32.xlu0 %v1222
        %v1224 = vpop.xlane.xlu0 %1223
        %v1225 = vrcp.pop %v1221
        %v1226 = vmul.f32 %v1216, %v1225
        %v1227 = vrcp.pop %v1224
        %v1228 = vmul.f32 %v1218, %v1227
        %v1230 = vsel %vm1206, %v1226, 0
        %v1233 = vsel %vm1206, %v1228, 0
        %1235 = vmatprep.subr.mxu0 0.0
        %1236 = vmatpush1.msra.mxu0 %v1100
        %1237 = vmatprep.subr.mxu0 0.0
        %1238 = vmatpush1.msra.mxu0 %v1105
        %1239 = vmatprep.subr.mxu0 0.0
        %1240 = vmatpush1.msra.mxu0 0.0
        %1241 = vmatprep.subr.mxu0 0.0
        %1242 = vmatpush1.msra.mxu0 0.0
        %1243 = vmatprep.subr.mxu0 0.0
        %1244 = vmatpush1.msra.mxu0 0.0
        %1245 = vmatprep.subr.mxu0 0.0
        %1246 = vmatpush1.msra.mxu0 0.0
        %1247 = vmatprep.subr.mxu0 0.0
        %1248 = vmatpush1.msra.mxu0 0.0
        %1249 = vmatprep.subr.mxu0 0.0
        %1250 = vmatpush1.msra.mxu0 0.0
        %1251 = vmatprep.subr.mxu0 0.0
        %1252 = vmatpush1.msra.mxu0 0.0
        %1253 = vmatprep.subr.mxu0 0.0
        %1254 = vmatpush1.msra.mxu0 0.0
        %1255 = vmatprep.subr.mxu0 0.0
        %1256 = vmatpush1.msra.mxu0 0.0
        %1257 = vmatprep.subr.mxu0 0.0
        %1258 = vmatpush1.msra.mxu0 0.0
        %1259 = vmatprep.subr.mxu0 0.0
        %1260 = vmatpush1.msra.mxu0 0.0
        %1261 = vmatprep.subr.mxu0 0.0
        %1262 = vmatpush1.msra.mxu0 0.0
        %1263 = vmatprep.subr.mxu0 0.0
        %1264 = vmatpush1.msra.mxu0 0.0
        %1265 = vmatprep.subr.mxu0 0.0
        %1266 = vmatpush1.msra.mxu0 0.0
        %1267 = vmatprep.subr.mxu0 0.0
        %1268 = vmatpush1.msra.mxu0 0.0
        %1269 = vmatprep.subr.mxu0 0.0
        %1270 = vmatpush1.msra.mxu0 0.0
        %1271 = vmatprep.subr.mxu0 0.0
        %1272 = vmatpush1.msra.mxu0 0.0
        %1273 = vmatprep.subr.mxu0 0.0
        %1274 = vmatpush1.msra.mxu0 0.0
        %1275 = vmatprep.subr.mxu0 0.0
        %1276 = vmatpush1.msra.mxu0 0.0
        %1277 = vmatprep.subr.mxu0 0.0
        %1278 = vmatpush1.msra.mxu0 0.0
        %1279 = vmatprep.subr.mxu0 0.0
        %1280 = vmatpush1.msra.mxu0 0.0
        %1281 = vmatprep.subr.mxu0 0.0
        %1282 = vmatpush1.msra.mxu0 0.0
        %1283 = vmatprep.subr.mxu0 0.0
        %1284 = vmatpush1.msra.mxu0 0.0
        %1285 = vmatprep.subr.mxu0 0.0
        %1286 = vmatpush1.msra.mxu0 0.0
        %1287 = vmatprep.subr.mxu0 0.0
        %1288 = vmatpush1.msra.mxu0 0.0
        %1289 = vmatprep.subr.mxu0 0.0
        %1290 = vmatpush1.msra.mxu0 0.0
        %1291 = vmatprep.subr.mxu0 0.0
        %1292 = vmatpush1.msra.mxu0 0.0
        %1293 = vmatprep.subr.mxu0 0.0
        %1294 = vmatpush1.msra.mxu0 0.0
        %1295 = vmatprep.subr.mxu0 0.0
        %1296 = vmatpush1.msra.mxu0 0.0
        %1297 = vmatprep.subr.mxu0 0.0
        %1298 = vmatpush1.msra.mxu0 0.0
        %1299 = vmatprep.mubr.f32.mxu0 0.0
        %1300 = vmatmul.mubr.f32.gmra.mrb[0].mxu0 %v1230
        %v1301 = vpop.f32.mrb[0].mxu0
        %v1302 = vadd.f32 0.0, %v1301
        %v1303 = vpop.f32.mrb[0].mxu0
        %1304 = vmatprep.mubr.f32.mxu0 0.0
        %1305 = vmatmul.mubr.f32.gmra.mrb[0].mxu0 %v1233
        %v1306 = vpop.f32.mrb[0].mxu0
        %v1307 = vadd.f32 0.0, %v1306
        %v1308 = vpop.f32.mrb[0].mxu0
        %1309 = vdwg.mxu0
        %v1310 = vld [vmem:[%s11] sm:$0xff]
        %v1311 = vld [vmem:[%s11 + $0x8] sm:$0xff]
        %v1312 = vld [vmem:[%s11 + $0x10] sm:$0xff]
        %v1313 = vld [vmem:[%s11 + $0x18] sm:$0xff]
        %s1314 = scalar_lea.vmem %s5, 64
        %v1315 = vld [vmem:[%s1314] sm:$0xff]
        %v1316 = vld [vmem:[%s1314 + $0x8] sm:$0xff]
        %v1317 = vld [vmem:[%s1314 + $0x10] sm:$0xff]
        %v1318 = vld [vmem:[%s1314 + $0x18] sm:$0xff]
        %v1319 = vld [vmem:[%s1314 + $0x20] sm:$0xff]
        %v1320 = vld [vmem:[%s1314 + $0x28] sm:$0xff]
        %v1321 = vld [vmem:[%s1314 + $0x30] sm:$0xff]
        %v1322 = vld [vmem:[%s1314 + $0x38] sm:$0xff]
        %s1323 = scalar_lea.vmem %s8, 1
        %v1324 = vld [vmem:[%s1323] sm:$0x1]
        %v1326 = vlaneseq
        %v1327 = vshrl.u32 %v1326, 7
        %v1328 = vsub.s32 0, %v1327
        %v1329 = vrot.slane %v1324, %v1328
        %1331 = vmatprep.subr.mxu0 0.0
        %1332 = vmatpush1.msra.mxu0 %v1315
        %1333 = vmatprep.subr.mxu0 0.0
        %1334 = vmatpush1.msra.mxu0 %v1316
        %1335 = vmatprep.subr.mxu0 0.0
        %1336 = vmatpush1.msra.mxu0 %v1317
        %1337 = vmatprep.subr.mxu0 0.0
        %1338 = vmatpush1.msra.mxu0 %v1318
        %1339 = vmatprep.subr.mxu0 0.0
        %1340 = vmatpush1.msra.mxu0 %v1319
        %1341 = vmatprep.subr.mxu0 0.0
        %1342 = vmatpush1.msra.mxu0 %v1320
        %1343 = vmatprep.subr.mxu0 0.0
        %1344 = vmatpush1.msra.mxu0 %v1321
        %1345 = vmatprep.subr.mxu0 0.0
        %1346 = vmatpush1.msra.mxu0 %v1322
        %1347 = vmatprep.subr.mxu0 0.0
        %1348 = vmatpush1.msra.mxu0 0.0
        %1349 = vmatprep.subr.mxu0 0.0
        %1350 = vmatpush1.msra.mxu0 0.0
        %1351 = vmatprep.subr.mxu0 0.0
        %1352 = vmatpush1.msra.mxu0 0.0
        %1353 = vmatprep.subr.mxu0 0.0
        %1354 = vmatpush1.msra.mxu0 0.0
        %1355 = vmatprep.subr.mxu0 0.0
        %1356 = vmatpush1.msra.mxu0 0.0
        %1357 = vmatprep.subr.mxu0 0.0
        %1358 = vmatpush1.msra.mxu0 0.0
        %1359 = vmatprep.subr.mxu0 0.0
        %1360 = vmatpush1.msra.mxu0 0.0
        %1361 = vmatprep.subr.mxu0 0.0
        %1362 = vmatpush1.msra.mxu0 0.0
        %1363 = vmatprep.subr.mxu0 0.0
        %1364 = vmatpush1.msra.mxu0 0.0
        %1365 = vmatprep.subr.mxu0 0.0
        %1366 = vmatpush1.msra.mxu0 0.0
        %1367 = vmatprep.subr.mxu0 0.0
        %1368 = vmatpush1.msra.mxu0 0.0
        %1369 = vmatprep.subr.mxu0 0.0
        %1370 = vmatpush1.msra.mxu0 0.0
        %1371 = vmatprep.subr.mxu0 0.0
        %1372 = vmatpush1.msra.mxu0 0.0
        %1373 = vmatprep.subr.mxu0 0.0
        %1374 = vmatpush1.msra.mxu0 0.0
        %1375 = vmatprep.subr.mxu0 0.0
        %1376 = vmatpush1.msra.mxu0 0.0
        %1377 = vmatprep.subr.mxu0 0.0
        %1378 = vmatpush1.msra.mxu0 0.0
        %1379 = vmatprep.subr.mxu0 0.0
        %1380 = vmatpush1.msra.mxu0 0.0
        %1381 = vmatprep.subr.mxu0 0.0
        %1382 = vmatpush1.msra.mxu0 0.0
        %1383 = vmatprep.subr.mxu0 0.0
        %1384 = vmatpush1.msra.mxu0 0.0
        %1385 = vmatprep.subr.mxu0 0.0
        %1386 = vmatpush1.msra.mxu0 0.0
        %1387 = vmatprep.subr.mxu0 0.0
        %1388 = vmatpush1.msra.mxu0 0.0
        %1389 = vmatprep.subr.mxu0 0.0
        %1390 = vmatpush1.msra.mxu0 0.0
        %1391 = vmatprep.subr.mxu0 0.0
        %1392 = vmatpush1.msra.mxu0 0.0
        %1393 = vmatprep.subr.mxu0 0.0
        %1394 = vmatpush1.msra.mxu0 0.0
        %1395 = vmatprep.mubr.f32.mxu0 0.0
        %1396 = vmatmul.mubr.f32.gmra.mrb[0].mxu0 %v848
        %v1397 = vpop.f32.mrb[0].mxu0
        %v1398 = vadd.f32 %v1329, %v1397
        %v1399 = vpop.f32.mrb[0].mxu0
        %1400 = vmatprep.mubr.f32.mxu0 0.0
        %1401 = vmatmul.mubr.f32.gmra.mrb[0].mxu0 %v851
        %v1402 = vpop.f32.mrb[0].mxu0
        %v1403 = vadd.f32 %v1329, %v1402
        %v1404 = vpop.f32.mrb[0].mxu0
        %1405 = vdwg.mxu0
        %s1406 = scalar_lea.vmem %s6, 64
        %v1407 = vld [vmem:[%s1406] sm:$0xff]
        %v1408 = vld [vmem:[%s1406 + $0x8] sm:$0xff]
        %v1409 = vld [vmem:[%s1406 + $0x10] sm:$0xff]
        %v1410 = vld [vmem:[%s1406 + $0x18] sm:$0xff]
        %v1411 = vld [vmem:[%s1406 + $0x20] sm:$0xff]
        %v1412 = vld [vmem:[%s1406 + $0x28] sm:$0xff]
        %v1413 = vld [vmem:[%s1406 + $0x30] sm:$0xff]
        %v1414 = vld [vmem:[%s1406 + $0x38] sm:$0xff]
        %s1415 = scalar_lea.vmem %s9, 1
        %v1416 = vld [vmem:[%s1415] sm:$0x1]
        %v1418 = vlaneseq
        %v1419 = vshrl.u32 %v1418, 7
        %v1420 = vsub.s32 0, %v1419
        %v1421 = vrot.slane %v1416, %v1420
        %1423 = vmatprep.subr.mxu0 0.0
        %1424 = vmatpush1.msra.mxu0 %v1407
        %1425 = vmatprep.subr.mxu0 0.0
        %1426 = vmatpush1.msra.mxu0 %v1408
        %1427 = vmatprep.subr.mxu0 0.0
        %1428 = vmatpush1.msra.mxu0 %v1409
        %1429 = vmatprep.subr.mxu0 0.0
        %1430 = vmatpush1.msra.mxu0 %v1410
        %1431 = vmatprep.subr.mxu0 0.0
        %1432 = vmatpush1.msra.mxu0 %v1411
        %1433 = vmatprep.subr.mxu0 0.0
        %1434 = vmatpush1.msra.mxu0 %v1412
        %1435 = vmatprep.subr.mxu0 0.0
        %1436 = vmatpush1.msra.mxu0 %v1413
        %1437 = vmatprep.subr.mxu0 0.0
        %1438 = vmatpush1.msra.mxu0 %v1414
        %1439 = vmatprep.subr.mxu0 0.0
        %1440 = vmatpush1.msra.mxu0 0.0
        %1441 = vmatprep.subr.mxu0 0.0
        %1442 = vmatpush1.msra.mxu0 0.0
        %1443 = vmatprep.subr.mxu0 0.0
        %1444 = vmatpush1.msra.mxu0 0.0
        %1445 = vmatprep.subr.mxu0 0.0
        %1446 = vmatpush1.msra.mxu0 0.0
        %1447 = vmatprep.subr.mxu0 0.0
        %1448 = vmatpush1.msra.mxu0 0.0
        %1449 = vmatprep.subr.mxu0 0.0
        %1450 = vmatpush1.msra.mxu0 0.0
        %1451 = vmatprep.subr.mxu0 0.0
        %1452 = vmatpush1.msra.mxu0 0.0
        %1453 = vmatprep.subr.mxu0 0.0
        %1454 = vmatpush1.msra.mxu0 0.0
        %1455 = vmatprep.subr.mxu0 0.0
        %1456 = vmatpush1.msra.mxu0 0.0
        %1457 = vmatprep.subr.mxu0 0.0
        %1458 = vmatpush1.msra.mxu0 0.0
        %1459 = vmatprep.subr.mxu0 0.0
        %1460 = vmatpush1.msra.mxu0 0.0
        %1461 = vmatprep.subr.mxu0 0.0
        %1462 = vmatpush1.msra.mxu0 0.0
        %1463 = vmatprep.subr.mxu0 0.0
        %1464 = vmatpush1.msra.mxu0 0.0
        %1465 = vmatprep.subr.mxu0 0.0
        %1466 = vmatpush1.msra.mxu0 0.0
        %1467 = vmatprep.subr.mxu0 0.0
        %1468 = vmatpush1.msra.mxu0 0.0
        %1469 = vmatprep.subr.mxu0 0.0
        %1470 = vmatpush1.msra.mxu0 0.0
        %1471 = vmatprep.subr.mxu0 0.0
        %1472 = vmatpush1.msra.mxu0 0.0
        %1473 = vmatprep.subr.mxu0 0.0
        %1474 = vmatpush1.msra.mxu0 0.0
        %1475 = vmatprep.subr.mxu0 0.0
        %1476 = vmatpush1.msra.mxu0 0.0
        %1477 = vmatprep.subr.mxu0 0.0
        %1478 = vmatpush1.msra.mxu0 0.0
        %1479 = vmatprep.subr.mxu0 0.0
        %1480 = vmatpush1.msra.mxu0 0.0
        %1481 = vmatprep.subr.mxu0 0.0
        %1482 = vmatpush1.msra.mxu0 0.0
        %1483 = vmatprep.subr.mxu0 0.0
        %1484 = vmatpush1.msra.mxu0 0.0
        %1485 = vmatprep.subr.mxu0 0.0
        %1486 = vmatpush1.msra.mxu0 0.0
        %1487 = vmatprep.mubr.f32.mxu0 0.0
        %1488 = vmatmul.mubr.f32.gmra.mrb[0].mxu0 %v848
        %v1489 = vpop.f32.mrb[0].mxu0
        %v1490 = vadd.f32 %v1421, %v1489
        %v1491 = vpop.f32.mrb[0].mxu0
        %1492 = vmatprep.mubr.f32.mxu0 0.0
        %1493 = vmatmul.mubr.f32.gmra.mrb[0].mxu0 %v851
        %v1494 = vpop.f32.mrb[0].mxu0
        %v1495 = vadd.f32 %v1421, %v1494
        %v1496 = vpop.f32.mrb[0].mxu0
        %1497 = vdwg.mxu0
        %s1498 = scalar_lea.vmem %s7, 64
        %v1499 = vld [vmem:[%s1498] sm:$0xff]
        %v1500 = vld [vmem:[%s1498 + $0x8] sm:$0xff]
        %v1501 = vld [vmem:[%s1498 + $0x10] sm:$0xff]
        %v1502 = vld [vmem:[%s1498 + $0x18] sm:$0xff]
        %v1503 = vld [vmem:[%s1498 + $0x20] sm:$0xff]
        %v1504 = vld [vmem:[%s1498 + $0x28] sm:$0xff]
        %v1505 = vld [vmem:[%s1498 + $0x30] sm:$0xff]
        %v1506 = vld [vmem:[%s1498 + $0x38] sm:$0xff]
        %s1507 = scalar_lea.vmem %s10, 1
        %v1508 = vld [vmem:[%s1507] sm:$0x1]
        %v1510 = vlaneseq
        %v1511 = vshrl.u32 %v1510, 7
        %v1512 = vsub.s32 0, %v1511
        %v1513 = vrot.slane %v1508, %v1512
        %1515 = vmatprep.subr.mxu0 0.0
        %1516 = vmatpush1.msra.mxu0 %v1499
        %1517 = vmatprep.subr.mxu0 0.0
        %1518 = vmatpush1.msra.mxu0 %v1500
        %1519 = vmatprep.subr.mxu0 0.0
        %1520 = vmatpush1.msra.mxu0 %v1501
        %1521 = vmatprep.subr.mxu0 0.0
        %1522 = vmatpush1.msra.mxu0 %v1502
        %1523 = vmatprep.subr.mxu0 0.0
        %1524 = vmatpush1.msra.mxu0 %v1503
        %1525 = vmatprep.subr.mxu0 0.0
        %1526 = vmatpush1.msra.mxu0 %v1504
        %1527 = vmatprep.subr.mxu0 0.0
        %1528 = vmatpush1.msra.mxu0 %v1505
        %1529 = vmatprep.subr.mxu0 0.0
        %1530 = vmatpush1.msra.mxu0 %v1506
        %1531 = vmatprep.subr.mxu0 0.0
        %1532 = vmatpush1.msra.mxu0 0.0
        %1533 = vmatprep.subr.mxu0 0.0
        %1534 = vmatpush1.msra.mxu0 0.0
        %1535 = vmatprep.subr.mxu0 0.0
        %1536 = vmatpush1.msra.mxu0 0.0
        %1537 = vmatprep.subr.mxu0 0.0
        %1538 = vmatpush1.msra.mxu0 0.0
        %1539 = vmatprep.subr.mxu0 0.0
        %1540 = vmatpush1.msra.mxu0 0.0
        %1541 = vmatprep.subr.mxu0 0.0
        %1542 = vmatpush1.msra.mxu0 0.0
        %1543 = vmatprep.subr.mxu0 0.0
        %1544 = vmatpush1.msra.mxu0 0.0
        %1545 = vmatprep.subr.mxu0 0.0
        %1546 = vmatpush1.msra.mxu0 0.0
        %1547 = vmatprep.subr.mxu0 0.0
        %1548 = vmatpush1.msra.mxu0 0.0
        %1549 = vmatprep.subr.mxu0 0.0
        %1550 = vmatpush1.msra.mxu0 0.0
        %1551 = vmatprep.subr.mxu0 0.0
        %1552 = vmatpush1.msra.mxu0 0.0
        %1553 = vmatprep.subr.mxu0 0.0
        %1554 = vmatpush1.msra.mxu0 0.0
        %1555 = vmatprep.subr.mxu0 0.0
        %1556 = vmatpush1.msra.mxu0 0.0
        %1557 = vmatprep.subr.mxu0 0.0
        %1558 = vmatpush1.msra.mxu0 0.0
        %1559 = vmatprep.subr.mxu0 0.0
        %1560 = vmatpush1.msra.mxu0 0.0
        %1561 = vmatprep.subr.mxu0 0.0
        %1562 = vmatpush1.msra.mxu0 0.0
        %1563 = vmatprep.subr.mxu0 0.0
        %1564 = vmatpush1.msra.mxu0 0.0
        %1565 = vmatprep.subr.mxu0 0.0
        %1566 = vmatpush1.msra.mxu0 0.0
        %1567 = vmatprep.subr.mxu0 0.0
        %1568 = vmatpush1.msra.mxu0 0.0
        %1569 = vmatprep.subr.mxu0 0.0
        %1570 = vmatpush1.msra.mxu0 0.0
        %1571 = vmatprep.subr.mxu0 0.0
        %1572 = vmatpush1.msra.mxu0 0.0
        %1573 = vmatprep.subr.mxu0 0.0
        %1574 = vmatpush1.msra.mxu0 0.0
        %1575 = vmatprep.subr.mxu0 0.0
        %1576 = vmatpush1.msra.mxu0 0.0
        %1577 = vmatprep.subr.mxu0 0.0
        %1578 = vmatpush1.msra.mxu0 0.0
        %1579 = vmatprep.mubr.f32.mxu0 0.0
        %1580 = vmatmul.mubr.f32.gmra.mrb[0].mxu0 %v848
        %v1581 = vpop.f32.mrb[0].mxu0
        %v1582 = vadd.f32 %v1513, %v1581
        %v1583 = vpop.f32.mrb[0].mxu0
        %1584 = vmatprep.mubr.f32.mxu0 0.0
        %1585 = vmatmul.mubr.f32.gmra.mrb[0].mxu0 %v851
        %v1586 = vpop.f32.mrb[0].mxu0
        %v1587 = vadd.f32 %v1513, %v1586
        %v1588 = vpop.f32.mrb[0].mxu0
        %1589 = vdwg.mxu0
        %v1591 = vsel %vm1108, %v1398, 0
        %v1594 = vsel %vm1108, %v1403, 0
        %v1597 = vsel %vm1108, %v1490, 0
        %v1600 = vsel %vm1108, %v1495, 0
        %1602 = vmatprep.subr.mxu0 0.0
        %1603 = vmatpush1.xpose.msra.mxu0 %v1597
        %1604 = vmatprep.subr.mxu0 0.0
        %1605 = vmatpush1.xpose.msra.mxu0 %v1600
        %1606 = vmatprep.subr.mxu0 0.0
        %1607 = vmatpush1.xpose.msra.mxu0 0.0
        %1608 = vmatprep.subr.mxu0 0.0
        %1609 = vmatpush1.xpose.msra.mxu0 0.0
        %1610 = vmatprep.subr.mxu0 0.0
        %1611 = vmatpush1.xpose.msra.mxu0 0.0
        %1612 = vmatprep.subr.mxu0 0.0
        %1613 = vmatpush1.xpose.msra.mxu0 0.0
        %1614 = vmatprep.subr.mxu0 0.0
        %1615 = vmatpush1.xpose.msra.mxu0 0.0
        %1616 = vmatprep.subr.mxu0 0.0
        %1617 = vmatpush1.xpose.msra.mxu0 0.0
        %1618 = vmatprep.subr.mxu0 0.0
        %1619 = vmatpush1.xpose.msra.mxu0 0.0
        %1620 = vmatprep.subr.mxu0 0.0
        %1621 = vmatpush1.xpose.msra.mxu0 0.0
        %1622 = vmatprep.subr.mxu0 0.0
        %1623 = vmatpush1.xpose.msra.mxu0 0.0
        %1624 = vmatprep.subr.mxu0 0.0
        %1625 = vmatpush1.xpose.msra.mxu0 0.0
        %1626 = vmatprep.subr.mxu0 0.0
        %1627 = vmatpush1.xpose.msra.mxu0 0.0
        %1628 = vmatprep.subr.mxu0 0.0
        %1629 = vmatpush1.xpose.msra.mxu0 0.0
        %1630 = vmatprep.subr.mxu0 0.0
        %1631 = vmatpush1.xpose.msra.mxu0 0.0
        %1632 = vmatprep.subr.mxu0 0.0
        %1633 = vmatpush1.xpose.msra.mxu0 0.0
        %1634 = vmatprep.subr.mxu0 0.0
        %1635 = vmatpush1.xpose.msra.mxu0 0.0
        %1636 = vmatprep.subr.mxu0 0.0
        %1637 = vmatpush1.xpose.msra.mxu0 0.0
        %1638 = vmatprep.subr.mxu0 0.0
        %1639 = vmatpush1.xpose.msra.mxu0 0.0
        %1640 = vmatprep.subr.mxu0 0.0
        %1641 = vmatpush1.xpose.msra.mxu0 0.0
        %1642 = vmatprep.subr.mxu0 0.0
        %1643 = vmatpush1.xpose.msra.mxu0 0.0
        %1644 = vmatprep.subr.mxu0 0.0
        %1645 = vmatpush1.xpose.msra.mxu0 0.0
        %1646 = vmatprep.subr.mxu0 0.0
        %1647 = vmatpush1.xpose.msra.mxu0 0.0
        %1648 = vmatprep.subr.mxu0 0.0
        %1649 = vmatpush1.xpose.msra.mxu0 0.0
        %1650 = vmatprep.subr.mxu0 0.0
        %1651 = vmatpush1.xpose.msra.mxu0 0.0
        %1652 = vmatprep.subr.mxu0 0.0
        %1653 = vmatpush1.xpose.msra.mxu0 0.0
        %1654 = vmatprep.subr.mxu0 0.0
        %1655 = vmatpush1.xpose.msra.mxu0 0.0
        %1656 = vmatprep.subr.mxu0 0.0
        %1657 = vmatpush1.xpose.msra.mxu0 0.0
        %1658 = vmatprep.subr.mxu0 0.0
        %1659 = vmatpush1.xpose.msra.mxu0 0.0
        %1660 = vmatprep.subr.mxu0 0.0
        %1661 = vmatpush1.xpose.msra.mxu0 0.0
        %1662 = vmatprep.subr.mxu0 0.0
        %1663 = vmatpush1.xpose.msra.mxu0 0.0
        %1664 = vmatprep.subr.mxu0 0.0
        %1665 = vmatpush1.xpose.msra.mxu0 0.0
        %1666 = vmatprep.mubr.f32.mxu0 0.0
        %1667 = vmatmul.mubr.f32.gmra.mrb[0].mxu0 %v1591
        %v1668 = vpop.f32.mrb[0].mxu0
        %v1669 = vadd.f32 0.0, %v1668
        %v1670 = vpop.f32.mrb[0].mxu0
        %1671 = vmatprep.mubr.f32.mxu0 0.0
        %1672 = vmatmul.mubr.f32.gmra.mrb[0].mxu0 %v1594
        %v1673 = vpop.f32.mrb[0].mxu0
        %v1674 = vadd.f32 0.0, %v1673
        %v1675 = vpop.f32.mrb[0].mxu0
        %1676 = vdwg.mxu0
        %v1677 = vmul.f32 %v1669, 0.17677669
        %v1678 = vmul.f32 %v1674, 0.17677669
        %v1679 = vadd.f32 %v1677, %v1202
        %v1680 = vadd.f32 %v1678, %v1202
        %v1681 = vsel %vm1206, %v1679, -inf
        %1682 = vmax.xlane.f32.xlu0 %v1681
        %v1683 = vpop.xlane.xlu0 %1682
        %v1684 = vsel %vm1206, %v1680, -inf
        %1685 = vmax.xlane.f32.xlu0 %v1684
        %v1686 = vpop.xlane.xlu0 %1685
        %v1687 = vsub.f32 %v1679, %v1683
        %v1688 = vsub.f32 %v1680, %v1686
        %v1689 = vmul.f32 %v1687, 1.442695
        %v1690 = vpow.pop %v1689
        %v1691 = vmul.f32 %v1688, 1.442695
        %v1692 = vpow.pop %v1691
        %v1693 = vsel %vm1206, %v1690, 0.0
        %1694 = vadd.xlane.f32.xlu0 %v1693
        %v1695 = vpop.xlane.xlu0 %1694
        %v1696 = vsel %vm1206, %v1692, 0.0
        %1697 = vadd.xlane.f32.xlu0 %v1696
        %v1698 = vpop.xlane.xlu0 %1697
        %v1699 = vrcp.pop %v1695
        %v1700 = vmul.f32 %v1690, %v1699
        %v1701 = vrcp.pop %v1698
        %v1702 = vmul.f32 %v1692, %v1701
        %v1704 = vsel %vm1206, %v1700, 0
        %v1707 = vsel %vm1206, %v1702, 0
        %1709 = vmatprep.subr.mxu0 0.0
        %1710 = vmatpush1.msra.mxu0 %v1582
        %1711 = vmatprep.subr.mxu0 0.0
        %1712 = vmatpush1.msra.mxu0 %v1587
        %1713 = vmatprep.subr.mxu0 0.0
        %1714 = vmatpush1.msra.mxu0 0.0
        %1715 = vmatprep.subr.mxu0 0.0
        %1716 = vmatpush1.msra.mxu0 0.0
        %1717 = vmatprep.subr.mxu0 0.0
        %1718 = vmatpush1.msra.mxu0 0.0
        %1719 = vmatprep.subr.mxu0 0.0
        %1720 = vmatpush1.msra.mxu0 0.0
        %1721 = vmatprep.subr.mxu0 0.0
        %1722 = vmatpush1.msra.mxu0 0.0
        %1723 = vmatprep.subr.mxu0 0.0
        %1724 = vmatpush1.msra.mxu0 0.0
        %1725 = vmatprep.subr.mxu0 0.0
        %1726 = vmatpush1.msra.mxu0 0.0
        %1727 = vmatprep.subr.mxu0 0.0
        %1728 = vmatpush1.msra.mxu0 0.0
        %1729 = vmatprep.subr.mxu0 0.0
        %1730 = vmatpush1.msra.mxu0 0.0
        %1731 = vmatprep.subr.mxu0 0.0
        %1732 = vmatpush1.msra.mxu0 0.0
        %1733 = vmatprep.subr.mxu0 0.0
        %1734 = vmatpush1.msra.mxu0 0.0
        %1735 = vmatprep.subr.mxu0 0.0
        %1736 = vmatpush1.msra.mxu0 0.0
        %1737 = vmatprep.subr.mxu0 0.0
        %1738 = vmatpush1.msra.mxu0 0.0
        %1739 = vmatprep.subr.mxu0 0.0
        %1740 = vmatpush1.msra.mxu0 0.0
        %1741 = vmatprep.subr.mxu0 0.0
        %1742 = vmatpush1.msra.mxu0 0.0
        %1743 = vmatprep.subr.mxu0 0.0
        %1744 = vmatpush1.msra.mxu0 0.0
        %1745 = vmatprep.subr.mxu0 0.0
        %1746 = vmatpush1.msra.mxu0 0.0
        %1747 = vmatprep.subr.mxu0 0.0
        %1748 = vmatpush1.msra.mxu0 0.0
        %1749 = vmatprep.subr.mxu0 0.0
        %1750 = vmatpush1.msra.mxu0 0.0
        %1751 = vmatprep.subr.mxu0 0.0
        %1752 = vmatpush1.msra.mxu0 0.0
        %1753 = vmatprep.subr.mxu0 0.0
        %1754 = vmatpush1.msra.mxu0 0.0
        %1755 = vmatprep.subr.mxu0 0.0
        %1756 = vmatpush1.msra.mxu0 0.0
        %1757 = vmatprep.subr.mxu0 0.0
        %1758 = vmatpush1.msra.mxu0 0.0
        %1759 = vmatprep.subr.mxu0 0.0
        %1760 = vmatpush1.msra.mxu0 0.0
        %1761 = vmatprep.subr.mxu0 0.0
        %1762 = vmatpush1.msra.mxu0 0.0
        %1763 = vmatprep.subr.mxu0 0.0
        %1764 = vmatpush1.msra.mxu0 0.0
        %1765 = vmatprep.subr.mxu0 0.0
        %1766 = vmatpush1.msra.mxu0 0.0
        %1767 = vmatprep.subr.mxu0 0.0
        %1768 = vmatpush1.msra.mxu0 0.0
        %1769 = vmatprep.subr.mxu0 0.0
        %1770 = vmatpush1.msra.mxu0 0.0
        %1771 = vmatprep.subr.mxu0 0.0
        %1772 = vmatpush1.msra.mxu0 0.0
        %1773 = vmatprep.mubr.f32.mxu0 0.0
        %1774 = vmatmul.mubr.f32.gmra.mrb[0].mxu0 %v1704
        %v1775 = vpop.f32.mrb[0].mxu0
        %v1776 = vadd.f32 0.0, %v1775
        %v1777 = vpop.f32.mrb[0].mxu0
        %1778 = vmatprep.mubr.f32.mxu0 0.0
        %1779 = vmatmul.mubr.f32.gmra.mrb[0].mxu0 %v1707
        %v1780 = vpop.f32.mrb[0].mxu0
        %v1781 = vadd.f32 0.0, %v1780
        %v1782 = vpop.f32.mrb[0].mxu0
        %1783 = vdwg.mxu0
        %s1784 = scalar_lea.vmem %s11, 32
        %v1785 = vld [vmem:[%s1784] sm:$0xff]
        %v1786 = vld [vmem:[%s1784 + $0x8] sm:$0xff]
        %v1787 = vld [vmem:[%s1784 + $0x10] sm:$0xff]
        %v1788 = vld [vmem:[%s1784 + $0x18] sm:$0xff]
        %v1790 = vsel %vm1108, %v1776, 0
        %v1793 = vsel %vm1108, %v1781, 0
        %1795 = vmatprep.subr.mxu0 0.0
        %1796 = vmatpush1.msra.mxu0 %v1785
        %1797 = vmatprep.subr.mxu0 0.0
        %1798 = vmatpush1.msra.mxu0 %v1786
        %1799 = vmatprep.subr.mxu0 0.0
        %1800 = vmatpush1.msra.mxu0 %v1787
        %1801 = vmatprep.subr.mxu0 0.0
        %1802 = vmatpush1.msra.mxu0 %v1788
        %1803 = vmatprep.subr.mxu0 0.0
        %1804 = vmatpush1.msra.mxu0 0.0
        %1805 = vmatprep.subr.mxu0 0.0
        %1806 = vmatpush1.msra.mxu0 0.0
        %1807 = vmatprep.subr.mxu0 0.0
        %1808 = vmatpush1.msra.mxu0 0.0
        %1809 = vmatprep.subr.mxu0 0.0
        %1810 = vmatpush1.msra.mxu0 0.0
        %1811 = vmatprep.subr.mxu0 0.0
        %1812 = vmatpush1.msra.mxu0 0.0
        %1813 = vmatprep.subr.mxu0 0.0
        %1814 = vmatpush1.msra.mxu0 0.0
        %1815 = vmatprep.subr.mxu0 0.0
        %1816 = vmatpush1.msra.mxu0 0.0
        %1817 = vmatprep.subr.mxu0 0.0
        %1818 = vmatpush1.msra.mxu0 0.0
        %1819 = vmatprep.subr.mxu0 0.0
        %1820 = vmatpush1.msra.mxu0 0.0
        %1821 = vmatprep.subr.mxu0 0.0
        %1822 = vmatpush1.msra.mxu0 0.0
        %1823 = vmatprep.subr.mxu0 0.0
        %1824 = vmatpush1.msra.mxu0 0.0
        %1825 = vmatprep.subr.mxu0 0.0
        %1826 = vmatpush1.msra.mxu0 0.0
        %1827 = vmatprep.subr.mxu0 0.0
        %1828 = vmatpush1.msra.mxu0 0.0
        %1829 = vmatprep.subr.mxu0 0.0
        %1830 = vmatpush1.msra.mxu0 0.0
        %1831 = vmatprep.subr.mxu0 0.0
        %1832 = vmatpush1.msra.mxu0 0.0
        %1833 = vmatprep.subr.mxu0 0.0
        %1834 = vmatpush1.msra.mxu0 0.0
        %1835 = vmatprep.subr.mxu0 0.0
        %1836 = vmatpush1.msra.mxu0 0.0
        %1837 = vmatprep.subr.mxu0 0.0
        %1838 = vmatpush1.msra.mxu0 0.0
        %1839 = vmatprep.subr.mxu0 0.0
        %1840 = vmatpush1.msra.mxu0 0.0
        %1841 = vmatprep.subr.mxu0 0.0
        %1842 = vmatpush1.msra.mxu0 0.0
        %1843 = vmatprep.subr.mxu0 0.0
        %1844 = vmatpush1.msra.mxu0 0.0
        %1845 = vmatprep.subr.mxu0 0.0
        %1846 = vmatpush1.msra.mxu0 0.0
        %1847 = vmatprep.subr.mxu0 0.0
        %1848 = vmatpush1.msra.mxu0 0.0
        %1849 = vmatprep.subr.mxu0 0.0
        %1850 = vmatpush1.msra.mxu0 0.0
        %1851 = vmatprep.subr.mxu0 0.0
        %1852 = vmatpush1.msra.mxu0 0.0
        %1853 = vmatprep.subr.mxu0 0.0
        %1854 = vmatpush1.msra.mxu0 0.0
        %1855 = vmatprep.subr.mxu0 0.0
        %1856 = vmatpush1.msra.mxu0 0.0
        %1857 = vmatprep.subr.mxu0 0.0
        %1858 = vmatpush1.msra.mxu0 0.0
        %1859 = vmatprep.mubr.f32.mxu0 0.0
        %1860 = vmatmul.mubr.f32.gmra.mrb[0].mxu0 %v1790
        %v1861 = vpop.f32.mrb[0].mxu0
        %v1862 = vadd.f32 0.0, %v1861
        %v1863 = vpop.f32.mrb[0].mxu0
        %1864 = vmatprep.mubr.f32.mxu0 0.0
        %1865 = vmatmul.mubr.f32.gmra.mrb[0].mxu0 %v1793
        %v1866 = vpop.f32.mrb[0].mxu0
        %v1867 = vadd.f32 0.0, %v1866
        %v1868 = vpop.f32.mrb[0].mxu0
        %1869 = vdwg.mxu0
        %v1871 = vsel %vm1108, %v1302, 0
        %v1874 = vsel %vm1108, %v1307, 0
        %1876 = vmatprep.subr.mxu0 0.0
        %1877 = vmatpush1.msra.mxu0 %v1310
        %1878 = vmatprep.subr.mxu0 0.0
        %1879 = vmatpush1.msra.mxu0 %v1311
        %1880 = vmatprep.subr.mxu0 0.0
        %1881 = vmatpush1.msra.mxu0 %v1312
        %1882 = vmatprep.subr.mxu0 0.0
        %1883 = vmatpush1.msra.mxu0 %v1313
        %1884 = vmatprep.subr.mxu0 0.0
        %1885 = vmatpush1.msra.mxu0 0.0
        %1886 = vmatprep.subr.mxu0 0.0
        %1887 = vmatpush1.msra.mxu0 0.0
        %1888 = vmatprep.subr.mxu0 0.0
        %1889 = vmatpush1.msra.mxu0 0.0
        %1890 = vmatprep.subr.mxu0 0.0
        %1891 = vmatpush1.msra.mxu0 0.0
        %1892 = vmatprep.subr.mxu0 0.0
        %1893 = vmatpush1.msra.mxu0 0.0
        %1894 = vmatprep.subr.mxu0 0.0
        %1895 = vmatpush1.msra.mxu0 0.0
        %1896 = vmatprep.subr.mxu0 0.0
        %1897 = vmatpush1.msra.mxu0 0.0
        %1898 = vmatprep.subr.mxu0 0.0
        %1899 = vmatpush1.msra.mxu0 0.0
        %1900 = vmatprep.subr.mxu0 0.0
        %1901 = vmatpush1.msra.mxu0 0.0
        %1902 = vmatprep.subr.mxu0 0.0
        %1903 = vmatpush1.msra.mxu0 0.0
        %1904 = vmatprep.subr.mxu0 0.0
        %1905 = vmatpush1.msra.mxu0 0.0
        %1906 = vmatprep.subr.mxu0 0.0
        %1907 = vmatpush1.msra.mxu0 0.0
        %1908 = vmatprep.subr.mxu0 0.0
        %1909 = vmatpush1.msra.mxu0 0.0
        %1910 = vmatprep.subr.mxu0 0.0
        %1911 = vmatpush1.msra.mxu0 0.0
        %1912 = vmatprep.subr.mxu0 0.0
        %1913 = vmatpush1.msra.mxu0 0.0
        %1914 = vmatprep.subr.mxu0 0.0
        %1915 = vmatpush1.msra.mxu0 0.0
        %1916 = vmatprep.subr.mxu0 0.0
        %1917 = vmatpush1.msra.mxu0 0.0
        %1918 = vmatprep.subr.mxu0 0.0
        %1919 = vmatpush1.msra.mxu0 0.0
        %1920 = vmatprep.subr.mxu0 0.0
        %1921 = vmatpush1.msra.mxu0 0.0
        %1922 = vmatprep.subr.mxu0 0.0
        %1923 = vmatpush1.msra.mxu0 0.0
        %1924 = vmatprep.subr.mxu0 0.0
        %1925 = vmatpush1.msra.mxu0 0.0
        %1926 = vmatprep.subr.mxu0 0.0
        %1927 = vmatpush1.msra.mxu0 0.0
        %1928 = vmatprep.subr.mxu0 0.0
        %1929 = vmatpush1.msra.mxu0 0.0
        %1930 = vmatprep.subr.mxu0 0.0
        %1931 = vmatpush1.msra.mxu0 0.0
        %1932 = vmatprep.subr.mxu0 0.0
        %1933 = vmatpush1.msra.mxu0 0.0
        %1934 = vmatprep.subr.mxu0 0.0
        %1935 = vmatpush1.msra.mxu0 0.0
        %1936 = vmatprep.subr.mxu0 0.0
        %1937 = vmatpush1.msra.mxu0 0.0
        %1938 = vmatprep.subr.mxu0 0.0
        %1939 = vmatpush1.msra.mxu0 0.0
        %1940 = vmatprep.mubr.f32.mxu0 0.0
        %1941 = vmatmul.mubr.f32.gmra.mrb[0].mxu0 %v1871
        %v1942 = vpop.f32.mrb[0].mxu0
        %v1943 = vadd.f32 %v1862, %v1942
        %v1944 = vpop.f32.mrb[0].mxu0
        %1945 = vmatprep.mubr.f32.mxu0 0.0
        %1946 = vmatmul.mubr.f32.gmra.mrb[0].mxu0 %v1874
        %v1947 = vpop.f32.mrb[0].mxu0
        %v1948 = vadd.f32 %v1867, %v1947
        %v1949 = vpop.f32.mrb[0].mxu0
        %1950 = vdwg.mxu0
        %v1951 = vld [vmem:[%s12] sm:$0x1]
        %v1953 = vlaneseq
        %v1954 = vshrl.u32 %v1953, 7
        %v1955 = vsub.s32 0, %v1954
        %v1956 = vrot.slane %v1951, %v1955
        %v1958 = vadd.f32 %v1943, %v1956
        %v1959 = vadd.f32 %v1948, %v1956
        %v1960 = vadd.f32 %v1958, %v829
        %v1961 = vadd.f32 %v1959, %v830
        %v1962 = vld [vmem:[%s13] sm:$0x1]
        %v1963 = vld [vmem:[%s14] sm:$0x1]
        %v1964 = vsel %vm787, %v1960, 0.0
        %1965 = vadd.xlane.f32.xlu0 %v1964
        %v1966 = vpop.xlane.xlu0 %1965
        %v1967 = vsel %vm787, %v1961, 0.0
        %1968 = vadd.xlane.f32.xlu0 %v1967
        %v1969 = vpop.xlane.xlu0 %1968
        %v1970 = vmul.f32 %v1966, %v794
        %v1971 = vmul.f32 %v1969, %v794
        %v1972 = vsub.f32 %v1960, %v1970
        %v1973 = vsub.f32 %v1961, %v1971
        %v1974 = vmul.f32 %v1972, %v1972
        %v1975 = vmul.f32 %v1973, %v1973
        %v1976 = vsel %vm787, %v1974, 0.0
        %1977 = vadd.xlane.f32.xlu0 %v1976
        %v1978 = vpop.xlane.xlu0 %1977
        %v1979 = vsel %vm787, %v1975, 0.0
        %1980 = vadd.xlane.f32.xlu0 %v1979
        %v1981 = vpop.xlane.xlu0 %1980
        %v1982 = vmul.f32 %v1978, %v794
        %v1983 = vmul.f32 %v1981, %v794
        %v1984 = vadd.f32 %v1982, 1e-12
        %v1985 = vadd.f32 %v1983, 1e-12
        %v1986 = vrsqrt.pop %v1984
        %v1987 = vrsqrt.pop %v1985
        %v1988 = vmul.f32 %v1972, %v1986
        %v1989 = vmul.f32 %v1973, %v1987
        %v1991 = vlaneseq
        %v1992 = vshrl.u32 %v1991, 7
        %v1993 = vsub.s32 0, %v1992
        %v1994 = vrot.slane %v1962, %v1993
        %v1996 = vmul.f32 %v1988, %v1994
        %v1997 = vmul.f32 %v1989, %v1994
        %v1999 = vlaneseq
        %v2000 = vshrl.u32 %v1999, 7
        %v2001 = vsub.s32 0, %v2000
        %v2002 = vrot.slane %v1963, %v2001
        %v2004 = vadd.f32 %v1996, %v2002
        %v2005 = vadd.f32 %v1997, %v2002
        %v2006 = vld [vmem:[%s15] sm:$0xff]
        %v2007 = vld [vmem:[%s15 + $0x8] sm:$0xff]
        %v2008 = vld [vmem:[%s15 + $0x10] sm:$0xff]
        %v2009 = vld [vmem:[%s15 + $0x18] sm:$0xff]
        %v2010 = vld [vmem:[%s15 + $0x20] sm:$0xff]
        %v2011 = vld [vmem:[%s15 + $0x28] sm:$0xff]
        %v2012 = vld [vmem:[%s15 + $0x30] sm:$0xff]
        %v2013 = vld [vmem:[%s15 + $0x38] sm:$0xff]
        %v2014 = vld [vmem:[%s16] sm:$0x1]
        %v2016 = vlaneseq
        %v2017 = vshrl.u32 %v2016, 7
        %v2018 = vsub.s32 0, %v2017
        %v2019 = vrot.slane %v2014, %v2018
        %v2022 = vsel %vm787, %v2004, 0
        %v2025 = vsel %vm787, %v2005, 0
        %2027 = vmatprep.subr.mxu0 0.0
        %2028 = vmatpush1.msra.mxu0 %v2006
        %2029 = vmatprep.subr.mxu0 0.0
        %2030 = vmatpush1.msra.mxu0 %v2007
        %2031 = vmatprep.subr.mxu0 0.0
        %2032 = vmatpush1.msra.mxu0 %v2008
        %2033 = vmatprep.subr.mxu0 0.0
        %2034 = vmatpush1.msra.mxu0 %v2009
        %2035 = vmatprep.subr.mxu0 0.0
        %2036 = vmatpush1.msra.mxu0 %v2010
        %2037 = vmatprep.subr.mxu0 0.0
        %2038 = vmatpush1.msra.mxu0 %v2011
        %2039 = vmatprep.subr.mxu0 0.0
        %2040 = vmatpush1.msra.mxu0 %v2012
        %2041 = vmatprep.subr.mxu0 0.0
        %2042 = vmatpush1.msra.mxu0 %v2013
        %2043 = vmatprep.subr.mxu0 0.0
        %2044 = vmatpush1.msra.mxu0 0.0
        %2045 = vmatprep.subr.mxu0 0.0
        %2046 = vmatpush1.msra.mxu0 0.0
        %2047 = vmatprep.subr.mxu0 0.0
        %2048 = vmatpush1.msra.mxu0 0.0
        %2049 = vmatprep.subr.mxu0 0.0
        %2050 = vmatpush1.msra.mxu0 0.0
        %2051 = vmatprep.subr.mxu0 0.0
        %2052 = vmatpush1.msra.mxu0 0.0
        %2053 = vmatprep.subr.mxu0 0.0
        %2054 = vmatpush1.msra.mxu0 0.0
        %2055 = vmatprep.subr.mxu0 0.0
        %2056 = vmatpush1.msra.mxu0 0.0
        %2057 = vmatprep.subr.mxu0 0.0
        %2058 = vmatpush1.msra.mxu0 0.0
        %2059 = vmatprep.subr.mxu0 0.0
        %2060 = vmatpush1.msra.mxu0 0.0
        %2061 = vmatprep.subr.mxu0 0.0
        %2062 = vmatpush1.msra.mxu0 0.0
        %2063 = vmatprep.subr.mxu0 0.0
        %2064 = vmatpush1.msra.mxu0 0.0
        %2065 = vmatprep.subr.mxu0 0.0
        %2066 = vmatpush1.msra.mxu0 0.0
        %2067 = vmatprep.subr.mxu0 0.0
        %2068 = vmatpush1.msra.mxu0 0.0
        %2069 = vmatprep.subr.mxu0 0.0
        %2070 = vmatpush1.msra.mxu0 0.0
        %2071 = vmatprep.subr.mxu0 0.0
        %2072 = vmatpush1.msra.mxu0 0.0
        %2073 = vmatprep.subr.mxu0 0.0
        %2074 = vmatpush1.msra.mxu0 0.0
        %2075 = vmatprep.subr.mxu0 0.0
        %2076 = vmatpush1.msra.mxu0 0.0
        %2077 = vmatprep.subr.mxu0 0.0
        %2078 = vmatpush1.msra.mxu0 0.0
        %2079 = vmatprep.subr.mxu0 0.0
        %2080 = vmatpush1.msra.mxu0 0.0
        %2081 = vmatprep.subr.mxu0 0.0
        %2082 = vmatpush1.msra.mxu0 0.0
        %2083 = vmatprep.subr.mxu0 0.0
        %2084 = vmatpush1.msra.mxu0 0.0
        %2085 = vmatprep.subr.mxu0 0.0
        %2086 = vmatpush1.msra.mxu0 0.0
        %2087 = vmatprep.subr.mxu0 0.0
        %2088 = vmatpush1.msra.mxu0 0.0
        %2089 = vmatprep.subr.mxu0 0.0
        %2090 = vmatpush1.msra.mxu0 0.0
        %2091 = vmatprep.mubr.f32.mxu0 0.0
        %2092 = vmatmul.mubr.f32.gmra.mrb[0].mxu0 %v2022
        %v2093 = vpop.f32.mrb[0].mxu0
        %v2094 = vadd.f32 %v2019, %v2093
        %v2095 = vpop.f32.mrb[0].mxu0
        %2096 = vmatprep.mubr.f32.mxu0 0.0
        %2097 = vmatmul.mubr.f32.gmra.mrb[0].mxu0 %v2025
        %v2098 = vpop.f32.mrb[0].mxu0
        %v2099 = vadd.f32 %v2019, %v2098
        %v2100 = vpop.f32.mrb[0].mxu0
        %2101 = vdwg.mxu0
        %v2102 = vmul.f32 %v2094, %v2094
        %v2103 = vmul.f32 %v2099, %v2099
        %v2104 = vmul.f32 %v2094, %v2102
        %v2105 = vmul.f32 %v2099, %v2103
        %v2106 = vmul.f32 %v2104, 0.044715
        %v2107 = vmul.f32 %v2105, 0.044715
        %v2108 = vadd.f32 %v2094, %v2106
        %v2109 = vadd.f32 %v2099, %v2107
        %v2110 = vmul.f32 %v2108, 0.7978846
        %v2111 = vmul.f32 %v2109, 0.7978846
        %v2112 = vtanh.pop %v2110
        %v2113 = vtanh.pop %v2111
        %v2114 = vadd.f32 %v2112, 1.0
        %v2115 = vadd.f32 %v2113, 1.0
        %v2116 = vmul.f32 %v2114, 0.5
        %v2117 = vmul.f32 %v2115, 0.5
        %v2118 = vmul.f32 %v2094, %v2116
        %v2119 = vmul.f32 %v2099, %v2117
        %v2120 = vld [vmem:[%s17] sm:$0xff]
        %v2121 = vld [vmem:[%s17 + $0x8] sm:$0xff]
        %v2122 = vld [vmem:[%s17 + $0x10] sm:$0xff]
        %v2123 = vld [vmem:[%s17 + $0x18] sm:$0xff]
        %v2124 = vld [vmem:[%s17 + $0x20] sm:$0xff]
        %v2125 = vld [vmem:[%s17 + $0x28] sm:$0xff]
        %v2126 = vld [vmem:[%s17 + $0x30] sm:$0xff]
        %v2127 = vld [vmem:[%s17 + $0x38] sm:$0xff]
        %v2128 = vld [vmem:[%s17 + $0x40] sm:$0xff]
        %v2129 = vld [vmem:[%s17 + $0x48] sm:$0xff]
        %v2130 = vld [vmem:[%s17 + $0x50] sm:$0xff]
        %v2131 = vld [vmem:[%s17 + $0x58] sm:$0xff]
        %v2132 = vld [vmem:[%s17 + $0x60] sm:$0xff]
        %v2133 = vld [vmem:[%s17 + $0x68] sm:$0xff]
        %v2134 = vld [vmem:[%s17 + $0x70] sm:$0xff]
        %v2135 = vld [vmem:[%s17 + $0x78] sm:$0xff]
        %v2136 = vld [vmem:[%s18] sm:$0x1]
        %v2138 = vlaneseq
        %v2139 = vshrl.u32 %v2138, 7
        %v2140 = vsub.s32 0, %v2139
        %v2141 = vrot.slane %v2136, %v2140
        %2143 = vmatprep.subr.mxu0 0.0
        %2144 = vmatpush1.msra.mxu0 %v2120
        %2145 = vmatprep.subr.mxu0 0.0
        %2146 = vmatpush1.msra.mxu0 %v2121
        %2147 = vmatprep.subr.mxu0 0.0
        %2148 = vmatpush1.msra.mxu0 %v2122
        %2149 = vmatprep.subr.mxu0 0.0
        %2150 = vmatpush1.msra.mxu0 %v2123
        %2151 = vmatprep.subr.mxu0 0.0
        %2152 = vmatpush1.msra.mxu0 %v2124
        %2153 = vmatprep.subr.mxu0 0.0
        %2154 = vmatpush1.msra.mxu0 %v2125
        %2155 = vmatprep.subr.mxu0 0.0
        %2156 = vmatpush1.msra.mxu0 %v2126
        %2157 = vmatprep.subr.mxu0 0.0
        %2158 = vmatpush1.msra.mxu0 %v2127
        %2159 = vmatprep.subr.mxu0 0.0
        %2160 = vmatpush1.msra.mxu0 %v2128
        %2161 = vmatprep.subr.mxu0 0.0
        %2162 = vmatpush1.msra.mxu0 %v2129
        %2163 = vmatprep.subr.mxu0 0.0
        %2164 = vmatpush1.msra.mxu0 %v2130
        %2165 = vmatprep.subr.mxu0 0.0
        %2166 = vmatpush1.msra.mxu0 %v2131
        %2167 = vmatprep.subr.mxu0 0.0
        %2168 = vmatpush1.msra.mxu0 %v2132
        %2169 = vmatprep.subr.mxu0 0.0
        %2170 = vmatpush1.msra.mxu0 %v2133
        %2171 = vmatprep.subr.mxu0 0.0
        %2172 = vmatpush1.msra.mxu0 %v2134
        %2173 = vmatprep.subr.mxu0 0.0
        %2174 = vmatpush1.msra.mxu0 %v2135
        %2175 = vmatprep.subr.mxu0 0.0
        %2176 = vmatpush1.msra.mxu0 0.0
        %2177 = vmatprep.subr.mxu0 0.0
        %2178 = vmatpush1.msra.mxu0 0.0
        %2179 = vmatprep.subr.mxu0 0.0
        %2180 = vmatpush1.msra.mxu0 0.0
        %2181 = vmatprep.subr.mxu0 0.0
        %2182 = vmatpush1.msra.mxu0 0.0
        %2183 = vmatprep.subr.mxu0 0.0
        %2184 = vmatpush1.msra.mxu0 0.0
        %2185 = vmatprep.subr.mxu0 0.0
        %2186 = vmatpush1.msra.mxu0 0.0
        %2187 = vmatprep.subr.mxu0 0.0
        %2188 = vmatpush1.msra.mxu0 0.0
        %2189 = vmatprep.subr.mxu0 0.0
        %2190 = vmatpush1.msra.mxu0 0.0
        %2191 = vmatprep.subr.mxu0 0.0
        %2192 = vmatpush1.msra.mxu0 0.0
        %2193 = vmatprep.subr.mxu0 0.0
        %2194 = vmatpush1.msra.mxu0 0.0
        %2195 = vmatprep.subr.mxu0 0.0
        %2196 = vmatpush1.msra.mxu0 0.0
        %2197 = vmatprep.subr.mxu0 0.0
        %2198 = vmatpush1.msra.mxu0 0.0
        %2199 = vmatprep.subr.mxu0 0.0
        %2200 = vmatpush1.msra.mxu0 0.0
        %2201 = vmatprep.subr.mxu0 0.0
        %2202 = vmatpush1.msra.mxu0 0.0
        %2203 = vmatprep.subr.mxu0 0.0
        %2204 = vmatpush1.msra.mxu0 0.0
        %2205 = vmatprep.subr.mxu0 0.0
        %2206 = vmatpush1.msra.mxu0 0.0
        %2207 = vmatprep.mubr.f32.mxu0 0.0
        %2208 = vmatmul.mubr.f32.gmra.mrb[0].mxu0 %v2118
        %v2209 = vpop.f32.mrb[0].mxu0
        %v2210 = vadd.f32 %v2141, %v2209
        %v2211 = vpop.f32.mrb[0].mxu0
        %2212 = vmatprep.mubr.f32.mxu0 0.0
        %2213 = vmatmul.mubr.f32.gmra.mrb[0].mxu0 %v2119
        %v2214 = vpop.f32.mrb[0].mxu0
        %v2215 = vadd.f32 %v2141, %v2214
        %v2216 = vpop.f32.mrb[0].mxu0
        %2217 = vdwg.mxu0
        %v2218 = vadd.f32 %v2210, %v2004
        %v2219 = vadd.f32 %v2215, %v2005
        %v2220 = vld [vmem:[%s19] sm:$0x1]
        %v2221 = vld [vmem:[%s20] sm:$0x1]
        %v2222 = vsel %vm787, %v2218, 0.0
        %2223 = vadd.xlane.f32.xlu0 %v2222
        %v2224 = vpop.xlane.xlu0 %2223
        %v2225 = vsel %vm787, %v2219, 0.0
        %2226 = vadd.xlane.f32.xlu0 %v2225
        %v2227 = vpop.xlane.xlu0 %2226
        %v2228 = vmul.f32 %v2224, %v794
        %v2229 = vmul.f32 %v2227, %v794
        %v2230 = vsub.f32 %v2218, %v2228
        %v2231 = vsub.f32 %v2219, %v2229
        %v2232 = vmul.f32 %v2230, %v2230
        %v2233 = vmul.f32 %v2231, %v2231
        %v2234 = vsel %vm787, %v2232, 0.0
        %2235 = vadd.xlane.f32.xlu0 %v2234
        %v2236 = vpop.xlane.xlu0 %2235
        %v2237 = vsel %vm787, %v2233, 0.0
        %2238 = vadd.xlane.f32.xlu0 %v2237
        %v2239 = vpop.xlane.xlu0 %2238
        %v2240 = vmul.f32 %v2236, %v794
        %v2241 = vmul.f32 %v2239, %v794
        %v2242 = vadd.f32 %v2240, 1e-12
        %v2243 = vadd.f32 %v2241, 1e-12
        %v2244 = vrsqrt.pop %v2242
        %v2245 = vrsqrt.pop %v2243
        %v2246 = vmul.f32 %v2230, %v2244
        %v2247 = vmul.f32 %v2231, %v2245
        %v2249 = vlaneseq
        %v2250 = vshrl.u32 %v2249, 7
        %v2251 = vsub.s32 0, %v2250
        %v2252 = vrot.slane %v2220, %v2251
        %v2254 = vmul.f32 %v2246, %v2252
        %v2255 = vmul.f32 %v2247, %v2252
        %v2257 = vlaneseq
        %v2258 = vshrl.u32 %v2257, 7
        %v2259 = vsub.s32 0, %v2258
        %v2260 = vrot.slane %v2221, %v2259
        %v2262 = vadd.f32 %v2254, %v2260
        %v2263 = vadd.f32 %v2255, %v2260
        %s2264 = scalar_lea.vmem %s5, 128
        %v2265 = vld [vmem:[%s2264] sm:$0xff]
        %v2266 = vld [vmem:[%s2264 + $0x8] sm:$0xff]
        %v2267 = vld [vmem:[%s2264 + $0x10] sm:$0xff]
        %v2268 = vld [vmem:[%s2264 + $0x18] sm:$0xff]
        %v2269 = vld [vmem:[%s2264 + $0x20] sm:$0xff]
        %v2270 = vld [vmem:[%s2264 + $0x28] sm:$0xff]
        %v2271 = vld [vmem:[%s2264 + $0x30] sm:$0xff]
        %v2272 = vld [vmem:[%s2264 + $0x38] sm:$0xff]
        %s2273 = scalar_lea.vmem %s8, 2
        %v2274 = vld [vmem:[%s2273] sm:$0x1]
        %v2276 = vlaneseq
        %v2277 = vshrl.u32 %v2276, 7
        %v2278 = vsub.s32 0, %v2277
        %v2279 = vrot.slane %v2274, %v2278
        %v2282 = vsel %vm787, %v2262, 0
        %v2285 = vsel %vm787, %v2263, 0
        %2287 = vmatprep.subr.mxu0 0.0
        %2288 = vmatpush1.msra.mxu0 %v2265
        %2289 = vmatprep.subr.mxu0 0.0
        %2290 = vmatpush1.msra.mxu0 %v2266
        %2291 = vmatprep.subr.mxu0 0.0
        %2292 = vmatpush1.msra.mxu0 %v2267
        %2293 = vmatprep.subr.mxu0 0.0
        %2294 = vmatpush1.msra.mxu0 %v2268
        %2295 = vmatprep.subr.mxu0 0.0
        %2296 = vmatpush1.msra.mxu0 %v2269
        %2297 = vmatprep.subr.mxu0 0.0
        %2298 = vmatpush1.msra.mxu0 %v2270
        %2299 = vmatprep.subr.mxu0 0.0
        %2300 = vmatpush1.msra.mxu0 %v2271
        %2301 = vmatprep.subr.mxu0 0.0
        %2302 = vmatpush1.msra.mxu0 %v2272
        %2303 = vmatprep.subr.mxu0 0.0
        %2304 = vmatpush1.msra.mxu0 0.0
        %2305 = vmatprep.subr.mxu0 0.0
        %2306 = vmatpush1.msra.mxu0 0.0
        %2307 = vmatprep.subr.mxu0 0.0
        %2308 = vmatpush1.msra.mxu0 0.0
        %2309 = vmatprep.subr.mxu0 0.0
        %2310 = vmatpush1.msra.mxu0 0.0
        %2311 = vmatprep.subr.mxu0 0.0
        %2312 = vmatpush1.msra.mxu0 0.0
        %2313 = vmatprep.subr.mxu0 0.0
        %2314 = vmatpush1.msra.mxu0 0.0
        %2315 = vmatprep.subr.mxu0 0.0
        %2316 = vmatpush1.msra.mxu0 0.0
        %2317 = vmatprep.subr.mxu0 0.0
        %2318 = vmatpush1.msra.mxu0 0.0
        %2319 = vmatprep.subr.mxu0 0.0
        %2320 = vmatpush1.msra.mxu0 0.0
        %2321 = vmatprep.subr.mxu0 0.0
        %2322 = vmatpush1.msra.mxu0 0.0
        %2323 = vmatprep.subr.mxu0 0.0
        %2324 = vmatpush1.msra.mxu0 0.0
        %2325 = vmatprep.subr.mxu0 0.0
        %2326 = vmatpush1.msra.mxu0 0.0
        %2327 = vmatprep.subr.mxu0 0.0
        %2328 = vmatpush1.msra.mxu0 0.0
        %2329 = vmatprep.subr.mxu0 0.0
        %2330 = vmatpush1.msra.mxu0 0.0
        %2331 = vmatprep.subr.mxu0 0.0
        %2332 = vmatpush1.msra.mxu0 0.0
        %2333 = vmatprep.subr.mxu0 0.0
        %2334 = vmatpush1.msra.mxu0 0.0
        %2335 = vmatprep.subr.mxu0 0.0
        %2336 = vmatpush1.msra.mxu0 0.0
        %2337 = vmatprep.subr.mxu0 0.0
        %2338 = vmatpush1.msra.mxu0 0.0
        %2339 = vmatprep.subr.mxu0 0.0
        %2340 = vmatpush1.msra.mxu0 0.0
        %2341 = vmatprep.subr.mxu0 0.0
        %2342 = vmatpush1.msra.mxu0 0.0
        %2343 = vmatprep.subr.mxu0 0.0
        %2344 = vmatpush1.msra.mxu0 0.0
        %2345 = vmatprep.subr.mxu0 0.0
        %2346 = vmatpush1.msra.mxu0 0.0
        %2347 = vmatprep.subr.mxu0 0.0
        %2348 = vmatpush1.msra.mxu0 0.0
        %2349 = vmatprep.subr.mxu0 0.0
        %2350 = vmatpush1.msra.mxu0 0.0
        %2351 = vmatprep.mubr.f32.mxu0 0.0
        %2352 = vmatmul.mubr.f32.gmra.mrb[0].mxu0 %v2282
        %v2353 = vpop.f32.mrb[0].mxu0
        %v2354 = vadd.f32 %v2279, %v2353
        %v2355 = vpop.f32.mrb[0].mxu0
        %2356 = vmatprep.mubr.f32.mxu0 0.0
        %2357 = vmatmul.mubr.f32.gmra.mrb[0].mxu0 %v2285
        %v2358 = vpop.f32.mrb[0].mxu0
        %v2359 = vadd.f32 %v2279, %v2358
        %v2360 = vpop.f32.mrb[0].mxu0
        %2361 = vdwg.mxu0
        %s2362 = scalar_lea.vmem %s6, 128
        %v2363 = vld [vmem:[%s2362] sm:$0xff]
        %v2364 = vld [vmem:[%s2362 + $0x8] sm:$0xff]
        %v2365 = vld [vmem:[%s2362 + $0x10] sm:$0xff]
        %v2366 = vld [vmem:[%s2362 + $0x18] sm:$0xff]
        %v2367 = vld [vmem:[%s2362 + $0x20] sm:$0xff]
        %v2368 = vld [vmem:[%s2362 + $0x28] sm:$0xff]
        %v2369 = vld [vmem:[%s2362 + $0x30] sm:$0xff]
        %v2370 = vld [vmem:[%s2362 + $0x38] sm:$0xff]
        %s2371 = scalar_lea.vmem %s9, 2
        %v2372 = vld [vmem:[%s2371] sm:$0x1]
        %v2374 = vlaneseq
        %v2375 = vshrl.u32 %v2374, 7
        %v2376 = vsub.s32 0, %v2375
        %v2377 = vrot.slane %v2372, %v2376
        %2379 = vmatprep.subr.mxu0 0.0
        %2380 = vmatpush1.msra.mxu0 %v2363
        %2381 = vmatprep.subr.mxu0 0.0
        %2382 = vmatpush1.msra.mxu0 %v2364
        %2383 = vmatprep.subr.mxu0 0.0
        %2384 = vmatpush1.msra.mxu0 %v2365
        %2385 = vmatprep.subr.mxu0 0.0
        %2386 = vmatpush1.msra.mxu0 %v2366
        %2387 = vmatprep.subr.mxu0 0.0
        %2388 = vmatpush1.msra.mxu0 %v2367
        %2389 = vmatprep.subr.mxu0 0.0
        %2390 = vmatpush1.msra.mxu0 %v2368
        %2391 = vmatprep.subr.mxu0 0.0
        %2392 = vmatpush1.msra.mxu0 %v2369
        %2393 = vmatprep.subr.mxu0 0.0
        %2394 = vmatpush1.msra.mxu0 %v2370
        %2395 = vmatprep.subr.mxu0 0.0
        %2396 = vmatpush1.msra.mxu0 0.0
        %2397 = vmatprep.subr.mxu0 0.0
        %2398 = vmatpush1.msra.mxu0 0.0
        %2399 = vmatprep.subr.mxu0 0.0
        %2400 = vmatpush1.msra.mxu0 0.0
        %2401 = vmatprep.subr.mxu0 0.0
        %2402 = vmatpush1.msra.mxu0 0.0
        %2403 = vmatprep.subr.mxu0 0.0
        %2404 = vmatpush1.msra.mxu0 0.0
        %2405 = vmatprep.subr.mxu0 0.0
        %2406 = vmatpush1.msra.mxu0 0.0
        %2407 = vmatprep.subr.mxu0 0.0
        %2408 = vmatpush1.msra.mxu0 0.0
        %2409 = vmatprep.subr.mxu0 0.0
        %2410 = vmatpush1.msra.mxu0 0.0
        %2411 = vmatprep.subr.mxu0 0.0
        %2412 = vmatpush1.msra.mxu0 0.0
        %2413 = vmatprep.subr.mxu0 0.0
        %2414 = vmatpush1.msra.mxu0 0.0
        %2415 = vmatprep.subr.mxu0 0.0
        %2416 = vmatpush1.msra.mxu0 0.0
        %2417 = vmatprep.subr.mxu0 0.0
        %2418 = vmatpush1.msra.mxu0 0.0
        %2419 = vmatprep.subr.mxu0 0.0
        %2420 = vmatpush1.msra.mxu0 0.0
        %2421 = vmatprep.subr.mxu0 0.0
        %2422 = vmatpush1.msra.mxu0 0.0
        %2423 = vmatprep.subr.mxu0 0.0
        %2424 = vmatpush1.msra.mxu0 0.0
        %2425 = vmatprep.subr.mxu0 0.0
        %2426 = vmatpush1.msra.mxu0 0.0
        %2427 = vmatprep.subr.mxu0 0.0
        %2428 = vmatpush1.msra.mxu0 0.0
        %2429 = vmatprep.subr.mxu0 0.0
        %2430 = vmatpush1.msra.mxu0 0.0
        %2431 = vmatprep.subr.mxu0 0.0
        %2432 = vmatpush1.msra.mxu0 0.0
        %2433 = vmatprep.subr.mxu0 0.0
        %2434 = vmatpush1.msra.mxu0 0.0
        %2435 = vmatprep.subr.mxu0 0.0
        %2436 = vmatpush1.msra.mxu0 0.0
        %2437 = vmatprep.subr.mxu0 0.0
        %2438 = vmatpush1.msra.mxu0 0.0
        %2439 = vmatprep.subr.mxu0 0.0
        %2440 = vmatpush1.msra.mxu0 0.0
        %2441 = vmatprep.subr.mxu0 0.0
        %2442 = vmatpush1.msra.mxu0 0.0
        %2443 = vmatprep.mubr.f32.mxu0 0.0
        %2444 = vmatmul.mubr.f32.gmra.mrb[0].mxu0 %v2282
        %v2445 = vpop.f32.mrb[0].mxu0
        %v2446 = vadd.f32 %v2377, %v2445
        %v2447 = vpop.f32.mrb[0].mxu0
        %2448 = vmatprep.mubr.f32.mxu0 0.0
        %2449 = vmatmul.mubr.f32.gmra.mrb[0].mxu0 %v2285
        %v2450 = vpop.f32.mrb[0].mxu0
        %v2451 = vadd.f32 %v2377, %v2450
        %v2452 = vpop.f32.mrb[0].mxu0
        %2453 = vdwg.mxu0
        %s2454 = scalar_lea.vmem %s7, 128
        %v2455 = vld [vmem:[%s2454] sm:$0xff]
        %v2456 = vld [vmem:[%s2454 + $0x8] sm:$0xff]
        %v2457 = vld [vmem:[%s2454 + $0x10] sm:$0xff]
        %v2458 = vld [vmem:[%s2454 + $0x18] sm:$0xff]
        %v2459 = vld [vmem:[%s2454 + $0x20] sm:$0xff]
        %v2460 = vld [vmem:[%s2454 + $0x28] sm:$0xff]
        %v2461 = vld [vmem:[%s2454 + $0x30] sm:$0xff]
        %v2462 = vld [vmem:[%s2454 + $0x38] sm:$0xff]
        %s2463 = scalar_lea.vmem %s10, 2
        %v2464 = vld [vmem:[%s2463] sm:$0x1]
        %v2466 = vlaneseq
        %v2467 = vshrl.u32 %v2466, 7
        %v2468 = vsub.s32 0, %v2467
        %v2469 = vrot.slane %v2464, %v2468
        %2471 = vmatprep.subr.mxu0 0.0
        %2472 = vmatpush1.msra.mxu0 %v2455
        %2473 = vmatprep.subr.mxu0 0.0
        %2474 = vmatpush1.msra.mxu0 %v2456
        %2475 = vmatprep.subr.mxu0 0.0
        %2476 = vmatpush1.msra.mxu0 %v2457
        %2477 = vmatprep.subr.mxu0 0.0
        %2478 = vmatpush1.msra.mxu0 %v2458
        %2479 = vmatprep.subr.mxu0 0.0
        %2480 = vmatpush1.msra.mxu0 %v2459
        %2481 = vmatprep.subr.mxu0 0.0
        %2482 = vmatpush1.msra.mxu0 %v2460
        %2483 = vmatprep.subr.mxu0 0.0
        %2484 = vmatpush1.msra.mxu0 %v2461
        %2485 = vmatprep.subr.mxu0 0.0
        %2486 = vmatpush1.msra.mxu0 %v2462
        %2487 = vmatprep.subr.mxu0 0.0
        %2488 = vmatpush1.msra.mxu0 0.0
        %2489 = vmatprep.subr.mxu0 0.0
        %2490 = vmatpush1.msra.mxu0 0.0
        %2491 = vmatprep.subr.mxu0 0.0
        %2492 = vmatpush1.msra.mxu0 0.0
        %2493 = vmatprep.subr.mxu0 0.0
        %2494 = vmatpush1.msra.mxu0 0.0
        %2495 = vmatprep.subr.mxu0 0.0
        %2496 = vmatpush1.msra.mxu0 0.0
        %2497 = vmatprep.subr.mxu0 0.0
        %2498 = vmatpush1.msra.mxu0 0.0
        %2499 = vmatprep.subr.mxu0 0.0
        %2500 = vmatpush1.msra.mxu0 0.0
        %2501 = vmatprep.subr.mxu0 0.0
        %2502 = vmatpush1.msra.mxu0 0.0
        %2503 = vmatprep.subr.mxu0 0.0
        %2504 = vmatpush1.msra.mxu0 0.0
        %2505 = vmatprep.subr.mxu0 0.0
        %2506 = vmatpush1.msra.mxu0 0.0
        %2507 = vmatprep.subr.mxu0 0.0
        %2508 = vmatpush1.msra.mxu0 0.0
        %2509 = vmatprep.subr.mxu0 0.0
        %2510 = vmatpush1.msra.mxu0 0.0
        %2511 = vmatprep.subr.mxu0 0.0
        %2512 = vmatpush1.msra.mxu0 0.0
        %2513 = vmatprep.subr.mxu0 0.0
        %2514 = vmatpush1.msra.mxu0 0.0
        %2515 = vmatprep.subr.mxu0 0.0
        %2516 = vmatpush1.msra.mxu0 0.0
        %2517 = vmatprep.subr.mxu0 0.0
        %2518 = vmatpush1.msra.mxu0 0.0
        %2519 = vmatprep.subr.mxu0 0.0
        %2520 = vmatpush1.msra.mxu0 0.0
        %2521 = vmatprep.subr.mxu0 0.0
        %2522 = vmatpush1.msra.mxu0 0.0
        %2523 = vmatprep.subr.mxu0 0.0
        %2524 = vmatpush1.msra.mxu0 0.0
        %2525 = vmatprep.subr.mxu0 0.0
        %2526 = vmatpush1.msra.mxu0 0.0
        %2527 = vmatprep.subr.mxu0 0.0
        %2528 = vmatpush1.msra.mxu0 0.0
        %2529 = vmatprep.subr.mxu0 0.0
        %2530 = vmatpush1.msra.mxu0 0.0
        %2531 = vmatprep.subr.mxu0 0.0
        %2532 = vmatpush1.msra.mxu0 0.0
        %2533 = vmatprep.subr.mxu0 0.0
        %2534 = vmatpush1.msra.mxu0 0.0
        %2535 = vmatprep.mubr.f32.mxu0 0.0
        %2536 = vmatmul.mubr.f32.gmra.mrb[0].mxu0 %v2282
        %v2537 = vpop.f32.mrb[0].mxu0
        %v2538 = vadd.f32 %v2469, %v2537
        %v2539 = vpop.f32.mrb[0].mxu0
        %2540 = vmatprep.mubr.f32.mxu0 0.0
        %2541 = vmatmul.mubr.f32.gmra.mrb[0].mxu0 %v2285
        %v2542 = vpop.f32.mrb[0].mxu0
        %v2543 = vadd.f32 %v2469, %v2542
        %v2544 = vpop.f32.mrb[0].mxu0
        %2545 = vdwg.mxu0
        %v2547 = vsel %vm1108, %v2354, 0
        %v2550 = vsel %vm1108, %v2359, 0
        %v2553 = vsel %vm1108, %v2446, 0
        %v2556 = vsel %vm1108, %v2451, 0
        %2558 = vmatprep.subr.mxu0 0.0
        %2559 = vmatpush1.xpose.msra.mxu0 %v2553
        %2560 = vmatprep.subr.mxu0 0.0
        %2561 = vmatpush1.xpose.msra.mxu0 %v2556
        %2562 = vmatprep.subr.mxu0 0.0
        %2563 = vmatpush1.xpose.msra.mxu0 0.0
        %2564 = vmatprep.subr.mxu0 0.0
        %2565 = vmatpush1.xpose.msra.mxu0 0.0
        %2566 = vmatprep.subr.mxu0 0.0
        %2567 = vmatpush1.xpose.msra.mxu0 0.0
        %2568 = vmatprep.subr.mxu0 0.0
        %2569 = vmatpush1.xpose.msra.mxu0 0.0
        %2570 = vmatprep.subr.mxu0 0.0
        %2571 = vmatpush1.xpose.msra.mxu0 0.0
        %2572 = vmatprep.subr.mxu0 0.0
        %2573 = vmatpush1.xpose.msra.mxu0 0.0
        %2574 = vmatprep.subr.mxu0 0.0
        %2575 = vmatpush1.xpose.msra.mxu0 0.0
        %2576 = vmatprep.subr.mxu0 0.0
        %2577 = vmatpush1.xpose.msra.mxu0 0.0
        %2578 = vmatprep.subr.mxu0 0.0
        %2579 = vmatpush1.xpose.msra.mxu0 0.0
        %2580 = vmatprep.subr.mxu0 0.0
        %2581 = vmatpush1.xpose.msra.mxu0 0.0
        %2582 = vmatprep.subr.mxu0 0.0
        %2583 = vmatpush1.xpose.msra.mxu0 0.0
        %2584 = vmatprep.subr.mxu0 0.0
        %2585 = vmatpush1.xpose.msra.mxu0 0.0
        %2586 = vmatprep.subr.mxu0 0.0
        %2587 = vmatpush1.xpose.msra.mxu0 0.0
        %2588 = vmatprep.subr.mxu0 0.0
        %2589 = vmatpush1.xpose.msra.mxu0 0.0
        %2590 = vmatprep.subr.mxu0 0.0
        %2591 = vmatpush1.xpose.msra.mxu0 0.0
        %2592 = vmatprep.subr.mxu0 0.0
        %2593 = vmatpush1.xpose.msra.mxu0 0.0
        %2594 = vmatprep.subr.mxu0 0.0
        %2595 = vmatpush1.xpose.msra.mxu0 0.0
        %2596 = vmatprep.subr.mxu0 0.0
        %2597 = vmatpush1.xpose.msra.mxu0 0.0
        %2598 = vmatprep.subr.mxu0 0.0
        %2599 = vmatpush1.xpose.msra.mxu0 0.0
        %2600 = vmatprep.subr.mxu0 0.0
        %2601 = vmatpush1.xpose.msra.mxu0 0.0
        %2602 = vmatprep.subr.mxu0 0.0
        %2603 = vmatpush1.xpose.msra.mxu0 0.0
        %2604 = vmatprep.subr.mxu0 0.0
        %2605 = vmatpush1.xpose.msra.mxu0 0.0
        %2606 = vmatprep.subr.mxu0 0.0
        %2607 = vmatpush1.xpose.msra.mxu0 0.0
        %2608 = vmatprep.subr.mxu0 0.0
        %2609 = vmatpush1.xpose.msra.mxu0 0.0
        %2610 = vmatprep.subr.mxu0 0.0
        %2611 = vmatpush1.xpose.msra.mxu0 0.0
        %2612 = vmatprep.subr.mxu0 0.0
        %2613 = vmatpush1.xpose.msra.mxu0 0.0
        %2614 = vmatprep.subr.mxu0 0.0
        %2615 = vmatpush1.xpose.msra.mxu0 0.0
        %2616 = vmatprep.subr.mxu0 0.0
        %2617 = vmatpush1.xpose.msra.mxu0 0.0
        %2618 = vmatprep.subr.mxu0 0.0
        %2619 = vmatpush1.xpose.msra.mxu0 0.0
        %2620 = vmatprep.subr.mxu0 0.0
        %2621 = vmatpush1.xpose.msra.mxu0 0.0
        %2622 = vmatprep.mubr.f32.mxu0 0.0
        %2623 = vmatmul.mubr.f32.gmra.mrb[0].mxu0 %v2547
        %v2624 = vpop.f32.mrb[0].mxu0
        %v2625 = vadd.f32 0.0, %v2624
        %v2626 = vpop.f32.mrb[0].mxu0
        %2627 = vmatprep.mubr.f32.mxu0 0.0
        %2628 = vmatmul.mubr.f32.gmra.mrb[0].mxu0 %v2550
        %v2629 = vpop.f32.mrb[0].mxu0
        %v2630 = vadd.f32 0.0, %v2629
        %v2631 = vpop.f32.mrb[0].mxu0
        %2632 = vdwg.mxu0
        %v2633 = vmul.f32 %v2625, 0.17677669
        %v2634 = vmul.f32 %v2630, 0.17677669
        %v2635 = vadd.f32 %v2633, %v1202
        %v2636 = vadd.f32 %v2634, %v1202
        %v2637 = vsel %vm1206, %v2635, -inf
        %2638 = vmax.xlane.f32.xlu0 %v2637
        %v2639 = vpop.xlane.xlu0 %2638
        %v2640 = vsel %vm1206, %v2636, -inf
        %2641 = vmax.xlane.f32.xlu0 %v2640
        %v2642 = vpop.xlane.xlu0 %2641
        %v2643 = vsub.f32 %v2635, %v2639
        %v2644 = vsub.f32 %v2636, %v2642
        %v2645 = vmul.f32 %v2643, 1.442695
        %v2646 = vpow.pop %v2645
        %v2647 = vmul.f32 %v2644, 1.442695
        %v2648 = vpow.pop %v2647
        %v2649 = vsel %vm1206, %v2646, 0.0
        %2650 = vadd.xlane.f32.xlu0 %v2649
        %v2651 = vpop.xlane.xlu0 %2650
        %v2652 = vsel %vm1206, %v2648, 0.0
        %2653 = vadd.xlane.f32.xlu0 %v2652
        %v2654 = vpop.xlane.xlu0 %2653
        %v2655 = vrcp.pop %v2651
        %v2656 = vmul.f32 %v2646, %v2655
        %v2657 = vrcp.pop %v2654
        %v2658 = vmul.f32 %v2648, %v2657
        %v2660 = vsel %vm1206, %v2656, 0
        %v2663 = vsel %vm1206, %v2658, 0
        %2665 = vmatprep.subr.mxu0 0.0
        %2666 = vmatpush1.msra.mxu0 %v2538
        %2667 = vmatprep.subr.mxu0 0.0
        %2668 = vmatpush1.msra.mxu0 %v2543
        %2669 = vmatprep.subr.mxu0 0.0
        %2670 = vmatpush1.msra.mxu0 0.0
        %2671 = vmatprep.subr.mxu0 0.0
        %2672 = vmatpush1.msra.mxu0 0.0
        %2673 = vmatprep.subr.mxu0 0.0
        %2674 = vmatpush1.msra.mxu0 0.0
        %2675 = vmatprep.subr.mxu0 0.0
        %2676 = vmatpush1.msra.mxu0 0.0
        %2677 = vmatprep.subr.mxu0 0.0
        %2678 = vmatpush1.msra.mxu0 0.0
        %2679 = vmatprep.subr.mxu0 0.0
        %2680 = vmatpush1.msra.mxu0 0.0
        %2681 = vmatprep.subr.mxu0 0.0
        %2682 = vmatpush1.msra.mxu0 0.0
        %2683 = vmatprep.subr.mxu0 0.0
        %2684 = vmatpush1.msra.mxu0 0.0
        %2685 = vmatprep.subr.mxu0 0.0
        %2686 = vmatpush1.msra.mxu0 0.0
        %2687 = vmatprep.subr.mxu0 0.0
        %2688 = vmatpush1.msra.mxu0 0.0
        %2689 = vmatprep.subr.mxu0 0.0
        %2690 = vmatpush1.msra.mxu0 0.0
        %2691 = vmatprep.subr.mxu0 0.0
        %2692 = vmatpush1.msra.mxu0 0.0
        %2693 = vmatprep.subr.mxu0 0.0
        %2694 = vmatpush1.msra.mxu0 0.0
        %2695 = vmatprep.subr.mxu0 0.0
        %2696 = vmatpush1.msra.mxu0 0.0
        %2697 = vmatprep.subr.mxu0 0.0
        %2698 = vmatpush1.msra.mxu0 0.0
        %2699 = vmatprep.subr.mxu0 0.0
        %2700 = vmatpush1.msra.mxu0 0.0
        %2701 = vmatprep.subr.mxu0 0.0
        %2702 = vmatpush1.msra.mxu0 0.0
        %2703 = vmatprep.subr.mxu0 0.0
        %2704 = vmatpush1.msra.mxu0 0.0
        %2705 = vmatprep.subr.mxu0 0.0
        %2706 = vmatpush1.msra.mxu0 0.0
        %2707 = vmatprep.subr.mxu0 0.0
        %2708 = vmatpush1.msra.mxu0 0.0
        %2709 = vmatprep.subr.mxu0 0.0
        %2710 = vmatpush1.msra.mxu0 0.0
        %2711 = vmatprep.subr.mxu0 0.0
        %2712 = vmatpush1.msra.mxu0 0.0
        %2713 = vmatprep.subr.mxu0 0.0
        %2714 = vmatpush1.msra.mxu0 0.0
        %2715 = vmatprep.subr.mxu0 0.0
        %2716 = vmatpush1.msra.mxu0 0.0
        %2717 = vmatprep.subr.mxu0 0.0
        %2718 = vmatpush1.msra.mxu0 0.0
        %2719 = vmatprep.subr.mxu0 0.0
        %2720 = vmatpush1.msra.mxu0 0.0
        %2721 = vmatprep.subr.mxu0 0.0
        %2722 = vmatpush1.msra.mxu0 0.0
        %2723 = vmatprep.subr.mxu0 0.0
        %2724 = vmatpush1.msra.mxu0 0.0
        %2725 = vmatprep.subr.mxu0 0.0
        %2726 = vmatpush1.msra.mxu0 0.0
        %2727 = vmatprep.subr.mxu0 0.0
        %2728 = vmatpush1.msra.mxu0 0.0
        %2729 = vmatprep.mubr.f32.mxu0 0.0
        %2730 = vmatmul.mubr.f32.gmra.mrb[0].mxu0 %v2660
        %v2731 = vpop.f32.mrb[0].mxu0
        %v2732 = vadd.f32 0.0, %v2731
        %v2733 = vpop.f32.mrb[0].mxu0
        %2734 = vmatprep.mubr.f32.mxu0 0.0
        %2735 = vmatmul.mubr.f32.gmra.mrb[0].mxu0 %v2663
        %v2736 = vpop.f32.mrb[0].mxu0
        %v2737 = vadd.f32 0.0, %v2736
        %v2738 = vpop.f32.mrb[0].mxu0
        %2739 = vdwg.mxu0
        %s2740 = scalar_lea.vmem %s11, 64
        %v2741 = vld [vmem:[%s2740] sm:$0xff]
        %v2742 = vld [vmem:[%s2740 + $0x8] sm:$0xff]
        %v2743 = vld [vmem:[%s2740 + $0x10] sm:$0xff]
        %v2744 = vld [vmem:[%s2740 + $0x18] sm:$0xff]
        %s2745 = scalar_lea.vmem %s5, 192
        %v2746 = vld [vmem:[%s2745] sm:$0xff]
        %v2747 = vld [vmem:[%s2745 + $0x8] sm:$0xff]
        %v2748 = vld [vmem:[%s2745 + $0x10] sm:$0xff]
        %v2749 = vld [vmem:[%s2745 + $0x18] sm:$0xff]
        %v2750 = vld [vmem:[%s2745 + $0x20] sm:$0xff]
        %v2751 = vld [vmem:[%s2745 + $0x28] sm:$0xff]
        %v2752 = vld [vmem:[%s2745 + $0x30] sm:$0xff]
        %v2753 = vld [vmem:[%s2745 + $0x38] sm:$0xff]
        %s2754 = scalar_lea.vmem %s8, 3
        %v2755 = vld [vmem:[%s2754] sm:$0x1]
        %v2757 = vlaneseq
        %v2758 = vshrl.u32 %v2757, 7
        %v2759 = vsub.s32 0, %v2758
        %v2760 = vrot.slane %v2755, %v2759
        %2762 = vmatprep.subr.mxu0 0.0
        %2763 = vmatpush1.msra.mxu0 %v2746
        %2764 = vmatprep.subr.mxu0 0.0
        %2765 = vmatpush1.msra.mxu0 %v2747
        %2766 = vmatprep.subr.mxu0 0.0
        %2767 = vmatpush1.msra.mxu0 %v2748
        %2768 = vmatprep.subr.mxu0 0.0
        %2769 = vmatpush1.msra.mxu0 %v2749
        %2770 = vmatprep.subr.mxu0 0.0
        %2771 = vmatpush1.msra.mxu0 %v2750
        %2772 = vmatprep.subr.mxu0 0.0
        %2773 = vmatpush1.msra.mxu0 %v2751
        %2774 = vmatprep.subr.mxu0 0.0
        %2775 = vmatpush1.msra.mxu0 %v2752
        %2776 = vmatprep.subr.mxu0 0.0
        %2777 = vmatpush1.msra.mxu0 %v2753
        %2778 = vmatprep.subr.mxu0 0.0
        %2779 = vmatpush1.msra.mxu0 0.0
        %2780 = vmatprep.subr.mxu0 0.0
        %2781 = vmatpush1.msra.mxu0 0.0
        %2782 = vmatprep.subr.mxu0 0.0
        %2783 = vmatpush1.msra.mxu0 0.0
        %2784 = vmatprep.subr.mxu0 0.0
        %2785 = vmatpush1.msra.mxu0 0.0
        %2786 = vmatprep.subr.mxu0 0.0
        %2787 = vmatpush1.msra.mxu0 0.0
        %2788 = vmatprep.subr.mxu0 0.0
        %2789 = vmatpush1.msra.mxu0 0.0
        %2790 = vmatprep.subr.mxu0 0.0
        %2791 = vmatpush1.msra.mxu0 0.0
        %2792 = vmatprep.subr.mxu0 0.0
        %2793 = vmatpush1.msra.mxu0 0.0
        %2794 = vmatprep.subr.mxu0 0.0
        %2795 = vmatpush1.msra.mxu0 0.0
        %2796 = vmatprep.subr.mxu0 0.0
        %2797 = vmatpush1.msra.mxu0 0.0
        %2798 = vmatprep.subr.mxu0 0.0
        %2799 = vmatpush1.msra.mxu0 0.0
        %2800 = vmatprep.subr.mxu0 0.0
        %2801 = vmatpush1.msra.mxu0 0.0
        %2802 = vmatprep.subr.mxu0 0.0
        %2803 = vmatpush1.msra.mxu0 0.0
        %2804 = vmatprep.subr.mxu0 0.0
        %2805 = vmatpush1.msra.mxu0 0.0
        %2806 = vmatprep.subr.mxu0 0.0
        %2807 = vmatpush1.msra.mxu0 0.0
        %2808 = vmatprep.subr.mxu0 0.0
        %2809 = vmatpush1.msra.mxu0 0.0
        %2810 = vmatprep.subr.mxu0 0.0
        %2811 = vmatpush1.msra.mxu0 0.0
        %2812 = vmatprep.subr.mxu0 0.0
        %2813 = vmatpush1.msra.mxu0 0.0
        %2814 = vmatprep.subr.mxu0 0.0
        %2815 = vmatpush1.msra.mxu0 0.0
        %2816 = vmatprep.subr.mxu0 0.0
        %2817 = vmatpush1.msra.mxu0 0.0
        %2818 = vmatprep.subr.mxu0 0.0
        %2819 = vmatpush1.msra.mxu0 0.0
        %2820 = vmatprep.subr.mxu0 0.0
        %2821 = vmatpush1.msra.mxu0 0.0
        %2822 = vmatprep.subr.mxu0 0.0
        %2823 = vmatpush1.msra.mxu0 0.0
        %2824 = vmatprep.subr.mxu0 0.0
        %2825 = vmatpush1.msra.mxu0 0.0
        %2826 = vmatprep.mubr.f32.mxu0 0.0
        %2827 = vmatmul.mubr.f32.gmra.mrb[0].mxu0 %v2282
        %v2828 = vpop.f32.mrb[0].mxu0
        %v2829 = vadd.f32 %v2760, %v2828
        %v2830 = vpop.f32.mrb[0].mxu0
        %2831 = vmatprep.mubr.f32.mxu0 0.0
        %2832 = vmatmul.mubr.f32.gmra.mrb[0].mxu0 %v2285
        %v2833 = vpop.f32.mrb[0].mxu0
        %v2834 = vadd.f32 %v2760, %v2833
        %v2835 = vpop.f32.mrb[0].mxu0
        %2836 = vdwg.mxu0
        %s2837 = scalar_lea.vmem %s6, 192
        %v2838 = vld [vmem:[%s2837] sm:$0xff]
        %v2839 = vld [vmem:[%s2837 + $0x8] sm:$0xff]
        %v2840 = vld [vmem:[%s2837 + $0x10] sm:$0xff]
        %v2841 = vld [vmem:[%s2837 + $0x18] sm:$0xff]
        %v2842 = vld [vmem:[%s2837 + $0x20] sm:$0xff]
        %v2843 = vld [vmem:[%s2837 + $0x28] sm:$0xff]
        %v2844 = vld [vmem:[%s2837 + $0x30] sm:$0xff]
        %v2845 = vld [vmem:[%s2837 + $0x38] sm:$0xff]
        %s2846 = scalar_lea.vmem %s9, 3
        %v2847 = vld [vmem:[%s2846] sm:$0x1]
        %v2849 = vlaneseq
        %v2850 = vshrl.u32 %v2849, 7
        %v2851 = vsub.s32 0, %v2850
        %v2852 = vrot.slane %v2847, %v2851
        %2854 = vmatprep.subr.mxu0 0.0
        %2855 = vmatpush1.msra.mxu0 %v2838
        %2856 = vmatprep.subr.mxu0 0.0
        %2857 = vmatpush1.msra.mxu0 %v2839
        %2858 = vmatprep.subr.mxu0 0.0
        %2859 = vmatpush1.msra.mxu0 %v2840
        %2860 = vmatprep.subr.mxu0 0.0
        %2861 = vmatpush1.msra.mxu0 %v2841
        %2862 = vmatprep.subr.mxu0 0.0
        %2863 = vmatpush1.msra.mxu0 %v2842
        %2864 = vmatprep.subr.mxu0 0.0
        %2865 = vmatpush1.msra.mxu0 %v2843
        %2866 = vmatprep.subr.mxu0 0.0
        %2867 = vmatpush1.msra.mxu0 %v2844
        %2868 = vmatprep.subr.mxu0 0.0
        %2869 = vmatpush1.msra.mxu0 %v2845
        %2870 = vmatprep.subr.mxu0 0.0
        %2871 = vmatpush1.msra.mxu0 0.0
        %2872 = vmatprep.subr.mxu0 0.0
        %2873 = vmatpush1.msra.mxu0 0.0
        %2874 = vmatprep.subr.mxu0 0.0
        %2875 = vmatpush1.msra.mxu0 0.0
        %2876 = vmatprep.subr.mxu0 0.0
        %2877 = vmatpush1.msra.mxu0 0.0
        %2878 = vmatprep.subr.mxu0 0.0
        %2879 = vmatpush1.msra.mxu0 0.0
        %2880 = vmatprep.subr.mxu0 0.0
        %2881 = vmatpush1.msra.mxu0 0.0
        %2882 = vmatprep.subr.mxu0 0.0
        %2883 = vmatpush1.msra.mxu0 0.0
        %2884 = vmatprep.subr.mxu0 0.0
        %2885 = vmatpush1.msra.mxu0 0.0
        %2886 = vmatprep.subr.mxu0 0.0
        %2887 = vmatpush1.msra.mxu0 0.0
        %2888 = vmatprep.subr.mxu0 0.0
        %2889 = vmatpush1.msra.mxu0 0.0
        %2890 = vmatprep.subr.mxu0 0.0
        %2891 = vmatpush1.msra.mxu0 0.0
        %2892 = vmatprep.subr.mxu0 0.0
        %2893 = vmatpush1.msra.mxu0 0.0
        %2894 = vmatprep.subr.mxu0 0.0
        %2895 = vmatpush1.msra.mxu0 0.0
        %2896 = vmatprep.subr.mxu0 0.0
        %2897 = vmatpush1.msra.mxu0 0.0
        %2898 = vmatprep.subr.mxu0 0.0
        %2899 = vmatpush1.msra.mxu0 0.0
        %2900 = vmatprep.subr.mxu0 0.0
        %2901 = vmatpush1.msra.mxu0 0.0
        %2902 = vmatprep.subr.mxu0 0.0
        %2903 = vmatpush1.msra.mxu0 0.0
        %2904 = vmatprep.subr.mxu0 0.0
        %2905 = vmatpush1.msra.mxu0 0.0
        %2906 = vmatprep.subr.mxu0 0.0
        %2907 = vmatpush1.msra.mxu0 0.0
        %2908 = vmatprep.subr.mxu0 0.0
        %2909 = vmatpush1.msra.mxu0 0.0
        %2910 = vmatprep.subr.mxu0 0.0
        %2911 = vmatpush1.msra.mxu0 0.0
        %2912 = vmatprep.subr.mxu0 0.0
        %2913 = vmatpush1.msra.mxu0 0.0
        %2914 = vmatprep.subr.mxu0 0.0
        %2915 = vmatpush1.msra.mxu0 0.0
        %2916 = vmatprep.subr.mxu0 0.0
        %2917 = vmatpush1.msra.mxu0 0.0
        %2918 = vmatprep.mubr.f32.mxu0 0.0
        %2919 = vmatmul.mubr.f32.gmra.mrb[0].mxu0 %v2282
        %v2920 = vpop.f32.mrb[0].mxu0
        %v2921 = vadd.f32 %v2852, %v2920
        %v2922 = vpop.f32.mrb[0].mxu0
        %2923 = vmatprep.mubr.f32.mxu0 0.0
        %2924 = vmatmul.mubr.f32.gmra.mrb[0].mxu0 %v2285
        %v2925 = vpop.f32.mrb[0].mxu0
        %v2926 = vadd.f32 %v2852, %v2925
        %v2927 = vpop.f32.mrb[0].mxu0
        %2928 = vdwg.mxu0
        %s2929 = scalar_lea.vmem %s7, 192
        %v2930 = vld [vmem:[%s2929] sm:$0xff]
        %v2931 = vld [vmem:[%s2929 + $0x8] sm:$0xff]
        %v2932 = vld [vmem:[%s2929 + $0x10] sm:$0xff]
        %v2933 = vld [vmem:[%s2929 + $0x18] sm:$0xff]
        %v2934 = vld [vmem:[%s2929 + $0x20] sm:$0xff]
        %v2935 = vld [vmem:[%s2929 + $0x28] sm:$0xff]
        %v2936 = vld [vmem:[%s2929 + $0x30] sm:$0xff]
        %v2937 = vld [vmem:[%s2929 + $0x38] sm:$0xff]
        %s2938 = scalar_lea.vmem %s10, 3
        %v2939 = vld [vmem:[%s2938] sm:$0x1]
        %v2941 = vlaneseq
        %v2942 = vshrl.u32 %v2941, 7
        %v2943 = vsub.s32 0, %v2942
        %v2944 = vrot.slane %v2939, %v2943
        %2946 = vmatprep.subr.mxu0 0.0
        %2947 = vmatpush1.msra.mxu0 %v2930
        %2948 = vmatprep.subr.mxu0 0.0
        %2949 = vmatpush1.msra.mxu0 %v2931
        %2950 = vmatprep.subr.mxu0 0.0
        %2951 = vmatpush1.msra.mxu0 %v2932
        %2952 = vmatprep.subr.mxu0 0.0
        %2953 = vmatpush1.msra.mxu0 %v2933
        %2954 = vmatprep.subr.mxu0 0.0
        %2955 = vmatpush1.msra.mxu0 %v2934
        %2956 = vmatprep.subr.mxu0 0.0
        %2957 = vmatpush1.msra.mxu0 %v2935
        %2958 = vmatprep.subr.mxu0 0.0
        %2959 = vmatpush1.msra.mxu0 %v2936
        %2960 = vmatprep.subr.mxu0 0.0
        %2961 = vmatpush1.msra.mxu0 %v2937
        %2962 = vmatprep.subr.mxu0 0.0
        %2963 = vmatpush1.msra.mxu0 0.0
        %2964 = vmatprep.subr.mxu0 0.0
        %2965 = vmatpush1.msra.mxu0 0.0
        %2966 = vmatprep.subr.mxu0 0.0
        %2967 = vmatpush1.msra.mxu0 0.0
        %2968 = vmatprep.subr.mxu0 0.0
        %2969 = vmatpush1.msra.mxu0 0.0
        %2970 = vmatprep.subr.mxu0 0.0
        %2971 = vmatpush1.msra.mxu0 0.0
        %2972 = vmatprep.subr.mxu0 0.0
        %2973 = vmatpush1.msra.mxu0 0.0
        %2974 = vmatprep.subr.mxu0 0.0
        %2975 = vmatpush1.msra.mxu0 0.0
        %2976 = vmatprep.subr.mxu0 0.0
        %2977 = vmatpush1.msra.mxu0 0.0
        %2978 = vmatprep.subr.mxu0 0.0
        %2979 = vmatpush1.msra.mxu0 0.0
        %2980 = vmatprep.subr.mxu0 0.0
        %2981 = vmatpush1.msra.mxu0 0.0
        %2982 = vmatprep.subr.mxu0 0.0
        %2983 = vmatpush1.msra.mxu0 0.0
        %2984 = vmatprep.subr.mxu0 0.0
        %2985 = vmatpush1.msra.mxu0 0.0
        %2986 = vmatprep.subr.mxu0 0.0
        %2987 = vmatpush1.msra.mxu0 0.0
        %2988 = vmatprep.subr.mxu0 0.0
        %2989 = vmatpush1.msra.mxu0 0.0
        %2990 = vmatprep.subr.mxu0 0.0
        %2991 = vmatpush1.msra.mxu0 0.0
        %2992 = vmatprep.subr.mxu0 0.0
        %2993 = vmatpush1.msra.mxu0 0.0
        %2994 = vmatprep.subr.mxu0 0.0
        %2995 = vmatpush1.msra.mxu0 0.0
        %2996 = vmatprep.subr.mxu0 0.0
        %2997 = vmatpush1.msra.mxu0 0.0
        %2998 = vmatprep.subr.mxu0 0.0
        %2999 = vmatpush1.msra.mxu0 0.0
        %3000 = vmatprep.subr.mxu0 0.0
        %3001 = vmatpush1.msra.mxu0 0.0
        %3002 = vmatprep.subr.mxu0 0.0
        %3003 = vmatpush1.msra.mxu0 0.0
        %3004 = vmatprep.subr.mxu0 0.0
        %3005 = vmatpush1.msra.mxu0 0.0
        %3006 = vmatprep.subr.mxu0 0.0
        %3007 = vmatpush1.msra.mxu0 0.0
        %3008 = vmatprep.subr.mxu0 0.0
        %3009 = vmatpush1.msra.mxu0 0.0
        %3010 = vmatprep.mubr.f32.mxu0 0.0
        %3011 = vmatmul.mubr.f32.gmra.mrb[0].mxu0 %v2282
        %v3012 = vpop.f32.mrb[0].mxu0
        %v3013 = vadd.f32 %v2944, %v3012
        %v3014 = vpop.f32.mrb[0].mxu0
        %3015 = vmatprep.mubr.f32.mxu0 0.0
        %3016 = vmatmul.mubr.f32.gmra.mrb[0].mxu0 %v2285
        %v3017 = vpop.f32.mrb[0].mxu0
        %v3018 = vadd.f32 %v2944, %v3017
        %v3019 = vpop.f32.mrb[0].mxu0
        %3020 = vdwg.mxu0
        %v3022 = vsel %vm1108, %v2829, 0
        %v3025 = vsel %vm1108, %v2834, 0
        %v3028 = vsel %vm1108, %v2921, 0
        %v3031 = vsel %vm1108, %v2926, 0
        %3033 = vmatprep.subr.mxu0 0.0
        %3034 = vmatpush1.xpose.msra.mxu0 %v3028
        %3035 = vmatprep.subr.mxu0 0.0
        %3036 = vmatpush1.xpose.msra.mxu0 %v3031
        %3037 = vmatprep.subr.mxu0 0.0
        %3038 = vmatpush1.xpose.msra.mxu0 0.0
        %3039 = vmatprep.subr.mxu0 0.0
        %3040 = vmatpush1.xpose.msra.mxu0 0.0
        %3041 = vmatprep.subr.mxu0 0.0
        %3042 = vmatpush1.xpose.msra.mxu0 0.0
        %3043 = vmatprep.subr.mxu0 0.0
        %3044 = vmatpush1.xpose.msra.mxu0 0.0
        %3045 = vmatprep.subr.mxu0 0.0
        %3046 = vmatpush1.xpose.msra.mxu0 0.0
        %3047 = vmatprep.subr.mxu0 0.0
        %3048 = vmatpush1.xpose.msra.mxu0 0.0
        %3049 = vmatprep.subr.mxu0 0.0
        %3050 = vmatpush1.xpose.msra.mxu0 0.0
        %3051 = vmatprep.subr.mxu0 0.0
        %3052 = vmatpush1.xpose.msra.mxu0 0.0
        %3053 = vmatprep.subr.mxu0 0.0
        %3054 = vmatpush1.xpose.msra.mxu0 0.0
        %3055 = vmatprep.subr.mxu0 0.0
        %3056 = vmatpush1.xpose.msra.mxu0 0.0
        %3057 = vmatprep.subr.mxu0 0.0
        %3058 = vmatpush1.xpose.msra.mxu0 0.0
        %3059 = vmatprep.subr.mxu0 0.0
        %3060 = vmatpush1.xpose.msra.mxu0 0.0
        %3061 = vmatprep.subr.mxu0 0.0
        %3062 = vmatpush1.xpose.msra.mxu0 0.0
        %3063 = vmatprep.subr.mxu0 0.0
        %3064 = vmatpush1.xpose.msra.mxu0 0.0
        %3065 = vmatprep.subr.mxu0 0.0
        %3066 = vmatpush1.xpose.msra.mxu0 0.0
        %3067 = vmatprep.subr.mxu0 0.0
        %3068 = vmatpush1.xpose.msra.mxu0 0.0
        %3069 = vmatprep.subr.mxu0 0.0
        %3070 = vmatpush1.xpose.msra.mxu0 0.0
        %3071 = vmatprep.subr.mxu0 0.0
        %3072 = vmatpush1.xpose.msra.mxu0 0.0
        %3073 = vmatprep.subr.mxu0 0.0
        %3074 = vmatpush1.xpose.msra.mxu0 0.0
        %3075 = vmatprep.subr.mxu0 0.0
        %3076 = vmatpush1.xpose.msra.mxu0 0.0
        %3077 = vmatprep.subr.mxu0 0.0
        %3078 = vmatpush1.xpose.msra.mxu0 0.0
        %3079 = vmatprep.subr.mxu0 0.0
        %3080 = vmatpush1.xpose.msra.mxu0 0.0
        %3081 = vmatprep.subr.mxu0 0.0
        %3082 = vmatpush1.xpose.msra.mxu0 0.0
        %3083 = vmatprep.subr.mxu0 0.0
        %3084 = vmatpush1.xpose.msra.mxu0 0.0
        %3085 = vmatprep.subr.mxu0 0.0
        %3086 = vmatpush1.xpose.msra.mxu0 0.0
        %3087 = vmatprep.subr.mxu0 0.0
        %3088 = vmatpush1.xpose.msra.mxu0 0.0
        %3089 = vmatprep.subr.mxu0 0.0
        %3090 = vmatpush1.xpose.msra.mxu0 0.0
        %3091 = vmatprep.subr.mxu0 0.0
        %3092 = vmatpush1.xpose.msra.mxu0 0.0
        %3093 = vmatprep.subr.mxu0 0.0
        %3094 = vmatpush1.xpose.msra.mxu0 0.0
        %3095 = vmatprep.subr.mxu0 0.0
        %3096 = vmatpush1.xpose.msra.mxu0 0.0
        %3097 = vmatprep.mubr.f32.mxu0 0.0
        %3098 = vmatmul.mubr.f32.gmra.mrb[0].mxu0 %v3022
        %v3099 = vpop.f32.mrb[0].mxu0
        %v3100 = vadd.f32 0.0, %v3099
        %v3101 = vpop.f32.mrb[0].mxu0
        %3102 = vmatprep.mubr.f32.mxu0 0.0
        %3103 = vmatmul.mubr.f32.gmra.mrb[0].mxu0 %v3025
        %v3104 = vpop.f32.mrb[0].mxu0
        %v3105 = vadd.f32 0.0, %v3104
        %v3106 = vpop.f32.mrb[0].mxu0
        %3107 = vdwg.mxu0
        %v3108 = vmul.f32 %v3100, 0.17677669
        %v3109 = vmul.f32 %v3105, 0.17677669
        %v3110 = vadd.f32 %v3108, %v1202
        %v3111 = vadd.f32 %v3109, %v1202
        %v3112 = vsel %vm1206, %v3110, -inf
        %3113 = vmax.xlane.f32.xlu0 %v3112
        %v3114 = vpop.xlane.xlu0 %3113
        %v3115 = vsel %vm1206, %v3111, -inf
        %3116 = vmax.xlane.f32.xlu0 %v3115
        %v3117 = vpop.xlane.xlu0 %3116
        %v3118 = vsub.f32 %v3110, %v3114
        %v3119 = vsub.f32 %v3111, %v3117
        %v3120 = vmul.f32 %v3118, 1.442695
        %v3121 = vpow.pop %v3120
        %v3122 = vmul.f32 %v3119, 1.442695
        %v3123 = vpow.pop %v3122
        %v3124 = vsel %vm1206, %v3121, 0.0
        %3125 = vadd.xlane.f32.xlu0 %v3124
        %v3126 = vpop.xlane.xlu0 %3125
        %v3127 = vsel %vm1206, %v3123, 0.0
        %3128 = vadd.xlane.f32.xlu0 %v3127
        %v3129 = vpop.xlane.xlu0 %3128
        %v3130 = vrcp.pop %v3126
        %v3131 = vmul.f32 %v3121, %v3130
        %v3132 = vrcp.pop %v3129
        %v3133 = vmul.f32 %v3123, %v3132
        %v3135 = vsel %vm1206, %v3131, 0
        %v3138 = vsel %vm1206, %v3133, 0
        %3140 = vmatprep.subr.mxu0 0.0
        %3141 = vmatpush1.msra.mxu0 %v3013
        %3142 = vmatprep.subr.mxu0 0.0
        %3143 = vmatpush1.msra.mxu0 %v3018
        %3144 = vmatprep.subr.mxu0 0.0
        %3145 = vmatpush1.msra.mxu0 0.0
        %3146 = vmatprep.subr.mxu0 0.0
        %3147 = vmatpush1.msra.mxu0 0.0
        %3148 = vmatprep.subr.mxu0 0.0
        %3149 = vmatpush1.msra.mxu0 0.0
        %3150 = vmatprep.subr.mxu0 0.0
        %3151 = vmatpush1.msra.mxu0 0.0
        %3152 = vmatprep.subr.mxu0 0.0
        %3153 = vmatpush1.msra.mxu0 0.0
        %3154 = vmatprep.subr.mxu0 0.0
        %3155 = vmatpush1.msra.mxu0 0.0
        %3156 = vmatprep.subr.mxu0 0.0
        %3157 = vmatpush1.msra.mxu0 0.0
        %3158 = vmatprep.subr.mxu0 0.0
        %3159 = vmatpush1.msra.mxu0 0.0
        %3160 = vmatprep.subr.mxu0 0.0
        %3161 = vmatpush1.msra.mxu0 0.0
        %3162 = vmatprep.subr.mxu0 0.0
        %3163 = vmatpush1.msra.mxu0 0.0
        %3164 = vmatprep.subr.mxu0 0.0
        %3165 = vmatpush1.msra.mxu0 0.0
        %3166 = vmatprep.subr.mxu0 0.0
        %3167 = vmatpush1.msra.mxu0 0.0
        %3168 = vmatprep.subr.mxu0 0.0
        %3169 = vmatpush1.msra.mxu0 0.0
        %3170 = vmatprep.subr.mxu0 0.0
        %3171 = vmatpush1.msra.mxu0 0.0
        %3172 = vmatprep.subr.mxu0 0.0
        %3173 = vmatpush1.msra.mxu0 0.0
        %3174 = vmatprep.subr.mxu0 0.0
        %3175 = vmatpush1.msra.mxu0 0.0
        %3176 = vmatprep.subr.mxu0 0.0
        %3177 = vmatpush1.msra.mxu0 0.0
        %3178 = vmatprep.subr.mxu0 0.0
        %3179 = vmatpush1.msra.mxu0 0.0
        %3180 = vmatprep.subr.mxu0 0.0
        %3181 = vmatpush1.msra.mxu0 0.0
        %3182 = vmatprep.subr.mxu0 0.0
        %3183 = vmatpush1.msra.mxu0 0.0
        %3184 = vmatprep.subr.mxu0 0.0
        %3185 = vmatpush1.msra.mxu0 0.0
        %3186 = vmatprep.subr.mxu0 0.0
        %3187 = vmatpush1.msra.mxu0 0.0
        %3188 = vmatprep.subr.mxu0 0.0
        %3189 = vmatpush1.msra.mxu0 0.0
        %3190 = vmatprep.subr.mxu0 0.0
        %3191 = vmatpush1.msra.mxu0 0.0
        %3192 = vmatprep.subr.mxu0 0.0
        %3193 = vmatpush1.msra.mxu0 0.0
        %3194 = vmatprep.subr.mxu0 0.0
        %3195 = vmatpush1.msra.mxu0 0.0
        %3196 = vmatprep.subr.mxu0 0.0
        %3197 = vmatpush1.msra.mxu0 0.0
        %3198 = vmatprep.subr.mxu0 0.0
        %3199 = vmatpush1.msra.mxu0 0.0
        %3200 = vmatprep.subr.mxu0 0.0
        %3201 = vmatpush1.msra.mxu0 0.0
        %3202 = vmatprep.subr.mxu0 0.0
        %3203 = vmatpush1.msra.mxu0 0.0
        %3204 = vmatprep.mubr.f32.mxu0 0.0
        %3205 = vmatmul.mubr.f32.gmra.mrb[0].mxu0 %v3135
        %v3206 = vpop.f32.mrb[0].mxu0
        %v3207 = vadd.f32 0.0, %v3206
        %v3208 = vpop.f32.mrb[0].mxu0
        %3209 = vmatprep.mubr.f32.mxu0 0.0
        %3210 = vmatmul.mubr.f32.gmra.mrb[0].mxu0 %v3138
        %v3211 = vpop.f32.mrb[0].mxu0
        %v3212 = vadd.f32 0.0, %v3211
        %v3213 = vpop.f32.mrb[0].mxu0
        %3214 = vdwg.mxu0
        %s3215 = scalar_lea.vmem %s11, 96
        %v3216 = vld [vmem:[%s3215] sm:$0xff]
        %v3217 = vld [vmem:[%s3215 + $0x8] sm:$0xff]
        %v3218 = vld [vmem:[%s3215 + $0x10] sm:$0xff]
        %v3219 = vld [vmem:[%s3215 + $0x18] sm:$0xff]
        %v3221 = vsel %vm1108, %v3207, 0
        %v3224 = vsel %vm1108, %v3212, 0
        %3226 = vmatprep.subr.mxu0 0.0
        %3227 = vmatpush1.msra.mxu0 %v3216
        %3228 = vmatprep.subr.mxu0 0.0
        %3229 = vmatpush1.msra.mxu0 %v3217
        %3230 = vmatprep.subr.mxu0 0.0
        %3231 = vmatpush1.msra.mxu0 %v3218
        %3232 = vmatprep.subr.mxu0 0.0
        %3233 = vmatpush1.msra.mxu0 %v3219
        %3234 = vmatprep.subr.mxu0 0.0
        %3235 = vmatpush1.msra.mxu0 0.0
        %3236 = vmatprep.subr.mxu0 0.0
        %3237 = vmatpush1.msra.mxu0 0.0
        %3238 = vmatprep.subr.mxu0 0.0
        %3239 = vmatpush1.msra.mxu0 0.0
        %3240 = vmatprep.subr.mxu0 0.0
        %3241 = vmatpush1.msra.mxu0 0.0
        %3242 = vmatprep.subr.mxu0 0.0
        %3243 = vmatpush1.msra.mxu0 0.0
        %3244 = vmatprep.subr.mxu0 0.0
        %3245 = vmatpush1.msra.mxu0 0.0
        %3246 = vmatprep.subr.mxu0 0.0
        %3247 = vmatpush1.msra.mxu0 0.0
        %3248 = vmatprep.subr.mxu0 0.0
        %3249 = vmatpush1.msra.mxu0 0.0
        %3250 = vmatprep.subr.mxu0 0.0
        %3251 = vmatpush1.msra.mxu0 0.0
        %3252 = vmatprep.subr.mxu0 0.0
        %3253 = vmatpush1.msra.mxu0 0.0
        %3254 = vmatprep.subr.mxu0 0.0
        %3255 = vmatpush1.msra.mxu0 0.0
        %3256 = vmatprep.subr.mxu0 0.0
        %3257 = vmatpush1.msra.mxu0 0.0
        %3258 = vmatprep.subr.mxu0 0.0
        %3259 = vmatpush1.msra.mxu0 0.0
        %3260 = vmatprep.subr.mxu0 0.0
        %3261 = vmatpush1.msra.mxu0 0.0
        %3262 = vmatprep.subr.mxu0 0.0
        %3263 = vmatpush1.msra.mxu0 0.0
        %3264 = vmatprep.subr.mxu0 0.0
        %3265 = vmatpush1.msra.mxu0 0.0
        %3266 = vmatprep.subr.mxu0 0.0
        %3267 = vmatpush1.msra.mxu0 0.0
        %3268 = vmatprep.subr.mxu0 0.0
        %3269 = vmatpush1.msra.mxu0 0.0
        %3270 = vmatprep.subr.mxu0 0.0
        %3271 = vmatpush1.msra.mxu0 0.0
        %3272 = vmatprep.subr.mxu0 0.0
        %3273 = vmatpush1.msra.mxu0 0.0
        %3274 = vmatprep.subr.mxu0 0.0
        %3275 = vmatpush1.msra.mxu0 0.0
        %3276 = vmatprep.subr.mxu0 0.0
        %3277 = vmatpush1.msra.mxu0 0.0
        %3278 = vmatprep.subr.mxu0 0.0
        %3279 = vmatpush1.msra.mxu0 0.0
        %3280 = vmatprep.subr.mxu0 0.0
        %3281 = vmatpush1.msra.mxu0 0.0
        %3282 = vmatprep.subr.mxu0 0.0
        %3283 = vmatpush1.msra.mxu0 0.0
        %3284 = vmatprep.subr.mxu0 0.0
        %3285 = vmatpush1.msra.mxu0 0.0
        %3286 = vmatprep.subr.mxu0 0.0
        %3287 = vmatpush1.msra.mxu0 0.0
        %3288 = vmatprep.subr.mxu0 0.0
        %3289 = vmatpush1.msra.mxu0 0.0
        %3290 = vmatprep.mubr.f32.mxu0 0.0
        %3291 = vmatmul.mubr.f32.gmra.mrb[0].mxu0 %v3221
        %v3292 = vpop.f32.mrb[0].mxu0
        %v3293 = vadd.f32 0.0, %v3292
        %v3294 = vpop.f32.mrb[0].mxu0
        %3295 = vmatprep.mubr.f32.mxu0 0.0
        %3296 = vmatmul.mubr.f32.gmra.mrb[0].mxu0 %v3224
        %v3297 = vpop.f32.mrb[0].mxu0
        %v3298 = vadd.f32 0.0, %v3297
        %v3299 = vpop.f32.mrb[0].mxu0
        %3300 = vdwg.mxu0
        %v3302 = vsel %vm1108, %v2732, 0
        %v3305 = vsel %vm1108, %v2737, 0
        %3307 = vmatprep.subr.mxu0 0.0
        %3308 = vmatpush1.msra.mxu0 %v2741
        %3309 = vmatprep.subr.mxu0 0.0
        %3310 = vmatpush1.msra.mxu0 %v2742
        %3311 = vmatprep.subr.mxu0 0.0
        %3312 = vmatpush1.msra.mxu0 %v2743
        %3313 = vmatprep.subr.mxu0 0.0
        %3314 = vmatpush1.msra.mxu0 %v2744
        %3315 = vmatprep.subr.mxu0 0.0
        %3316 = vmatpush1.msra.mxu0 0.0
        %3317 = vmatprep.subr.mxu0 0.0
        %3318 = vmatpush1.msra.mxu0 0.0
        %3319 = vmatprep.subr.mxu0 0.0
        %3320 = vmatpush1.msra.mxu0 0.0
        %3321 = vmatprep.subr.mxu0 0.0
        %3322 = vmatpush1.msra.mxu0 0.0
        %3323 = vmatprep.subr.mxu0 0.0
        %3324 = vmatpush1.msra.mxu0 0.0
        %3325 = vmatprep.subr.mxu0 0.0
        %3326 = vmatpush1.msra.mxu0 0.0
        %3327 = vmatprep.subr.mxu0 0.0
        %3328 = vmatpush1.msra.mxu0 0.0
        %3329 = vmatprep.subr.mxu0 0.0
        %3330 = vmatpush1.msra.mxu0 0.0
        %3331 = vmatprep.subr.mxu0 0.0
        %3332 = vmatpush1.msra.mxu0 0.0
        %3333 = vmatprep.subr.mxu0 0.0
        %3334 = vmatpush1.msra.mxu0 0.0
        %3335 = vmatprep.subr.mxu0 0.0
        %3336 = vmatpush1.msra.mxu0 0.0
        %3337 = vmatprep.subr.mxu0 0.0
        %3338 = vmatpush1.msra.mxu0 0.0
        %3339 = vmatprep.subr.mxu0 0.0
        %3340 = vmatpush1.msra.mxu0 0.0
        %3341 = vmatprep.subr.mxu0 0.0
        %3342 = vmatpush1.msra.mxu0 0.0
        %3343 = vmatprep.subr.mxu0 0.0
        %3344 = vmatpush1.msra.mxu0 0.0
        %3345 = vmatprep.subr.mxu0 0.0
        %3346 = vmatpush1.msra.mxu0 0.0
        %3347 = vmatprep.subr.mxu0 0.0
        %3348 = vmatpush1.msra.mxu0 0.0
        %3349 = vmatprep.subr.mxu0 0.0
        %3350 = vmatpush1.msra.mxu0 0.0
        %3351 = vmatprep.subr.mxu0 0.0
        %3352 = vmatpush1.msra.mxu0 0.0
        %3353 = vmatprep.subr.mxu0 0.0
        %3354 = vmatpush1.msra.mxu0 0.0
        %3355 = vmatprep.subr.mxu0 0.0
        %3356 = vmatpush1.msra.mxu0 0.0
        %3357 = vmatprep.subr.mxu0 0.0
        %3358 = vmatpush1.msra.mxu0 0.0
        %3359 = vmatprep.subr.mxu0 0.0
        %3360 = vmatpush1.msra.mxu0 0.0
        %3361 = vmatprep.subr.mxu0 0.0
        %3362 = vmatpush1.msra.mxu0 0.0
        %3363 = vmatprep.subr.mxu0 0.0
        %3364 = vmatpush1.msra.mxu0 0.0
        %3365 = vmatprep.subr.mxu0 0.0
        %3366 = vmatpush1.msra.mxu0 0.0
        %3367 = vmatprep.subr.mxu0 0.0
        %3368 = vmatpush1.msra.mxu0 0.0
        %3369 = vmatprep.subr.mxu0 0.0
        %3370 = vmatpush1.msra.mxu0 0.0
        %3371 = vmatprep.mubr.f32.mxu0 0.0
        %3372 = vmatmul.mubr.f32.gmra.mrb[0].mxu0 %v3302
        %v3373 = vpop.f32.mrb[0].mxu0
        %v3374 = vadd.f32 %v3293, %v3373
        %v3375 = vpop.f32.mrb[0].mxu0
        %3376 = vmatprep.mubr.f32.mxu0 0.0
        %3377 = vmatmul.mubr.f32.gmra.mrb[0].mxu0 %v3305
        %v3378 = vpop.f32.mrb[0].mxu0
        %v3379 = vadd.f32 %v3298, %v3378
        %v3380 = vpop.f32.mrb[0].mxu0
        %3381 = vdwg.mxu0
        %s3382 = scalar_lea.vmem %s12, 1
        %v3383 = vld [vmem:[%s3382] sm:$0x1]
        %v3385 = vlaneseq
        %v3386 = vshrl.u32 %v3385, 7
        %v3387 = vsub.s32 0, %v3386
        %v3388 = vrot.slane %v3383, %v3387
        %v3390 = vadd.f32 %v3374, %v3388
        %v3391 = vadd.f32 %v3379, %v3388
        %v3392 = vadd.f32 %v3390, %v2262
        %v3393 = vadd.f32 %v3391, %v2263
        %s3394 = scalar_lea.vmem %s13, 1
        %v3395 = vld [vmem:[%s3394] sm:$0x1]
        %s3396 = scalar_lea.vmem %s14, 1
        %v3397 = vld [vmem:[%s3396] sm:$0x1]
        %v3398 = vsel %vm787, %v3392, 0.0
        %3399 = vadd.xlane.f32.xlu0 %v3398
        %v3400 = vpop.xlane.xlu0 %3399
        %v3401 = vsel %vm787, %v3393, 0.0
        %3402 = vadd.xlane.f32.xlu0 %v3401
        %v3403 = vpop.xlane.xlu0 %3402
        %v3404 = vmul.f32 %v3400, %v794
        %v3405 = vmul.f32 %v3403, %v794
        %v3406 = vsub.f32 %v3392, %v3404
        %v3407 = vsub.f32 %v3393, %v3405
        %v3408 = vmul.f32 %v3406, %v3406
        %v3409 = vmul.f32 %v3407, %v3407
        %v3410 = vsel %vm787, %v3408, 0.0
        %3411 = vadd.xlane.f32.xlu0 %v3410
        %v3412 = vpop.xlane.xlu0 %3411
        %v3413 = vsel %vm787, %v3409, 0.0
        %3414 = vadd.xlane.f32.xlu0 %v3413
        %v3415 = vpop.xlane.xlu0 %3414
        %v3416 = vmul.f32 %v3412, %v794
        %v3417 = vmul.f32 %v3415, %v794
        %v3418 = vadd.f32 %v3416, 1e-12
        %v3419 = vadd.f32 %v3417, 1e-12
        %v3420 = vrsqrt.pop %v3418
        %v3421 = vrsqrt.pop %v3419
        %v3422 = vmul.f32 %v3406, %v3420
        %v3423 = vmul.f32 %v3407, %v3421
        %v3425 = vlaneseq
        %v3426 = vshrl.u32 %v3425, 7
        %v3427 = vsub.s32 0, %v3426
        %v3428 = vrot.slane %v3395, %v3427
        %v3430 = vmul.f32 %v3422, %v3428
        %v3431 = vmul.f32 %v3423, %v3428
        %v3433 = vlaneseq
        %v3434 = vshrl.u32 %v3433, 7
        %v3435 = vsub.s32 0, %v3434
        %v3436 = vrot.slane %v3397, %v3435
        %v3438 = vadd.f32 %v3430, %v3436
        %v3439 = vadd.f32 %v3431, %v3436
        %s3440 = scalar_lea.vmem %s15, 64
        %v3441 = vld [vmem:[%s3440] sm:$0xff]
        %v3442 = vld [vmem:[%s3440 + $0x8] sm:$0xff]
        %v3443 = vld [vmem:[%s3440 + $0x10] sm:$0xff]
        %v3444 = vld [vmem:[%s3440 + $0x18] sm:$0xff]
        %v3445 = vld [vmem:[%s3440 + $0x20] sm:$0xff]
        %v3446 = vld [vmem:[%s3440 + $0x28] sm:$0xff]
        %v3447 = vld [vmem:[%s3440 + $0x30] sm:$0xff]
        %v3448 = vld [vmem:[%s3440 + $0x38] sm:$0xff]
        %s3449 = scalar_lea.vmem %s16, 1
        %v3450 = vld [vmem:[%s3449] sm:$0x1]
        %v3452 = vlaneseq
        %v3453 = vshrl.u32 %v3452, 7
        %v3454 = vsub.s32 0, %v3453
        %v3455 = vrot.slane %v3450, %v3454
        %v3458 = vsel %vm787, %v3438, 0
        %v3461 = vsel %vm787, %v3439, 0
        %3463 = vmatprep.subr.mxu0 0.0
        %3464 = vmatpush1.msra.mxu0 %v3441
        %3465 = vmatprep.subr.mxu0 0.0
        %3466 = vmatpush1.msra.mxu0 %v3442
        %3467 = vmatprep.subr.mxu0 0.0
        %3468 = vmatpush1.msra.mxu0 %v3443
        %3469 = vmatprep.subr.mxu0 0.0
        %3470 = vmatpush1.msra.mxu0 %v3444
        %3471 = vmatprep.subr.mxu0 0.0
        %3472 = vmatpush1.msra.mxu0 %v3445
        %3473 = vmatprep.subr.mxu0 0.0
        %3474 = vmatpush1.msra.mxu0 %v3446
        %3475 = vmatprep.subr.mxu0 0.0
        %3476 = vmatpush1.msra.mxu0 %v3447
        %3477 = vmatprep.subr.mxu0 0.0
        %3478 = vmatpush1.msra.mxu0 %v3448
        %3479 = vmatprep.subr.mxu0 0.0
        %3480 = vmatpush1.msra.mxu0 0.0
        %3481 = vmatprep.subr.mxu0 0.0
        %3482 = vmatpush1.msra.mxu0 0.0
        %3483 = vmatprep.subr.mxu0 0.0
        %3484 = vmatpush1.msra.mxu0 0.0
        %3485 = vmatprep.subr.mxu0 0.0
        %3486 = vmatpush1.msra.mxu0 0.0
        %3487 = vmatprep.subr.mxu0 0.0
        %3488 = vmatpush1.msra.mxu0 0.0
        %3489 = vmatprep.subr.mxu0 0.0
        %3490 = vmatpush1.msra.mxu0 0.0
        %3491 = vmatprep.subr.mxu0 0.0
        %3492 = vmatpush1.msra.mxu0 0.0
        %3493 = vmatprep.subr.mxu0 0.0
        %3494 = vmatpush1.msra.mxu0 0.0
        %3495 = vmatprep.subr.mxu0 0.0
        %3496 = vmatpush1.msra.mxu0 0.0
        %3497 = vmatprep.subr.mxu0 0.0
        %3498 = vmatpush1.msra.mxu0 0.0
        %3499 = vmatprep.subr.mxu0 0.0
        %3500 = vmatpush1.msra.mxu0 0.0
        %3501 = vmatprep.subr.mxu0 0.0
        %3502 = vmatpush1.msra.mxu0 0.0
        %3503 = vmatprep.subr.mxu0 0.0
        %3504 = vmatpush1.msra.mxu0 0.0
        %3505 = vmatprep.subr.mxu0 0.0
        %3506 = vmatpush1.msra.mxu0 0.0
        %3507 = vmatprep.subr.mxu0 0.0
        %3508 = vmatpush1.msra.mxu0 0.0
        %3509 = vmatprep.subr.mxu0 0.0
        %3510 = vmatpush1.msra.mxu0 0.0
        %3511 = vmatprep.subr.mxu0 0.0
        %3512 = vmatpush1.msra.mxu0 0.0
        %3513 = vmatprep.subr.mxu0 0.0
        %3514 = vmatpush1.msra.mxu0 0.0
        %3515 = vmatprep.subr.mxu0 0.0
        %3516 = vmatpush1.msra.mxu0 0.0
        %3517 = vmatprep.subr.mxu0 0.0
        %3518 = vmatpush1.msra.mxu0 0.0
        %3519 = vmatprep.subr.mxu0 0.0
        %3520 = vmatpush1.msra.mxu0 0.0
        %3521 = vmatprep.subr.mxu0 0.0
        %3522 = vmatpush1.msra.mxu0 0.0
        %3523 = vmatprep.subr.mxu0 0.0
        %3524 = vmatpush1.msra.mxu0 0.0
        %3525 = vmatprep.subr.mxu0 0.0
        %3526 = vmatpush1.msra.mxu0 0.0
        %3527 = vmatprep.mubr.f32.mxu0 0.0
        %3528 = vmatmul.mubr.f32.gmra.mrb[0].mxu0 %v3458
        %v3529 = vpop.f32.mrb[0].mxu0
        %v3530 = vadd.f32 %v3455, %v3529
        %v3531 = vpop.f32.mrb[0].mxu0
        %3532 = vmatprep.mubr.f32.mxu0 0.0
        %3533 = vmatmul.mubr.f32.gmra.mrb[0].mxu0 %v3461
        %v3534 = vpop.f32.mrb[0].mxu0
        %v3535 = vadd.f32 %v3455, %v3534
        %v3536 = vpop.f32.mrb[0].mxu0
        %3537 = vdwg.mxu0
        %v3538 = vmul.f32 %v3530, %v3530
        %v3539 = vmul.f32 %v3535, %v3535
        %v3540 = vmul.f32 %v3530, %v3538
        %v3541 = vmul.f32 %v3535, %v3539
        %v3542 = vmul.f32 %v3540, 0.044715
        %v3543 = vmul.f32 %v3541, 0.044715
        %v3544 = vadd.f32 %v3530, %v3542
        %v3545 = vadd.f32 %v3535, %v3543
        %v3546 = vmul.f32 %v3544, 0.7978846
        %v3547 = vmul.f32 %v3545, 0.7978846
        %v3548 = vtanh.pop %v3546
        %v3549 = vtanh.pop %v3547
        %v3550 = vadd.f32 %v3548, 1.0
        %v3551 = vadd.f32 %v3549, 1.0
        %v3552 = vmul.f32 %v3550, 0.5
        %v3553 = vmul.f32 %v3551, 0.5
        %v3554 = vmul.f32 %v3530, %v3552
        %v3555 = vmul.f32 %v3535, %v3553
        %s3556 = scalar_lea.vmem %s17, 128
        %v3557 = vld [vmem:[%s3556] sm:$0xff]
        %v3558 = vld [vmem:[%s3556 + $0x8] sm:$0xff]
        %v3559 = vld [vmem:[%s3556 + $0x10] sm:$0xff]
        %v3560 = vld [vmem:[%s3556 + $0x18] sm:$0xff]
        %v3561 = vld [vmem:[%s3556 + $0x20] sm:$0xff]
        %v3562 = vld [vmem:[%s3556 + $0x28] sm:$0xff]
        %v3563 = vld [vmem:[%s3556 + $0x30] sm:$0xff]
        %v3564 = vld [vmem:[%s3556 + $0x38] sm:$0xff]
        %v3565 = vld [vmem:[%s3556 + $0x40] sm:$0xff]
        %v3566 = vld [vmem:[%s3556 + $0x48] sm:$0xff]
        %v3567 = vld [vmem:[%s3556 + $0x50] sm:$0xff]
        %v3568 = vld [vmem:[%s3556 + $0x58] sm:$0xff]
        %v3569 = vld [vmem:[%s3556 + $0x60] sm:$0xff]
        %v3570 = vld [vmem:[%s3556 + $0x68] sm:$0xff]
        %v3571 = vld [vmem:[%s3556 + $0x70] sm:$0xff]
        %v3572 = vld [vmem:[%s3556 + $0x78] sm:$0xff]
        %s3573 = scalar_lea.vmem %s18, 1
        %v3574 = vld [vmem:[%s3573] sm:$0x1]
        %v3576 = vlaneseq
        %v3577 = vshrl.u32 %v3576, 7
        %v3578 = vsub.s32 0, %v3577
        %v3579 = vrot.slane %v3574, %v3578
        %3581 = vmatprep.subr.mxu0 0.0
        %3582 = vmatpush1.msra.mxu0 %v3557
        %3583 = vmatprep.subr.mxu0 0.0
        %3584 = vmatpush1.msra.mxu0 %v3558
        %3585 = vmatprep.subr.mxu0 0.0
        %3586 = vmatpush1.msra.mxu0 %v3559
        %3587 = vmatprep.subr.mxu0 0.0
        %3588 = vmatpush1.msra.mxu0 %v3560
        %3589 = vmatprep.subr.mxu0 0.0
        %3590 = vmatpush1.msra.mxu0 %v3561
        %3591 = vmatprep.subr.mxu0 0.0
        %3592 = vmatpush1.msra.mxu0 %v3562
        %3593 = vmatprep.subr.mxu0 0.0
        %3594 = vmatpush1.msra.mxu0 %v3563
        %3595 = vmatprep.subr.mxu0 0.0
        %3596 = vmatpush1.msra.mxu0 %v3564
        %3597 = vmatprep.subr.mxu0 0.0
        %3598 = vmatpush1.msra.mxu0 %v3565
        %3599 = vmatprep.subr.mxu0 0.0
        %3600 = vmatpush1.msra.mxu0 %v3566
        %3601 = vmatprep.subr.mxu0 0.0
        %3602 = vmatpush1.msra.mxu0 %v3567
        %3603 = vmatprep.subr.mxu0 0.0
        %3604 = vmatpush1.msra.mxu0 %v3568
        %3605 = vmatprep.subr.mxu0 0.0
        %3606 = vmatpush1.msra.mxu0 %v3569
        %3607 = vmatprep.subr.mxu0 0.0
        %3608 = vmatpush1.msra.mxu0 %v3570
        %3609 = vmatprep.subr.mxu0 0.0
        %3610 = vmatpush1.msra.mxu0 %v3571
        %3611 = vmatprep.subr.mxu0 0.0
        %3612 = vmatpush1.msra.mxu0 %v3572
        %3613 = vmatprep.subr.mxu0 0.0
        %3614 = vmatpush1.msra.mxu0 0.0
        %3615 = vmatprep.subr.mxu0 0.0
        %3616 = vmatpush1.msra.mxu0 0.0
        %3617 = vmatprep.subr.mxu0 0.0
        %3618 = vmatpush1.msra.mxu0 0.0
        %3619 = vmatprep.subr.mxu0 0.0
        %3620 = vmatpush1.msra.mxu0 0.0
        %3621 = vmatprep.subr.mxu0 0.0
        %3622 = vmatpush1.msra.mxu0 0.0
        %3623 = vmatprep.subr.mxu0 0.0
        %3624 = vmatpush1.msra.mxu0 0.0
        %3625 = vmatprep.subr.mxu0 0.0
        %3626 = vmatpush1.msra.mxu0 0.0
        %3627 = vmatprep.subr.mxu0 0.0
        %3628 = vmatpush1.msra.mxu0 0.0
        %3629 = vmatprep.subr.mxu0 0.0
        %3630 = vmatpush1.msra.mxu0 0.0
        %3631 = vmatprep.subr.mxu0 0.0
        %3632 = vmatpush1.msra.mxu0 0.0
        %3633 = vmatprep.subr.mxu0 0.0
        %3634 = vmatpush1.msra.mxu0 0.0
        %3635 = vmatprep.subr.mxu0 0.0
        %3636 = vmatpush1.msra.mxu0 0.0
        %3637 = vmatprep.subr.mxu0 0.0
        %3638 = vmatpush1.msra.mxu0 0.0
        %3639 = vmatprep.subr.mxu0 0.0
        %3640 = vmatpush1.msra.mxu0 0.0
        %3641 = vmatprep.subr.mxu0 0.0
        %3642 = vmatpush1.msra.mxu0 0.0
        %3643 = vmatprep.subr.mxu0 0.0
        %3644 = vmatpush1.msra.mxu0 0.0
        %3645 = vmatprep.mubr.f32.mxu0 0.0
        %3646 = vmatmul.mubr.f32.gmra.mrb[0].mxu0 %v3554
        %v3647 = vpop.f32.mrb[0].mxu0
        %v3648 = vadd.f32 %v3579, %v3647
        %v3649 = vpop.f32.mrb[0].mxu0
        %3650 = vmatprep.mubr.f32.mxu0 0.0
        %3651 = vmatmul.mubr.f32.gmra.mrb[0].mxu0 %v3555
        %v3652 = vpop.f32.mrb[0].mxu0
        %v3653 = vadd.f32 %v3579, %v3652
        %v3654 = vpop.f32.mrb[0].mxu0
        %3655 = vdwg.mxu0
        %v3656 = vadd.f32 %v3648, %v3438
        %v3657 = vadd.f32 %v3653, %v3439
        %s3658 = scalar_lea.vmem %s19, 1
        %v3659 = vld [vmem:[%s3658] sm:$0x1]
        %s3660 = scalar_lea.vmem %s20, 1
        %v3661 = vld [vmem:[%s3660] sm:$0x1]
        %v3662 = vsel %vm787, %v3656, 0.0
        %3663 = vadd.xlane.f32.xlu0 %v3662
        %v3664 = vpop.xlane.xlu0 %3663
        %v3665 = vsel %vm787, %v3657, 0.0
        %3666 = vadd.xlane.f32.xlu0 %v3665
        %v3667 = vpop.xlane.xlu0 %3666
        %v3668 = vmul.f32 %v3664, %v794
        %v3669 = vmul.f32 %v3667, %v794
        %v3670 = vsub.f32 %v3656, %v3668
        %v3671 = vsub.f32 %v3657, %v3669
        %v3672 = vmul.f32 %v3670, %v3670
        %v3673 = vmul.f32 %v3671, %v3671
        %v3674 = vsel %vm787, %v3672, 0.0
        %3675 = vadd.xlane.f32.xlu0 %v3674
        %v3676 = vpop.xlane.xlu0 %3675
        %v3677 = vsel %vm787, %v3673, 0.0
        %3678 = vadd.xlane.f32.xlu0 %v3677
        %v3679 = vpop.xlane.xlu0 %3678
        %v3680 = vmul.f32 %v3676, %v794
        %v3681 = vmul.f32 %v3679, %v794
        %v3682 = vadd.f32 %v3680, 1e-12
        %v3683 = vadd.f32 %v3681, 1e-12
        %v3684 = vrsqrt.pop %v3682
        %v3685 = vrsqrt.pop %v3683
        %v3686 = vmul.f32 %v3670, %v3684
        %v3687 = vmul.f32 %v3671, %v3685
        %v3689 = vlaneseq
        %v3690 = vshrl.u32 %v3689, 7
        %v3691 = vsub.s32 0, %v3690
        %v3692 = vrot.slane %v3659, %v3691
        %v3694 = vmul.f32 %v3686, %v3692
        %v3695 = vmul.f32 %v3687, %v3692
        %v3697 = vlaneseq
        %v3698 = vshrl.u32 %v3697, 7
        %v3699 = vsub.s32 0, %v3698
        %v3700 = vrot.slane %v3661, %v3699
        %v3702 = vadd.f32 %v3694, %v3700
        %v3703 = vadd.f32 %v3695, %v3700
        %v3704 = vld [vmem:[%s21] sm:$0xff]
        %v3705 = vld [vmem:[%s21 + $0x8] sm:$0xff]
        %v3706 = vld [vmem:[%s21 + $0x10] sm:$0xff]
        %v3707 = vld [vmem:[%s21 + $0x18] sm:$0xff]
        %v3708 = vld [vmem:[%s21 + $0x20] sm:$0xff]
        %v3709 = vld [vmem:[%s21 + $0x28] sm:$0xff]
        %v3710 = vld [vmem:[%s21 + $0x30] sm:$0xff]
        %v3711 = vld [vmem:[%s21 + $0x38] sm:$0xff]
        %v3712 = vld [vmem:[%s22] sm:$0x1]
        %v3714 = vlaneseq
        %v3715 = vshrl.u32 %v3714, 7
        %v3716 = vsub.s32 0, %v3715
        %v3717 = vrot.slane %v3712, %v3716
        %v3720 = vsel %vm787, %v3702, 0
        %v3723 = vsel %vm787, %v3703, 0
        %3725 = vmatprep.subr.mxu0 0.0
        %3726 = vmatpush1.msra.mxu0 %v3704
        %3727 = vmatprep.subr.mxu0 0.0
        %3728 = vmatpush1.msra.mxu0 %v3705
        %3729 = vmatprep.subr.mxu0 0.0
        %3730 = vmatpush1.msra.mxu0 %v3706
        %3731 = vmatprep.subr.mxu0 0.0
        %3732 = vmatpush1.msra.mxu0 %v3707
        %3733 = vmatprep.subr.mxu0 0.0
        %3734 = vmatpush1.msra.mxu0 %v3708
        %3735 = vmatprep.subr.mxu0 0.0
        %3736 = vmatpush1.msra.mxu0 %v3709
        %3737 = vmatprep.subr.mxu0 0.0
        %3738 = vmatpush1.msra.mxu0 %v3710
        %3739 = vmatprep.subr.mxu0 0.0
        %3740 = vmatpush1.msra.mxu0 %v3711
        %3741 = vmatprep.subr.mxu0 0.0
        %3742 = vmatpush1.msra.mxu0 0.0
        %3743 = vmatprep.subr.mxu0 0.0
        %3744 = vmatpush1.msra.mxu0 0.0
        %3745 = vmatprep.subr.mxu0 0.0
        %3746 = vmatpush1.msra.mxu0 0.0
        %3747 = vmatprep.subr.mxu0 0.0
        %3748 = vmatpush1.msra.mxu0 0.0
        %3749 = vmatprep.subr.mxu0 0.0
        %3750 = vmatpush1.msra.mxu0 0.0
        %3751 = vmatprep.subr.mxu0 0.0
        %3752 = vmatpush1.msra.mxu0 0.0
        %3753 = vmatprep.subr.mxu0 0.0
        %3754 = vmatpush1.msra.mxu0 0.0
        %3755 = vmatprep.subr.mxu0 0.0
        %3756 = vmatpush1.msra.mxu0 0.0
        %3757 = vmatprep.subr.mxu0 0.0
        %3758 = vmatpush1.msra.mxu0 0.0
        %3759 = vmatprep.subr.mxu0 0.0
        %3760 = vmatpush1.msra.mxu0 0.0
        %3761 = vmatprep.subr.mxu0 0.0
        %3762 = vmatpush1.msra.mxu0 0.0
        %3763 = vmatprep.subr.mxu0 0.0
        %3764 = vmatpush1.msra.mxu0 0.0
        %3765 = vmatprep.subr.mxu0 0.0
        %3766 = vmatpush1.msra.mxu0 0.0
        %3767 = vmatprep.subr.mxu0 0.0
        %3768 = vmatpush1.msra.mxu0 0.0
        %3769 = vmatprep.subr.mxu0 0.0
        %3770 = vmatpush1.msra.mxu0 0.0
        %3771 = vmatprep.subr.mxu0 0.0
        %3772 = vmatpush1.msra.mxu0 0.0
        %3773 = vmatprep.subr.mxu0 0.0
        %3774 = vmatpush1.msra.mxu0 0.0
        %3775 = vmatprep.subr.mxu0 0.0
        %3776 = vmatpush1.msra.mxu0 0.0
        %3777 = vmatprep.subr.mxu0 0.0
        %3778 = vmatpush1.msra.mxu0 0.0
        %3779 = vmatprep.subr.mxu0 0.0
        %3780 = vmatpush1.msra.mxu0 0.0
        %3781 = vmatprep.subr.mxu0 0.0
        %3782 = vmatpush1.msra.mxu0 0.0
        %3783 = vmatprep.subr.mxu0 0.0
        %3784 = vmatpush1.msra.mxu0 0.0
        %3785 = vmatprep.subr.mxu0 0.0
        %3786 = vmatpush1.msra.mxu0 0.0
        %3787 = vmatprep.subr.mxu0 0.0
        %3788 = vmatpush1.msra.mxu0 0.0
        %3789 = vmatprep.mubr.f32.mxu0 0.0
        %3790 = vmatmul.mubr.f32.gmra.mrb[0].mxu0 %v3720
        %v3791 = vpop.f32.mrb[0].mxu0
        %v3792 = vadd.f32 %v3717, %v3791
        %v3793 = vpop.f32.mrb[0].mxu0
        %3794 = vmatprep.mubr.f32.mxu0 0.0
        %3795 = vmatmul.mubr.f32.gmra.mrb[0].mxu0 %v3723
        %v3796 = vpop.f32.mrb[0].mxu0
        %v3797 = vadd.f32 %v3717, %v3796
        %v3798 = vpop.f32.mrb[0].mxu0
        %3799 = vdwg.mxu0
        %v3800 = vld [vmem:[%s25] sm:$0xff]
        %v3801 = vlaneseq
        %v3802 = vand.u32 %v3801, 127
        %v3803 = vld [vmem:[%s23] sm:$0x1]
        %v3804 = vadd.f32 %v3803, %v3792
        %v3806 = vlaneseq
        %v3807 = vshrl.u32 %v3806, 7
        %v3808 = vsub.s32 0, %v3807
        %v3809 = vrot.slane %v3804, %v3808
        %v3811 = vadd.f32 %v3809, %v3800
        %vm3812 = vcmask 64512
        %v3813 = vsel %vm3812, %v3811, -inf
        %3814 = vmax.xlane.f32.xlu0 %v3813
        %v3815 = vpop.xlane.xlu0 %3814
        %vm3816 = vcmp.ge.f32.partialorder %v3811, %v3815
        %v3817 = vsel %vm3816, %v3802, 8
        %v3818 = vsel %vm3812, %v3817, 2147483647
        %v3819 = vand.u32 %v3818, 65535
        %v3820 = vshra.s32 %v3818, 16
        %v3821 = vcvt.s32.f32 %v3819
        %v3822 = vcvt.s32.f32 %v3820
        %3823 = vmin.xlane.f32.xlu0 %v3822
        %v3824 = vpop.xlane.xlu0 %3823
        %vm3825 = vcmp.eq.f32.partialorder %v3822, %v3824
        %v3826 = vsel %vm3825, %v3821, inf
        %3827 = vmin.xlane.f32.xlu0 %v3826
        %v3828 = vpop.xlane.xlu0 %3827
        %v3829 = vcvt.f32.s32 %v3828
        %v3830 = vcvt.f32.s32 %v3824
        %v3831 = vshll.u32 %v3830, 16
        %v3832 = vadd.s32 %v3831, %v3829
        %s3833 = smul.u32 %s46, 128
        %s3834 = sadd.s32 %s3833, 1
        %s3835 = sld [smem:[#allocation3 + %s3834]]
        %p3836 = scmp.gt.s32.totalorder %s3835, 0
        %s3837 = scalar_select %p3836, 1, 0
        %s3838 = scvt.s32.f32 %s3837
        %v3840 = vlaneseq
        %v3841 = vshrl.u32 %v3840, 7
        %v3842 = vsub.s32 1, %v3841
        %v3843 = vrot.slane %v3792, %v3842
        %3845 = vbcast.lane.b32.xlu0 %v3843, 256
        %v3846 = vpop.permute.xlu0 %3845
        %v3848 = vadd.f32 %v3815, %v3846
        %3850 = vbcast.lane.b32.xlu0 %v3809, 256
        %v3851 = vpop.permute.xlu0 %3850
        %v3853 = vsub.f32 %v3848, %v3851
        %v3854 = vstv %s3838
        %v3855 = vmul.f32 %v3854, %v3853
        %v3857 = vcombine.high %v3855, %v3855
        %v3859 = vunpack.c.l.s4 1966171168
        %v3860 = vunpack.c.0.s8 %v3859
        %v3861 = vlaneseq
        %v3862 = vshrl.u32 %v3861, 7
        %v3863 = vsub.s32 %v3860, %v3862
        %v3864 = vrot.slane %v3855, %v3863
        %v3866 = vunpack.c.l.s4 1966171168
        %v3867 = vunpack.c.0.s8 %v3866
        %v3868 = vlaneseq
        %v3869 = vshrl.u32 %v3868, 7
        %v3870 = vsub.s32 %v3867, %v3869
        %v3871 = vrot.slane %v3857, %v3870
        %v3872 = vcombine.high %v3864, %v3864
        %v3873 = vcombine.high %v3871, %v3871
        %v3875 = vunpack.c.l.s4 1966171168
        %v3876 = vunpack.c.0.s8 %v3875
        %v3877 = vlaneseq
        %v3878 = vshrl.u32 %v3877, 7
        %v3879 = vsub.s32 %v3876, %v3878
        %v3880 = vrot.slane %v3864, %v3879
        %v3882 = vunpack.c.l.s4 1966171168
        %v3883 = vunpack.c.0.s8 %v3882
        %v3884 = vlaneseq
        %v3885 = vshrl.u32 %v3884, 7
        %v3886 = vsub.s32 %v3883, %v3885
        %v3887 = vrot.slane %v3871, %v3886
        %v3889 = vunpack.c.l.s4 1966171168
        %v3890 = vunpack.c.0.s8 %v3889
        %v3891 = vlaneseq
        %v3892 = vshrl.u32 %v3891, 7
        %v3893 = vsub.s32 %v3890, %v3892
        %v3894 = vrot.slane %v3872, %v3893
        %v3896 = vunpack.c.l.s4 1966171168
        %v3897 = vunpack.c.0.s8 %v3896
        %v3898 = vlaneseq
        %v3899 = vshrl.u32 %v3898, 7
        %v3900 = vsub.s32 %v3897, %v3899
        %v3901 = vrot.slane %v3873, %v3900
        %v3902 = vcombine.high %v3880, %v3880
        %v3903 = vcombine.high %v3887, %v3887
        %v3904 = vcombine.high %v3894, %v3894
        %v3905 = vcombine.high %v3901, %v3901
        %v3906 = vcombine.low %v3880, %v3894
        %v3907 = vcombine.low %v3902, %v3904
        %v3908 = vcombine.low %v3887, %v3901
        %v3909 = vcombine.low %v3903, %v3905
        %v3911 = vunpack.c.l.s4 1966171168
        %v3912 = vunpack.c.0.s8 %v3911
        %v3913 = vlaneseq
        %v3914 = vshrl.u32 %v3913, 7
        %v3915 = vsub.s32 %v3912, %v3914
        %v3916 = vrot.slane %v3906, %v3915
        %v3918 = vunpack.c.l.s4 1966171168
        %v3919 = vunpack.c.0.s8 %v3918
        %v3920 = vlaneseq
        %v3921 = vshrl.u32 %v3920, 7
        %v3922 = vsub.s32 %v3919, %v3921
        %v3923 = vrot.slane %v3907, %v3922
        %v3925 = vunpack.c.l.s4 1966171168
        %v3926 = vunpack.c.0.s8 %v3925
        %v3927 = vlaneseq
        %v3928 = vshrl.u32 %v3927, 7
        %v3929 = vsub.s32 %v3926, %v3928
        %v3930 = vrot.slane %v3908, %v3929
        %v3932 = vunpack.c.l.s4 1966171168
        %v3933 = vunpack.c.0.s8 %v3932
        %v3934 = vlaneseq
        %v3935 = vshrl.u32 %v3934, 7
        %v3936 = vsub.s32 %v3933, %v3935
        %v3937 = vrot.slane %v3909, %v3936
        %v3938 = vcombine.low %v3916, %v3923
        %v3939 = vcombine.low %v3930, %v3937
        %v3941 = vunpack.c.l.s4 1966171168
        %v3942 = vunpack.c.0.s8 %v3941
        %v3943 = vlaneseq
        %v3944 = vshrl.u32 %v3943, 7
        %v3945 = vsub.s32 %v3942, %v3944
        %v3946 = vrot.slane %v3938, %v3945
        %v3948 = vunpack.c.l.s4 1966171168
        %v3949 = vunpack.c.0.s8 %v3948
        %v3950 = vlaneseq
        %v3951 = vshrl.u32 %v3950, 7
        %v3952 = vsub.s32 %v3949, %v3951
        %v3953 = vrot.slane %v3939, %v3952
        %v3954 = vcombine.low %v3946, %v3953
        %3955 = vset.pattern.permute.xlu0 0
        %3956 = vperm.xlu0 %3955, %v3954
        %v3957 = vpop.permute.xlu0 %3956
        %v3958 = vlaneseq
        %v3959 = vshrl.u32 %v3958, 7
        %v3960 = vsub.s32 %v3802, %v3959
        %v3961 = vrot.slane %v3957, %v3960
        %v3963 = vunpack.c.l.s4 1966171168
        %v3964 = vunpack.c.0.s8 %v3963
        %v3965 = vlaneseq
        %v3966 = vshrl.u32 %v3965, 7
        %v3967 = vsub.s32 %v3964, %v3966
        %v3968 = vrot.slane %v3961, %v3967
        %v3970 = vunpack.c.l.s4 1966171168
        %v3971 = vunpack.c.0.s8 %v3970
        %v3972 = vlaneseq
        %v3973 = vshrl.u32 %v3972, 7
        %v3974 = vsub.s32 %v3971, %v3973
        %v3975 = vrot.slane %v3968, %v3974
        %v3977 = vadd.f32 %v3804, %v3975
        %v3979 = vlaneseq
        %v3980 = vshrl.u32 %v3979, 7
        %v3981 = vsub.s32 0, %v3980
        %v3982 = vrot.slane %v3977, %v3981
        %v3984 = vadd.f32 %v3982, %v3800
        %v3985 = vsel %vm3812, %v3984, -inf
        %3986 = vmax.xlane.f32.xlu0 %v3985
        %v3987 = vpop.xlane.xlu0 %3986
        %vm3988 = vcmp.ge.f32.partialorder %v3984, %v3987
        %v3989 = vsel %vm3988, %v3802, 8
        %v3990 = vsel %vm3812, %v3989, 2147483647
        %v3991 = vand.u32 %v3990, 65535
        %v3992 = vshra.s32 %v3990, 16
        %v3993 = vcvt.s32.f32 %v3991
        %v3994 = vcvt.s32.f32 %v3992
        %3995 = vmin.xlane.f32.xlu0 %v3994
        %v3996 = vpop.xlane.xlu0 %3995
        %vm3997 = vcmp.eq.f32.partialorder %v3994, %v3996
        %v3998 = vsel %vm3997, %v3993, inf
        %3999 = vmin.xlane.f32.xlu0 %v3998
        %v4000 = vpop.xlane.xlu0 %3999
        %v4001 = vcvt.f32.s32 %v4000
        %v4002 = vcvt.f32.s32 %v3996
        %v4003 = vshll.u32 %v4002, 16
        %v4004 = vadd.s32 %v4003, %v4001
        %s4005 = sadd.s32 %s3833, 2
        %s4006 = sld [smem:[#allocation3 + %s4005]]
        %p4007 = scmp.gt.s32.totalorder %s4006, 0
        %s4008 = scalar_select %p4007, 1, 0
        %s4009 = scvt.s32.f32 %s4008
        %v4010 = vlaneseq
        %v4011 = vshrl.u32 %v4010, 7
        %v4012 = vsub.s32 2, %v4011
        %v4013 = vrot.slane %v3792, %v4012
        %4015 = vbcast.lane.b32.xlu0 %v4013, 256
        %v4016 = vpop.permute.xlu0 %4015
        %v4018 = vadd.f32 %v3987, %v4016
        %4020 = vbcast.lane.b32.xlu0 %v3982, 256
        %v4021 = vpop.permute.xlu0 %4020
        %v4023 = vsub.f32 %v4018, %v4021
        %v4024 = vstv %s4009
        %v4025 = vmul.f32 %v4024, %v4023
        %v4027 = vcombine.high %v4025, %v4025
        %v4029 = vunpack.c.l.s4 1966171168
        %v4030 = vunpack.c.0.s8 %v4029
        %v4031 = vlaneseq
        %v4032 = vshrl.u32 %v4031, 7
        %v4033 = vsub.s32 %v4030, %v4032
        %v4034 = vrot.slane %v4025, %v4033
        %v4036 = vunpack.c.l.s4 1966171168
        %v4037 = vunpack.c.0.s8 %v4036
        %v4038 = vlaneseq
        %v4039 = vshrl.u32 %v4038, 7
        %v4040 = vsub.s32 %v4037, %v4039
        %v4041 = vrot.slane %v4027, %v4040
        %v4042 = vcombine.high %v4034, %v4034
        %v4043 = vcombine.high %v4041, %v4041
        %v4045 = vunpack.c.l.s4 1966171168
        %v4046 = vunpack.c.0.s8 %v4045
        %v4047 = vlaneseq
        %v4048 = vshrl.u32 %v4047, 7
        %v4049 = vsub.s32 %v4046, %v4048
        %v4050 = vrot.slane %v4034, %v4049
        %v4052 = vunpack.c.l.s4 1966171168
        %v4053 = vunpack.c.0.s8 %v4052
        %v4054 = vlaneseq
        %v4055 = vshrl.u32 %v4054, 7
        %v4056 = vsub.s32 %v4053, %v4055
        %v4057 = vrot.slane %v4041, %v4056
        %v4059 = vunpack.c.l.s4 1966171168
        %v4060 = vunpack.c.0.s8 %v4059
        %v4061 = vlaneseq
        %v4062 = vshrl.u32 %v4061, 7
        %v4063 = vsub.s32 %v4060, %v4062
        %v4064 = vrot.slane %v4042, %v4063
        %v4066 = vunpack.c.l.s4 1966171168
        %v4067 = vunpack.c.0.s8 %v4066
        %v4068 = vlaneseq
        %v4069 = vshrl.u32 %v4068, 7
        %v4070 = vsub.s32 %v4067, %v4069
        %v4071 = vrot.slane %v4043, %v4070
        %v4072 = vcombine.high %v4050, %v4050
        %v4073 = vcombine.high %v4057, %v4057
        %v4074 = vcombine.high %v4064, %v4064
        %v4075 = vcombine.high %v4071, %v4071
        %v4076 = vcombine.low %v4050, %v4064
        %v4077 = vcombine.low %v4072, %v4074
        %v4078 = vcombine.low %v4057, %v4071
        %v4079 = vcombine.low %v4073, %v4075
        %v4081 = vunpack.c.l.s4 1966171168
        %v4082 = vunpack.c.0.s8 %v4081
        %v4083 = vlaneseq
        %v4084 = vshrl.u32 %v4083, 7
        %v4085 = vsub.s32 %v4082, %v4084
        %v4086 = vrot.slane %v4076, %v4085
        %v4088 = vunpack.c.l.s4 1966171168
        %v4089 = vunpack.c.0.s8 %v4088
        %v4090 = vlaneseq
        %v4091 = vshrl.u32 %v4090, 7
        %v4092 = vsub.s32 %v4089, %v4091
        %v4093 = vrot.slane %v4077, %v4092
        %v4095 = vunpack.c.l.s4 1966171168
        %v4096 = vunpack.c.0.s8 %v4095
        %v4097 = vlaneseq
        %v4098 = vshrl.u32 %v4097, 7
        %v4099 = vsub.s32 %v4096, %v4098
        %v4100 = vrot.slane %v4078, %v4099
        %v4102 = vunpack.c.l.s4 1966171168
        %v4103 = vunpack.c.0.s8 %v4102
        %v4104 = vlaneseq
        %v4105 = vshrl.u32 %v4104, 7
        %v4106 = vsub.s32 %v4103, %v4105
        %v4107 = vrot.slane %v4079, %v4106
        %v4108 = vcombine.low %v4086, %v4093
        %v4109 = vcombine.low %v4100, %v4107
        %v4111 = vunpack.c.l.s4 1966171168
        %v4112 = vunpack.c.0.s8 %v4111
        %v4113 = vlaneseq
        %v4114 = vshrl.u32 %v4113, 7
        %v4115 = vsub.s32 %v4112, %v4114
        %v4116 = vrot.slane %v4108, %v4115
        %v4118 = vunpack.c.l.s4 1966171168
        %v4119 = vunpack.c.0.s8 %v4118
        %v4120 = vlaneseq
        %v4121 = vshrl.u32 %v4120, 7
        %v4122 = vsub.s32 %v4119, %v4121
        %v4123 = vrot.slane %v4109, %v4122
        %v4124 = vcombine.low %v4116, %v4123
        %4125 = vset.pattern.permute.xlu0 0
        %4126 = vperm.xlu0 %4125, %v4124
        %v4127 = vpop.permute.xlu0 %4126
        %v4128 = vlaneseq
        %v4129 = vshrl.u32 %v4128, 7
        %v4130 = vsub.s32 %v3802, %v4129
        %v4131 = vrot.slane %v4127, %v4130
        %v4133 = vunpack.c.l.s4 1966171168
        %v4134 = vunpack.c.0.s8 %v4133
        %v4135 = vlaneseq
        %v4136 = vshrl.u32 %v4135, 7
        %v4137 = vsub.s32 %v4134, %v4136
        %v4138 = vrot.slane %v4131, %v4137
        %v4140 = vunpack.c.l.s4 1966171168
        %v4141 = vunpack.c.0.s8 %v4140
        %v4142 = vlaneseq
        %v4143 = vshrl.u32 %v4142, 7
        %v4144 = vsub.s32 %v4141, %v4143
        %v4145 = vrot.slane %v4138, %v4144
        %v4147 = vadd.f32 %v3977, %v4145
        %v4149 = vlaneseq
        %v4150 = vshrl.u32 %v4149, 7
        %v4151 = vsub.s32 0, %v4150
        %v4152 = vrot.slane %v4147, %v4151
        %v4154 = vadd.f32 %v4152, %v3800
        %v4155 = vsel %vm3812, %v4154, -inf
        %4156 = vmax.xlane.f32.xlu0 %v4155
        %v4157 = vpop.xlane.xlu0 %4156
        %vm4158 = vcmp.ge.f32.partialorder %v4154, %v4157
        %v4159 = vsel %vm4158, %v3802, 8
        %v4160 = vsel %vm3812, %v4159, 2147483647
        %v4161 = vand.u32 %v4160, 65535
        %v4162 = vshra.s32 %v4160, 16
        %v4163 = vcvt.s32.f32 %v4161
        %v4164 = vcvt.s32.f32 %v4162
        %4165 = vmin.xlane.f32.xlu0 %v4164
        %v4166 = vpop.xlane.xlu0 %4165
        %vm4167 = vcmp.eq.f32.partialorder %v4164, %v4166
        %v4168 = vsel %vm4167, %v4163, inf
        %4169 = vmin.xlane.f32.xlu0 %v4168
        %v4170 = vpop.xlane.xlu0 %4169
        %v4171 = vcvt.f32.s32 %v4170
        %v4172 = vcvt.f32.s32 %v4166
        %v4173 = vshll.u32 %v4172, 16
        %v4174 = vadd.s32 %v4173, %v4171
        %s4175 = sadd.s32 %s3833, 3
        %s4176 = sld [smem:[#allocation3 + %s4175]]
        %p4177 = scmp.gt.s32.totalorder %s4176, 0
        %s4178 = scalar_select %p4177, 1, 0
        %s4179 = scvt.s32.f32 %s4178
        %v4180 = vlaneseq
        %v4181 = vshrl.u32 %v4180, 7
        %v4182 = vsub.s32 3, %v4181
        %v4183 = vrot.slane %v3792, %v4182
        %4185 = vbcast.lane.b32.xlu0 %v4183, 256
        %v4186 = vpop.permute.xlu0 %4185
        %v4188 = vadd.f32 %v4157, %v4186
        %4190 = vbcast.lane.b32.xlu0 %v4152, 256
        %v4191 = vpop.permute.xlu0 %4190
        %v4193 = vsub.f32 %v4188, %v4191
        %v4194 = vstv %s4179
        %v4195 = vmul.f32 %v4194, %v4193
        %v4197 = vcombine.high %v4195, %v4195
        %v4199 = vunpack.c.l.s4 1966171168
        %v4200 = vunpack.c.0.s8 %v4199
        %v4201 = vlaneseq
        %v4202 = vshrl.u32 %v4201, 7
        %v4203 = vsub.s32 %v4200, %v4202
        %v4204 = vrot.slane %v4195, %v4203
        %v4206 = vunpack.c.l.s4 1966171168
        %v4207 = vunpack.c.0.s8 %v4206
        %v4208 = vlaneseq
        %v4209 = vshrl.u32 %v4208, 7
        %v4210 = vsub.s32 %v4207, %v4209
        %v4211 = vrot.slane %v4197, %v4210
        %v4212 = vcombine.high %v4204, %v4204
        %v4213 = vcombine.high %v4211, %v4211
        %v4215 = vunpack.c.l.s4 1966171168
        %v4216 = vunpack.c.0.s8 %v4215
        %v4217 = vlaneseq
        %v4218 = vshrl.u32 %v4217, 7
        %v4219 = vsub.s32 %v4216, %v4218
        %v4220 = vrot.slane %v4204, %v4219
        %v4222 = vunpack.c.l.s4 1966171168
        %v4223 = vunpack.c.0.s8 %v4222
        %v4224 = vlaneseq
        %v4225 = vshrl.u32 %v4224, 7
        %v4226 = vsub.s32 %v4223, %v4225
        %v4227 = vrot.slane %v4211, %v4226
        %v4229 = vunpack.c.l.s4 1966171168
        %v4230 = vunpack.c.0.s8 %v4229
        %v4231 = vlaneseq
        %v4232 = vshrl.u32 %v4231, 7
        %v4233 = vsub.s32 %v4230, %v4232
        %v4234 = vrot.slane %v4212, %v4233
        %v4236 = vunpack.c.l.s4 1966171168
        %v4237 = vunpack.c.0.s8 %v4236
        %v4238 = vlaneseq
        %v4239 = vshrl.u32 %v4238, 7
        %v4240 = vsub.s32 %v4237, %v4239
        %v4241 = vrot.slane %v4213, %v4240
        %v4242 = vcombine.high %v4220, %v4220
        %v4243 = vcombine.high %v4227, %v4227
        %v4244 = vcombine.high %v4234, %v4234
        %v4245 = vcombine.high %v4241, %v4241
        %v4246 = vcombine.low %v4220, %v4234
        %v4247 = vcombine.low %v4242, %v4244
        %v4248 = vcombine.low %v4227, %v4241
        %v4249 = vcombine.low %v4243, %v4245
        %v4251 = vunpack.c.l.s4 1966171168
        %v4252 = vunpack.c.0.s8 %v4251
        %v4253 = vlaneseq
        %v4254 = vshrl.u32 %v4253, 7
        %v4255 = vsub.s32 %v4252, %v4254
        %v4256 = vrot.slane %v4246, %v4255
        %v4258 = vunpack.c.l.s4 1966171168
        %v4259 = vunpack.c.0.s8 %v4258
        %v4260 = vlaneseq
        %v4261 = vshrl.u32 %v4260, 7
        %v4262 = vsub.s32 %v4259, %v4261
        %v4263 = vrot.slane %v4247, %v4262
        %v4265 = vunpack.c.l.s4 1966171168
        %v4266 = vunpack.c.0.s8 %v4265
        %v4267 = vlaneseq
        %v4268 = vshrl.u32 %v4267, 7
        %v4269 = vsub.s32 %v4266, %v4268
        %v4270 = vrot.slane %v4248, %v4269
        %v4272 = vunpack.c.l.s4 1966171168
        %v4273 = vunpack.c.0.s8 %v4272
        %v4274 = vlaneseq
        %v4275 = vshrl.u32 %v4274, 7
        %v4276 = vsub.s32 %v4273, %v4275
        %v4277 = vrot.slane %v4249, %v4276
        %v4278 = vcombine.low %v4256, %v4263
        %v4279 = vcombine.low %v4270, %v4277
        %v4281 = vunpack.c.l.s4 1966171168
        %v4282 = vunpack.c.0.s8 %v4281
        %v4283 = vlaneseq
        %v4284 = vshrl.u32 %v4283, 7
        %v4285 = vsub.s32 %v4282, %v4284
        %v4286 = vrot.slane %v4278, %v4285
        %v4288 = vunpack.c.l.s4 1966171168
        %v4289 = vunpack.c.0.s8 %v4288
        %v4290 = vlaneseq
        %v4291 = vshrl.u32 %v4290, 7
        %v4292 = vsub.s32 %v4289, %v4291
        %v4293 = vrot.slane %v4279, %v4292
        %v4294 = vcombine.low %v4286, %v4293
        %4295 = vset.pattern.permute.xlu0 0
        %4296 = vperm.xlu0 %4295, %v4294
        %v4297 = vpop.permute.xlu0 %4296
        %v4298 = vlaneseq
        %v4299 = vshrl.u32 %v4298, 7
        %v4300 = vsub.s32 %v3802, %v4299
        %v4301 = vrot.slane %v4297, %v4300
        %v4303 = vunpack.c.l.s4 1966171168
        %v4304 = vunpack.c.0.s8 %v4303
        %v4305 = vlaneseq
        %v4306 = vshrl.u32 %v4305, 7
        %v4307 = vsub.s32 %v4304, %v4306
        %v4308 = vrot.slane %v4301, %v4307
        %v4310 = vunpack.c.l.s4 1966171168
        %v4311 = vunpack.c.0.s8 %v4310
        %v4312 = vlaneseq
        %v4313 = vshrl.u32 %v4312, 7
        %v4314 = vsub.s32 %v4311, %v4313
        %v4315 = vrot.slane %v4308, %v4314
        %v4317 = vadd.f32 %v4147, %v4315
        %v4319 = vlaneseq
        %v4320 = vshrl.u32 %v4319, 7
        %v4321 = vsub.s32 0, %v4320
        %v4322 = vrot.slane %v4317, %v4321
        %v4324 = vadd.f32 %v4322, %v3800
        %v4325 = vsel %vm3812, %v4324, -inf
        %4326 = vmax.xlane.f32.xlu0 %v4325
        %v4327 = vpop.xlane.xlu0 %4326
        %vm4328 = vcmp.ge.f32.partialorder %v4324, %v4327
        %v4329 = vsel %vm4328, %v3802, 8
        %v4330 = vsel %vm3812, %v4329, 2147483647
        %v4331 = vand.u32 %v4330, 65535
        %v4332 = vshra.s32 %v4330, 16
        %v4333 = vcvt.s32.f32 %v4331
        %v4334 = vcvt.s32.f32 %v4332
        %4335 = vmin.xlane.f32.xlu0 %v4334
        %v4336 = vpop.xlane.xlu0 %4335
        %vm4337 = vcmp.eq.f32.partialorder %v4334, %v4336
        %v4338 = vsel %vm4337, %v4333, inf
        %4339 = vmin.xlane.f32.xlu0 %v4338
        %v4340 = vpop.xlane.xlu0 %4339
        %v4341 = vcvt.f32.s32 %v4340
        %v4342 = vcvt.f32.s32 %v4336
        %v4343 = vshll.u32 %v4342, 16
        %v4344 = vadd.s32 %v4343, %v4341
        %s4345 = sadd.s32 %s3833, 4
        %s4346 = sld [smem:[#allocation3 + %s4345]]
        %p4347 = scmp.gt.s32.totalorder %s4346, 0
        %s4348 = scalar_select %p4347, 1, 0
        %s4349 = scvt.s32.f32 %s4348
        %v4350 = vlaneseq
        %v4351 = vshrl.u32 %v4350, 7
        %v4352 = vsub.s32 4, %v4351
        %v4353 = vrot.slane %v3792, %v4352
        %4355 = vbcast.lane.b32.xlu0 %v4353, 256
        %v4356 = vpop.permute.xlu0 %4355
        %v4358 = vadd.f32 %v4327, %v4356
        %4360 = vbcast.lane.b32.xlu0 %v4322, 256
        %v4361 = vpop.permute.xlu0 %4360
        %v4363 = vsub.f32 %v4358, %v4361
        %v4364 = vstv %s4349
        %v4365 = vmul.f32 %v4364, %v4363
        %v4367 = vcombine.high %v4365, %v4365
        %v4369 = vunpack.c.l.s4 1966171168
        %v4370 = vunpack.c.0.s8 %v4369
        %v4371 = vlaneseq
        %v4372 = vshrl.u32 %v4371, 7
        %v4373 = vsub.s32 %v4370, %v4372
        %v4374 = vrot.slane %v4365, %v4373
        %v4376 = vunpack.c.l.s4 1966171168
        %v4377 = vunpack.c.0.s8 %v4376
        %v4378 = vlaneseq
        %v4379 = vshrl.u32 %v4378, 7
        %v4380 = vsub.s32 %v4377, %v4379
        %v4381 = vrot.slane %v4367, %v4380
        %v4382 = vcombine.high %v4374, %v4374
        %v4383 = vcombine.high %v4381, %v4381
        %v4385 = vunpack.c.l.s4 1966171168
        %v4386 = vunpack.c.0.s8 %v4385
        %v4387 = vlaneseq
        %v4388 = vshrl.u32 %v4387, 7
        %v4389 = vsub.s32 %v4386, %v4388
        %v4390 = vrot.slane %v4374, %v4389
        %v4392 = vunpack.c.l.s4 1966171168
        %v4393 = vunpack.c.0.s8 %v4392
        %v4394 = vlaneseq
        %v4395 = vshrl.u32 %v4394, 7
        %v4396 = vsub.s32 %v4393, %v4395
        %v4397 = vrot.slane %v4381, %v4396
        %v4399 = vunpack.c.l.s4 1966171168
        %v4400 = vunpack.c.0.s8 %v4399
        %v4401 = vlaneseq
        %v4402 = vshrl.u32 %v4401, 7
        %v4403 = vsub.s32 %v4400, %v4402
        %v4404 = vrot.slane %v4382, %v4403
        %v4406 = vunpack.c.l.s4 1966171168
        %v4407 = vunpack.c.0.s8 %v4406
        %v4408 = vlaneseq
        %v4409 = vshrl.u32 %v4408, 7
        %v4410 = vsub.s32 %v4407, %v4409
        %v4411 = vrot.slane %v4383, %v4410
        %v4412 = vcombine.high %v4390, %v4390
        %v4413 = vcombine.high %v4397, %v4397
        %v4414 = vcombine.high %v4404, %v4404
        %v4415 = vcombine.high %v4411, %v4411
        %v4416 = vcombine.low %v4390, %v4404
        %v4417 = vcombine.low %v4412, %v4414
        %v4418 = vcombine.low %v4397, %v4411
        %v4419 = vcombine.low %v4413, %v4415
        %v4421 = vunpack.c.l.s4 1966171168
        %v4422 = vunpack.c.0.s8 %v4421
        %v4423 = vlaneseq
        %v4424 = vshrl.u32 %v4423, 7
        %v4425 = vsub.s32 %v4422, %v4424
        %v4426 = vrot.slane %v4416, %v4425
        %v4428 = vunpack.c.l.s4 1966171168
        %v4429 = vunpack.c.0.s8 %v4428
        %v4430 = vlaneseq
        %v4431 = vshrl.u32 %v4430, 7
        %v4432 = vsub.s32 %v4429, %v4431
        %v4433 = vrot.slane %v4417, %v4432
        %v4435 = vunpack.c.l.s4 1966171168
        %v4436 = vunpack.c.0.s8 %v4435
        %v4437 = vlaneseq
        %v4438 = vshrl.u32 %v4437, 7
        %v4439 = vsub.s32 %v4436, %v4438
        %v4440 = vrot.slane %v4418, %v4439
        %v4442 = vunpack.c.l.s4 1966171168
        %v4443 = vunpack.c.0.s8 %v4442
        %v4444 = vlaneseq
        %v4445 = vshrl.u32 %v4444, 7
        %v4446 = vsub.s32 %v4443, %v4445
        %v4447 = vrot.slane %v4419, %v4446
        %v4448 = vcombine.low %v4426, %v4433
        %v4449 = vcombine.low %v4440, %v4447
        %v4451 = vunpack.c.l.s4 1966171168
        %v4452 = vunpack.c.0.s8 %v4451
        %v4453 = vlaneseq
        %v4454 = vshrl.u32 %v4453, 7
        %v4455 = vsub.s32 %v4452, %v4454
        %v4456 = vrot.slane %v4448, %v4455
        %v4458 = vunpack.c.l.s4 1966171168
        %v4459 = vunpack.c.0.s8 %v4458
        %v4460 = vlaneseq
        %v4461 = vshrl.u32 %v4460, 7
        %v4462 = vsub.s32 %v4459, %v4461
        %v4463 = vrot.slane %v4449, %v4462
        %v4464 = vcombine.low %v4456, %v4463
        %4465 = vset.pattern.permute.xlu0 0
        %4466 = vperm.xlu0 %4465, %v4464
        %v4467 = vpop.permute.xlu0 %4466
        %v4468 = vlaneseq
        %v4469 = vshrl.u32 %v4468, 7
        %v4470 = vsub.s32 %v3802, %v4469
        %v4471 = vrot.slane %v4467, %v4470
        %v4473 = vunpack.c.l.s4 1966171168
        %v4474 = vunpack.c.0.s8 %v4473
        %v4475 = vlaneseq
        %v4476 = vshrl.u32 %v4475, 7
        %v4477 = vsub.s32 %v4474, %v4476
        %v4478 = vrot.slane %v4471, %v4477
        %v4480 = vunpack.c.l.s4 1966171168
        %v4481 = vunpack.c.0.s8 %v4480
        %v4482 = vlaneseq
        %v4483 = vshrl.u32 %v4482, 7
        %v4484 = vsub.s32 %v4481, %v4483
        %v4485 = vrot.slane %v4478, %v4484
        %v4487 = vadd.f32 %v4317, %v4485
        %v4489 = vlaneseq
        %v4490 = vshrl.u32 %v4489, 7
        %v4491 = vsub.s32 0, %v4490
        %v4492 = vrot.slane %v4487, %v4491
        %v4494 = vadd.f32 %v4492, %v3800
        %v4495 = vsel %vm3812, %v4494, -inf
        %4496 = vmax.xlane.f32.xlu0 %v4495
        %v4497 = vpop.xlane.xlu0 %4496
        %vm4498 = vcmp.ge.f32.partialorder %v4494, %v4497
        %v4499 = vsel %vm4498, %v3802, 8
        %v4500 = vsel %vm3812, %v4499, 2147483647
        %v4501 = vand.u32 %v4500, 65535
        %v4502 = vshra.s32 %v4500, 16
        %v4503 = vcvt.s32.f32 %v4501
        %v4504 = vcvt.s32.f32 %v4502
        %4505 = vmin.xlane.f32.xlu0 %v4504
        %v4506 = vpop.xlane.xlu0 %4505
        %vm4507 = vcmp.eq.f32.partialorder %v4504, %v4506
        %v4508 = vsel %vm4507, %v4503, inf
        %4509 = vmin.xlane.f32.xlu0 %v4508
        %v4510 = vpop.xlane.xlu0 %4509
        %v4511 = vcvt.f32.s32 %v4510
        %v4512 = vcvt.f32.s32 %v4506
        %v4513 = vshll.u32 %v4512, 16
        %v4514 = vadd.s32 %v4513, %v4511
        %s4515 = sadd.s32 %s3833, 5
        %s4516 = sld [smem:[#allocation3 + %s4515]]
        %p4517 = scmp.gt.s32.totalorder %s4516, 0
        %s4518 = scalar_select %p4517, 1, 0
        %s4519 = scvt.s32.f32 %s4518
        %v4520 = vlaneseq
        %v4521 = vshrl.u32 %v4520, 7
        %v4522 = vsub.s32 5, %v4521
        %v4523 = vrot.slane %v3792, %v4522
        %4525 = vbcast.lane.b32.xlu0 %v4523, 256
        %v4526 = vpop.permute.xlu0 %4525
        %v4528 = vadd.f32 %v4497, %v4526
        %4530 = vbcast.lane.b32.xlu0 %v4492, 256
        %v4531 = vpop.permute.xlu0 %4530
        %v4533 = vsub.f32 %v4528, %v4531
        %v4534 = vstv %s4519
        %v4535 = vmul.f32 %v4534, %v4533
        %v4537 = vcombine.high %v4535, %v4535
        %v4539 = vunpack.c.l.s4 1966171168
        %v4540 = vunpack.c.0.s8 %v4539
        %v4541 = vlaneseq
        %v4542 = vshrl.u32 %v4541, 7
        %v4543 = vsub.s32 %v4540, %v4542
        %v4544 = vrot.slane %v4535, %v4543
        %v4546 = vunpack.c.l.s4 1966171168
        %v4547 = vunpack.c.0.s8 %v4546
        %v4548 = vlaneseq
        %v4549 = vshrl.u32 %v4548, 7
        %v4550 = vsub.s32 %v4547, %v4549
        %v4551 = vrot.slane %v4537, %v4550
        %v4552 = vcombine.high %v4544, %v4544
        %v4553 = vcombine.high %v4551, %v4551
        %v4555 = vunpack.c.l.s4 1966171168
        %v4556 = vunpack.c.0.s8 %v4555
        %v4557 = vlaneseq
        %v4558 = vshrl.u32 %v4557, 7
        %v4559 = vsub.s32 %v4556, %v4558
        %v4560 = vrot.slane %v4544, %v4559
        %v4562 = vunpack.c.l.s4 1966171168
        %v4563 = vunpack.c.0.s8 %v4562
        %v4564 = vlaneseq
        %v4565 = vshrl.u32 %v4564, 7
        %v4566 = vsub.s32 %v4563, %v4565
        %v4567 = vrot.slane %v4551, %v4566
        %v4569 = vunpack.c.l.s4 1966171168
        %v4570 = vunpack.c.0.s8 %v4569
        %v4571 = vlaneseq
        %v4572 = vshrl.u32 %v4571, 7
        %v4573 = vsub.s32 %v4570, %v4572
        %v4574 = vrot.slane %v4552, %v4573
        %v4576 = vunpack.c.l.s4 1966171168
        %v4577 = vunpack.c.0.s8 %v4576
        %v4578 = vlaneseq
        %v4579 = vshrl.u32 %v4578, 7
        %v4580 = vsub.s32 %v4577, %v4579
        %v4581 = vrot.slane %v4553, %v4580
        %v4582 = vcombine.high %v4560, %v4560
        %v4583 = vcombine.high %v4567, %v4567
        %v4584 = vcombine.high %v4574, %v4574
        %v4585 = vcombine.high %v4581, %v4581
        %v4586 = vcombine.low %v4560, %v4574
        %v4587 = vcombine.low %v4582, %v4584
        %v4588 = vcombine.low %v4567, %v4581
        %v4589 = vcombine.low %v4583, %v4585
        %v4591 = vunpack.c.l.s4 1966171168
        %v4592 = vunpack.c.0.s8 %v4591
        %v4593 = vlaneseq
        %v4594 = vshrl.u32 %v4593, 7
        %v4595 = vsub.s32 %v4592, %v4594
        %v4596 = vrot.slane %v4586, %v4595
        %v4598 = vunpack.c.l.s4 1966171168
        %v4599 = vunpack.c.0.s8 %v4598
        %v4600 = vlaneseq
        %v4601 = vshrl.u32 %v4600, 7
        %v4602 = vsub.s32 %v4599, %v4601
        %v4603 = vrot.slane %v4587, %v4602
        %v4605 = vunpack.c.l.s4 1966171168
        %v4606 = vunpack.c.0.s8 %v4605
        %v4607 = vlaneseq
        %v4608 = vshrl.u32 %v4607, 7
        %v4609 = vsub.s32 %v4606, %v4608
        %v4610 = vrot.slane %v4588, %v4609
        %v4612 = vunpack.c.l.s4 1966171168
        %v4613 = vunpack.c.0.s8 %v4612
        %v4614 = vlaneseq
        %v4615 = vshrl.u32 %v4614, 7
        %v4616 = vsub.s32 %v4613, %v4615
        %v4617 = vrot.slane %v4589, %v4616
        %v4618 = vcombine.low %v4596, %v4603
        %v4619 = vcombine.low %v4610, %v4617
        %v4621 = vunpack.c.l.s4 1966171168
        %v4622 = vunpack.c.0.s8 %v4621
        %v4623 = vlaneseq
        %v4624 = vshrl.u32 %v4623, 7
        %v4625 = vsub.s32 %v4622, %v4624
        %v4626 = vrot.slane %v4618, %v4625
        %v4628 = vunpack.c.l.s4 1966171168
        %v4629 = vunpack.c.0.s8 %v4628
        %v4630 = vlaneseq
        %v4631 = vshrl.u32 %v4630, 7
        %v4632 = vsub.s32 %v4629, %v4631
        %v4633 = vrot.slane %v4619, %v4632
        %v4634 = vcombine.low %v4626, %v4633
        %4635 = vset.pattern.permute.xlu0 0
        %4636 = vperm.xlu0 %4635, %v4634
        %v4637 = vpop.permute.xlu0 %4636
        %v4638 = vlaneseq
        %v4639 = vshrl.u32 %v4638, 7
        %v4640 = vsub.s32 %v3802, %v4639
        %v4641 = vrot.slane %v4637, %v4640
        %v4643 = vunpack.c.l.s4 1966171168
        %v4644 = vunpack.c.0.s8 %v4643
        %v4645 = vlaneseq
        %v4646 = vshrl.u32 %v4645, 7
        %v4647 = vsub.s32 %v4644, %v4646
        %v4648 = vrot.slane %v4641, %v4647
        %v4650 = vunpack.c.l.s4 1966171168
        %v4651 = vunpack.c.0.s8 %v4650
        %v4652 = vlaneseq
        %v4653 = vshrl.u32 %v4652, 7
        %v4654 = vsub.s32 %v4651, %v4653
        %v4655 = vrot.slane %v4648, %v4654
        %v4657 = vadd.f32 %v4487, %v4655
        %v4659 = vlaneseq
        %v4660 = vshrl.u32 %v4659, 7
        %v4661 = vsub.s32 0, %v4660
        %v4662 = vrot.slane %v4657, %v4661
        %v4664 = vadd.f32 %v4662, %v3800
        %v4665 = vsel %vm3812, %v4664, -inf
        %4666 = vmax.xlane.f32.xlu0 %v4665
        %v4667 = vpop.xlane.xlu0 %4666
        %vm4668 = vcmp.ge.f32.partialorder %v4664, %v4667
        %v4669 = vsel %vm4668, %v3802, 8
        %v4670 = vsel %vm3812, %v4669, 2147483647
        %v4671 = vand.u32 %v4670, 65535
        %v4672 = vshra.s32 %v4670, 16
        %v4673 = vcvt.s32.f32 %v4671
        %v4674 = vcvt.s32.f32 %v4672
        %4675 = vmin.xlane.f32.xlu0 %v4674
        %v4676 = vpop.xlane.xlu0 %4675
        %vm4677 = vcmp.eq.f32.partialorder %v4674, %v4676
        %v4678 = vsel %vm4677, %v4673, inf
        %4679 = vmin.xlane.f32.xlu0 %v4678
        %v4680 = vpop.xlane.xlu0 %4679
        %v4681 = vcvt.f32.s32 %v4680
        %v4682 = vcvt.f32.s32 %v4676
        %v4683 = vshll.u32 %v4682, 16
        %v4684 = vadd.s32 %v4683, %v4681
        %s4685 = sadd.s32 %s3833, 6
        %s4686 = sld [smem:[#allocation3 + %s4685]]
        %p4687 = scmp.gt.s32.totalorder %s4686, 0
        %s4688 = scalar_select %p4687, 1, 0
        %s4689 = scvt.s32.f32 %s4688
        %v4690 = vlaneseq
        %v4691 = vshrl.u32 %v4690, 7
        %v4692 = vsub.s32 6, %v4691
        %v4693 = vrot.slane %v3792, %v4692
        %4695 = vbcast.lane.b32.xlu0 %v4693, 256
        %v4696 = vpop.permute.xlu0 %4695
        %v4698 = vadd.f32 %v4667, %v4696
        %4700 = vbcast.lane.b32.xlu0 %v4662, 256
        %v4701 = vpop.permute.xlu0 %4700
        %v4703 = vsub.f32 %v4698, %v4701
        %v4704 = vstv %s4689
        %v4705 = vmul.f32 %v4704, %v4703
        %v4707 = vcombine.high %v4705, %v4705
        %v4709 = vunpack.c.l.s4 1966171168
        %v4710 = vunpack.c.0.s8 %v4709
        %v4711 = vlaneseq
        %v4712 = vshrl.u32 %v4711, 7
        %v4713 = vsub.s32 %v4710, %v4712
        %v4714 = vrot.slane %v4705, %v4713
        %v4716 = vunpack.c.l.s4 1966171168
        %v4717 = vunpack.c.0.s8 %v4716
        %v4718 = vlaneseq
        %v4719 = vshrl.u32 %v4718, 7
        %v4720 = vsub.s32 %v4717, %v4719
        %v4721 = vrot.slane %v4707, %v4720
        %v4722 = vcombine.high %v4714, %v4714
        %v4723 = vcombine.high %v4721, %v4721
        %v4725 = vunpack.c.l.s4 1966171168
        %v4726 = vunpack.c.0.s8 %v4725
        %v4727 = vlaneseq
        %v4728 = vshrl.u32 %v4727, 7
        %v4729 = vsub.s32 %v4726, %v4728
        %v4730 = vrot.slane %v4714, %v4729
        %v4732 = vunpack.c.l.s4 1966171168
        %v4733 = vunpack.c.0.s8 %v4732
        %v4734 = vlaneseq
        %v4735 = vshrl.u32 %v4734, 7
        %v4736 = vsub.s32 %v4733, %v4735
        %v4737 = vrot.slane %v4721, %v4736
        %v4739 = vunpack.c.l.s4 1966171168
        %v4740 = vunpack.c.0.s8 %v4739
        %v4741 = vlaneseq
        %v4742 = vshrl.u32 %v4741, 7
        %v4743 = vsub.s32 %v4740, %v4742
        %v4744 = vrot.slane %v4722, %v4743
        %v4746 = vunpack.c.l.s4 1966171168
        %v4747 = vunpack.c.0.s8 %v4746
        %v4748 = vlaneseq
        %v4749 = vshrl.u32 %v4748, 7
        %v4750 = vsub.s32 %v4747, %v4749
        %v4751 = vrot.slane %v4723, %v4750
        %v4752 = vcombine.high %v4730, %v4730
        %v4753 = vcombine.high %v4737, %v4737
        %v4754 = vcombine.high %v4744, %v4744
        %v4755 = vcombine.high %v4751, %v4751
        %v4756 = vcombine.low %v4730, %v4744
        %v4757 = vcombine.low %v4752, %v4754
        %v4758 = vcombine.low %v4737, %v4751
        %v4759 = vcombine.low %v4753, %v4755
        %v4761 = vunpack.c.l.s4 1966171168
        %v4762 = vunpack.c.0.s8 %v4761
        %v4763 = vlaneseq
        %v4764 = vshrl.u32 %v4763, 7
        %v4765 = vsub.s32 %v4762, %v4764
        %v4766 = vrot.slane %v4756, %v4765
        %v4768 = vunpack.c.l.s4 1966171168
        %v4769 = vunpack.c.0.s8 %v4768
        %v4770 = vlaneseq
        %v4771 = vshrl.u32 %v4770, 7
        %v4772 = vsub.s32 %v4769, %v4771
        %v4773 = vrot.slane %v4757, %v4772
        %v4775 = vunpack.c.l.s4 1966171168
        %v4776 = vunpack.c.0.s8 %v4775
        %v4777 = vlaneseq
        %v4778 = vshrl.u32 %v4777, 7
        %v4779 = vsub.s32 %v4776, %v4778
        %v4780 = vrot.slane %v4758, %v4779
        %v4782 = vunpack.c.l.s4 1966171168
        %v4783 = vunpack.c.0.s8 %v4782
        %v4784 = vlaneseq
        %v4785 = vshrl.u32 %v4784, 7
        %v4786 = vsub.s32 %v4783, %v4785
        %v4787 = vrot.slane %v4759, %v4786
        %v4788 = vcombine.low %v4766, %v4773
        %v4789 = vcombine.low %v4780, %v4787
        %v4791 = vunpack.c.l.s4 1966171168
        %v4792 = vunpack.c.0.s8 %v4791
        %v4793 = vlaneseq
        %v4794 = vshrl.u32 %v4793, 7
        %v4795 = vsub.s32 %v4792, %v4794
        %v4796 = vrot.slane %v4788, %v4795
        %v4798 = vunpack.c.l.s4 1966171168
        %v4799 = vunpack.c.0.s8 %v4798
        %v4800 = vlaneseq
        %v4801 = vshrl.u32 %v4800, 7
        %v4802 = vsub.s32 %v4799, %v4801
        %v4803 = vrot.slane %v4789, %v4802
        %v4804 = vcombine.low %v4796, %v4803
        %4805 = vset.pattern.permute.xlu0 0
        %4806 = vperm.xlu0 %4805, %v4804
        %v4807 = vpop.permute.xlu0 %4806
        %v4808 = vlaneseq
        %v4809 = vshrl.u32 %v4808, 7
        %v4810 = vsub.s32 %v3802, %v4809
        %v4811 = vrot.slane %v4807, %v4810
        %v4813 = vunpack.c.l.s4 1966171168
        %v4814 = vunpack.c.0.s8 %v4813
        %v4815 = vlaneseq
        %v4816 = vshrl.u32 %v4815, 7
        %v4817 = vsub.s32 %v4814, %v4816
        %v4818 = vrot.slane %v4811, %v4817
        %v4820 = vunpack.c.l.s4 1966171168
        %v4821 = vunpack.c.0.s8 %v4820
        %v4822 = vlaneseq
        %v4823 = vshrl.u32 %v4822, 7
        %v4824 = vsub.s32 %v4821, %v4823
        %v4825 = vrot.slane %v4818, %v4824
        %v4827 = vadd.f32 %v4657, %v4825
        %v4829 = vlaneseq
        %v4830 = vshrl.u32 %v4829, 7
        %v4831 = vsub.s32 0, %v4830
        %v4832 = vrot.slane %v4827, %v4831
        %v4834 = vadd.f32 %v4832, %v3800
        %v4835 = vsel %vm3812, %v4834, -inf
        %4836 = vmax.xlane.f32.xlu0 %v4835
        %v4837 = vpop.xlane.xlu0 %4836
        %vm4838 = vcmp.ge.f32.partialorder %v4834, %v4837
        %v4839 = vsel %vm4838, %v3802, 8
        %v4840 = vsel %vm3812, %v4839, 2147483647
        %v4841 = vand.u32 %v4840, 65535
        %v4842 = vshra.s32 %v4840, 16
        %v4843 = vcvt.s32.f32 %v4841
        %v4844 = vcvt.s32.f32 %v4842
        %4845 = vmin.xlane.f32.xlu0 %v4844
        %v4846 = vpop.xlane.xlu0 %4845
        %vm4847 = vcmp.eq.f32.partialorder %v4844, %v4846
        %v4848 = vsel %vm4847, %v4843, inf
        %4849 = vmin.xlane.f32.xlu0 %v4848
        %v4850 = vpop.xlane.xlu0 %4849
        %v4851 = vcvt.f32.s32 %v4850
        %v4852 = vcvt.f32.s32 %v4846
        %v4853 = vshll.u32 %v4852, 16
        %v4854 = vadd.s32 %v4853, %v4851
        %s4855 = sadd.s32 %s3833, 7
        %s4856 = sld [smem:[#allocation3 + %s4855]]
        %p4857 = scmp.gt.s32.totalorder %s4856, 0
        %s4858 = scalar_select %p4857, 1, 0
        %s4859 = scvt.s32.f32 %s4858
        %v4860 = vlaneseq
        %v4861 = vshrl.u32 %v4860, 7
        %v4862 = vsub.s32 7, %v4861
        %v4863 = vrot.slane %v3792, %v4862
        %4865 = vbcast.lane.b32.xlu0 %v4863, 256
        %v4866 = vpop.permute.xlu0 %4865
        %v4868 = vadd.f32 %v4837, %v4866
        %4870 = vbcast.lane.b32.xlu0 %v4832, 256
        %v4871 = vpop.permute.xlu0 %4870
        %v4873 = vsub.f32 %v4868, %v4871
        %v4874 = vstv %s4859
        %v4875 = vmul.f32 %v4874, %v4873
        %v4877 = vcombine.high %v4875, %v4875
        %v4879 = vunpack.c.l.s4 1966171168
        %v4880 = vunpack.c.0.s8 %v4879
        %v4881 = vlaneseq
        %v4882 = vshrl.u32 %v4881, 7
        %v4883 = vsub.s32 %v4880, %v4882
        %v4884 = vrot.slane %v4875, %v4883
        %v4886 = vunpack.c.l.s4 1966171168
        %v4887 = vunpack.c.0.s8 %v4886
        %v4888 = vlaneseq
        %v4889 = vshrl.u32 %v4888, 7
        %v4890 = vsub.s32 %v4887, %v4889
        %v4891 = vrot.slane %v4877, %v4890
        %v4892 = vcombine.high %v4884, %v4884
        %v4893 = vcombine.high %v4891, %v4891
        %v4895 = vunpack.c.l.s4 1966171168
        %v4896 = vunpack.c.0.s8 %v4895
        %v4897 = vlaneseq
        %v4898 = vshrl.u32 %v4897, 7
        %v4899 = vsub.s32 %v4896, %v4898
        %v4900 = vrot.slane %v4884, %v4899
        %v4902 = vunpack.c.l.s4 1966171168
        %v4903 = vunpack.c.0.s8 %v4902
        %v4904 = vlaneseq
        %v4905 = vshrl.u32 %v4904, 7
        %v4906 = vsub.s32 %v4903, %v4905
        %v4907 = vrot.slane %v4891, %v4906
        %v4909 = vunpack.c.l.s4 1966171168
        %v4910 = vunpack.c.0.s8 %v4909
        %v4911 = vlaneseq
        %v4912 = vshrl.u32 %v4911, 7
        %v4913 = vsub.s32 %v4910, %v4912
        %v4914 = vrot.slane %v4892, %v4913
        %v4916 = vunpack.c.l.s4 1966171168
        %v4917 = vunpack.c.0.s8 %v4916
        %v4918 = vlaneseq
        %v4919 = vshrl.u32 %v4918, 7
        %v4920 = vsub.s32 %v4917, %v4919
        %v4921 = vrot.slane %v4893, %v4920
        %v4922 = vcombine.high %v4900, %v4900
        %v4923 = vcombine.high %v4907, %v4907
        %v4924 = vcombine.high %v4914, %v4914
        %v4925 = vcombine.high %v4921, %v4921
        %v4926 = vcombine.low %v4900, %v4914
        %v4927 = vcombine.low %v4922, %v4924
        %v4928 = vcombine.low %v4907, %v4921
        %v4929 = vcombine.low %v4923, %v4925
        %v4931 = vunpack.c.l.s4 1966171168
        %v4932 = vunpack.c.0.s8 %v4931
        %v4933 = vlaneseq
        %v4934 = vshrl.u32 %v4933, 7
        %v4935 = vsub.s32 %v4932, %v4934
        %v4936 = vrot.slane %v4926, %v4935
        %v4938 = vunpack.c.l.s4 1966171168
        %v4939 = vunpack.c.0.s8 %v4938
        %v4940 = vlaneseq
        %v4941 = vshrl.u32 %v4940, 7
        %v4942 = vsub.s32 %v4939, %v4941
        %v4943 = vrot.slane %v4927, %v4942
        %v4945 = vunpack.c.l.s4 1966171168
        %v4946 = vunpack.c.0.s8 %v4945
        %v4947 = vlaneseq
        %v4948 = vshrl.u32 %v4947, 7
        %v4949 = vsub.s32 %v4946, %v4948
        %v4950 = vrot.slane %v4928, %v4949
        %v4952 = vunpack.c.l.s4 1966171168
        %v4953 = vunpack.c.0.s8 %v4952
        %v4954 = vlaneseq
        %v4955 = vshrl.u32 %v4954, 7
        %v4956 = vsub.s32 %v4953, %v4955
        %v4957 = vrot.slane %v4929, %v4956
        %v4958 = vcombine.low %v4936, %v4943
        %v4959 = vcombine.low %v4950, %v4957
        %v4961 = vunpack.c.l.s4 1966171168
        %v4962 = vunpack.c.0.s8 %v4961
        %v4963 = vlaneseq
        %v4964 = vshrl.u32 %v4963, 7
        %v4965 = vsub.s32 %v4962, %v4964
        %v4966 = vrot.slane %v4958, %v4965
        %v4968 = vunpack.c.l.s4 1966171168
        %v4969 = vunpack.c.0.s8 %v4968
        %v4970 = vlaneseq
        %v4971 = vshrl.u32 %v4970, 7
        %v4972 = vsub.s32 %v4969, %v4971
        %v4973 = vrot.slane %v4959, %v4972
        %v4974 = vcombine.low %v4966, %v4973
        %4975 = vset.pattern.permute.xlu0 0
        %4976 = vperm.xlu0 %4975, %v4974
        %v4977 = vpop.permute.xlu0 %4976
        %v4978 = vlaneseq
        %v4979 = vshrl.u32 %v4978, 7
        %v4980 = vsub.s32 %v3802, %v4979
        %v4981 = vrot.slane %v4977, %v4980
        %v4983 = vunpack.c.l.s4 1966171168
        %v4984 = vunpack.c.0.s8 %v4983
        %v4985 = vlaneseq
        %v4986 = vshrl.u32 %v4985, 7
        %v4987 = vsub.s32 %v4984, %v4986
        %v4988 = vrot.slane %v4981, %v4987
        %v4990 = vunpack.c.l.s4 1966171168
        %v4991 = vunpack.c.0.s8 %v4990
        %v4992 = vlaneseq
        %v4993 = vshrl.u32 %v4992, 7
        %v4994 = vsub.s32 %v4991, %v4993
        %v4995 = vrot.slane %v4988, %v4994
        %v4997 = vadd.f32 %v4827, %v4995
        %v4999 = vlaneseq
        %v5000 = vshrl.u32 %v4999, 7
        %v5001 = vsub.s32 0, %v5000
        %v5002 = vrot.slane %v4997, %v5001
        %v5004 = vadd.f32 %v5002, %v3800
        %v5005 = vsel %vm3812, %v5004, -inf
        %5006 = vmax.xlane.f32.xlu0 %v5005
        %v5007 = vpop.xlane.xlu0 %5006
        %vm5008 = vcmp.ge.f32.partialorder %v5004, %v5007
        %v5009 = vsel %vm5008, %v3802, 8
        %v5010 = vsel %vm3812, %v5009, 2147483647
        %v5011 = vand.u32 %v5010, 65535
        %v5012 = vshra.s32 %v5010, 16
        %v5013 = vcvt.s32.f32 %v5011
        %v5014 = vcvt.s32.f32 %v5012
        %5015 = vmin.xlane.f32.xlu0 %v5014
        %v5016 = vpop.xlane.xlu0 %5015
        %vm5017 = vcmp.eq.f32.partialorder %v5014, %v5016
        %v5018 = vsel %vm5017, %v5013, inf
        %5019 = vmin.xlane.f32.xlu0 %v5018
        %v5020 = vpop.xlane.xlu0 %5019
        %v5021 = vcvt.f32.s32 %v5020
        %v5022 = vcvt.f32.s32 %v5016
        %v5023 = vshll.u32 %v5022, 16
        %v5024 = vadd.s32 %v5023, %v5021
        %s5025 = sadd.s32 %s3833, 8
        %s5026 = sld [smem:[#allocation3 + %s5025]]
        %p5027 = scmp.gt.s32.totalorder %s5026, 0
        %s5028 = scalar_select %p5027, 1, 0
        %s5029 = scvt.s32.f32 %s5028
        %v5031 = vlaneseq
        %v5032 = vshrl.u32 %v5031, 7
        %v5033 = vsub.s32 0, %v5032
        %v5034 = vrot.slane %v3797, %v5033
        %5036 = vbcast.lane.b32.xlu0 %v5034, 256
        %v5037 = vpop.permute.xlu0 %5036
        %v5039 = vadd.f32 %v5007, %v5037
        %5041 = vbcast.lane.b32.xlu0 %v5002, 256
        %v5042 = vpop.permute.xlu0 %5041
        %v5044 = vsub.f32 %v5039, %v5042
        %v5045 = vstv %s5029
        %v5046 = vmul.f32 %v5045, %v5044
        %v5048 = vcombine.high %v5046, %v5046
        %v5050 = vunpack.c.l.s4 1966171168
        %v5051 = vunpack.c.0.s8 %v5050
        %v5052 = vlaneseq
        %v5053 = vshrl.u32 %v5052, 7
        %v5054 = vsub.s32 %v5051, %v5053
        %v5055 = vrot.slane %v5046, %v5054
        %v5057 = vunpack.c.l.s4 1966171168
        %v5058 = vunpack.c.0.s8 %v5057
        %v5059 = vlaneseq
        %v5060 = vshrl.u32 %v5059, 7
        %v5061 = vsub.s32 %v5058, %v5060
        %v5062 = vrot.slane %v5048, %v5061
        %v5063 = vcombine.high %v5055, %v5055
        %v5064 = vcombine.high %v5062, %v5062
        %v5066 = vunpack.c.l.s4 1966171168
        %v5067 = vunpack.c.0.s8 %v5066
        %v5068 = vlaneseq
        %v5069 = vshrl.u32 %v5068, 7
        %v5070 = vsub.s32 %v5067, %v5069
        %v5071 = vrot.slane %v5055, %v5070
        %v5073 = vunpack.c.l.s4 1966171168
        %v5074 = vunpack.c.0.s8 %v5073
        %v5075 = vlaneseq
        %v5076 = vshrl.u32 %v5075, 7
        %v5077 = vsub.s32 %v5074, %v5076
        %v5078 = vrot.slane %v5062, %v5077
        %v5080 = vunpack.c.l.s4 1966171168
        %v5081 = vunpack.c.0.s8 %v5080
        %v5082 = vlaneseq
        %v5083 = vshrl.u32 %v5082, 7
        %v5084 = vsub.s32 %v5081, %v5083
        %v5085 = vrot.slane %v5063, %v5084
        %v5087 = vunpack.c.l.s4 1966171168
        %v5088 = vunpack.c.0.s8 %v5087
        %v5089 = vlaneseq
        %v5090 = vshrl.u32 %v5089, 7
        %v5091 = vsub.s32 %v5088, %v5090
        %v5092 = vrot.slane %v5064, %v5091
        %v5093 = vcombine.high %v5071, %v5071
        %v5094 = vcombine.high %v5078, %v5078
        %v5095 = vcombine.high %v5085, %v5085
        %v5096 = vcombine.high %v5092, %v5092
        %v5097 = vcombine.low %v5071, %v5085
        %v5098 = vcombine.low %v5093, %v5095
        %v5099 = vcombine.low %v5078, %v5092
        %v5100 = vcombine.low %v5094, %v5096
        %v5102 = vunpack.c.l.s4 1966171168
        %v5103 = vunpack.c.0.s8 %v5102
        %v5104 = vlaneseq
        %v5105 = vshrl.u32 %v5104, 7
        %v5106 = vsub.s32 %v5103, %v5105
        %v5107 = vrot.slane %v5097, %v5106
        %v5109 = vunpack.c.l.s4 1966171168
        %v5110 = vunpack.c.0.s8 %v5109
        %v5111 = vlaneseq
        %v5112 = vshrl.u32 %v5111, 7
        %v5113 = vsub.s32 %v5110, %v5112
        %v5114 = vrot.slane %v5098, %v5113
        %v5116 = vunpack.c.l.s4 1966171168
        %v5117 = vunpack.c.0.s8 %v5116
        %v5118 = vlaneseq
        %v5119 = vshrl.u32 %v5118, 7
        %v5120 = vsub.s32 %v5117, %v5119
        %v5121 = vrot.slane %v5099, %v5120
        %v5123 = vunpack.c.l.s4 1966171168
        %v5124 = vunpack.c.0.s8 %v5123
        %v5125 = vlaneseq
        %v5126 = vshrl.u32 %v5125, 7
        %v5127 = vsub.s32 %v5124, %v5126
        %v5128 = vrot.slane %v5100, %v5127
        %v5129 = vcombine.low %v5107, %v5114
        %v5130 = vcombine.low %v5121, %v5128
        %v5132 = vunpack.c.l.s4 1966171168
        %v5133 = vunpack.c.0.s8 %v5132
        %v5134 = vlaneseq
        %v5135 = vshrl.u32 %v5134, 7
        %v5136 = vsub.s32 %v5133, %v5135
        %v5137 = vrot.slane %v5129, %v5136
        %v5139 = vunpack.c.l.s4 1966171168
        %v5140 = vunpack.c.0.s8 %v5139
        %v5141 = vlaneseq
        %v5142 = vshrl.u32 %v5141, 7
        %v5143 = vsub.s32 %v5140, %v5142
        %v5144 = vrot.slane %v5130, %v5143
        %v5145 = vcombine.low %v5137, %v5144
        %5146 = vset.pattern.permute.xlu0 0
        %5147 = vperm.xlu0 %5146, %v5145
        %v5148 = vpop.permute.xlu0 %5147
        %v5149 = vlaneseq
        %v5150 = vshrl.u32 %v5149, 7
        %v5151 = vsub.s32 %v3802, %v5150
        %v5152 = vrot.slane %v5148, %v5151
        %v5154 = vunpack.c.l.s4 1966171168
        %v5155 = vunpack.c.0.s8 %v5154
        %v5156 = vlaneseq
        %v5157 = vshrl.u32 %v5156, 7
        %v5158 = vsub.s32 %v5155, %v5157
        %v5159 = vrot.slane %v5152, %v5158
        %v5161 = vunpack.c.l.s4 1966171168
        %v5162 = vunpack.c.0.s8 %v5161
        %v5163 = vlaneseq
        %v5164 = vshrl.u32 %v5163, 7
        %v5165 = vsub.s32 %v5162, %v5164
        %v5166 = vrot.slane %v5159, %v5165
        %v5168 = vadd.f32 %v4997, %v5166
        %v5170 = vlaneseq
        %v5171 = vshrl.u32 %v5170, 7
        %v5172 = vsub.s32 0, %v5171
        %v5173 = vrot.slane %v5168, %v5172
        %v5175 = vadd.f32 %v5173, %v3800
        %v5176 = vsel %vm3812, %v5175, -inf
        %5177 = vmax.xlane.f32.xlu0 %v5176
        %v5178 = vpop.xlane.xlu0 %5177
        %vm5179 = vcmp.ge.f32.partialorder %v5175, %v5178
        %v5180 = vsel %vm5179, %v3802, 8
        %v5181 = vsel %vm3812, %v5180, 2147483647
        %v5182 = vand.u32 %v5181, 65535
        %v5183 = vshra.s32 %v5181, 16
        %v5184 = vcvt.s32.f32 %v5182
        %v5185 = vcvt.s32.f32 %v5183
        %5186 = vmin.xlane.f32.xlu0 %v5185
        %v5187 = vpop.xlane.xlu0 %5186
        %vm5188 = vcmp.eq.f32.partialorder %v5185, %v5187
        %v5189 = vsel %vm5188, %v5184, inf
        %5190 = vmin.xlane.f32.xlu0 %v5189
        %v5191 = vpop.xlane.xlu0 %5190
        %v5192 = vcvt.f32.s32 %v5191
        %v5193 = vcvt.f32.s32 %v5187
        %v5194 = vshll.u32 %v5193, 16
        %v5195 = vadd.s32 %v5194, %v5192
        %s5196 = sadd.s32 %s3833, 9
        %s5197 = sld [smem:[#allocation3 + %s5196]]
        %p5198 = scmp.gt.s32.totalorder %s5197, 0
        %s5199 = scalar_select %p5198, 1, 0
        %s5200 = scvt.s32.f32 %s5199
        %v5201 = vlaneseq
        %v5202 = vshrl.u32 %v5201, 7
        %v5203 = vsub.s32 1, %v5202
        %v5204 = vrot.slane %v3797, %v5203
        %5206 = vbcast.lane.b32.xlu0 %v5204, 256
        %v5207 = vpop.permute.xlu0 %5206
        %v5209 = vadd.f32 %v5178, %v5207
        %5211 = vbcast.lane.b32.xlu0 %v5173, 256
        %v5212 = vpop.permute.xlu0 %5211
        %v5214 = vsub.f32 %v5209, %v5212
        %v5215 = vstv %s5200
        %v5216 = vmul.f32 %v5215, %v5214
        %v5218 = vcombine.high %v5216, %v5216
        %v5220 = vunpack.c.l.s4 1966171168
        %v5221 = vunpack.c.0.s8 %v5220
        %v5222 = vlaneseq
        %v5223 = vshrl.u32 %v5222, 7
        %v5224 = vsub.s32 %v5221, %v5223
        %v5225 = vrot.slane %v5216, %v5224
        %v5227 = vunpack.c.l.s4 1966171168
        %v5228 = vunpack.c.0.s8 %v5227
        %v5229 = vlaneseq
        %v5230 = vshrl.u32 %v5229, 7
        %v5231 = vsub.s32 %v5228, %v5230
        %v5232 = vrot.slane %v5218, %v5231
        %v5233 = vcombine.high %v5225, %v5225
        %v5234 = vcombine.high %v5232, %v5232
        %v5236 = vunpack.c.l.s4 1966171168
        %v5237 = vunpack.c.0.s8 %v5236
        %v5238 = vlaneseq
        %v5239 = vshrl.u32 %v5238, 7
        %v5240 = vsub.s32 %v5237, %v5239
        %v5241 = vrot.slane %v5225, %v5240
        %v5243 = vunpack.c.l.s4 1966171168
        %v5244 = vunpack.c.0.s8 %v5243
        %v5245 = vlaneseq
        %v5246 = vshrl.u32 %v5245, 7
        %v5247 = vsub.s32 %v5244, %v5246
        %v5248 = vrot.slane %v5232, %v5247
        %v5250 = vunpack.c.l.s4 1966171168
        %v5251 = vunpack.c.0.s8 %v5250
        %v5252 = vlaneseq
        %v5253 = vshrl.u32 %v5252, 7
        %v5254 = vsub.s32 %v5251, %v5253
        %v5255 = vrot.slane %v5233, %v5254
        %v5257 = vunpack.c.l.s4 1966171168
        %v5258 = vunpack.c.0.s8 %v5257
        %v5259 = vlaneseq
        %v5260 = vshrl.u32 %v5259, 7
        %v5261 = vsub.s32 %v5258, %v5260
        %v5262 = vrot.slane %v5234, %v5261
        %v5263 = vcombine.high %v5241, %v5241
        %v5264 = vcombine.high %v5248, %v5248
        %v5265 = vcombine.high %v5255, %v5255
        %v5266 = vcombine.high %v5262, %v5262
        %v5267 = vcombine.low %v5241, %v5255
        %v5268 = vcombine.low %v5263, %v5265
        %v5269 = vcombine.low %v5248, %v5262
        %v5270 = vcombine.low %v5264, %v5266
        %v5272 = vunpack.c.l.s4 1966171168
        %v5273 = vunpack.c.0.s8 %v5272
        %v5274 = vlaneseq
        %v5275 = vshrl.u32 %v5274, 7
        %v5276 = vsub.s32 %v5273, %v5275
        %v5277 = vrot.slane %v5267, %v5276
        %v5279 = vunpack.c.l.s4 1966171168
        %v5280 = vunpack.c.0.s8 %v5279
        %v5281 = vlaneseq
        %v5282 = vshrl.u32 %v5281, 7
        %v5283 = vsub.s32 %v5280, %v5282
        %v5284 = vrot.slane %v5268, %v5283
        %v5286 = vunpack.c.l.s4 1966171168
        %v5287 = vunpack.c.0.s8 %v5286
        %v5288 = vlaneseq
        %v5289 = vshrl.u32 %v5288, 7
        %v5290 = vsub.s32 %v5287, %v5289
        %v5291 = vrot.slane %v5269, %v5290
        %v5293 = vunpack.c.l.s4 1966171168
        %v5294 = vunpack.c.0.s8 %v5293
        %v5295 = vlaneseq
        %v5296 = vshrl.u32 %v5295, 7
        %v5297 = vsub.s32 %v5294, %v5296
        %v5298 = vrot.slane %v5270, %v5297
        %v5299 = vcombine.low %v5277, %v5284
        %v5300 = vcombine.low %v5291, %v5298
        %v5302 = vunpack.c.l.s4 1966171168
        %v5303 = vunpack.c.0.s8 %v5302
        %v5304 = vlaneseq
        %v5305 = vshrl.u32 %v5304, 7
        %v5306 = vsub.s32 %v5303, %v5305
        %v5307 = vrot.slane %v5299, %v5306
        %v5309 = vunpack.c.l.s4 1966171168
        %v5310 = vunpack.c.0.s8 %v5309
        %v5311 = vlaneseq
        %v5312 = vshrl.u32 %v5311, 7
        %v5313 = vsub.s32 %v5310, %v5312
        %v5314 = vrot.slane %v5300, %v5313
        %v5315 = vcombine.low %v5307, %v5314
        %5316 = vset.pattern.permute.xlu0 0
        %5317 = vperm.xlu0 %5316, %v5315
        %v5318 = vpop.permute.xlu0 %5317
        %v5319 = vlaneseq
        %v5320 = vshrl.u32 %v5319, 7
        %v5321 = vsub.s32 %v3802, %v5320
        %v5322 = vrot.slane %v5318, %v5321
        %v5324 = vunpack.c.l.s4 1966171168
        %v5325 = vunpack.c.0.s8 %v5324
        %v5326 = vlaneseq
        %v5327 = vshrl.u32 %v5326, 7
        %v5328 = vsub.s32 %v5325, %v5327
        %v5329 = vrot.slane %v5322, %v5328
        %v5331 = vunpack.c.l.s4 1966171168
        %v5332 = vunpack.c.0.s8 %v5331
        %v5333 = vlaneseq
        %v5334 = vshrl.u32 %v5333, 7
        %v5335 = vsub.s32 %v5332, %v5334
        %v5336 = vrot.slane %v5329, %v5335
        %v5338 = vadd.f32 %v5168, %v5336
        %v5340 = vlaneseq
        %v5341 = vshrl.u32 %v5340, 7
        %v5342 = vsub.s32 0, %v5341
        %v5343 = vrot.slane %v5338, %v5342
        %v5345 = vadd.f32 %v5343, %v3800
        %v5346 = vsel %vm3812, %v5345, -inf
        %5347 = vmax.xlane.f32.xlu0 %v5346
        %v5348 = vpop.xlane.xlu0 %5347
        %vm5349 = vcmp.ge.f32.partialorder %v5345, %v5348
        %v5350 = vsel %vm5349, %v3802, 8
        %v5351 = vsel %vm3812, %v5350, 2147483647
        %v5352 = vand.u32 %v5351, 65535
        %v5353 = vshra.s32 %v5351, 16
        %v5354 = vcvt.s32.f32 %v5352
        %v5355 = vcvt.s32.f32 %v5353
        %5356 = vmin.xlane.f32.xlu0 %v5355
        %v5357 = vpop.xlane.xlu0 %5356
        %vm5358 = vcmp.eq.f32.partialorder %v5355, %v5357
        %v5359 = vsel %vm5358, %v5354, inf
        %5360 = vmin.xlane.f32.xlu0 %v5359
        %v5361 = vpop.xlane.xlu0 %5360
        %v5362 = vcvt.f32.s32 %v5361
        %v5363 = vcvt.f32.s32 %v5357
        %v5364 = vshll.u32 %v5363, 16
        %v5365 = vadd.s32 %v5364, %v5362
        %s5366 = sadd.s32 %s3833, 10
        %s5367 = sld [smem:[#allocation3 + %s5366]]
        %p5368 = scmp.gt.s32.totalorder %s5367, 0
        %s5369 = scalar_select %p5368, 1, 0
        %s5370 = scvt.s32.f32 %s5369
        %v5371 = vlaneseq
        %v5372 = vshrl.u32 %v5371, 7
        %v5373 = vsub.s32 2, %v5372
        %v5374 = vrot.slane %v3797, %v5373
        %5376 = vbcast.lane.b32.xlu0 %v5374, 256
        %v5377 = vpop.permute.xlu0 %5376
        %v5379 = vadd.f32 %v5348, %v5377
        %5381 = vbcast.lane.b32.xlu0 %v5343, 256
        %v5382 = vpop.permute.xlu0 %5381
        %v5384 = vsub.f32 %v5379, %v5382
        %v5385 = vstv %s5370
        %v5386 = vmul.f32 %v5385, %v5384
        %v5388 = vcombine.high %v5386, %v5386
        %v5390 = vunpack.c.l.s4 1966171168
        %v5391 = vunpack.c.0.s8 %v5390
        %v5392 = vlaneseq
        %v5393 = vshrl.u32 %v5392, 7
        %v5394 = vsub.s32 %v5391, %v5393
        %v5395 = vrot.slane %v5386, %v5394
        %v5397 = vunpack.c.l.s4 1966171168
        %v5398 = vunpack.c.0.s8 %v5397
        %v5399 = vlaneseq
        %v5400 = vshrl.u32 %v5399, 7
        %v5401 = vsub.s32 %v5398, %v5400
        %v5402 = vrot.slane %v5388, %v5401
        %v5403 = vcombine.high %v5395, %v5395
        %v5404 = vcombine.high %v5402, %v5402
        %v5406 = vunpack.c.l.s4 1966171168
        %v5407 = vunpack.c.0.s8 %v5406
        %v5408 = vlaneseq
        %v5409 = vshrl.u32 %v5408, 7
        %v5410 = vsub.s32 %v5407, %v5409
        %v5411 = vrot.slane %v5395, %v5410
        %v5413 = vunpack.c.l.s4 1966171168
        %v5414 = vunpack.c.0.s8 %v5413
        %v5415 = vlaneseq
        %v5416 = vshrl.u32 %v5415, 7
        %v5417 = vsub.s32 %v5414, %v5416
        %v5418 = vrot.slane %v5402, %v5417
        %v5420 = vunpack.c.l.s4 1966171168
        %v5421 = vunpack.c.0.s8 %v5420
        %v5422 = vlaneseq
        %v5423 = vshrl.u32 %v5422, 7
        %v5424 = vsub.s32 %v5421, %v5423
        %v5425 = vrot.slane %v5403, %v5424
        %v5427 = vunpack.c.l.s4 1966171168
        %v5428 = vunpack.c.0.s8 %v5427
        %v5429 = vlaneseq
        %v5430 = vshrl.u32 %v5429, 7
        %v5431 = vsub.s32 %v5428, %v5430
        %v5432 = vrot.slane %v5404, %v5431
        %v5433 = vcombine.high %v5411, %v5411
        %v5434 = vcombine.high %v5418, %v5418
        %v5435 = vcombine.high %v5425, %v5425
        %v5436 = vcombine.high %v5432, %v5432
        %v5437 = vcombine.low %v5411, %v5425
        %v5438 = vcombine.low %v5433, %v5435
        %v5439 = vcombine.low %v5418, %v5432
        %v5440 = vcombine.low %v5434, %v5436
        %v5442 = vunpack.c.l.s4 1966171168
        %v5443 = vunpack.c.0.s8 %v5442
        %v5444 = vlaneseq
        %v5445 = vshrl.u32 %v5444, 7
        %v5446 = vsub.s32 %v5443, %v5445
        %v5447 = vrot.slane %v5437, %v5446
        %v5449 = vunpack.c.l.s4 1966171168
        %v5450 = vunpack.c.0.s8 %v5449
        %v5451 = vlaneseq
        %v5452 = vshrl.u32 %v5451, 7
        %v5453 = vsub.s32 %v5450, %v5452
        %v5454 = vrot.slane %v5438, %v5453
        %v5456 = vunpack.c.l.s4 1966171168
        %v5457 = vunpack.c.0.s8 %v5456
        %v5458 = vlaneseq
        %v5459 = vshrl.u32 %v5458, 7
        %v5460 = vsub.s32 %v5457, %v5459
        %v5461 = vrot.slane %v5439, %v5460
        %v5463 = vunpack.c.l.s4 1966171168
        %v5464 = vunpack.c.0.s8 %v5463
        %v5465 = vlaneseq
        %v5466 = vshrl.u32 %v5465, 7
        %v5467 = vsub.s32 %v5464, %v5466
        %v5468 = vrot.slane %v5440, %v5467
        %v5469 = vcombine.low %v5447, %v5454
        %v5470 = vcombine.low %v5461, %v5468
        %v5472 = vunpack.c.l.s4 1966171168
        %v5473 = vunpack.c.0.s8 %v5472
        %v5474 = vlaneseq
        %v5475 = vshrl.u32 %v5474, 7
        %v5476 = vsub.s32 %v5473, %v5475
        %v5477 = vrot.slane %v5469, %v5476
        %v5479 = vunpack.c.l.s4 1966171168
        %v5480 = vunpack.c.0.s8 %v5479
        %v5481 = vlaneseq
        %v5482 = vshrl.u32 %v5481, 7
        %v5483 = vsub.s32 %v5480, %v5482
        %v5484 = vrot.slane %v5470, %v5483
        %v5485 = vcombine.low %v5477, %v5484
        %5486 = vset.pattern.permute.xlu0 0
        %5487 = vperm.xlu0 %5486, %v5485
        %v5488 = vpop.permute.xlu0 %5487
        %v5489 = vlaneseq
        %v5490 = vshrl.u32 %v5489, 7
        %v5491 = vsub.s32 %v3802, %v5490
        %v5492 = vrot.slane %v5488, %v5491
        %v5494 = vunpack.c.l.s4 1966171168
        %v5495 = vunpack.c.0.s8 %v5494
        %v5496 = vlaneseq
        %v5497 = vshrl.u32 %v5496, 7
        %v5498 = vsub.s32 %v5495, %v5497
        %v5499 = vrot.slane %v5492, %v5498
        %v5501 = vunpack.c.l.s4 1966171168
        %v5502 = vunpack.c.0.s8 %v5501
        %v5503 = vlaneseq
        %v5504 = vshrl.u32 %v5503, 7
        %v5505 = vsub.s32 %v5502, %v5504
        %v5506 = vrot.slane %v5499, %v5505
        %v5508 = vadd.f32 %v5338, %v5506
        %v5510 = vlaneseq
        %v5511 = vshrl.u32 %v5510, 7
        %v5512 = vsub.s32 0, %v5511
        %v5513 = vrot.slane %v5508, %v5512
        %v5515 = vadd.f32 %v5513, %v3800
        %v5516 = vsel %vm3812, %v5515, -inf
        %5517 = vmax.xlane.f32.xlu0 %v5516
        %v5518 = vpop.xlane.xlu0 %5517
        %vm5519 = vcmp.ge.f32.partialorder %v5515, %v5518
        %v5520 = vsel %vm5519, %v3802, 8
        %v5521 = vsel %vm3812, %v5520, 2147483647
        %v5522 = vand.u32 %v5521, 65535
        %v5523 = vshra.s32 %v5521, 16
        %v5524 = vcvt.s32.f32 %v5522
        %v5525 = vcvt.s32.f32 %v5523
        %5526 = vmin.xlane.f32.xlu0 %v5525
        %v5527 = vpop.xlane.xlu0 %5526
        %vm5528 = vcmp.eq.f32.partialorder %v5525, %v5527
        %v5529 = vsel %vm5528, %v5524, inf
        %5530 = vmin.xlane.f32.xlu0 %v5529
        %v5531 = vpop.xlane.xlu0 %5530
        %v5532 = vcvt.f32.s32 %v5531
        %v5533 = vcvt.f32.s32 %v5527
        %v5534 = vshll.u32 %v5533, 16
        %v5535 = vadd.s32 %v5534, %v5532
        %s5536 = sadd.s32 %s3833, 11
        %s5537 = sld [smem:[#allocation3 + %s5536]]
        %p5538 = scmp.gt.s32.totalorder %s5537, 0
        %s5539 = scalar_select %p5538, 1, 0
        %s5540 = scvt.s32.f32 %s5539
        %v5541 = vlaneseq
        %v5542 = vshrl.u32 %v5541, 7
        %v5543 = vsub.s32 3, %v5542
        %v5544 = vrot.slane %v3797, %v5543
        %5546 = vbcast.lane.b32.xlu0 %v5544, 256
        %v5547 = vpop.permute.xlu0 %5546
        %v5549 = vadd.f32 %v5518, %v5547
        %5551 = vbcast.lane.b32.xlu0 %v5513, 256
        %v5552 = vpop.permute.xlu0 %5551
        %v5554 = vsub.f32 %v5549, %v5552
        %v5555 = vstv %s5540
        %v5556 = vmul.f32 %v5555, %v5554
        %v5558 = vcombine.high %v5556, %v5556
        %v5560 = vunpack.c.l.s4 1966171168
        %v5561 = vunpack.c.0.s8 %v5560
        %v5562 = vlaneseq
        %v5563 = vshrl.u32 %v5562, 7
        %v5564 = vsub.s32 %v5561, %v5563
        %v5565 = vrot.slane %v5556, %v5564
        %v5567 = vunpack.c.l.s4 1966171168
        %v5568 = vunpack.c.0.s8 %v5567
        %v5569 = vlaneseq
        %v5570 = vshrl.u32 %v5569, 7
        %v5571 = vsub.s32 %v5568, %v5570
        %v5572 = vrot.slane %v5558, %v5571
        %v5573 = vcombine.high %v5565, %v5565
        %v5574 = vcombine.high %v5572, %v5572
        %v5576 = vunpack.c.l.s4 1966171168
        %v5577 = vunpack.c.0.s8 %v5576
        %v5578 = vlaneseq
        %v5579 = vshrl.u32 %v5578, 7
        %v5580 = vsub.s32 %v5577, %v5579
        %v5581 = vrot.slane %v5565, %v5580
        %v5583 = vunpack.c.l.s4 1966171168
        %v5584 = vunpack.c.0.s8 %v5583
        %v5585 = vlaneseq
        %v5586 = vshrl.u32 %v5585, 7
        %v5587 = vsub.s32 %v5584, %v5586
        %v5588 = vrot.slane %v5572, %v5587
        %v5590 = vunpack.c.l.s4 1966171168
        %v5591 = vunpack.c.0.s8 %v5590
        %v5592 = vlaneseq
        %v5593 = vshrl.u32 %v5592, 7
        %v5594 = vsub.s32 %v5591, %v5593
        %v5595 = vrot.slane %v5573, %v5594
        %v5597 = vunpack.c.l.s4 1966171168
        %v5598 = vunpack.c.0.s8 %v5597
        %v5599 = vlaneseq
        %v5600 = vshrl.u32 %v5599, 7
        %v5601 = vsub.s32 %v5598, %v5600
        %v5602 = vrot.slane %v5574, %v5601
        %v5603 = vcombine.high %v5581, %v5581
        %v5604 = vcombine.high %v5588, %v5588
        %v5605 = vcombine.high %v5595, %v5595
        %v5606 = vcombine.high %v5602, %v5602
        %v5607 = vcombine.low %v5581, %v5595
        %v5608 = vcombine.low %v5603, %v5605
        %v5609 = vcombine.low %v5588, %v5602
        %v5610 = vcombine.low %v5604, %v5606
        %v5612 = vunpack.c.l.s4 1966171168
        %v5613 = vunpack.c.0.s8 %v5612
        %v5614 = vlaneseq
        %v5615 = vshrl.u32 %v5614, 7
        %v5616 = vsub.s32 %v5613, %v5615
        %v5617 = vrot.slane %v5607, %v5616
        %v5619 = vunpack.c.l.s4 1966171168
        %v5620 = vunpack.c.0.s8 %v5619
        %v5621 = vlaneseq
        %v5622 = vshrl.u32 %v5621, 7
        %v5623 = vsub.s32 %v5620, %v5622
        %v5624 = vrot.slane %v5608, %v5623
        %v5626 = vunpack.c.l.s4 1966171168
        %v5627 = vunpack.c.0.s8 %v5626
        %v5628 = vlaneseq
        %v5629 = vshrl.u32 %v5628, 7
        %v5630 = vsub.s32 %v5627, %v5629
        %v5631 = vrot.slane %v5609, %v5630
        %v5633 = vunpack.c.l.s4 1966171168
        %v5634 = vunpack.c.0.s8 %v5633
        %v5635 = vlaneseq
        %v5636 = vshrl.u32 %v5635, 7
        %v5637 = vsub.s32 %v5634, %v5636
        %v5638 = vrot.slane %v5610, %v5637
        %v5639 = vcombine.low %v5617, %v5624
        %v5640 = vcombine.low %v5631, %v5638
        %v5642 = vunpack.c.l.s4 1966171168
        %v5643 = vunpack.c.0.s8 %v5642
        %v5644 = vlaneseq
        %v5645 = vshrl.u32 %v5644, 7
        %v5646 = vsub.s32 %v5643, %v5645
        %v5647 = vrot.slane %v5639, %v5646
        %v5649 = vunpack.c.l.s4 1966171168
        %v5650 = vunpack.c.0.s8 %v5649
        %v5651 = vlaneseq
        %v5652 = vshrl.u32 %v5651, 7
        %v5653 = vsub.s32 %v5650, %v5652
        %v5654 = vrot.slane %v5640, %v5653
        %v5655 = vcombine.low %v5647, %v5654
        %5656 = vset.pattern.permute.xlu0 0
        %5657 = vperm.xlu0 %5656, %v5655
        %v5658 = vpop.permute.xlu0 %5657
        %v5659 = vlaneseq
        %v5660 = vshrl.u32 %v5659, 7
        %v5661 = vsub.s32 %v3802, %v5660
        %v5662 = vrot.slane %v5658, %v5661
        %v5664 = vunpack.c.l.s4 1966171168
        %v5665 = vunpack.c.0.s8 %v5664
        %v5666 = vlaneseq
        %v5667 = vshrl.u32 %v5666, 7
        %v5668 = vsub.s32 %v5665, %v5667
        %v5669 = vrot.slane %v5662, %v5668
        %v5671 = vunpack.c.l.s4 1966171168
        %v5672 = vunpack.c.0.s8 %v5671
        %v5673 = vlaneseq
        %v5674 = vshrl.u32 %v5673, 7
        %v5675 = vsub.s32 %v5672, %v5674
        %v5676 = vrot.slane %v5669, %v5675
        %v5678 = vadd.f32 %v5508, %v5676
        %v5680 = vlaneseq
        %v5681 = vshrl.u32 %v5680, 7
        %v5682 = vsub.s32 0, %v5681
        %v5683 = vrot.slane %v5678, %v5682
        %v5685 = vadd.f32 %v5683, %v3800
        %v5686 = vsel %vm3812, %v5685, -inf
        %5687 = vmax.xlane.f32.xlu0 %v5686
        %v5688 = vpop.xlane.xlu0 %5687
        %vm5689 = vcmp.ge.f32.partialorder %v5685, %v5688
        %v5690 = vsel %vm5689, %v3802, 8
        %v5691 = vsel %vm3812, %v5690, 2147483647
        %v5692 = vand.u32 %v5691, 65535
        %v5693 = vshra.s32 %v5691, 16
        %v5694 = vcvt.s32.f32 %v5692
        %v5695 = vcvt.s32.f32 %v5693
        %5696 = vmin.xlane.f32.xlu0 %v5695
        %v5697 = vpop.xlane.xlu0 %5696
        %vm5698 = vcmp.eq.f32.partialorder %v5695, %v5697
        %v5699 = vsel %vm5698, %v5694, inf
        %5700 = vmin.xlane.f32.xlu0 %v5699
        %v5701 = vpop.xlane.xlu0 %5700
        %v5702 = vcvt.f32.s32 %v5701
        %v5703 = vcvt.f32.s32 %v5697
        %v5704 = vshll.u32 %v5703, 16
        %v5705 = vadd.s32 %v5704, %v5702
        %s5706 = sadd.s32 %s3833, 12
        %s5707 = sld [smem:[#allocation3 + %s5706]]
        %p5708 = scmp.gt.s32.totalorder %s5707, 0
        %s5709 = scalar_select %p5708, 1, 0
        %s5710 = scvt.s32.f32 %s5709
        %v5711 = vlaneseq
        %v5712 = vshrl.u32 %v5711, 7
        %v5713 = vsub.s32 4, %v5712
        %v5714 = vrot.slane %v3797, %v5713
        %5716 = vbcast.lane.b32.xlu0 %v5714, 256
        %v5717 = vpop.permute.xlu0 %5716
        %v5719 = vadd.f32 %v5688, %v5717
        %5721 = vbcast.lane.b32.xlu0 %v5683, 256
        %v5722 = vpop.permute.xlu0 %5721
        %v5724 = vsub.f32 %v5719, %v5722
        %v5725 = vstv %s5710
        %v5726 = vmul.f32 %v5725, %v5724
        %v5728 = vcombine.high %v5726, %v5726
        %v5730 = vunpack.c.l.s4 1966171168
        %v5731 = vunpack.c.0.s8 %v5730
        %v5732 = vlaneseq
        %v5733 = vshrl.u32 %v5732, 7
        %v5734 = vsub.s32 %v5731, %v5733
        %v5735 = vrot.slane %v5726, %v5734
        %v5737 = vunpack.c.l.s4 1966171168
        %v5738 = vunpack.c.0.s8 %v5737
        %v5739 = vlaneseq
        %v5740 = vshrl.u32 %v5739, 7
        %v5741 = vsub.s32 %v5738, %v5740
        %v5742 = vrot.slane %v5728, %v5741
        %v5743 = vcombine.high %v5735, %v5735
        %v5744 = vcombine.high %v5742, %v5742
        %v5746 = vunpack.c.l.s4 1966171168
        %v5747 = vunpack.c.0.s8 %v5746
        %v5748 = vlaneseq
        %v5749 = vshrl.u32 %v5748, 7
        %v5750 = vsub.s32 %v5747, %v5749
        %v5751 = vrot.slane %v5735, %v5750
        %v5753 = vunpack.c.l.s4 1966171168
        %v5754 = vunpack.c.0.s8 %v5753
        %v5755 = vlaneseq
        %v5756 = vshrl.u32 %v5755, 7
        %v5757 = vsub.s32 %v5754, %v5756
        %v5758 = vrot.slane %v5742, %v5757
        %v5760 = vunpack.c.l.s4 1966171168
        %v5761 = vunpack.c.0.s8 %v5760
        %v5762 = vlaneseq
        %v5763 = vshrl.u32 %v5762, 7
        %v5764 = vsub.s32 %v5761, %v5763
        %v5765 = vrot.slane %v5743, %v5764
        %v5767 = vunpack.c.l.s4 1966171168
        %v5768 = vunpack.c.0.s8 %v5767
        %v5769 = vlaneseq
        %v5770 = vshrl.u32 %v5769, 7
        %v5771 = vsub.s32 %v5768, %v5770
        %v5772 = vrot.slane %v5744, %v5771
        %v5773 = vcombine.high %v5751, %v5751
        %v5774 = vcombine.high %v5758, %v5758
        %v5775 = vcombine.high %v5765, %v5765
        %v5776 = vcombine.high %v5772, %v5772
        %v5777 = vcombine.low %v5751, %v5765
        %v5778 = vcombine.low %v5773, %v5775
        %v5779 = vcombine.low %v5758, %v5772
        %v5780 = vcombine.low %v5774, %v5776
        %v5782 = vunpack.c.l.s4 1966171168
        %v5783 = vunpack.c.0.s8 %v5782
        %v5784 = vlaneseq
        %v5785 = vshrl.u32 %v5784, 7
        %v5786 = vsub.s32 %v5783, %v5785
        %v5787 = vrot.slane %v5777, %v5786
        %v5789 = vunpack.c.l.s4 1966171168
        %v5790 = vunpack.c.0.s8 %v5789
        %v5791 = vlaneseq
        %v5792 = vshrl.u32 %v5791, 7
        %v5793 = vsub.s32 %v5790, %v5792
        %v5794 = vrot.slane %v5778, %v5793
        %v5796 = vunpack.c.l.s4 1966171168
        %v5797 = vunpack.c.0.s8 %v5796
        %v5798 = vlaneseq
        %v5799 = vshrl.u32 %v5798, 7
        %v5800 = vsub.s32 %v5797, %v5799
        %v5801 = vrot.slane %v5779, %v5800
        %v5803 = vunpack.c.l.s4 1966171168
        %v5804 = vunpack.c.0.s8 %v5803
        %v5805 = vlaneseq
        %v5806 = vshrl.u32 %v5805, 7
        %v5807 = vsub.s32 %v5804, %v5806
        %v5808 = vrot.slane %v5780, %v5807
        %v5809 = vcombine.low %v5787, %v5794
        %v5810 = vcombine.low %v5801, %v5808
        %v5812 = vunpack.c.l.s4 1966171168
        %v5813 = vunpack.c.0.s8 %v5812
        %v5814 = vlaneseq
        %v5815 = vshrl.u32 %v5814, 7
        %v5816 = vsub.s32 %v5813, %v5815
        %v5817 = vrot.slane %v5809, %v5816
        %v5819 = vunpack.c.l.s4 1966171168
        %v5820 = vunpack.c.0.s8 %v5819
        %v5821 = vlaneseq
        %v5822 = vshrl.u32 %v5821, 7
        %v5823 = vsub.s32 %v5820, %v5822
        %v5824 = vrot.slane %v5810, %v5823
        %v5825 = vcombine.low %v5817, %v5824
        %5826 = vset.pattern.permute.xlu0 0
        %5827 = vperm.xlu0 %5826, %v5825
        %v5828 = vpop.permute.xlu0 %5827
        %v5829 = vlaneseq
        %v5830 = vshrl.u32 %v5829, 7
        %v5831 = vsub.s32 %v3802, %v5830
        %v5832 = vrot.slane %v5828, %v5831
        %v5834 = vunpack.c.l.s4 1966171168
        %v5835 = vunpack.c.0.s8 %v5834
        %v5836 = vlaneseq
        %v5837 = vshrl.u32 %v5836, 7
        %v5838 = vsub.s32 %v5835, %v5837
        %v5839 = vrot.slane %v5832, %v5838
        %v5841 = vunpack.c.l.s4 1966171168
        %v5842 = vunpack.c.0.s8 %v5841
        %v5843 = vlaneseq
        %v5844 = vshrl.u32 %v5843, 7
        %v5845 = vsub.s32 %v5842, %v5844
        %v5846 = vrot.slane %v5839, %v5845
        %v5848 = vadd.f32 %v5678, %v5846
        %v5850 = vlaneseq
        %v5851 = vshrl.u32 %v5850, 7
        %v5852 = vsub.s32 0, %v5851
        %v5853 = vrot.slane %v5848, %v5852
        %v5855 = vadd.f32 %v5853, %v3800
        %v5856 = vsel %vm3812, %v5855, -inf
        %5857 = vmax.xlane.f32.xlu0 %v5856
        %v5858 = vpop.xlane.xlu0 %5857
        %vm5859 = vcmp.ge.f32.partialorder %v5855, %v5858
        %v5860 = vsel %vm5859, %v3802, 8
        %v5861 = vsel %vm3812, %v5860, 2147483647
        %v5862 = vand.u32 %v5861, 65535
        %v5863 = vshra.s32 %v5861, 16
        %v5864 = vcvt.s32.f32 %v5862
        %v5865 = vcvt.s32.f32 %v5863
        %5866 = vmin.xlane.f32.xlu0 %v5865
        %v5867 = vpop.xlane.xlu0 %5866
        %vm5868 = vcmp.eq.f32.partialorder %v5865, %v5867
        %v5869 = vsel %vm5868, %v5864, inf
        %5870 = vmin.xlane.f32.xlu0 %v5869
        %v5871 = vpop.xlane.xlu0 %5870
        %v5872 = vcvt.f32.s32 %v5871
        %v5873 = vcvt.f32.s32 %v5867
        %v5874 = vshll.u32 %v5873, 16
        %v5875 = vadd.s32 %v5874, %v5872
        %s5876 = sadd.s32 %s3833, 13
        %s5877 = sld [smem:[#allocation3 + %s5876]]
        %p5878 = scmp.gt.s32.totalorder %s5877, 0
        %s5879 = scalar_select %p5878, 1, 0
        %s5880 = scvt.s32.f32 %s5879
        %v5881 = vlaneseq
        %v5882 = vshrl.u32 %v5881, 7
        %v5883 = vsub.s32 5, %v5882
        %v5884 = vrot.slane %v3797, %v5883
        %5886 = vbcast.lane.b32.xlu0 %v5884, 256
        %v5887 = vpop.permute.xlu0 %5886
        %v5889 = vadd.f32 %v5858, %v5887
        %5891 = vbcast.lane.b32.xlu0 %v5853, 256
        %v5892 = vpop.permute.xlu0 %5891
        %v5894 = vsub.f32 %v5889, %v5892
        %v5895 = vstv %s5880
        %v5896 = vmul.f32 %v5895, %v5894
        %v5898 = vcombine.high %v5896, %v5896
        %v5900 = vunpack.c.l.s4 1966171168
        %v5901 = vunpack.c.0.s8 %v5900
        %v5902 = vlaneseq
        %v5903 = vshrl.u32 %v5902, 7
        %v5904 = vsub.s32 %v5901, %v5903
        %v5905 = vrot.slane %v5896, %v5904
        %v5907 = vunpack.c.l.s4 1966171168
        %v5908 = vunpack.c.0.s8 %v5907
        %v5909 = vlaneseq
        %v5910 = vshrl.u32 %v5909, 7
        %v5911 = vsub.s32 %v5908, %v5910
        %v5912 = vrot.slane %v5898, %v5911
        %v5913 = vcombine.high %v5905, %v5905
        %v5914 = vcombine.high %v5912, %v5912
        %v5916 = vunpack.c.l.s4 1966171168
        %v5917 = vunpack.c.0.s8 %v5916
        %v5918 = vlaneseq
        %v5919 = vshrl.u32 %v5918, 7
        %v5920 = vsub.s32 %v5917, %v5919
        %v5921 = vrot.slane %v5905, %v5920
        %v5923 = vunpack.c.l.s4 1966171168
        %v5924 = vunpack.c.0.s8 %v5923
        %v5925 = vlaneseq
        %v5926 = vshrl.u32 %v5925, 7
        %v5927 = vsub.s32 %v5924, %v5926
        %v5928 = vrot.slane %v5912, %v5927
        %v5930 = vunpack.c.l.s4 1966171168
        %v5931 = vunpack.c.0.s8 %v5930
        %v5932 = vlaneseq
        %v5933 = vshrl.u32 %v5932, 7
        %v5934 = vsub.s32 %v5931, %v5933
        %v5935 = vrot.slane %v5913, %v5934
        %v5937 = vunpack.c.l.s4 1966171168
        %v5938 = vunpack.c.0.s8 %v5937
        %v5939 = vlaneseq
        %v5940 = vshrl.u32 %v5939, 7
        %v5941 = vsub.s32 %v5938, %v5940
        %v5942 = vrot.slane %v5914, %v5941
        %v5943 = vcombine.high %v5921, %v5921
        %v5944 = vcombine.high %v5928, %v5928
        %v5945 = vcombine.high %v5935, %v5935
        %v5946 = vcombine.high %v5942, %v5942
        %v5947 = vcombine.low %v5921, %v5935
        %v5948 = vcombine.low %v5943, %v5945
        %v5949 = vcombine.low %v5928, %v5942
        %v5950 = vcombine.low %v5944, %v5946
        %v5952 = vunpack.c.l.s4 1966171168
        %v5953 = vunpack.c.0.s8 %v5952
        %v5954 = vlaneseq
        %v5955 = vshrl.u32 %v5954, 7
        %v5956 = vsub.s32 %v5953, %v5955
        %v5957 = vrot.slane %v5947, %v5956
        %v5959 = vunpack.c.l.s4 1966171168
        %v5960 = vunpack.c.0.s8 %v5959
        %v5961 = vlaneseq
        %v5962 = vshrl.u32 %v5961, 7
        %v5963 = vsub.s32 %v5960, %v5962
        %v5964 = vrot.slane %v5948, %v5963
        %v5966 = vunpack.c.l.s4 1966171168
        %v5967 = vunpack.c.0.s8 %v5966
        %v5968 = vlaneseq
        %v5969 = vshrl.u32 %v5968, 7
        %v5970 = vsub.s32 %v5967, %v5969
        %v5971 = vrot.slane %v5949, %v5970
        %v5973 = vunpack.c.l.s4 1966171168
        %v5974 = vunpack.c.0.s8 %v5973
        %v5975 = vlaneseq
        %v5976 = vshrl.u32 %v5975, 7
        %v5977 = vsub.s32 %v5974, %v5976
        %v5978 = vrot.slane %v5950, %v5977
        %v5979 = vcombine.low %v5957, %v5964
        %v5980 = vcombine.low %v5971, %v5978
        %v5982 = vunpack.c.l.s4 1966171168
        %v5983 = vunpack.c.0.s8 %v5982
        %v5984 = vlaneseq
        %v5985 = vshrl.u32 %v5984, 7
        %v5986 = vsub.s32 %v5983, %v5985
        %v5987 = vrot.slane %v5979, %v5986
        %v5989 = vunpack.c.l.s4 1966171168
        %v5990 = vunpack.c.0.s8 %v5989
        %v5991 = vlaneseq
        %v5992 = vshrl.u32 %v5991, 7
        %v5993 = vsub.s32 %v5990, %v5992
        %v5994 = vrot.slane %v5980, %v5993
        %v5995 = vcombine.low %v5987, %v5994
        %5996 = vset.pattern.permute.xlu0 0
        %5997 = vperm.xlu0 %5996, %v5995
        %v5998 = vpop.permute.xlu0 %5997
        %v5999 = vlaneseq
        %v6000 = vshrl.u32 %v5999, 7
        %v6001 = vsub.s32 %v3802, %v6000
        %v6002 = vrot.slane %v5998, %v6001
        %v6004 = vunpack.c.l.s4 1966171168
        %v6005 = vunpack.c.0.s8 %v6004
        %v6006 = vlaneseq
        %v6007 = vshrl.u32 %v6006, 7
        %v6008 = vsub.s32 %v6005, %v6007
        %v6009 = vrot.slane %v6002, %v6008
        %v6011 = vunpack.c.l.s4 1966171168
        %v6012 = vunpack.c.0.s8 %v6011
        %v6013 = vlaneseq
        %v6014 = vshrl.u32 %v6013, 7
        %v6015 = vsub.s32 %v6012, %v6014
        %v6016 = vrot.slane %v6009, %v6015
        %v6018 = vadd.f32 %v5848, %v6016
        %v6020 = vlaneseq
        %v6021 = vshrl.u32 %v6020, 7
        %v6022 = vsub.s32 0, %v6021
        %v6023 = vrot.slane %v6018, %v6022
        %v6025 = vadd.f32 %v6023, %v3800
        %v6026 = vsel %vm3812, %v6025, -inf
        %6027 = vmax.xlane.f32.xlu0 %v6026
        %v6028 = vpop.xlane.xlu0 %6027
        %vm6029 = vcmp.ge.f32.partialorder %v6025, %v6028
        %v6030 = vsel %vm6029, %v3802, 8
        %v6031 = vsel %vm3812, %v6030, 2147483647
        %v6032 = vand.u32 %v6031, 65535
        %v6033 = vshra.s32 %v6031, 16
        %v6034 = vcvt.s32.f32 %v6032
        %v6035 = vcvt.s32.f32 %v6033
        %6036 = vmin.xlane.f32.xlu0 %v6035
        %v6037 = vpop.xlane.xlu0 %6036
        %vm6038 = vcmp.eq.f32.partialorder %v6035, %v6037
        %v6039 = vsel %vm6038, %v6034, inf
        %6040 = vmin.xlane.f32.xlu0 %v6039
        %v6041 = vpop.xlane.xlu0 %6040
        %v6042 = vcvt.f32.s32 %v6041
        %v6043 = vcvt.f32.s32 %v6037
        %v6044 = vshll.u32 %v6043, 16
        %v6045 = vadd.s32 %v6044, %v6042
        %s6046 = sadd.s32 %s3833, 14
        %s6047 = sld [smem:[#allocation3 + %s6046]]
        %p6048 = scmp.gt.s32.totalorder %s6047, 0
        %s6049 = scalar_select %p6048, 1, 0
        %s6050 = scvt.s32.f32 %s6049
        %v6051 = vlaneseq
        %v6052 = vshrl.u32 %v6051, 7
        %v6053 = vsub.s32 6, %v6052
        %v6054 = vrot.slane %v3797, %v6053
        %6056 = vbcast.lane.b32.xlu0 %v6054, 256
        %v6057 = vpop.permute.xlu0 %6056
        %v6059 = vadd.f32 %v6028, %v6057
        %6061 = vbcast.lane.b32.xlu0 %v6023, 256
        %v6062 = vpop.permute.xlu0 %6061
        %v6064 = vsub.f32 %v6059, %v6062
        %v6065 = vstv %s6050
        %v6066 = vmul.f32 %v6065, %v6064
        %v6068 = vcombine.high %v6066, %v6066
        %v6070 = vunpack.c.l.s4 1966171168
        %v6071 = vunpack.c.0.s8 %v6070
        %v6072 = vlaneseq
        %v6073 = vshrl.u32 %v6072, 7
        %v6074 = vsub.s32 %v6071, %v6073
        %v6075 = vrot.slane %v6066, %v6074
        %v6077 = vunpack.c.l.s4 1966171168
        %v6078 = vunpack.c.0.s8 %v6077
        %v6079 = vlaneseq
        %v6080 = vshrl.u32 %v6079, 7
        %v6081 = vsub.s32 %v6078, %v6080
        %v6082 = vrot.slane %v6068, %v6081
        %v6083 = vcombine.high %v6075, %v6075
        %v6084 = vcombine.high %v6082, %v6082
        %v6086 = vunpack.c.l.s4 1966171168
        %v6087 = vunpack.c.0.s8 %v6086
        %v6088 = vlaneseq
        %v6089 = vshrl.u32 %v6088, 7
        %v6090 = vsub.s32 %v6087, %v6089
        %v6091 = vrot.slane %v6075, %v6090
        %v6093 = vunpack.c.l.s4 1966171168
        %v6094 = vunpack.c.0.s8 %v6093
        %v6095 = vlaneseq
        %v6096 = vshrl.u32 %v6095, 7
        %v6097 = vsub.s32 %v6094, %v6096
        %v6098 = vrot.slane %v6082, %v6097
        %v6100 = vunpack.c.l.s4 1966171168
        %v6101 = vunpack.c.0.s8 %v6100
        %v6102 = vlaneseq
        %v6103 = vshrl.u32 %v6102, 7
        %v6104 = vsub.s32 %v6101, %v6103
        %v6105 = vrot.slane %v6083, %v6104
        %v6107 = vunpack.c.l.s4 1966171168
        %v6108 = vunpack.c.0.s8 %v6107
        %v6109 = vlaneseq
        %v6110 = vshrl.u32 %v6109, 7
        %v6111 = vsub.s32 %v6108, %v6110
        %v6112 = vrot.slane %v6084, %v6111
        %v6113 = vcombine.high %v6091, %v6091
        %v6114 = vcombine.high %v6098, %v6098
        %v6115 = vcombine.high %v6105, %v6105
        %v6116 = vcombine.high %v6112, %v6112
        %v6117 = vcombine.low %v6091, %v6105
        %v6118 = vcombine.low %v6113, %v6115
        %v6119 = vcombine.low %v6098, %v6112
        %v6120 = vcombine.low %v6114, %v6116
        %v6122 = vunpack.c.l.s4 1966171168
        %v6123 = vunpack.c.0.s8 %v6122
        %v6124 = vlaneseq
        %v6125 = vshrl.u32 %v6124, 7
        %v6126 = vsub.s32 %v6123, %v6125
        %v6127 = vrot.slane %v6117, %v6126
        %v6129 = vunpack.c.l.s4 1966171168
        %v6130 = vunpack.c.0.s8 %v6129
        %v6131 = vlaneseq
        %v6132 = vshrl.u32 %v6131, 7
        %v6133 = vsub.s32 %v6130, %v6132
        %v6134 = vrot.slane %v6118, %v6133
        %v6136 = vunpack.c.l.s4 1966171168
        %v6137 = vunpack.c.0.s8 %v6136
        %v6138 = vlaneseq
        %v6139 = vshrl.u32 %v6138, 7
        %v6140 = vsub.s32 %v6137, %v6139
        %v6141 = vrot.slane %v6119, %v6140
        %v6143 = vunpack.c.l.s4 1966171168
        %v6144 = vunpack.c.0.s8 %v6143
        %v6145 = vlaneseq
        %v6146 = vshrl.u32 %v6145, 7
        %v6147 = vsub.s32 %v6144, %v6146
        %v6148 = vrot.slane %v6120, %v6147
        %v6149 = vcombine.low %v6127, %v6134
        %v6150 = vcombine.low %v6141, %v6148
        %v6152 = vunpack.c.l.s4 1966171168
        %v6153 = vunpack.c.0.s8 %v6152
        %v6154 = vlaneseq
        %v6155 = vshrl.u32 %v6154, 7
        %v6156 = vsub.s32 %v6153, %v6155
        %v6157 = vrot.slane %v6149, %v6156
        %v6159 = vunpack.c.l.s4 1966171168
        %v6160 = vunpack.c.0.s8 %v6159
        %v6161 = vlaneseq
        %v6162 = vshrl.u32 %v6161, 7
        %v6163 = vsub.s32 %v6160, %v6162
        %v6164 = vrot.slane %v6150, %v6163
        %v6165 = vcombine.low %v6157, %v6164
        %6166 = vset.pattern.permute.xlu0 0
        %6167 = vperm.xlu0 %6166, %v6165
        %v6168 = vpop.permute.xlu0 %6167
        %v6169 = vlaneseq
        %v6170 = vshrl.u32 %v6169, 7
        %v6171 = vsub.s32 %v3802, %v6170
        %v6172 = vrot.slane %v6168, %v6171
        %v6174 = vunpack.c.l.s4 1966171168
        %v6175 = vunpack.c.0.s8 %v6174
        %v6176 = vlaneseq
        %v6177 = vshrl.u32 %v6176, 7
        %v6178 = vsub.s32 %v6175, %v6177
        %v6179 = vrot.slane %v6172, %v6178
        %v6181 = vunpack.c.l.s4 1966171168
        %v6182 = vunpack.c.0.s8 %v6181
        %v6183 = vlaneseq
        %v6184 = vshrl.u32 %v6183, 7
        %v6185 = vsub.s32 %v6182, %v6184
        %v6186 = vrot.slane %v6179, %v6185
        %v6188 = vadd.f32 %v6018, %v6186
        %v6190 = vlaneseq
        %v6191 = vshrl.u32 %v6190, 7
        %v6192 = vsub.s32 0, %v6191
        %v6193 = vrot.slane %v6188, %v6192
        %v6195 = vadd.f32 %v6193, %v3800
        %v6196 = vsel %vm3812, %v6195, -inf
        %6197 = vmax.xlane.f32.xlu0 %v6196
        %v6198 = vpop.xlane.xlu0 %6197
        %vm6199 = vcmp.ge.f32.partialorder %v6195, %v6198
        %v6200 = vsel %vm6199, %v3802, 8
        %v6201 = vsel %vm3812, %v6200, 2147483647
        %v6202 = vand.u32 %v6201, 65535
        %v6203 = vshra.s32 %v6201, 16
        %v6204 = vcvt.s32.f32 %v6202
        %v6205 = vcvt.s32.f32 %v6203
        %6206 = vmin.xlane.f32.xlu0 %v6205
        %v6207 = vpop.xlane.xlu0 %6206
        %vm6208 = vcmp.eq.f32.partialorder %v6205, %v6207
        %v6209 = vsel %vm6208, %v6204, inf
        %6210 = vmin.xlane.f32.xlu0 %v6209
        %v6211 = vpop.xlane.xlu0 %6210
        %v6212 = vcvt.f32.s32 %v6211
        %v6213 = vcvt.f32.s32 %v6207
        %v6214 = vshll.u32 %v6213, 16
        %v6215 = vadd.s32 %v6214, %v6212
        %s6216 = sadd.s32 %s3833, 15
        %s6217 = sld [smem:[#allocation3 + %s6216]]
        %p6218 = scmp.gt.s32.totalorder %s6217, 0
        %s6219 = scalar_select %p6218, 1, 0
        %s6220 = scvt.s32.f32 %s6219
        %v6221 = vlaneseq
        %v6222 = vshrl.u32 %v6221, 7
        %v6223 = vsub.s32 7, %v6222
        %v6224 = vrot.slane %v3797, %v6223
        %6226 = vbcast.lane.b32.xlu0 %v6224, 256
        %v6227 = vpop.permute.xlu0 %6226
        %v6229 = vadd.f32 %v6198, %v6227
        %6231 = vbcast.lane.b32.xlu0 %v6193, 256
        %v6232 = vpop.permute.xlu0 %6231
        %v6234 = vsub.f32 %v6229, %v6232
        %v6235 = vstv %s6220
        %v6236 = vmul.f32 %v6235, %v6234
        %v6238 = vcombine.high %v6236, %v6236
        %v6240 = vunpack.c.l.s4 1966171168
        %v6241 = vunpack.c.0.s8 %v6240
        %v6242 = vlaneseq
        %v6243 = vshrl.u32 %v6242, 7
        %v6244 = vsub.s32 %v6241, %v6243
        %v6245 = vrot.slane %v6236, %v6244
        %v6247 = vunpack.c.l.s4 1966171168
        %v6248 = vunpack.c.0.s8 %v6247
        %v6249 = vlaneseq
        %v6250 = vshrl.u32 %v6249, 7
        %v6251 = vsub.s32 %v6248, %v6250
        %v6252 = vrot.slane %v6238, %v6251
        %v6253 = vcombine.high %v6245, %v6245
        %v6254 = vcombine.high %v6252, %v6252
        %v6256 = vunpack.c.l.s4 1966171168
        %v6257 = vunpack.c.0.s8 %v6256
        %v6258 = vlaneseq
        %v6259 = vshrl.u32 %v6258, 7
        %v6260 = vsub.s32 %v6257, %v6259
        %v6261 = vrot.slane %v6245, %v6260
        %v6263 = vunpack.c.l.s4 1966171168
        %v6264 = vunpack.c.0.s8 %v6263
        %v6265 = vlaneseq
        %v6266 = vshrl.u32 %v6265, 7
        %v6267 = vsub.s32 %v6264, %v6266
        %v6268 = vrot.slane %v6252, %v6267
        %v6270 = vunpack.c.l.s4 1966171168
        %v6271 = vunpack.c.0.s8 %v6270
        %v6272 = vlaneseq
        %v6273 = vshrl.u32 %v6272, 7
        %v6274 = vsub.s32 %v6271, %v6273
        %v6275 = vrot.slane %v6253, %v6274
        %v6277 = vunpack.c.l.s4 1966171168
        %v6278 = vunpack.c.0.s8 %v6277
        %v6279 = vlaneseq
        %v6280 = vshrl.u32 %v6279, 7
        %v6281 = vsub.s32 %v6278, %v6280
        %v6282 = vrot.slane %v6254, %v6281
        %v6283 = vcombine.high %v6261, %v6261
        %v6284 = vcombine.high %v6268, %v6268
        %v6285 = vcombine.high %v6275, %v6275
        %v6286 = vcombine.high %v6282, %v6282
        %v6287 = vcombine.low %v6261, %v6275
        %v6288 = vcombine.low %v6283, %v6285
        %v6289 = vcombine.low %v6268, %v6282
        %v6290 = vcombine.low %v6284, %v6286
        %v6292 = vunpack.c.l.s4 1966171168
        %v6293 = vunpack.c.0.s8 %v6292
        %v6294 = vlaneseq
        %v6295 = vshrl.u32 %v6294, 7
        %v6296 = vsub.s32 %v6293, %v6295
        %v6297 = vrot.slane %v6287, %v6296
        %v6299 = vunpack.c.l.s4 1966171168
        %v6300 = vunpack.c.0.s8 %v6299
        %v6301 = vlaneseq
        %v6302 = vshrl.u32 %v6301, 7
        %v6303 = vsub.s32 %v6300, %v6302
        %v6304 = vrot.slane %v6288, %v6303
        %v6306 = vunpack.c.l.s4 1966171168
        %v6307 = vunpack.c.0.s8 %v6306
        %v6308 = vlaneseq
        %v6309 = vshrl.u32 %v6308, 7
        %v6310 = vsub.s32 %v6307, %v6309
        %v6311 = vrot.slane %v6289, %v6310
        %v6313 = vunpack.c.l.s4 1966171168
        %v6314 = vunpack.c.0.s8 %v6313
        %v6315 = vlaneseq
        %v6316 = vshrl.u32 %v6315, 7
        %v6317 = vsub.s32 %v6314, %v6316
        %v6318 = vrot.slane %v6290, %v6317
        %v6319 = vcombine.low %v6297, %v6304
        %v6320 = vcombine.low %v6311, %v6318
        %v6322 = vunpack.c.l.s4 1966171168
        %v6323 = vunpack.c.0.s8 %v6322
        %v6324 = vlaneseq
        %v6325 = vshrl.u32 %v6324, 7
        %v6326 = vsub.s32 %v6323, %v6325
        %v6327 = vrot.slane %v6319, %v6326
        %v6329 = vunpack.c.l.s4 1966171168
        %v6330 = vunpack.c.0.s8 %v6329
        %v6331 = vlaneseq
        %v6332 = vshrl.u32 %v6331, 7
        %v6333 = vsub.s32 %v6330, %v6332
        %v6334 = vrot.slane %v6320, %v6333
        %v6335 = vcombine.low %v6327, %v6334
        %6336 = vset.pattern.permute.xlu0 0
        %6337 = vperm.xlu0 %6336, %v6335
        %v6338 = vpop.permute.xlu0 %6337
        %v6339 = vlaneseq
        %v6340 = vshrl.u32 %v6339, 7
        %v6341 = vsub.s32 %v3802, %v6340
        %v6342 = vrot.slane %v6338, %v6341
        %v6344 = vunpack.c.l.s4 1966171168
        %v6345 = vunpack.c.0.s8 %v6344
        %v6346 = vlaneseq
        %v6347 = vshrl.u32 %v6346, 7
        %v6348 = vsub.s32 %v6345, %v6347
        %v6349 = vrot.slane %v6342, %v6348
        %v6351 = vunpack.c.l.s4 1966171168
        %v6352 = vunpack.c.0.s8 %v6351
        %v6353 = vlaneseq
        %v6354 = vshrl.u32 %v6353, 7
        %v6355 = vsub.s32 %v6352, %v6354
        %v6356 = vrot.slane %v6349, %v6355
        %v6358 = vadd.f32 %v6188, %v6356
        %v6359 = vld [vmem:[%s24] sm:$0x1]
        %v6360 = vadd.f32 %v6358, %v6359
        %vm6361 = vcmask 57344
        %v6362 = vsel %vm6361, %v6360, -inf
        %6363 = vmax.xlane.f32.xlu0 %v6362
        %v6364 = vpop.xlane.xlu0 %6363
        %vm6365 = vcmp.ge.f32.partialorder %v6360, %v6364
        %v6366 = vsel %vm6365, %v3802, 8
        %v6367 = vsel %vm6361, %v6366, 2147483647
        %v6368 = vand.u32 %v6367, 65535
        %v6369 = vshra.s32 %v6367, 16
        %v6370 = vcvt.s32.f32 %v6368
        %v6371 = vcvt.s32.f32 %v6369
        %6372 = vmin.xlane.f32.xlu0 %v6371
        %v6373 = vpop.xlane.xlu0 %6372
        %vm6374 = vcmp.eq.f32.partialorder %v6371, %v6373
        %v6375 = vsel %vm6374, %v6370, inf
        %6376 = vmin.xlane.f32.xlu0 %v6375
        %v6377 = vpop.xlane.xlu0 %6376
        %v6378 = vcvt.f32.s32 %v6377
        %v6379 = vcvt.f32.s32 %v6373
        %v6380 = vshll.u32 %v6379, 16
        %v6381 = vadd.s32 %v6380, %v6378
        %v6382 = vstv %s6217
        %v6383 = vmul.u32 %v6382, %v6381
        %vm6384 = vcmp.eq.s32.totalorder %v3802, 15
        %v6385 = vsel %vm6384, %v6383, 0
        %vm6386 = vcmp.eq.s32.totalorder %v3802, %v6381
        %v6387 = vlaneseq
        %v6388 = vshrl.u32 %v6387, 7
        %v6389 = vsub.s32 %v3802, %v6388
        %v6390 = vrot.slane %v6215, %v6389
        %v6391 = vsel %vm6386, %v6390, 0
        %v6392 = vsel %vm6361, %v6391, 0
        %v6393 = vand.u32 %v6392, 65535
        %v6394 = vshrl.u32 %v6392, 16
        %v6395 = vcvt.s32.f32 %v6393
        %v6396 = vcvt.s32.f32 %v6394
        %6397 = vadd.xlane.f32.xlu0 %v6395
        %v6398 = vpop.xlane.xlu0 %6397
        %6399 = vadd.xlane.f32.xlu0 %v6396
        %v6400 = vpop.xlane.xlu0 %6399
        %v6401 = vcvt.f32.s32 %v6398
        %v6402 = vcvt.f32.s32 %v6400
        %v6403 = vshll.u32 %v6402, 16
        %v6404 = vadd.s32 %v6403, %v6401
        %v6405 = vsub.s32 %v6404, %v6381
        %v6406 = vmul.u32 %v6382, %v6405
        %v6407 = vadd.s32 %v6381, %v6406
        %v6408 = vstv %s6047
        %v6409 = vmul.u32 %v6408, %v6407
        %vm6410 = vcmp.eq.s32.totalorder %v3802, 14
        %v6411 = vsel %vm6410, %v6409, %v6385
        %vm6412 = vcmp.eq.s32.totalorder %v3802, %v6407
        %v6413 = vlaneseq
        %v6414 = vshrl.u32 %v6413, 7
        %v6415 = vsub.s32 %v3802, %v6414
        %v6416 = vrot.slane %v6045, %v6415
        %v6417 = vsel %vm6412, %v6416, 0
        %v6418 = vsel %vm6361, %v6417, 0
        %v6419 = vand.u32 %v6418, 65535
        %v6420 = vshrl.u32 %v6418, 16
        %v6421 = vcvt.s32.f32 %v6419
        %v6422 = vcvt.s32.f32 %v6420
        %6423 = vadd.xlane.f32.xlu0 %v6421
        %v6424 = vpop.xlane.xlu0 %6423
        %6425 = vadd.xlane.f32.xlu0 %v6422
        %v6426 = vpop.xlane.xlu0 %6425
        %v6427 = vcvt.f32.s32 %v6424
        %v6428 = vcvt.f32.s32 %v6426
        %v6429 = vshll.u32 %v6428, 16
        %v6430 = vadd.s32 %v6429, %v6427
        %v6431 = vsub.s32 %v6430, %v6407
        %v6432 = vmul.u32 %v6408, %v6431
        %v6433 = vadd.s32 %v6407, %v6432
        %v6434 = vstv %s5877
        %v6435 = vmul.u32 %v6434, %v6433
        %vm6436 = vcmp.eq.s32.totalorder %v3802, 13
        %v6437 = vsel %vm6436, %v6435, %v6411
        %vm6438 = vcmp.eq.s32.totalorder %v3802, %v6433
        %v6439 = vlaneseq
        %v6440 = vshrl.u32 %v6439, 7
        %v6441 = vsub.s32 %v3802, %v6440
        %v6442 = vrot.slane %v5875, %v6441
        %v6443 = vsel %vm6438, %v6442, 0
        %v6444 = vsel %vm6361, %v6443, 0
        %v6445 = vand.u32 %v6444, 65535
        %v6446 = vshrl.u32 %v6444, 16
        %v6447 = vcvt.s32.f32 %v6445
        %v6448 = vcvt.s32.f32 %v6446
        %6449 = vadd.xlane.f32.xlu0 %v6447
        %v6450 = vpop.xlane.xlu0 %6449
        %6451 = vadd.xlane.f32.xlu0 %v6448
        %v6452 = vpop.xlane.xlu0 %6451
        %v6453 = vcvt.f32.s32 %v6450
        %v6454 = vcvt.f32.s32 %v6452
        %v6455 = vshll.u32 %v6454, 16
        %v6456 = vadd.s32 %v6455, %v6453
        %v6457 = vsub.s32 %v6456, %v6433
        %v6458 = vmul.u32 %v6434, %v6457
        %v6459 = vadd.s32 %v6433, %v6458
        %v6460 = vstv %s5707
        %v6461 = vmul.u32 %v6460, %v6459
        %vm6462 = vcmp.eq.s32.totalorder %v3802, 12
        %v6463 = vsel %vm6462, %v6461, %v6437
        %vm6464 = vcmp.eq.s32.totalorder %v3802, %v6459
        %v6465 = vlaneseq
        %v6466 = vshrl.u32 %v6465, 7
        %v6467 = vsub.s32 %v3802, %v6466
        %v6468 = vrot.slane %v5705, %v6467
        %v6469 = vsel %vm6464, %v6468, 0
        %v6470 = vsel %vm6361, %v6469, 0
        %v6471 = vand.u32 %v6470, 65535
        %v6472 = vshrl.u32 %v6470, 16
        %v6473 = vcvt.s32.f32 %v6471
        %v6474 = vcvt.s32.f32 %v6472
        %6475 = vadd.xlane.f32.xlu0 %v6473
        %v6476 = vpop.xlane.xlu0 %6475
        %6477 = vadd.xlane.f32.xlu0 %v6474
        %v6478 = vpop.xlane.xlu0 %6477
        %v6479 = vcvt.f32.s32 %v6476
        %v6480 = vcvt.f32.s32 %v6478
        %v6481 = vshll.u32 %v6480, 16
        %v6482 = vadd.s32 %v6481, %v6479
        %v6483 = vsub.s32 %v6482, %v6459
        %v6484 = vmul.u32 %v6460, %v6483
        %v6485 = vadd.s32 %v6459, %v6484
        %v6486 = vstv %s5537
        %v6487 = vmul.u32 %v6486, %v6485
        %vm6488 = vcmp.eq.s32.totalorder %v3802, 11
        %v6489 = vsel %vm6488, %v6487, %v6463
        %vm6490 = vcmp.eq.s32.totalorder %v3802, %v6485
        %v6491 = vlaneseq
        %v6492 = vshrl.u32 %v6491, 7
        %v6493 = vsub.s32 %v3802, %v6492
        %v6494 = vrot.slane %v5535, %v6493
        %v6495 = vsel %vm6490, %v6494, 0
        %v6496 = vsel %vm6361, %v6495, 0
        %v6497 = vand.u32 %v6496, 65535
        %v6498 = vshrl.u32 %v6496, 16
        %v6499 = vcvt.s32.f32 %v6497
        %v6500 = vcvt.s32.f32 %v6498
        %6501 = vadd.xlane.f32.xlu0 %v6499
        %v6502 = vpop.xlane.xlu0 %6501
        %6503 = vadd.xlane.f32.xlu0 %v6500
        %v6504 = vpop.xlane.xlu0 %6503
        %v6505 = vcvt.f32.s32 %v6502
        %v6506 = vcvt.f32.s32 %v6504
        %v6507 = vshll.u32 %v6506, 16
        %v6508 = vadd.s32 %v6507, %v6505
        %v6509 = vsub.s32 %v6508, %v6485
        %v6510 = vmul.u32 %v6486, %v6509
        %v6511 = vadd.s32 %v6485, %v6510
        %v6512 = vstv %s5367
        %v6513 = vmul.u32 %v6512, %v6511
        %vm6514 = vcmp.eq.s32.totalorder %v3802, 10
        %v6515 = vsel %vm6514, %v6513, %v6489
        %vm6516 = vcmp.eq.s32.totalorder %v3802, %v6511
        %v6517 = vlaneseq
        %v6518 = vshrl.u32 %v6517, 7
        %v6519 = vsub.s32 %v3802, %v6518
        %v6520 = vrot.slane %v5365, %v6519
        %v6521 = vsel %vm6516, %v6520, 0
        %v6522 = vsel %vm6361, %v6521, 0
        %v6523 = vand.u32 %v6522, 65535
        %v6524 = vshrl.u32 %v6522, 16
        %v6525 = vcvt.s32.f32 %v6523
        %v6526 = vcvt.s32.f32 %v6524
        %6527 = vadd.xlane.f32.xlu0 %v6525
        %v6528 = vpop.xlane.xlu0 %6527
        %6529 = vadd.xlane.f32.xlu0 %v6526
        %v6530 = vpop.xlane.xlu0 %6529
        %v6531 = vcvt.f32.s32 %v6528
        %v6532 = vcvt.f32.s32 %v6530
        %v6533 = vshll.u32 %v6532, 16
        %v6534 = vadd.s32 %v6533, %v6531
        %v6535 = vsub.s32 %v6534, %v6511
        %v6536 = vmul.u32 %v6512, %v6535
        %v6537 = vadd.s32 %v6511, %v6536
        %v6538 = vstv %s5197
        %v6539 = vmul.u32 %v6538, %v6537
        %vm6540 = vcmp.eq.s32.totalorder %v3802, 9
        %v6541 = vsel %vm6540, %v6539, %v6515
        %vm6542 = vcmp.eq.s32.totalorder %v3802, %v6537
        %v6543 = vlaneseq
        %v6544 = vshrl.u32 %v6543, 7
        %v6545 = vsub.s32 %v3802, %v6544
        %v6546 = vrot.slane %v5195, %v6545
        %v6547 = vsel %vm6542, %v6546, 0
        %v6548 = vsel %vm6361, %v6547, 0
        %v6549 = vand.u32 %v6548, 65535
        %v6550 = vshrl.u32 %v6548, 16
        %v6551 = vcvt.s32.f32 %v6549
        %v6552 = vcvt.s32.f32 %v6550
        %6553 = vadd.xlane.f32.xlu0 %v6551
        %v6554 = vpop.xlane.xlu0 %6553
        %6555 = vadd.xlane.f32.xlu0 %v6552
        %v6556 = vpop.xlane.xlu0 %6555
        %v6557 = vcvt.f32.s32 %v6554
        %v6558 = vcvt.f32.s32 %v6556
        %v6559 = vshll.u32 %v6558, 16
        %v6560 = vadd.s32 %v6559, %v6557
        %v6561 = vsub.s32 %v6560, %v6537
        %v6562 = vmul.u32 %v6538, %v6561
        %v6563 = vadd.s32 %v6537, %v6562
        %v6564 = vstv %s5026
        %v6565 = vmul.u32 %v6564, %v6563
        %vm6566 = vcmp.eq.s32.totalorder %v3802, 8
        %v6567 = vsel %vm6566, %v6565, %v6541
        %vm6568 = vcmp.eq.s32.totalorder %v3802, %v6563
        %v6569 = vlaneseq
        %v6570 = vshrl.u32 %v6569, 7
        %v6571 = vsub.s32 %v3802, %v6570
        %v6572 = vrot.slane %v5024, %v6571
        %v6573 = vsel %vm6568, %v6572, 0
        %v6574 = vsel %vm6361, %v6573, 0
        %v6575 = vand.u32 %v6574, 65535
        %v6576 = vshrl.u32 %v6574, 16
        %v6577 = vcvt.s32.f32 %v6575
        %v6578 = vcvt.s32.f32 %v6576
        %6579 = vadd.xlane.f32.xlu0 %v6577
        %v6580 = vpop.xlane.xlu0 %6579
        %6581 = vadd.xlane.f32.xlu0 %v6578
        %v6582 = vpop.xlane.xlu0 %6581
        %v6583 = vcvt.f32.s32 %v6580
        %v6584 = vcvt.f32.s32 %v6582
        %v6585 = vshll.u32 %v6584, 16
        %v6586 = vadd.s32 %v6585, %v6583
        %v6587 = vsub.s32 %v6586, %v6563
        %v6588 = vmul.u32 %v6564, %v6587
        %v6589 = vadd.s32 %v6563, %v6588
        %v6590 = vstv %s4856
        %v6591 = vmul.u32 %v6590, %v6589
        %vm6592 = vcmp.eq.s32.totalorder %v3802, 7
        %v6593 = vsel %vm6592, %v6591, %v6567
        %vm6594 = vcmp.eq.s32.totalorder %v3802, %v6589
        %v6595 = vlaneseq
        %v6596 = vshrl.u32 %v6595, 7
        %v6597 = vsub.s32 %v3802, %v6596
        %v6598 = vrot.slane %v4854, %v6597
        %v6599 = vsel %vm6594, %v6598, 0
        %v6600 = vsel %vm6361, %v6599, 0
        %v6601 = vand.u32 %v6600, 65535
        %v6602 = vshrl.u32 %v6600, 16
        %v6603 = vcvt.s32.f32 %v6601
        %v6604 = vcvt.s32.f32 %v6602
        %6605 = vadd.xlane.f32.xlu0 %v6603
        %v6606 = vpop.xlane.xlu0 %6605
        %6607 = vadd.xlane.f32.xlu0 %v6604
        %v6608 = vpop.xlane.xlu0 %6607
        %v6609 = vcvt.f32.s32 %v6606
        %v6610 = vcvt.f32.s32 %v6608
        %v6611 = vshll.u32 %v6610, 16
        %v6612 = vadd.s32 %v6611, %v6609
        %v6613 = vsub.s32 %v6612, %v6589
        %v6614 = vmul.u32 %v6590, %v6613
        %v6615 = vadd.s32 %v6589, %v6614
        %v6616 = vstv %s4686
        %v6617 = vmul.u32 %v6616, %v6615
        %vm6618 = vcmp.eq.s32.totalorder %v3802, 6
        %v6619 = vsel %vm6618, %v6617, %v6593
        %vm6620 = vcmp.eq.s32.totalorder %v3802, %v6615
        %v6621 = vlaneseq
        %v6622 = vshrl.u32 %v6621, 7
        %v6623 = vsub.s32 %v3802, %v6622
        %v6624 = vrot.slane %v4684, %v6623
        %v6625 = vsel %vm6620, %v6624, 0
        %v6626 = vsel %vm6361, %v6625, 0
        %v6627 = vand.u32 %v6626, 65535
        %v6628 = vshrl.u32 %v6626, 16
        %v6629 = vcvt.s32.f32 %v6627
        %v6630 = vcvt.s32.f32 %v6628
        %6631 = vadd.xlane.f32.xlu0 %v6629
        %v6632 = vpop.xlane.xlu0 %6631
        %6633 = vadd.xlane.f32.xlu0 %v6630
        %v6634 = vpop.xlane.xlu0 %6633
        %v6635 = vcvt.f32.s32 %v6632
        %v6636 = vcvt.f32.s32 %v6634
        %v6637 = vshll.u32 %v6636, 16
        %v6638 = vadd.s32 %v6637, %v6635
        %v6639 = vsub.s32 %v6638, %v6615
        %v6640 = vmul.u32 %v6616, %v6639
        %v6641 = vadd.s32 %v6615, %v6640
        %v6642 = vstv %s4516
        %v6643 = vmul.u32 %v6642, %v6641
        %vm6644 = vcmp.eq.s32.totalorder %v3802, 5
        %v6645 = vsel %vm6644, %v6643, %v6619
        %vm6646 = vcmp.eq.s32.totalorder %v3802, %v6641
        %v6647 = vlaneseq
        %v6648 = vshrl.u32 %v6647, 7
        %v6649 = vsub.s32 %v3802, %v6648
        %v6650 = vrot.slane %v4514, %v6649
        %v6651 = vsel %vm6646, %v6650, 0
        %v6652 = vsel %vm6361, %v6651, 0
        %v6653 = vand.u32 %v6652, 65535
        %v6654 = vshrl.u32 %v6652, 16
        %v6655 = vcvt.s32.f32 %v6653
        %v6656 = vcvt.s32.f32 %v6654
        %6657 = vadd.xlane.f32.xlu0 %v6655
        %v6658 = vpop.xlane.xlu0 %6657
        %6659 = vadd.xlane.f32.xlu0 %v6656
        %v6660 = vpop.xlane.xlu0 %6659
        %v6661 = vcvt.f32.s32 %v6658
        %v6662 = vcvt.f32.s32 %v6660
        %v6663 = vshll.u32 %v6662, 16
        %v6664 = vadd.s32 %v6663, %v6661
        %v6665 = vsub.s32 %v6664, %v6641
        %v6666 = vmul.u32 %v6642, %v6665
        %v6667 = vadd.s32 %v6641, %v6666
        %v6668 = vstv %s4346
        %v6669 = vmul.u32 %v6668, %v6667
        %vm6670 = vcmp.eq.s32.totalorder %v3802, 4
        %v6671 = vsel %vm6670, %v6669, %v6645
        %vm6672 = vcmp.eq.s32.totalorder %v3802, %v6667
        %v6673 = vlaneseq
        %v6674 = vshrl.u32 %v6673, 7
        %v6675 = vsub.s32 %v3802, %v6674
        %v6676 = vrot.slane %v4344, %v6675
        %v6677 = vsel %vm6672, %v6676, 0
        %v6678 = vsel %vm6361, %v6677, 0
        %v6679 = vand.u32 %v6678, 65535
        %v6680 = vshrl.u32 %v6678, 16
        %v6681 = vcvt.s32.f32 %v6679
        %v6682 = vcvt.s32.f32 %v6680
        %6683 = vadd.xlane.f32.xlu0 %v6681
        %v6684 = vpop.xlane.xlu0 %6683
        %6685 = vadd.xlane.f32.xlu0 %v6682
        %v6686 = vpop.xlane.xlu0 %6685
        %v6687 = vcvt.f32.s32 %v6684
        %v6688 = vcvt.f32.s32 %v6686
        %v6689 = vshll.u32 %v6688, 16
        %v6690 = vadd.s32 %v6689, %v6687
        %v6691 = vsub.s32 %v6690, %v6667
        %v6692 = vmul.u32 %v6668, %v6691
        %v6693 = vadd.s32 %v6667, %v6692
        %v6694 = vstv %s4176
        %v6695 = vmul.u32 %v6694, %v6693
        %vm6696 = vcmp.eq.s32.totalorder %v3802, 3
        %v6697 = vsel %vm6696, %v6695, %v6671
        %vm6698 = vcmp.eq.s32.totalorder %v3802, %v6693
        %v6699 = vlaneseq
        %v6700 = vshrl.u32 %v6699, 7
        %v6701 = vsub.s32 %v3802, %v6700
        %v6702 = vrot.slane %v4174, %v6701
        %v6703 = vsel %vm6698, %v6702, 0
        %v6704 = vsel %vm6361, %v6703, 0
        %v6705 = vand.u32 %v6704, 65535
        %v6706 = vshrl.u32 %v6704, 16
        %v6707 = vcvt.s32.f32 %v6705
        %v6708 = vcvt.s32.f32 %v6706
        %6709 = vadd.xlane.f32.xlu0 %v6707
        %v6710 = vpop.xlane.xlu0 %6709
        %6711 = vadd.xlane.f32.xlu0 %v6708
        %v6712 = vpop.xlane.xlu0 %6711
        %v6713 = vcvt.f32.s32 %v6710
        %v6714 = vcvt.f32.s32 %v6712
        %v6715 = vshll.u32 %v6714, 16
        %v6716 = vadd.s32 %v6715, %v6713
        %v6717 = vsub.s32 %v6716, %v6693
        %v6718 = vmul.u32 %v6694, %v6717
        %v6719 = vadd.s32 %v6693, %v6718
        %v6720 = vstv %s4006
        %v6721 = vmul.u32 %v6720, %v6719
        %vm6722 = vcmp.eq.s32.totalorder %v3802, 2
        %v6723 = vsel %vm6722, %v6721, %v6697
        %vm6724 = vcmp.eq.s32.totalorder %v3802, %v6719
        %v6725 = vlaneseq
        %v6726 = vshrl.u32 %v6725, 7
        %v6727 = vsub.s32 %v3802, %v6726
        %v6728 = vrot.slane %v4004, %v6727
        %v6729 = vsel %vm6724, %v6728, 0
        %v6730 = vsel %vm6361, %v6729, 0
        %v6731 = vand.u32 %v6730, 65535
        %v6732 = vshrl.u32 %v6730, 16
        %v6733 = vcvt.s32.f32 %v6731
        %v6734 = vcvt.s32.f32 %v6732
        %6735 = vadd.xlane.f32.xlu0 %v6733
        %v6736 = vpop.xlane.xlu0 %6735
        %6737 = vadd.xlane.f32.xlu0 %v6734
        %v6738 = vpop.xlane.xlu0 %6737
        %v6739 = vcvt.f32.s32 %v6736
        %v6740 = vcvt.f32.s32 %v6738
        %v6741 = vshll.u32 %v6740, 16
        %v6742 = vadd.s32 %v6741, %v6739
        %v6743 = vsub.s32 %v6742, %v6719
        %v6744 = vmul.u32 %v6720, %v6743
        %v6745 = vadd.s32 %v6719, %v6744
        %v6746 = vstv %s3835
        %v6747 = vmul.u32 %v6746, %v6745
        %vm6748 = vcmp.eq.s32.totalorder %v3802, 1
        %v6749 = vsel %vm6748, %v6747, %v6723
        %vm6750 = vcmp.eq.s32.totalorder %v3802, %v6745
        %v6751 = vlaneseq
        %v6752 = vshrl.u32 %v6751, 7
        %v6753 = vsub.s32 %v3802, %v6752
        %v6754 = vrot.slane %v3832, %v6753
        %v6755 = vsel %vm6750, %v6754, 0
        %v6756 = vsel %vm6361, %v6755, 0
        %v6757 = vand.u32 %v6756, 65535
        %v6758 = vshrl.u32 %v6756, 16
        %v6759 = vcvt.s32.f32 %v6757
        %v6760 = vcvt.s32.f32 %v6758
        %6761 = vadd.xlane.f32.xlu0 %v6759
        %v6762 = vpop.xlane.xlu0 %6761
        %6763 = vadd.xlane.f32.xlu0 %v6760
        %v6764 = vpop.xlane.xlu0 %6763
        %v6765 = vcvt.f32.s32 %v6762
        %v6766 = vcvt.f32.s32 %v6764
        %v6767 = vshll.u32 %v6766, 16
        %v6768 = vadd.s32 %v6767, %v6765
        %v6769 = vsub.s32 %v6768, %v6745
        %v6770 = vmul.u32 %v6746, %v6769
        %v6771 = vadd.s32 %v6745, %v6770
        %s6772 = sld [smem:[#allocation3 + %s3833]]
        %v6773 = vstv %s6772
        %v6774 = vmul.u32 %v6773, %v6771
        %vm6775 = vcmp.eq.s32.totalorder %v3802, 0
        %v6776 = vsel %vm6775, %v6774, %v6749
        %vm6777 = vcmask 122880
        %6778 = vst.msk [vmem:[%s774] sm:$0x1] %vm6777, %v6776
        %s6779 = sand.u32 %s589, 1
        %s6780 = scalar_lea.sflag [#allocation5], %s6779
        %s6781 = sand.u32 %s589, 1
        %s6782 = scalar_lea.vmem [#allocation4], %s6781
        // Predicated region
        $region121: #{bert_crf_forward.1} parent=119 // pred_check
          %p6783 = pneg %p599
        $region122: #{bert_crf_forward.1} parent=119 // pred_check_branch
          %6785 = sbr.rel (%p6783) target = $region124
        $region123: #{bert_crf_forward.1} parent=119 // pred_region
          %s6787 = ssub.s32 16, 16
          %6788 = vsyncadd %s6780, %s6787
          %s6789 = smul.addr %s46, 16
          %s6790 = scalar_lea.hbm %s26, %s6789
          %s6792 = sshll.u32 %s6782, 4
          %s6793 = int_to_ptr.vmem [resolvable:$true] %s6792
          %6795 = dma.vmem_to_hbm [thread:$0]  %s6793, 16, %s6790, %s6780
        $region124: #{bert_crf_forward.1} parent=119 // pred_fallthru
          _
      $region120: #{bert_crf_forward.1} parent=5 // pred_fallthru
        _
      %p6796 = scmp.le.s32.totalorder 2, %s41
      // Predicated region
      $region125: #{bert_crf_forward.1} parent=5 // pred_check
        %p6797 = pneg %p6796
      $region126: #{bert_crf_forward.1} parent=5 // pred_check_branch
        %6799 = sbr.rel (%p6797) target = $region128
      $region127: #{bert_crf_forward.1} parent=5 // pred_region
        %s6800 = ssub.s32 %s41, 2
        // Predicated region
        $region129: #{bert_crf_forward.1} parent=127 // pred_check
          %p6801 = pneg %p605
        $region130: #{bert_crf_forward.1} parent=127 // pred_check_branch
          %6803 = sbr.rel (%p6801) target = $region132
        $region131: #{bert_crf_forward.1} parent=127 // pred_region
          %s6804 = sand.u32 %s590, 1
          %s6805 = scalar_lea.sflag [#allocation5], %s6804
          %s6806 = sand.u32 %s590, 1
          %s6807 = scalar_lea.vmem [#allocation4], %s6806
          %6808 = dma.done %s6805, 16
        $region132: #{bert_crf_forward.1} parent=127 // pred_fallthru
          _
      $region128: #{bert_crf_forward.1} parent=5 // pred_fallthru
        _
    $region6: #{bert_crf_forward.1} parent=1 // loop_footer
      %s45 = sadd.s32 1, %s41
    $region7: #{bert_crf_forward.1} parent=1 // loop_footer_branch
      %40 = sbr.rel target = $region3
    $region8: #{bert_crf_forward.1} parent=1 // loop_exit
      _
    %6809 = vsyncpa [#allocation5], 1
    %s6810 = scalar_lea.sflag [#allocation5], 1
    %6811 = vsyncpa %s6810, 1

</llo_original>
